<compile_context>
chip_gen: v7x
topology: tpu7x:2x2x1
jax: 0.10.0
libtpu: 0.0.40
codegen_flags: <defaults>
</compile_context>

<pallas_src>
import functools

import jax
import jax.numpy as jnp
from jax.experimental import pallas as pl
from jax.experimental.pallas import tpu as pltpu


def _log_sigmoid(x):
    # Inputs are already clamped to [-10, 10]; the naive formula is stable in f32.
    return -jnp.log1p(jnp.exp(-x))


def _w2v_kernel(emb_u_ref, emb_all_ref, w_ref, b_ref,
                loss_ref, fix_ref, *, batch, tile_b):
    """One batch tile: partial loss sum + per-row predicted fix."""
    tile = pl.program_id(0)

    emb_u = emb_u_ref[...].astype(jnp.float32)        # (TB, D)
    emb_all = emb_all_ref[...].astype(jnp.float32)    # (TB, 1+N, D): [context | negatives]
    w = w_ref[...].astype(jnp.float32)                # (1, D)
    b = b_ref[0, 0].astype(jnp.float32)               # scalar (SMEM)

    # duration_regression: Linear(D, 1) on the VPU (reuses emb_u already in
    # vregs; avoids a 1-column MXU matmul and any transpose of w).
    fix = jnp.sum(emb_u * w, axis=-1, keepdims=True) + b           # (TB, 1)
    fix_ref[...] = fix.astype(fix_ref.dtype)
    # NOTE: fix stays (TB, 1) (sublane layout).  Making it lane-dense would need
    # an in-kernel sublane->lane transpose that costs more than the tiny
    # (TB*4 B/tile) masked store it would save.

    # Validity mask for the ragged tail tile (batch % tile_b != 0).
    valid = jnp.clip(batch - tile * tile_b, 0, tile_b)
    row_ids = jax.lax.broadcasted_iota(jnp.int32, (tile_b, 1), 0)
    row_mask = row_ids < valid                                     # (TB, 1)

    # Fused positive + negative scores: one batched mat-vec over the combined
    # (1+N) v-embeddings, then one clamp/logsigmoid chain with a sign select.
    #   col 0   : -logsigmoid(+clip(s))   (positive/context term)
    #   cols 1..: -logsigmoid(-clip(s))   (negative-sampling terms)
    s = jnp.sum(emb_all * emb_u[:, None, :], axis=-1)              # (TB, 1+N)
    s = jnp.clip(s, -10.0, 10.0)
    col_ids = jax.lax.broadcasted_iota(jnp.int32, s.shape, 1)
    signed = jnp.where(col_ids == 0, s, -s)
    contrib = -_log_sigmoid(signed)                                # (TB, 1+N)
    loss_rows = jnp.sum(contrib, axis=-1, keepdims=True)           # (TB, 1)
    part = jnp.sum(jnp.where(row_mask, loss_rows, 0.0))

    # Per-tile partial loss sum, written lane-broadcast into an aligned block.
    loss_ref[...] = jnp.broadcast_to(part, (1, 1, 128)).astype(jnp.float32)


def _choose_tile_b(B, N, D, itemsize):
    """Pick a batch-tile size from VMEM capacity (generation-aware)."""
    try:
        info = pltpu.get_tpu_info()
        vmem_cap = int(getattr(info, "vmem_capacity_bytes", 64 * 1024 * 1024))
    except Exception:  # pragma: no cover - conservative fallback
        vmem_cap = 64 * 1024 * 1024  # v7x per-TC size = safe lower bound
    # Budget for the double-buffered streaming inputs, with headroom.
    budget = min(vmem_cap // 4, 16 * 1024 * 1024)
    n1_pad = ((N + 1 + 7) // 8) * 8     # sublane padding of the (1+N, D) tiles
    d_pad = ((D + 127) // 128) * 128    # lane padding
    bytes_per_example = (d_pad + n1_pad * d_pad) * itemsize  # emb_u + fused emb_all
    tb = budget // (2 * bytes_per_example)                   # x2: double buffering
    tb = max(8, min(2048, (tb // 8) * 8))
    tb = min(tb, ((B + 7) // 8) * 8)    # never exceed the (padded) batch
    return int(tb)


def word2vec_forward(u_table, v_table, lin_w, lin_b,
                     target_word, context_words, neg_words, *, tile_b=None):
    """Skip-gram Word2Vec forward. Returns (scalar loss, predicted_fix (B,))."""
    B = target_word.shape[0]
    N = neg_words.shape[1]
    D = u_table.shape[1]
    itemsize = jnp.dtype(u_table.dtype).itemsize

    tb = tile_b if tile_b is not None else _choose_tile_b(B, N, D, itemsize)
    tb = max(8, (int(tb) // 8) * 8)
    num_tiles = (B + tb - 1) // tb
    b_pad = num_tiles * tb
    pad = b_pad - B

    # Pad the index arrays (cheap) so the grid tiles evenly; padded rows are
    # masked out of the loss in-kernel and sliced off the fix output below.
    tw = jnp.pad(target_word, (0, pad)) if pad else target_word
    cw = jnp.pad(context_words, (0, pad)) if pad else context_words
    nw = jnp.pad(neg_words, ((0, pad), (0, 0))) if pad else neg_words

    # Single v_table gather for [context | negatives]: one (B, 1+N, D) stream
    # instead of separate (B, D) + (B, N, D) streams.  With N=6 the sublane dim
    # pads to 8 either way, so the context row rides in otherwise-wasted
    # padding -> one fewer DMA stream and ~10% fewer padded HBM/VMEM bytes.
    v_idx = jnp.concatenate([cw[:, None], nw], axis=1)       # (B_pad, 1+N)

    # Embedding lookups stay in the wrapper (XLA fused gather).
    # TODO(synk): fusing the gathers into the kernel (pl.ANY tables + per-row
    # make_async_copy driven by scalar-prefetched indices) loses at this D —
    # ~D*itemsize-byte per-row DMAs are descriptor-bound vs. XLA's gather;
    # revisit with a row-blocked gather for large D.
    emb_u = jnp.take(u_table, tw, axis=0)                    # (B_pad, D)
    emb_all = jnp.take(v_table, v_idx, axis=0)               # (B_pad, 1+N, D)

    w2 = lin_w.reshape(1, D)                      # kept in table dtype; cast in-kernel
    b2 = lin_b.reshape(1, 1).astype(jnp.float32)  # scalar -> SMEM

    kernel = functools.partial(_w2v_kernel, batch=B, tile_b=tb)
    n1 = N + 1

    loss_parts, fix = pl.pallas_call(
        kernel,
        grid=(num_tiles,),
        in_specs=[
            pl.BlockSpec((tb, D), lambda i: (i, 0)),
            pl.BlockSpec((tb, n1, D), lambda i: (i, 0, 0)),
            pl.BlockSpec((1, D), lambda i: (0, 0)),
            pl.BlockSpec(memory_space=pltpu.MemorySpace.SMEM),
        ],
        out_specs=[
            pl.BlockSpec((1, 1, 128), lambda i: (i, 0, 0)),   # per-tile loss partial
            pl.BlockSpec((tb, 1), lambda i: (i, 0)),          # per-row predicted fix
        ],
        out_shape=[
            jax.ShapeDtypeStruct((num_tiles, 1, 128), jnp.float32),
            jax.ShapeDtypeStruct((b_pad, 1), jnp.float32),
        ],
        compiler_params=pltpu.CompilerParams(
            dimension_semantics=("parallel",),        # megacore-shardable on v7x
            vmem_limit_bytes=32 * 1024 * 1024,        # explicit, fits all generations
        ),
    )(emb_u, emb_all, w2, b2)

    loss = jnp.sum(loss_parts[:, 0, 0]) / B     # mean over the *global* batch
    return loss, fix[:B, 0]                     # .squeeze() as in torch (num_classes=1)


def _reference_forward(u_table, v_table, lin_w, lin_b,
                       target_word, context_words, neg_words):
    emb_u = jnp.take(u_table, target_word, axis=0)
    emb_v = jnp.take(v_table, context_words, axis=0)
    emb_neg = jnp.take(v_table, neg_words, axis=0)
    fix = (emb_u @ lin_w.reshape(1, -1).T + lin_b.reshape(1, 1))[:, 0]
    score = jnp.clip(jnp.sum(emb_u * emb_v, axis=1), -10, 10)
    score = -jax.nn.log_sigmoid(score)
    neg = jnp.clip(jnp.einsum('bnd,bd->bn', emb_neg, emb_u), -10, 10)
    neg = -jnp.sum(jax.nn.log_sigmoid(-neg), axis=1)
    return jnp.mean(score + neg), fix


if __name__ == "__main__":
    # Small, module-consistent shapes (lane-friendly D).
    vocab_size, emb_dim, num_classes = 256, 128, 1
    B, N = 384, 6  # batch, negatives per example

    key = jax.random.PRNGKey(0)
    k_u, k_v, k_w, k_b, k_t, k_c, k_n = jax.random.split(key, 7)

    initrange = 1.0 / emb_dim
    # Deterministic parameter init (shapes follow Word2Vec.__init__).
    # NOTE: v_embeddings is init'd to 0 in the torch module; small nonzero
    # values are used here so the kernel's math is exercised meaningfully.
    u_table = jax.random.uniform(k_u, (vocab_size, emb_dim), jnp.float32,
                                 -initrange, initrange)
    v_table = jax.random.uniform(k_v, (vocab_size, emb_dim), jnp.float32,
                                 -initrange, initrange)
    # padding_idx=0 -> zero row 0.
    u_table = u_table.at[0].set(0.0)
    v_table = v_table.at[0].set(0.0)
    lin_w = jax.random.uniform(k_w, (num_classes, emb_dim), jnp.float32, -0.1, 0.1)
    lin_b = jax.random.uniform(k_b, (num_classes,), jnp.float32, -0.1, 0.1)

    target_word = jax.random.randint(k_t, (B,), 1, vocab_size)
    context_words = jax.random.randint(k_c, (B,), 1, vocab_size)
    neg_words = jax.random.randint(k_n, (B, N), 1, vocab_size)

    ref_loss, ref_fix = _reference_forward(u_table, v_table, lin_w, lin_b,
                                           target_word, context_words, neg_words)

    # 1) Auto tile size (generation-aware; single tile at this small batch).
    loss, fix = word2vec_forward(u_table, v_table, lin_w, lin_b,
                                 target_word, context_words, neg_words)
    jax.block_until_ready((loss, fix))
    assert jnp.allclose(loss, ref_loss, atol=1e-5, rtol=1e-5)
    assert jnp.allclose(fix, ref_fix, atol=1e-5, rtol=1e-5)

    # 2) Forced small tile: exercises multi-tile pipelining + ragged-tail mask
    #    (B=384, tb=256 -> 2 tiles, second tile only half valid).
    loss_t, fix_t = word2vec_forward(u_table, v_table, lin_w, lin_b,
                                     target_word, context_words, neg_words,
                                     tile_b=256)
    jax.block_until_ready((loss_t, fix_t))
    assert jnp.allclose(loss_t, ref_loss, atol=1e-5, rtol=1e-5)
    assert jnp.allclose(fix_t, ref_fix, atol=1e-5, rtol=1e-5)

    print("KERNEL_OK")
</pallas_src>

<mosaic_0001>
module attributes {stable_mosaic.version = 11 : i64} {
  func.func @_w2v_kernel(%arg0: i32, %arg1: memref<384x128xf32, #tpu.memory_space<vmem>>, %arg2: memref<384x7x128xf32, #tpu.memory_space<vmem>>, %arg3: memref<1x128xf32, #tpu.memory_space<vmem>>, %arg4: memref<1x1xf32, #tpu.memory_space<smem>>, %arg5: memref<1x1x128xf32, #tpu.memory_space<vmem>>, %arg6: memref<384x1xf32, #tpu.memory_space<vmem>>) attributes {dimension_semantics = [#tpu.dimension_semantics<parallel>], iteration_bounds = array<i64: 1>, scalar_prefetch = 0 : i64, scratch_operands = 0 : i64, tpu.core_type = #tpu.core_type<tc>, window_params = [{transform_indices = @transform_0, window_bounds = array<i64: 384, 128>}, {transform_indices = @transform_1, window_bounds = array<i64: 384, 7, 128>}, {pipeline_mode = #tpu.pipeline_mode<synchronous>, transform_indices = @transform_2, window_bounds = array<i64: 1, 128>}, {transform_indices = @transform_3, window_bounds = array<i64: 1, 1>}, {transform_indices = @transform_4, window_bounds = array<i64: 1, 1, 128>}, {transform_indices = @transform_5, window_bounds = array<i64: 384, 1>}]} {
    %c0 = arith.constant 0 : index
    %c0_0 = arith.constant 0 : index
    %0 = vector.load %arg1[%c0, %c0_0] : memref<384x128xf32, #tpu.memory_space<vmem>>, vector<384x128xf32>
    %c0_1 = arith.constant 0 : index
    %c0_2 = arith.constant 0 : index
    %c0_3 = arith.constant 0 : index
    %1 = vector.load %arg2[%c0_1, %c0_2, %c0_3] : memref<384x7x128xf32, #tpu.memory_space<vmem>>, vector<384x7x128xf32>
    %c0_4 = arith.constant 0 : index
    %c0_5 = arith.constant 0 : index
    %2 = vector.load %arg3[%c0_4, %c0_5] : memref<1x128xf32, #tpu.memory_space<vmem>>, vector<1x128xf32>
    %c0_6 = arith.constant 0 : index
    %c0_7 = arith.constant 0 : index
    %3 = memref.load %arg4[%c0_6, %c0_7] : memref<1x1xf32, #tpu.memory_space<smem>>
    %4 = vector.broadcast %2 : vector<1x128xf32> to vector<384x128xf32>
    %5 = arith.mulf %0, %4 : vector<384x128xf32>
    %cst = arith.constant dense<0.000000e+00> : vector<384xf32>
    %6 = vector.multi_reduction <add>, %5, %cst [1] : vector<384x128xf32> to vector<384xf32>
    %7 = vector.shape_cast %6 : vector<384xf32> to vector<384x1xf32>
    %8 = vector.broadcast %3 : f32 to vector<384x1xf32>
    %9 = arith.addf %7, %8 : vector<384x1xf32>
    %c0_8 = arith.constant 0 : index
    %c0_9 = arith.constant 0 : index
    %10 = vector.load %arg6[%c0_8, %c0_9] : memref<384x1xf32, #tpu.memory_space<vmem>>, vector<384x1xf32>
    tpu.vector_store %arg6[%c0_8, %c0_9], %9 {strides = array<i32>} : memref<384x1xf32, #tpu.memory_space<vmem>>, vector<384x1xf32>,
    %c384_i32 = arith.constant 384 : i32
    %11 = arith.muli %arg0, %c384_i32 : i32
    %c384_i32_10 = arith.constant 384 : i32
    %12 = arith.subi %c384_i32_10, %11 : i32
    %c0_i32 = arith.constant 0 : i32
    %c384_i32_11 = arith.constant 384 : i32
    %13 = arith.maxsi %c0_i32, %12 : i32
    %14 = arith.minsi %c384_i32_11, %13 : i32
    %15 = tpu.iota {dimensions = array<i32: 0>} : vector<384x1xi32>
    %16 = vector.broadcast %14 : i32 to vector<384x1xi32>
    %17 = arith.cmpi slt, %15, %16 : vector<384x1xi32>
    %18 = vector.shape_cast %0 : vector<384x128xf32> to vector<384x1x128xf32>
    %19 = vector.broadcast %18 : vector<384x1x128xf32> to vector<384x7x128xf32>
    %20 = arith.mulf %1, %19 : vector<384x7x128xf32>
    %cst_12 = arith.constant dense<0.000000e+00> : vector<384x7xf32>
    %21 = vector.multi_reduction <add>, %20, %cst_12 [2] : vector<384x7x128xf32> to vector<384x7xf32>
    %cst_13 = arith.constant -1.000000e+01 : f32
    %cst_14 = arith.constant 1.000000e+01 : f32
    %22 = vector.broadcast %cst_13 : f32 to vector<384x7xf32>
    %23 = arith.maximumf %22, %21 : vector<384x7xf32>
    %24 = vector.broadcast %cst_14 : f32 to vector<384x7xf32>
    %25 = arith.minimumf %24, %23 : vector<384x7xf32>
    %26 = tpu.iota {dimensions = array<i32: 1>} : vector<384x7xi32>
    %c0_i32_15 = arith.constant 0 : i32
    %27 = vector.broadcast %c0_i32_15 : i32 to vector<384x7xi32>
    %28 = arith.cmpi eq, %26, %27 : vector<384x7xi32>
    %cst_16 = arith.constant 0.000000e+00 : f32
    %29 = vector.broadcast %cst_16 : f32 to vector<384x7xf32>
    %30 = arith.subf %29, %25 : vector<384x7xf32>
    %31 = arith.select %28, %25, %30 : vector<384x7xi1>, vector<384x7xf32>
    %cst_17 = arith.constant 0.000000e+00 : f32
    %32 = vector.broadcast %cst_17 : f32 to vector<384x7xf32>
    %33 = arith.subf %32, %31 : vector<384x7xf32>
    %34 = math.exp %33 : vector<384x7xf32>
    %35 = math.log1p %34 : vector<384x7xf32>
    %cst_18 = arith.constant 0.000000e+00 : f32
    %36 = vector.broadcast %cst_18 : f32 to vector<384x7xf32>
    %37 = arith.subf %36, %35 : vector<384x7xf32>
    %cst_19 = arith.constant 0.000000e+00 : f32
    %38 = vector.broadcast %cst_19 : f32 to vector<384x7xf32>
    %39 = arith.subf %38, %37 : vector<384x7xf32>
    %cst_20 = arith.constant dense<0.000000e+00> : vector<384xf32>
    %40 = vector.multi_reduction <add>, %39, %cst_20 [1] : vector<384x7xf32> to vector<384xf32>
    %41 = vector.shape_cast %40 : vector<384xf32> to vector<384x1xf32>
    %cst_21 = arith.constant 0.000000e+00 : f32
    %42 = vector.broadcast %cst_21 : f32 to vector<384x1xf32>
    %43 = arith.select %17, %41, %42 : vector<384x1xi1>, vector<384x1xf32>
    %44 = vector.shape_cast %43 : vector<384x1xf32> to vector<1x384x1xf32>
    %cst_22 = arith.constant dense<0.000000e+00> : vector<1xf32>
    %45 = vector.multi_reduction <add>, %44, %cst_22 [1, 2] : vector<1x384x1xf32> to vector<1xf32>
    %46 = vector.shape_cast %45 : vector<1xf32> to vector<1x1x1xf32>
    %47 = vector.extract %46[0, 0, 0] : f32 from vector<1x1x1xf32>
    %48 = vector.broadcast %47 : f32 to vector<1x1x128xf32>
    %c0_23 = arith.constant 0 : index
    %c0_24 = arith.constant 0 : index
    %c0_25 = arith.constant 0 : index
    %49 = vector.load %arg5[%c0_23, %c0_24, %c0_25] : memref<1x1x128xf32, #tpu.memory_space<vmem>>, vector<1x1x128xf32>
    tpu.vector_store %arg5[%c0_23, %c0_24, %c0_25], %48 {strides = array<i32>} : memref<1x1x128xf32, #tpu.memory_space<vmem>>, vector<1x1x128xf32>,
    return
  }
  func.func @transform_0(%arg0: i32) -> (i32, i32) {
    %c0_i32 = arith.constant 0 : i32
    %c0_i32_0 = arith.constant 0 : i32
    return %arg0, %c0_i32 : i32, i32
  }
  func.func @transform_1(%arg0: i32) -> (i32, i32, i32) {
    %c0_i32 = arith.constant 0 : i32
    %c0_i32_0 = arith.constant 0 : i32
    %c0_i32_1 = arith.constant 0 : i32
    return %arg0, %c0_i32, %c0_i32_0 : i32, i32, i32
  }
  func.func @transform_2(%arg0: i32) -> (i32, i32) {
    %c0_i32 = arith.constant 0 : i32
    %c0_i32_0 = arith.constant 0 : i32
    %c0_i32_1 = arith.constant 0 : i32
    return %c0_i32, %c0_i32_0 : i32, i32
  }
  func.func @transform_3(%arg0: i32) -> (i32, i32) {
    %c0_i32 = arith.constant 0 : i32
    %c0_i32_0 = arith.constant 0 : i32
    %c0_i32_1 = arith.constant 0 : i32
    return %c0_i32, %c0_i32_0 : i32, i32
  }
  func.func @transform_4(%arg0: i32) -> (i32, i32, i32) {
    %c0_i32 = arith.constant 0 : i32
    %c0_i32_0 = arith.constant 0 : i32
    %c0_i32_1 = arith.constant 0 : i32
    return %arg0, %c0_i32, %c0_i32_0 : i32, i32, i32
  }
  func.func @transform_5(%arg0: i32) -> (i32, i32) {
    %c0_i32 = arith.constant 0 : i32
    %c0_i32_0 = arith.constant 0 : i32
    return %arg0, %c0_i32 : i32, i32
  }
}

</mosaic_0001>

<llo_original>
// kernel: tpu_custom_call.1
$region0: #{tpu_custom_call.1}
  #allocation0 [shape = 'u32[]', space=smem, size = 0x4, offset = 0x4, fixed_abs, tag = 'smem constant byte address 0x4 - core index']
  #allocation1 [shape = 'u32[144,128]{1,0:T(1,128)}', space=vmem, size = 0x12000, scoped, tag = 'internal scratch']
  #allocation2 [shape = 'f32[1,1]{1,0:T(1,128)S(6)}', space=smem, size = 0x200, scoped, tag = 'scoped memory for tpu_custom_call.1']
  %s0 = inlined_call_operand.vmem [shape: f32[384,128], index: 0, kind: input, shape index: {}]
  %s1 = inlined_call_operand.vmem [shape: f32[384,7,128], index: 1, kind: input, shape index: {}]
  %s2 = inlined_call_operand.vmem [shape: f32[1,128], index: 2, kind: input, shape index: {}]
  %s3 = inlined_call_operand.<no memory space> [shape: f32[1,1], index: 3, kind: input, shape index: {}]
  %s4 = inlined_call_operand.hbm [shape: f32[1,1,128], index: 4, kind: output, shape index: {0}]
  %s5 = inlined_call_operand.vmem [shape: f32[384,1], index: 5, kind: output, shape index: {1}]
  %6 = xla_tuple %s4, %s5
  %s7 = sld [smem:[#allocation0]]
  $region34: #{tpu_custom_call.1} parent=0
    _
  %s9 = ssub.s32 1, %s7
  %s10 = scalar_select 0, %s9, %s7
  %11 = sst [smem:[#allocation2]] %s3
  $region1: #{tpu_custom_call.1} parent=0
    #allocation3 [shape = 'u8[512]{0}', space=vmem, size = 0x400, scoped, tag = 'output window, operand 0, single buffered']
    #allocation4 [shape = 's32[1]{0}', space=sflag, size = 0x4, scoped, tag = 'scoped memory for tpu_custom_call.1']
    %12 = vsyncpa [#allocation4], 0
    // Predicated region
    $region2: #{tpu_custom_call.1} parent=1 // pred_check
      _
    $region3: #{tpu_custom_call.1} parent=1 // pred_check_branch
      %14 = sbr.rel (0) target = $region5
    $region4: #{tpu_custom_call.1} parent=1 // pred_region
      _
    $region5: #{tpu_custom_call.1} parent=1 // pred_fallthru
      _
    // Predicated region
    $region6: #{tpu_custom_call.1} parent=1 // pred_check
      _
    $region7: #{tpu_custom_call.1} parent=1 // pred_check_branch
      %16 = sbr.rel (0) target = $region9
    $region8: #{tpu_custom_call.1} parent=1 // pred_region
      _
    $region9: #{tpu_custom_call.1} parent=1 // pred_fallthru
      _
    // Predicated region
    $region10: #{tpu_custom_call.1} parent=1 // pred_check
      _
    $region11: #{tpu_custom_call.1} parent=1 // pred_check_branch
      %18 = sbr.rel (0) target = $region13
    $region12: #{tpu_custom_call.1} parent=1 // pred_region
      _
    $region13: #{tpu_custom_call.1} parent=1 // pred_fallthru
      _
    // Predicated region
    $region14: #{tpu_custom_call.1} parent=1 // pred_check
      _
    $region15: #{tpu_custom_call.1} parent=1 // pred_check_branch
      %20 = sbr.rel (0) target = $region17
    $region16: #{tpu_custom_call.1} parent=1 // pred_region
      _
    $region17: #{tpu_custom_call.1} parent=1 // pred_fallthru
      _
    %v21 = vld [vmem:[%s0] sm:$0xff]
    %v22 = vld [vmem:[%s0 + $0x8] sm:$0xff]
    %v23 = vld [vmem:[%s0 + $0x10] sm:$0xff]
    %v24 = vld [vmem:[%s0 + $0x18] sm:$0xff]
    %v25 = vld [vmem:[%s0 + $0x20] sm:$0xff]
    %v26 = vld [vmem:[%s0 + $0x28] sm:$0xff]
    %v27 = vld [vmem:[%s0 + $0x30] sm:$0xff]
    %v28 = vld [vmem:[%s0 + $0x38] sm:$0xff]
    %v29 = vld [vmem:[%s0 + $0x40] sm:$0xff]
    %v30 = vld [vmem:[%s0 + $0x48] sm:$0xff]
    %v31 = vld [vmem:[%s0 + $0x50] sm:$0xff]
    %v32 = vld [vmem:[%s0 + $0x58] sm:$0xff]
    %v33 = vld [vmem:[%s0 + $0x60] sm:$0xff]
    %v34 = vld [vmem:[%s0 + $0x68] sm:$0xff]
    %v35 = vld [vmem:[%s0 + $0x70] sm:$0xff]
    %v36 = vld [vmem:[%s0 + $0x78] sm:$0xff]
    %v37 = vld [vmem:[%s0 + $0x80] sm:$0xff]
    %v38 = vld [vmem:[%s0 + $0x88] sm:$0xff]
    %v39 = vld [vmem:[%s0 + $0x90] sm:$0xff]
    %v40 = vld [vmem:[%s0 + $0x98] sm:$0xff]
    %v41 = vld [vmem:[%s0 + $0xa0] sm:$0xff]
    %v42 = vld [vmem:[%s0 + $0xa8] sm:$0xff]
    %v43 = vld [vmem:[%s0 + $0xb0] sm:$0xff]
    %v44 = vld [vmem:[%s0 + $0xb8] sm:$0xff]
    %v45 = vld [vmem:[%s0 + $0xc0] sm:$0xff]
    %v46 = vld [vmem:[%s0 + $0xc8] sm:$0xff]
    %v47 = vld [vmem:[%s0 + $0xd0] sm:$0xff]
    %v48 = vld [vmem:[%s0 + $0xd8] sm:$0xff]
    %v49 = vld [vmem:[%s0 + $0xe0] sm:$0xff]
    %v50 = vld [vmem:[%s0 + $0xe8] sm:$0xff]
    %v51 = vld [vmem:[%s0 + $0xf0] sm:$0xff]
    %v52 = vld [vmem:[%s0 + $0xf8] sm:$0xff]
    %v53 = vld [vmem:[%s0 + $0x100] sm:$0xff]
    %v54 = vld [vmem:[%s0 + $0x108] sm:$0xff]
    %v55 = vld [vmem:[%s0 + $0x110] sm:$0xff]
    %v56 = vld [vmem:[%s0 + $0x118] sm:$0xff]
    %v57 = vld [vmem:[%s0 + $0x120] sm:$0xff]
    %v58 = vld [vmem:[%s0 + $0x128] sm:$0xff]
    %v59 = vld [vmem:[%s0 + $0x130] sm:$0xff]
    %v60 = vld [vmem:[%s0 + $0x138] sm:$0xff]
    %v61 = vld [vmem:[%s0 + $0x140] sm:$0xff]
    %v62 = vld [vmem:[%s0 + $0x148] sm:$0xff]
    %v63 = vld [vmem:[%s0 + $0x150] sm:$0xff]
    %v64 = vld [vmem:[%s0 + $0x158] sm:$0xff]
    %v65 = vld [vmem:[%s0 + $0x160] sm:$0xff]
    %v66 = vld [vmem:[%s0 + $0x168] sm:$0xff]
    %v67 = vld [vmem:[%s0 + $0x170] sm:$0xff]
    %v68 = vld [vmem:[%s0 + $0x178] sm:$0xff]
    %v69 = vld [vmem:[%s1] sm:$0x7f]
    %v70 = vld [vmem:[%s1 + $0x8] sm:$0x7f]
    %v71 = vld [vmem:[%s1 + $0x10] sm:$0x7f]
    %v72 = vld [vmem:[%s1 + $0x18] sm:$0x7f]
    %v73 = vld [vmem:[%s1 + $0x20] sm:$0x7f]
    %v74 = vld [vmem:[%s1 + $0x28] sm:$0x7f]
    %v75 = vld [vmem:[%s1 + $0x30] sm:$0x7f]
    %v76 = vld [vmem:[%s1 + $0x38] sm:$0x7f]
    %v77 = vld [vmem:[%s1 + $0x40] sm:$0x7f]
    %v78 = vld [vmem:[%s1 + $0x48] sm:$0x7f]
    %v79 = vld [vmem:[%s1 + $0x50] sm:$0x7f]
    %v80 = vld [vmem:[%s1 + $0x58] sm:$0x7f]
    %v81 = vld [vmem:[%s1 + $0x60] sm:$0x7f]
    %v82 = vld [vmem:[%s1 + $0x68] sm:$0x7f]
    %v83 = vld [vmem:[%s1 + $0x70] sm:$0x7f]
    %v84 = vld [vmem:[%s1 + $0x78] sm:$0x7f]
    %v85 = vld [vmem:[%s1 + $0x80] sm:$0x7f]
    %v86 = vld [vmem:[%s1 + $0x88] sm:$0x7f]
    %v87 = vld [vmem:[%s1 + $0x90] sm:$0x7f]
    %v88 = vld [vmem:[%s1 + $0x98] sm:$0x7f]
    %v89 = vld [vmem:[%s1 + $0xa0] sm:$0x7f]
    %v90 = vld [vmem:[%s1 + $0xa8] sm:$0x7f]
    %v91 = vld [vmem:[%s1 + $0xb0] sm:$0x7f]
    %v92 = vld [vmem:[%s1 + $0xb8] sm:$0x7f]
    %v93 = vld [vmem:[%s1 + $0xc0] sm:$0x7f]
    %v94 = vld [vmem:[%s1 + $0xc8] sm:$0x7f]
    %v95 = vld [vmem:[%s1 + $0xd0] sm:$0x7f]
    %v96 = vld [vmem:[%s1 + $0xd8] sm:$0x7f]
    %v97 = vld [vmem:[%s1 + $0xe0] sm:$0x7f]
    %v98 = vld [vmem:[%s1 + $0xe8] sm:$0x7f]
    %v99 = vld [vmem:[%s1 + $0xf0] sm:$0x7f]
    %v100 = vld [vmem:[%s1 + $0xf8] sm:$0x7f]
    %v101 = vld [vmem:[%s1 + $0x100] sm:$0x7f]
    %v102 = vld [vmem:[%s1 + $0x108] sm:$0x7f]
    %v103 = vld [vmem:[%s1 + $0x110] sm:$0x7f]
    %v104 = vld [vmem:[%s1 + $0x118] sm:$0x7f]
    %v105 = vld [vmem:[%s1 + $0x120] sm:$0x7f]
    %v106 = vld [vmem:[%s1 + $0x128] sm:$0x7f]
    %v107 = vld [vmem:[%s1 + $0x130] sm:$0x7f]
    %v108 = vld [vmem:[%s1 + $0x138] sm:$0x7f]
    %v109 = vld [vmem:[%s1 + $0x140] sm:$0x7f]
    %v110 = vld [vmem:[%s1 + $0x148] sm:$0x7f]
    %v111 = vld [vmem:[%s1 + $0x150] sm:$0x7f]
    %v112 = vld [vmem:[%s1 + $0x158] sm:$0x7f]
    %v113 = vld [vmem:[%s1 + $0x160] sm:$0x7f]
    %v114 = vld [vmem:[%s1 + $0x168] sm:$0x7f]
    %v115 = vld [vmem:[%s1 + $0x170] sm:$0x7f]
    %v116 = vld [vmem:[%s1 + $0x178] sm:$0x7f]
    %v117 = vld [vmem:[%s1 + $0x180] sm:$0x7f]
    %v118 = vld [vmem:[%s1 + $0x188] sm:$0x7f]
    %v119 = vld [vmem:[%s1 + $0x190] sm:$0x7f]
    %v120 = vld [vmem:[%s1 + $0x198] sm:$0x7f]
    %v121 = vld [vmem:[%s1 + $0x1a0] sm:$0x7f]
    %v122 = vld [vmem:[%s1 + $0x1a8] sm:$0x7f]
    %v123 = vld [vmem:[%s1 + $0x1b0] sm:$0x7f]
    %v124 = vld [vmem:[%s1 + $0x1b8] sm:$0x7f]
    %v125 = vld [vmem:[%s1 + $0x1c0] sm:$0x7f]
    %v126 = vld [vmem:[%s1 + $0x1c8] sm:$0x7f]
    %v127 = vld [vmem:[%s1 + $0x1d0] sm:$0x7f]
    %v128 = vld [vmem:[%s1 + $0x1d8] sm:$0x7f]
    %v129 = vld [vmem:[%s1 + $0x1e0] sm:$0x7f]
    %v130 = vld [vmem:[%s1 + $0x1e8] sm:$0x7f]
    %v131 = vld [vmem:[%s1 + $0x1f0] sm:$0x7f]
    %v132 = vld [vmem:[%s1 + $0x1f8] sm:$0x7f]
    %v133 = vld [vmem:[%s1 + $0x200] sm:$0x7f]
    %v134 = vld [vmem:[%s1 + $0x208] sm:$0x7f]
    %v135 = vld [vmem:[%s1 + $0x210] sm:$0x7f]
    %v136 = vld [vmem:[%s1 + $0x218] sm:$0x7f]
    %v137 = vld [vmem:[%s1 + $0x220] sm:$0x7f]
    %v138 = vld [vmem:[%s1 + $0x228] sm:$0x7f]
    %v139 = vld [vmem:[%s1 + $0x230] sm:$0x7f]
    %v140 = vld [vmem:[%s1 + $0x238] sm:$0x7f]
    %v141 = vld [vmem:[%s1 + $0x240] sm:$0x7f]
    %v142 = vld [vmem:[%s1 + $0x248] sm:$0x7f]
    %v143 = vld [vmem:[%s1 + $0x250] sm:$0x7f]
    %v144 = vld [vmem:[%s1 + $0x258] sm:$0x7f]
    %v145 = vld [vmem:[%s1 + $0x260] sm:$0x7f]
    %v146 = vld [vmem:[%s1 + $0x268] sm:$0x7f]
    %v147 = vld [vmem:[%s1 + $0x270] sm:$0x7f]
    %v148 = vld [vmem:[%s1 + $0x278] sm:$0x7f]
    %v149 = vld [vmem:[%s1 + $0x280] sm:$0x7f]
    %v150 = vld [vmem:[%s1 + $0x288] sm:$0x7f]
    %v151 = vld [vmem:[%s1 + $0x290] sm:$0x7f]
    %v152 = vld [vmem:[%s1 + $0x298] sm:$0x7f]
    %v153 = vld [vmem:[%s1 + $0x2a0] sm:$0x7f]
    %v154 = vld [vmem:[%s1 + $0x2a8] sm:$0x7f]
    %v155 = vld [vmem:[%s1 + $0x2b0] sm:$0x7f]
    %v156 = vld [vmem:[%s1 + $0x2b8] sm:$0x7f]
    %v157 = vld [vmem:[%s1 + $0x2c0] sm:$0x7f]
    %v158 = vld [vmem:[%s1 + $0x2c8] sm:$0x7f]
    %v159 = vld [vmem:[%s1 + $0x2d0] sm:$0x7f]
    %v160 = vld [vmem:[%s1 + $0x2d8] sm:$0x7f]
    %v161 = vld [vmem:[%s1 + $0x2e0] sm:$0x7f]
    %v162 = vld [vmem:[%s1 + $0x2e8] sm:$0x7f]
    %v163 = vld [vmem:[%s1 + $0x2f0] sm:$0x7f]
    %v164 = vld [vmem:[%s1 + $0x2f8] sm:$0x7f]
    %v165 = vld [vmem:[%s1 + $0x300] sm:$0x7f]
    %v166 = vld [vmem:[%s1 + $0x308] sm:$0x7f]
    %v167 = vld [vmem:[%s1 + $0x310] sm:$0x7f]
    %v168 = vld [vmem:[%s1 + $0x318] sm:$0x7f]
    %v169 = vld [vmem:[%s1 + $0x320] sm:$0x7f]
    %v170 = vld [vmem:[%s1 + $0x328] sm:$0x7f]
    %v171 = vld [vmem:[%s1 + $0x330] sm:$0x7f]
    %v172 = vld [vmem:[%s1 + $0x338] sm:$0x7f]
    %v173 = vld [vmem:[%s1 + $0x340] sm:$0x7f]
    %v174 = vld [vmem:[%s1 + $0x348] sm:$0x7f]
    %v175 = vld [vmem:[%s1 + $0x350] sm:$0x7f]
    %v176 = vld [vmem:[%s1 + $0x358] sm:$0x7f]
    %v177 = vld [vmem:[%s1 + $0x360] sm:$0x7f]
    %v178 = vld [vmem:[%s1 + $0x368] sm:$0x7f]
    %v179 = vld [vmem:[%s1 + $0x370] sm:$0x7f]
    %v180 = vld [vmem:[%s1 + $0x378] sm:$0x7f]
    %v181 = vld [vmem:[%s1 + $0x380] sm:$0x7f]
    %v182 = vld [vmem:[%s1 + $0x388] sm:$0x7f]
    %v183 = vld [vmem:[%s1 + $0x390] sm:$0x7f]
    %v184 = vld [vmem:[%s1 + $0x398] sm:$0x7f]
    %v185 = vld [vmem:[%s1 + $0x3a0] sm:$0x7f]
    %v186 = vld [vmem:[%s1 + $0x3a8] sm:$0x7f]
    %v187 = vld [vmem:[%s1 + $0x3b0] sm:$0x7f]
    %v188 = vld [vmem:[%s1 + $0x3b8] sm:$0x7f]
    %v189 = vld [vmem:[%s1 + $0x3c0] sm:$0x7f]
    %v190 = vld [vmem:[%s1 + $0x3c8] sm:$0x7f]
    %v191 = vld [vmem:[%s1 + $0x3d0] sm:$0x7f]
    %v192 = vld [vmem:[%s1 + $0x3d8] sm:$0x7f]
    %v193 = vld [vmem:[%s1 + $0x3e0] sm:$0x7f]
    %v194 = vld [vmem:[%s1 + $0x3e8] sm:$0x7f]
    %v195 = vld [vmem:[%s1 + $0x3f0] sm:$0x7f]
    %v196 = vld [vmem:[%s1 + $0x3f8] sm:$0x7f]
    %v197 = vld [vmem:[%s1 + $0x400] sm:$0x7f]
    %v198 = vld [vmem:[%s1 + $0x408] sm:$0x7f]
    %v199 = vld [vmem:[%s1 + $0x410] sm:$0x7f]
    %v200 = vld [vmem:[%s1 + $0x418] sm:$0x7f]
    %v201 = vld [vmem:[%s1 + $0x420] sm:$0x7f]
    %v202 = vld [vmem:[%s1 + $0x428] sm:$0x7f]
    %v203 = vld [vmem:[%s1 + $0x430] sm:$0x7f]
    %v204 = vld [vmem:[%s1 + $0x438] sm:$0x7f]
    %v205 = vld [vmem:[%s1 + $0x440] sm:$0x7f]
    %v206 = vld [vmem:[%s1 + $0x448] sm:$0x7f]
    %v207 = vld [vmem:[%s1 + $0x450] sm:$0x7f]
    %v208 = vld [vmem:[%s1 + $0x458] sm:$0x7f]
    %v209 = vld [vmem:[%s1 + $0x460] sm:$0x7f]
    %v210 = vld [vmem:[%s1 + $0x468] sm:$0x7f]
    %v211 = vld [vmem:[%s1 + $0x470] sm:$0x7f]
    %v212 = vld [vmem:[%s1 + $0x478] sm:$0x7f]
    %v213 = vld [vmem:[%s1 + $0x480] sm:$0x7f]
    %v214 = vld [vmem:[%s1 + $0x488] sm:$0x7f]
    %v215 = vld [vmem:[%s1 + $0x490] sm:$0x7f]
    %v216 = vld [vmem:[%s1 + $0x498] sm:$0x7f]
    %v217 = vld [vmem:[%s1 + $0x4a0] sm:$0x7f]
    %v218 = vld [vmem:[%s1 + $0x4a8] sm:$0x7f]
    %v219 = vld [vmem:[%s1 + $0x4b0] sm:$0x7f]
    %v220 = vld [vmem:[%s1 + $0x4b8] sm:$0x7f]
    %v221 = vld [vmem:[%s1 + $0x4c0] sm:$0x7f]
    %v222 = vld [vmem:[%s1 + $0x4c8] sm:$0x7f]
    %v223 = vld [vmem:[%s1 + $0x4d0] sm:$0x7f]
    %v224 = vld [vmem:[%s1 + $0x4d8] sm:$0x7f]
    %v225 = vld [vmem:[%s1 + $0x4e0] sm:$0x7f]
    %v226 = vld [vmem:[%s1 + $0x4e8] sm:$0x7f]
    %v227 = vld [vmem:[%s1 + $0x4f0] sm:$0x7f]
    %v228 = vld [vmem:[%s1 + $0x4f8] sm:$0x7f]
    %v229 = vld [vmem:[%s1 + $0x500] sm:$0x7f]
    %v230 = vld [vmem:[%s1 + $0x508] sm:$0x7f]
    %v231 = vld [vmem:[%s1 + $0x510] sm:$0x7f]
    %v232 = vld [vmem:[%s1 + $0x518] sm:$0x7f]
    %v233 = vld [vmem:[%s1 + $0x520] sm:$0x7f]
    %v234 = vld [vmem:[%s1 + $0x528] sm:$0x7f]
    %v235 = vld [vmem:[%s1 + $0x530] sm:$0x7f]
    %v236 = vld [vmem:[%s1 + $0x538] sm:$0x7f]
    %v237 = vld [vmem:[%s1 + $0x540] sm:$0x7f]
    %v238 = vld [vmem:[%s1 + $0x548] sm:$0x7f]
    %v239 = vld [vmem:[%s1 + $0x550] sm:$0x7f]
    %v240 = vld [vmem:[%s1 + $0x558] sm:$0x7f]
    %v241 = vld [vmem:[%s1 + $0x560] sm:$0x7f]
    %v242 = vld [vmem:[%s1 + $0x568] sm:$0x7f]
    %v243 = vld [vmem:[%s1 + $0x570] sm:$0x7f]
    %v244 = vld [vmem:[%s1 + $0x578] sm:$0x7f]
    %v245 = vld [vmem:[%s1 + $0x580] sm:$0x7f]
    %v246 = vld [vmem:[%s1 + $0x588] sm:$0x7f]
    %v247 = vld [vmem:[%s1 + $0x590] sm:$0x7f]
    %v248 = vld [vmem:[%s1 + $0x598] sm:$0x7f]
    %v249 = vld [vmem:[%s1 + $0x5a0] sm:$0x7f]
    %v250 = vld [vmem:[%s1 + $0x5a8] sm:$0x7f]
    %v251 = vld [vmem:[%s1 + $0x5b0] sm:$0x7f]
    %v252 = vld [vmem:[%s1 + $0x5b8] sm:$0x7f]
    %v253 = vld [vmem:[%s1 + $0x5c0] sm:$0x7f]
    %v254 = vld [vmem:[%s1 + $0x5c8] sm:$0x7f]
    %v255 = vld [vmem:[%s1 + $0x5d0] sm:$0x7f]
    %v256 = vld [vmem:[%s1 + $0x5d8] sm:$0x7f]
    %v257 = vld [vmem:[%s1 + $0x5e0] sm:$0x7f]
    %v258 = vld [vmem:[%s1 + $0x5e8] sm:$0x7f]
    %v259 = vld [vmem:[%s1 + $0x5f0] sm:$0x7f]
    %v260 = vld [vmem:[%s1 + $0x5f8] sm:$0x7f]
    %v261 = vld [vmem:[%s1 + $0x600] sm:$0x7f]
    %v262 = vld [vmem:[%s1 + $0x608] sm:$0x7f]
    %v263 = vld [vmem:[%s1 + $0x610] sm:$0x7f]
    %v264 = vld [vmem:[%s1 + $0x618] sm:$0x7f]
    %v265 = vld [vmem:[%s1 + $0x620] sm:$0x7f]
    %v266 = vld [vmem:[%s1 + $0x628] sm:$0x7f]
    %v267 = vld [vmem:[%s1 + $0x630] sm:$0x7f]
    %v268 = vld [vmem:[%s1 + $0x638] sm:$0x7f]
    %v269 = vld [vmem:[%s1 + $0x640] sm:$0x7f]
    %v270 = vld [vmem:[%s1 + $0x648] sm:$0x7f]
    %v271 = vld [vmem:[%s1 + $0x650] sm:$0x7f]
    %v272 = vld [vmem:[%s1 + $0x658] sm:$0x7f]
    %v273 = vld [vmem:[%s1 + $0x660] sm:$0x7f]
    %v274 = vld [vmem:[%s1 + $0x668] sm:$0x7f]
    %v275 = vld [vmem:[%s1 + $0x670] sm:$0x7f]
    %v276 = vld [vmem:[%s1 + $0x678] sm:$0x7f]
    %v277 = vld [vmem:[%s1 + $0x680] sm:$0x7f]
    %v278 = vld [vmem:[%s1 + $0x688] sm:$0x7f]
    %v279 = vld [vmem:[%s1 + $0x690] sm:$0x7f]
    %v280 = vld [vmem:[%s1 + $0x698] sm:$0x7f]
    %v281 = vld [vmem:[%s1 + $0x6a0] sm:$0x7f]
    %v282 = vld [vmem:[%s1 + $0x6a8] sm:$0x7f]
    %v283 = vld [vmem:[%s1 + $0x6b0] sm:$0x7f]
    %v284 = vld [vmem:[%s1 + $0x6b8] sm:$0x7f]
    %v285 = vld [vmem:[%s1 + $0x6c0] sm:$0x7f]
    %v286 = vld [vmem:[%s1 + $0x6c8] sm:$0x7f]
    %v287 = vld [vmem:[%s1 + $0x6d0] sm:$0x7f]
    %v288 = vld [vmem:[%s1 + $0x6d8] sm:$0x7f]
    %v289 = vld [vmem:[%s1 + $0x6e0] sm:$0x7f]
    %v290 = vld [vmem:[%s1 + $0x6e8] sm:$0x7f]
    %v291 = vld [vmem:[%s1 + $0x6f0] sm:$0x7f]
    %v292 = vld [vmem:[%s1 + $0x6f8] sm:$0x7f]
    %v293 = vld [vmem:[%s1 + $0x700] sm:$0x7f]
    %v294 = vld [vmem:[%s1 + $0x708] sm:$0x7f]
    %v295 = vld [vmem:[%s1 + $0x710] sm:$0x7f]
    %v296 = vld [vmem:[%s1 + $0x718] sm:$0x7f]
    %v297 = vld [vmem:[%s1 + $0x720] sm:$0x7f]
    %v298 = vld [vmem:[%s1 + $0x728] sm:$0x7f]
    %v299 = vld [vmem:[%s1 + $0x730] sm:$0x7f]
    %v300 = vld [vmem:[%s1 + $0x738] sm:$0x7f]
    %v301 = vld [vmem:[%s1 + $0x740] sm:$0x7f]
    %v302 = vld [vmem:[%s1 + $0x748] sm:$0x7f]
    %v303 = vld [vmem:[%s1 + $0x750] sm:$0x7f]
    %v304 = vld [vmem:[%s1 + $0x758] sm:$0x7f]
    %v305 = vld [vmem:[%s1 + $0x760] sm:$0x7f]
    %v306 = vld [vmem:[%s1 + $0x768] sm:$0x7f]
    %v307 = vld [vmem:[%s1 + $0x770] sm:$0x7f]
    %v308 = vld [vmem:[%s1 + $0x778] sm:$0x7f]
    %v309 = vld [vmem:[%s1 + $0x780] sm:$0x7f]
    %v310 = vld [vmem:[%s1 + $0x788] sm:$0x7f]
    %v311 = vld [vmem:[%s1 + $0x790] sm:$0x7f]
    %v312 = vld [vmem:[%s1 + $0x798] sm:$0x7f]
    %v313 = vld [vmem:[%s1 + $0x7a0] sm:$0x7f]
    %v314 = vld [vmem:[%s1 + $0x7a8] sm:$0x7f]
    %v315 = vld [vmem:[%s1 + $0x7b0] sm:$0x7f]
    %v316 = vld [vmem:[%s1 + $0x7b8] sm:$0x7f]
    %v317 = vld [vmem:[%s1 + $0x7c0] sm:$0x7f]
    %v318 = vld [vmem:[%s1 + $0x7c8] sm:$0x7f]
    %v319 = vld [vmem:[%s1 + $0x7d0] sm:$0x7f]
    %v320 = vld [vmem:[%s1 + $0x7d8] sm:$0x7f]
    %v321 = vld [vmem:[%s1 + $0x7e0] sm:$0x7f]
    %v322 = vld [vmem:[%s1 + $0x7e8] sm:$0x7f]
    %v323 = vld [vmem:[%s1 + $0x7f0] sm:$0x7f]
    %v324 = vld [vmem:[%s1 + $0x7f8] sm:$0x7f]
    %v325 = vld [vmem:[%s1 + $0x800] sm:$0x7f]
    %v326 = vld [vmem:[%s1 + $0x808] sm:$0x7f]
    %v327 = vld [vmem:[%s1 + $0x810] sm:$0x7f]
    %v328 = vld [vmem:[%s1 + $0x818] sm:$0x7f]
    %v329 = vld [vmem:[%s1 + $0x820] sm:$0x7f]
    %v330 = vld [vmem:[%s1 + $0x828] sm:$0x7f]
    %v331 = vld [vmem:[%s1 + $0x830] sm:$0x7f]
    %v332 = vld [vmem:[%s1 + $0x838] sm:$0x7f]
    %v333 = vld [vmem:[%s1 + $0x840] sm:$0x7f]
    %v334 = vld [vmem:[%s1 + $0x848] sm:$0x7f]
    %v335 = vld [vmem:[%s1 + $0x850] sm:$0x7f]
    %v336 = vld [vmem:[%s1 + $0x858] sm:$0x7f]
    %v337 = vld [vmem:[%s1 + $0x860] sm:$0x7f]
    %v338 = vld [vmem:[%s1 + $0x868] sm:$0x7f]
    %v339 = vld [vmem:[%s1 + $0x870] sm:$0x7f]
    %v340 = vld [vmem:[%s1 + $0x878] sm:$0x7f]
    %v341 = vld [vmem:[%s1 + $0x880] sm:$0x7f]
    %v342 = vld [vmem:[%s1 + $0x888] sm:$0x7f]
    %v343 = vld [vmem:[%s1 + $0x890] sm:$0x7f]
    %v344 = vld [vmem:[%s1 + $0x898] sm:$0x7f]
    %v345 = vld [vmem:[%s1 + $0x8a0] sm:$0x7f]
    %v346 = vld [vmem:[%s1 + $0x8a8] sm:$0x7f]
    %v347 = vld [vmem:[%s1 + $0x8b0] sm:$0x7f]
    %v348 = vld [vmem:[%s1 + $0x8b8] sm:$0x7f]
    %v349 = vld [vmem:[%s1 + $0x8c0] sm:$0x7f]
    %v350 = vld [vmem:[%s1 + $0x8c8] sm:$0x7f]
    %v351 = vld [vmem:[%s1 + $0x8d0] sm:$0x7f]
    %v352 = vld [vmem:[%s1 + $0x8d8] sm:$0x7f]
    %v353 = vld [vmem:[%s1 + $0x8e0] sm:$0x7f]
    %v354 = vld [vmem:[%s1 + $0x8e8] sm:$0x7f]
    %v355 = vld [vmem:[%s1 + $0x8f0] sm:$0x7f]
    %v356 = vld [vmem:[%s1 + $0x8f8] sm:$0x7f]
    %v357 = vld [vmem:[%s1 + $0x900] sm:$0x7f]
    %v358 = vld [vmem:[%s1 + $0x908] sm:$0x7f]
    %v359 = vld [vmem:[%s1 + $0x910] sm:$0x7f]
    %v360 = vld [vmem:[%s1 + $0x918] sm:$0x7f]
    %v361 = vld [vmem:[%s1 + $0x920] sm:$0x7f]
    %v362 = vld [vmem:[%s1 + $0x928] sm:$0x7f]
    %v363 = vld [vmem:[%s1 + $0x930] sm:$0x7f]
    %v364 = vld [vmem:[%s1 + $0x938] sm:$0x7f]
    %v365 = vld [vmem:[%s1 + $0x940] sm:$0x7f]
    %v366 = vld [vmem:[%s1 + $0x948] sm:$0x7f]
    %v367 = vld [vmem:[%s1 + $0x950] sm:$0x7f]
    %v368 = vld [vmem:[%s1 + $0x958] sm:$0x7f]
    %v369 = vld [vmem:[%s1 + $0x960] sm:$0x7f]
    %v370 = vld [vmem:[%s1 + $0x968] sm:$0x7f]
    %v371 = vld [vmem:[%s1 + $0x970] sm:$0x7f]
    %v372 = vld [vmem:[%s1 + $0x978] sm:$0x7f]
    %v373 = vld [vmem:[%s1 + $0x980] sm:$0x7f]
    %v374 = vld [vmem:[%s1 + $0x988] sm:$0x7f]
    %v375 = vld [vmem:[%s1 + $0x990] sm:$0x7f]
    %v376 = vld [vmem:[%s1 + $0x998] sm:$0x7f]
    %v377 = vld [vmem:[%s1 + $0x9a0] sm:$0x7f]
    %v378 = vld [vmem:[%s1 + $0x9a8] sm:$0x7f]
    %v379 = vld [vmem:[%s1 + $0x9b0] sm:$0x7f]
    %v380 = vld [vmem:[%s1 + $0x9b8] sm:$0x7f]
    %v381 = vld [vmem:[%s1 + $0x9c0] sm:$0x7f]
    %v382 = vld [vmem:[%s1 + $0x9c8] sm:$0x7f]
    %v383 = vld [vmem:[%s1 + $0x9d0] sm:$0x7f]
    %v384 = vld [vmem:[%s1 + $0x9d8] sm:$0x7f]
    %v385 = vld [vmem:[%s1 + $0x9e0] sm:$0x7f]
    %v386 = vld [vmem:[%s1 + $0x9e8] sm:$0x7f]
    %v387 = vld [vmem:[%s1 + $0x9f0] sm:$0x7f]
    %v388 = vld [vmem:[%s1 + $0x9f8] sm:$0x7f]
    %v389 = vld [vmem:[%s1 + $0xa00] sm:$0x7f]
    %v390 = vld [vmem:[%s1 + $0xa08] sm:$0x7f]
    %v391 = vld [vmem:[%s1 + $0xa10] sm:$0x7f]
    %v392 = vld [vmem:[%s1 + $0xa18] sm:$0x7f]
    %v393 = vld [vmem:[%s1 + $0xa20] sm:$0x7f]
    %v394 = vld [vmem:[%s1 + $0xa28] sm:$0x7f]
    %v395 = vld [vmem:[%s1 + $0xa30] sm:$0x7f]
    %v396 = vld [vmem:[%s1 + $0xa38] sm:$0x7f]
    %v397 = vld [vmem:[%s1 + $0xa40] sm:$0x7f]
    %v398 = vld [vmem:[%s1 + $0xa48] sm:$0x7f]
    %v399 = vld [vmem:[%s1 + $0xa50] sm:$0x7f]
    %v400 = vld [vmem:[%s1 + $0xa58] sm:$0x7f]
    %v401 = vld [vmem:[%s1 + $0xa60] sm:$0x7f]
    %v402 = vld [vmem:[%s1 + $0xa68] sm:$0x7f]
    %v403 = vld [vmem:[%s1 + $0xa70] sm:$0x7f]
    %v404 = vld [vmem:[%s1 + $0xa78] sm:$0x7f]
    %v405 = vld [vmem:[%s1 + $0xa80] sm:$0x7f]
    %v406 = vld [vmem:[%s1 + $0xa88] sm:$0x7f]
    %v407 = vld [vmem:[%s1 + $0xa90] sm:$0x7f]
    %v408 = vld [vmem:[%s1 + $0xa98] sm:$0x7f]
    %v409 = vld [vmem:[%s1 + $0xaa0] sm:$0x7f]
    %v410 = vld [vmem:[%s1 + $0xaa8] sm:$0x7f]
    %v411 = vld [vmem:[%s1 + $0xab0] sm:$0x7f]
    %v412 = vld [vmem:[%s1 + $0xab8] sm:$0x7f]
    %v413 = vld [vmem:[%s1 + $0xac0] sm:$0x7f]
    %v414 = vld [vmem:[%s1 + $0xac8] sm:$0x7f]
    %v415 = vld [vmem:[%s1 + $0xad0] sm:$0x7f]
    %v416 = vld [vmem:[%s1 + $0xad8] sm:$0x7f]
    %v417 = vld [vmem:[%s1 + $0xae0] sm:$0x7f]
    %v418 = vld [vmem:[%s1 + $0xae8] sm:$0x7f]
    %v419 = vld [vmem:[%s1 + $0xaf0] sm:$0x7f]
    %v420 = vld [vmem:[%s1 + $0xaf8] sm:$0x7f]
    %v421 = vld [vmem:[%s1 + $0xb00] sm:$0x7f]
    %v422 = vld [vmem:[%s1 + $0xb08] sm:$0x7f]
    %v423 = vld [vmem:[%s1 + $0xb10] sm:$0x7f]
    %v424 = vld [vmem:[%s1 + $0xb18] sm:$0x7f]
    %v425 = vld [vmem:[%s1 + $0xb20] sm:$0x7f]
    %v426 = vld [vmem:[%s1 + $0xb28] sm:$0x7f]
    %v427 = vld [vmem:[%s1 + $0xb30] sm:$0x7f]
    %v428 = vld [vmem:[%s1 + $0xb38] sm:$0x7f]
    %v429 = vld [vmem:[%s1 + $0xb40] sm:$0x7f]
    %v430 = vld [vmem:[%s1 + $0xb48] sm:$0x7f]
    %v431 = vld [vmem:[%s1 + $0xb50] sm:$0x7f]
    %v432 = vld [vmem:[%s1 + $0xb58] sm:$0x7f]
    %v433 = vld [vmem:[%s1 + $0xb60] sm:$0x7f]
    %v434 = vld [vmem:[%s1 + $0xb68] sm:$0x7f]
    %v435 = vld [vmem:[%s1 + $0xb70] sm:$0x7f]
    %v436 = vld [vmem:[%s1 + $0xb78] sm:$0x7f]
    %v437 = vld [vmem:[%s1 + $0xb80] sm:$0x7f]
    %v438 = vld [vmem:[%s1 + $0xb88] sm:$0x7f]
    %v439 = vld [vmem:[%s1 + $0xb90] sm:$0x7f]
    %v440 = vld [vmem:[%s1 + $0xb98] sm:$0x7f]
    %v441 = vld [vmem:[%s1 + $0xba0] sm:$0x7f]
    %v442 = vld [vmem:[%s1 + $0xba8] sm:$0x7f]
    %v443 = vld [vmem:[%s1 + $0xbb0] sm:$0x7f]
    %v444 = vld [vmem:[%s1 + $0xbb8] sm:$0x7f]
    %v445 = vld [vmem:[%s1 + $0xbc0] sm:$0x7f]
    %v446 = vld [vmem:[%s1 + $0xbc8] sm:$0x7f]
    %v447 = vld [vmem:[%s1 + $0xbd0] sm:$0x7f]
    %v448 = vld [vmem:[%s1 + $0xbd8] sm:$0x7f]
    %v449 = vld [vmem:[%s1 + $0xbe0] sm:$0x7f]
    %v450 = vld [vmem:[%s1 + $0xbe8] sm:$0x7f]
    %v451 = vld [vmem:[%s1 + $0xbf0] sm:$0x7f]
    %v452 = vld [vmem:[%s1 + $0xbf8] sm:$0x7f]
    %v453 = vld [vmem:[%s2] sm:$0x1]
    %s454 = sld [smem:[#allocation2]]
    %v456 = vlaneseq
    %v457 = vshrl.u32 %v456, 7
    %v458 = vsub.s32 0, %v457
    %v459 = vrot.slane %v453, %v458
    %v461 = vmul.f32 %v21, %v459
    %v462 = vmul.f32 %v22, %v459
    %v463 = vmul.f32 %v23, %v459
    %v464 = vmul.f32 %v24, %v459
    %v465 = vmul.f32 %v25, %v459
    %v466 = vmul.f32 %v26, %v459
    %v467 = vmul.f32 %v27, %v459
    %v468 = vmul.f32 %v28, %v459
    %v469 = vmul.f32 %v29, %v459
    %v470 = vmul.f32 %v30, %v459
    %v471 = vmul.f32 %v31, %v459
    %v472 = vmul.f32 %v32, %v459
    %v473 = vmul.f32 %v33, %v459
    %v474 = vmul.f32 %v34, %v459
    %v475 = vmul.f32 %v35, %v459
    %v476 = vmul.f32 %v36, %v459
    %v477 = vmul.f32 %v37, %v459
    %v478 = vmul.f32 %v38, %v459
    %v479 = vmul.f32 %v39, %v459
    %v480 = vmul.f32 %v40, %v459
    %v481 = vmul.f32 %v41, %v459
    %v482 = vmul.f32 %v42, %v459
    %v483 = vmul.f32 %v43, %v459
    %v484 = vmul.f32 %v44, %v459
    %v485 = vmul.f32 %v45, %v459
    %v486 = vmul.f32 %v46, %v459
    %v487 = vmul.f32 %v47, %v459
    %v488 = vmul.f32 %v48, %v459
    %v489 = vmul.f32 %v49, %v459
    %v490 = vmul.f32 %v50, %v459
    %v491 = vmul.f32 %v51, %v459
    %v492 = vmul.f32 %v52, %v459
    %v493 = vmul.f32 %v53, %v459
    %v494 = vmul.f32 %v54, %v459
    %v495 = vmul.f32 %v55, %v459
    %v496 = vmul.f32 %v56, %v459
    %v497 = vmul.f32 %v57, %v459
    %v498 = vmul.f32 %v58, %v459
    %v499 = vmul.f32 %v59, %v459
    %v500 = vmul.f32 %v60, %v459
    %v501 = vmul.f32 %v61, %v459
    %v502 = vmul.f32 %v62, %v459
    %v503 = vmul.f32 %v63, %v459
    %v504 = vmul.f32 %v64, %v459
    %v505 = vmul.f32 %v65, %v459
    %v506 = vmul.f32 %v66, %v459
    %v507 = vmul.f32 %v67, %v459
    %v508 = vmul.f32 %v68, %v459
    %509 = vadd.xlane.f32.xlu0 %v461
    %v510 = vpop.xlane.xlu0 %509
    %511 = vadd.xlane.f32.xlu0 %v462
    %v512 = vpop.xlane.xlu0 %511
    %513 = vadd.xlane.f32.xlu0 %v463
    %v514 = vpop.xlane.xlu0 %513
    %515 = vadd.xlane.f32.xlu0 %v464
    %v516 = vpop.xlane.xlu0 %515
    %517 = vadd.xlane.f32.xlu0 %v465
    %v518 = vpop.xlane.xlu0 %517
    %519 = vadd.xlane.f32.xlu0 %v466
    %v520 = vpop.xlane.xlu0 %519
    %521 = vadd.xlane.f32.xlu0 %v467
    %v522 = vpop.xlane.xlu0 %521
    %523 = vadd.xlane.f32.xlu0 %v468
    %v524 = vpop.xlane.xlu0 %523
    %525 = vadd.xlane.f32.xlu0 %v469
    %v526 = vpop.xlane.xlu0 %525
    %527 = vadd.xlane.f32.xlu0 %v470
    %v528 = vpop.xlane.xlu0 %527
    %529 = vadd.xlane.f32.xlu0 %v471
    %v530 = vpop.xlane.xlu0 %529
    %531 = vadd.xlane.f32.xlu0 %v472
    %v532 = vpop.xlane.xlu0 %531
    %533 = vadd.xlane.f32.xlu0 %v473
    %v534 = vpop.xlane.xlu0 %533
    %535 = vadd.xlane.f32.xlu0 %v474
    %v536 = vpop.xlane.xlu0 %535
    %537 = vadd.xlane.f32.xlu0 %v475
    %v538 = vpop.xlane.xlu0 %537
    %539 = vadd.xlane.f32.xlu0 %v476
    %v540 = vpop.xlane.xlu0 %539
    %541 = vadd.xlane.f32.xlu0 %v477
    %v542 = vpop.xlane.xlu0 %541
    %543 = vadd.xlane.f32.xlu0 %v478
    %v544 = vpop.xlane.xlu0 %543
    %545 = vadd.xlane.f32.xlu0 %v479
    %v546 = vpop.xlane.xlu0 %545
    %547 = vadd.xlane.f32.xlu0 %v480
    %v548 = vpop.xlane.xlu0 %547
    %549 = vadd.xlane.f32.xlu0 %v481
    %v550 = vpop.xlane.xlu0 %549
    %551 = vadd.xlane.f32.xlu0 %v482
    %v552 = vpop.xlane.xlu0 %551
    %553 = vadd.xlane.f32.xlu0 %v483
    %v554 = vpop.xlane.xlu0 %553
    %555 = vadd.xlane.f32.xlu0 %v484
    %v556 = vpop.xlane.xlu0 %555
    %557 = vadd.xlane.f32.xlu0 %v485
    %v558 = vpop.xlane.xlu0 %557
    %559 = vadd.xlane.f32.xlu0 %v486
    %v560 = vpop.xlane.xlu0 %559
    %561 = vadd.xlane.f32.xlu0 %v487
    %v562 = vpop.xlane.xlu0 %561
    %563 = vadd.xlane.f32.xlu0 %v488
    %v564 = vpop.xlane.xlu0 %563
    %565 = vadd.xlane.f32.xlu0 %v489
    %v566 = vpop.xlane.xlu0 %565
    %567 = vadd.xlane.f32.xlu0 %v490
    %v568 = vpop.xlane.xlu0 %567
    %569 = vadd.xlane.f32.xlu0 %v491
    %v570 = vpop.xlane.xlu0 %569
    %571 = vadd.xlane.f32.xlu0 %v492
    %v572 = vpop.xlane.xlu0 %571
    %573 = vadd.xlane.f32.xlu0 %v493
    %v574 = vpop.xlane.xlu0 %573
    %575 = vadd.xlane.f32.xlu0 %v494
    %v576 = vpop.xlane.xlu0 %575
    %577 = vadd.xlane.f32.xlu0 %v495
    %v578 = vpop.xlane.xlu0 %577
    %579 = vadd.xlane.f32.xlu0 %v496
    %v580 = vpop.xlane.xlu0 %579
    %581 = vadd.xlane.f32.xlu0 %v497
    %v582 = vpop.xlane.xlu0 %581
    %583 = vadd.xlane.f32.xlu0 %v498
    %v584 = vpop.xlane.xlu0 %583
    %585 = vadd.xlane.f32.xlu0 %v499
    %v586 = vpop.xlane.xlu0 %585
    %587 = vadd.xlane.f32.xlu0 %v500
    %v588 = vpop.xlane.xlu0 %587
    %589 = vadd.xlane.f32.xlu0 %v501
    %v590 = vpop.xlane.xlu0 %589
    %591 = vadd.xlane.f32.xlu0 %v502
    %v592 = vpop.xlane.xlu0 %591
    %593 = vadd.xlane.f32.xlu0 %v503
    %v594 = vpop.xlane.xlu0 %593
    %595 = vadd.xlane.f32.xlu0 %v504
    %v596 = vpop.xlane.xlu0 %595
    %597 = vadd.xlane.f32.xlu0 %v505
    %v598 = vpop.xlane.xlu0 %597
    %599 = vadd.xlane.f32.xlu0 %v506
    %v600 = vpop.xlane.xlu0 %599
    %601 = vadd.xlane.f32.xlu0 %v507
    %v602 = vpop.xlane.xlu0 %601
    %603 = vadd.xlane.f32.xlu0 %v508
    %v604 = vpop.xlane.xlu0 %603
    %v605 = vstv %s454
    %v606 = vadd.f32 %v510, %v605
    %v607 = vadd.f32 %v512, %v605
    %v608 = vadd.f32 %v514, %v605
    %v609 = vadd.f32 %v516, %v605
    %v610 = vadd.f32 %v518, %v605
    %v611 = vadd.f32 %v520, %v605
    %v612 = vadd.f32 %v522, %v605
    %v613 = vadd.f32 %v524, %v605
    %v614 = vadd.f32 %v526, %v605
    %v615 = vadd.f32 %v528, %v605
    %v616 = vadd.f32 %v530, %v605
    %v617 = vadd.f32 %v532, %v605
    %v618 = vadd.f32 %v534, %v605
    %v619 = vadd.f32 %v536, %v605
    %v620 = vadd.f32 %v538, %v605
    %v621 = vadd.f32 %v540, %v605
    %v622 = vadd.f32 %v542, %v605
    %v623 = vadd.f32 %v544, %v605
    %v624 = vadd.f32 %v546, %v605
    %v625 = vadd.f32 %v548, %v605
    %v626 = vadd.f32 %v550, %v605
    %v627 = vadd.f32 %v552, %v605
    %v628 = vadd.f32 %v554, %v605
    %v629 = vadd.f32 %v556, %v605
    %v630 = vadd.f32 %v558, %v605
    %v631 = vadd.f32 %v560, %v605
    %v632 = vadd.f32 %v562, %v605
    %v633 = vadd.f32 %v564, %v605
    %v634 = vadd.f32 %v566, %v605
    %v635 = vadd.f32 %v568, %v605
    %v636 = vadd.f32 %v570, %v605
    %v637 = vadd.f32 %v572, %v605
    %v638 = vadd.f32 %v574, %v605
    %v639 = vadd.f32 %v576, %v605
    %v640 = vadd.f32 %v578, %v605
    %v641 = vadd.f32 %v580, %v605
    %v642 = vadd.f32 %v582, %v605
    %v643 = vadd.f32 %v584, %v605
    %v644 = vadd.f32 %v586, %v605
    %v645 = vadd.f32 %v588, %v605
    %v646 = vadd.f32 %v590, %v605
    %v647 = vadd.f32 %v592, %v605
    %v648 = vadd.f32 %v594, %v605
    %v649 = vadd.f32 %v596, %v605
    %v650 = vadd.f32 %v598, %v605
    %v651 = vadd.f32 %v600, %v605
    %v652 = vadd.f32 %v602, %v605
    %v653 = vadd.f32 %v604, %v605
    %vm654 = vcmask 7168
    %655 = vst.msk [vmem:[%s5] sm:$0xff] %vm654, %v606
    %656 = vst.msk [vmem:[%s5 + $0x8] sm:$0xff] %vm654, %v607
    %657 = vst.msk [vmem:[%s5 + $0x10] sm:$0xff] %vm654, %v608
    %658 = vst.msk [vmem:[%s5 + $0x18] sm:$0xff] %vm654, %v609
    %659 = vst.msk [vmem:[%s5 + $0x20] sm:$0xff] %vm654, %v610
    %660 = vst.msk [vmem:[%s5 + $0x28] sm:$0xff] %vm654, %v611
    %661 = vst.msk [vmem:[%s5 + $0x30] sm:$0xff] %vm654, %v612
    %662 = vst.msk [vmem:[%s5 + $0x38] sm:$0xff] %vm654, %v613
    %663 = vst.msk [vmem:[%s5 + $0x40] sm:$0xff] %vm654, %v614
    %664 = vst.msk [vmem:[%s5 + $0x48] sm:$0xff] %vm654, %v615
    %665 = vst.msk [vmem:[%s5 + $0x50] sm:$0xff] %vm654, %v616
    %666 = vst.msk [vmem:[%s5 + $0x58] sm:$0xff] %vm654, %v617
    %667 = vst.msk [vmem:[%s5 + $0x60] sm:$0xff] %vm654, %v618
    %668 = vst.msk [vmem:[%s5 + $0x68] sm:$0xff] %vm654, %v619
    %669 = vst.msk [vmem:[%s5 + $0x70] sm:$0xff] %vm654, %v620
    %670 = vst.msk [vmem:[%s5 + $0x78] sm:$0xff] %vm654, %v621
    %671 = vst.msk [vmem:[%s5 + $0x80] sm:$0xff] %vm654, %v622
    %672 = vst.msk [vmem:[%s5 + $0x88] sm:$0xff] %vm654, %v623
    %673 = vst.msk [vmem:[%s5 + $0x90] sm:$0xff] %vm654, %v624
    %674 = vst.msk [vmem:[%s5 + $0x98] sm:$0xff] %vm654, %v625
    %675 = vst.msk [vmem:[%s5 + $0xa0] sm:$0xff] %vm654, %v626
    %676 = vst.msk [vmem:[%s5 + $0xa8] sm:$0xff] %vm654, %v627
    %677 = vst.msk [vmem:[%s5 + $0xb0] sm:$0xff] %vm654, %v628
    %678 = vst.msk [vmem:[%s5 + $0xb8] sm:$0xff] %vm654, %v629
    %679 = vst.msk [vmem:[%s5 + $0xc0] sm:$0xff] %vm654, %v630
    %680 = vst.msk [vmem:[%s5 + $0xc8] sm:$0xff] %vm654, %v631
    %681 = vst.msk [vmem:[%s5 + $0xd0] sm:$0xff] %vm654, %v632
    %682 = vst.msk [vmem:[%s5 + $0xd8] sm:$0xff] %vm654, %v633
    %683 = vst.msk [vmem:[%s5 + $0xe0] sm:$0xff] %vm654, %v634
    %684 = vst.msk [vmem:[%s5 + $0xe8] sm:$0xff] %vm654, %v635
    %685 = vst.msk [vmem:[%s5 + $0xf0] sm:$0xff] %vm654, %v636
    %686 = vst.msk [vmem:[%s5 + $0xf8] sm:$0xff] %vm654, %v637
    %687 = vst.msk [vmem:[%s5 + $0x100] sm:$0xff] %vm654, %v638
    %688 = vst.msk [vmem:[%s5 + $0x108] sm:$0xff] %vm654, %v639
    %689 = vst.msk [vmem:[%s5 + $0x110] sm:$0xff] %vm654, %v640
    %690 = vst.msk [vmem:[%s5 + $0x118] sm:$0xff] %vm654, %v641
    %691 = vst.msk [vmem:[%s5 + $0x120] sm:$0xff] %vm654, %v642
    %692 = vst.msk [vmem:[%s5 + $0x128] sm:$0xff] %vm654, %v643
    %693 = vst.msk [vmem:[%s5 + $0x130] sm:$0xff] %vm654, %v644
    %694 = vst.msk [vmem:[%s5 + $0x138] sm:$0xff] %vm654, %v645
    %695 = vst.msk [vmem:[%s5 + $0x140] sm:$0xff] %vm654, %v646
    %696 = vst.msk [vmem:[%s5 + $0x148] sm:$0xff] %vm654, %v647
    %697 = vst.msk [vmem:[%s5 + $0x150] sm:$0xff] %vm654, %v648
    %698 = vst.msk [vmem:[%s5 + $0x158] sm:$0xff] %vm654, %v649
    %699 = vst.msk [vmem:[%s5 + $0x160] sm:$0xff] %vm654, %v650
    %700 = vst.msk [vmem:[%s5 + $0x168] sm:$0xff] %vm654, %v651
    %701 = vst.msk [vmem:[%s5 + $0x170] sm:$0xff] %vm654, %v652
    %702 = vst.msk [vmem:[%s5 + $0x178] sm:$0xff] %vm654, %v653
    %s703 = smul.u32 0, 384
    %s704 = ssub.s32 384, %s703
    %p705 = scmp.gt.s32.totalorder %s704, 0
    %s706 = scalar_select %p705, %s704, 0
    %p707 = scmp.lt.s32.totalorder %s706, 384
    %s708 = scalar_select %p707, %s706, 384
    %v709 = vlaneseq
    %v710 = vshrl.u32 %v709, 7
    %v711 = vadd.s32 %v710, 8
    %v712 = vadd.s32 %v710, 16
    %v713 = vadd.s32 %v710, 24
    %v714 = vadd.s32 %v710, 32
    %v715 = vadd.s32 %v710, 40
    %v716 = vadd.s32 %v710, 48
    %v717 = vadd.s32 %v710, 56
    %v718 = vadd.s32 %v710, 64
    %v719 = vadd.s32 %v710, 72
    %v720 = vadd.s32 %v710, 80
    %v721 = vadd.s32 %v710, 88
    %v722 = vadd.s32 %v710, 96
    %v723 = vadd.s32 %v710, 104
    %v724 = vadd.s32 %v710, 112
    %v725 = vadd.s32 %v710, 120
    %v726 = vadd.s32 %v710, 128
    %v727 = vadd.s32 %v710, 136
    %v728 = vadd.s32 %v710, 144
    %v729 = vadd.s32 %v710, 152
    %v730 = vadd.s32 %v710, 160
    %v731 = vadd.s32 %v710, 168
    %v732 = vadd.s32 %v710, 176
    %v733 = vadd.s32 %v710, 184
    %v734 = vadd.s32 %v710, 192
    %v735 = vadd.s32 %v710, 200
    %v736 = vadd.s32 %v710, 208
    %v737 = vadd.s32 %v710, 216
    %v738 = vadd.s32 %v710, 224
    %v739 = vadd.s32 %v710, 232
    %v740 = vadd.s32 %v710, 240
    %v741 = vadd.s32 %v710, 248
    %v742 = vadd.s32 %v710, 256
    %v743 = vadd.s32 %v710, 264
    %v744 = vadd.s32 %v710, 272
    %v745 = vadd.s32 %v710, 280
    %v746 = vadd.s32 %v710, 288
    %v747 = vadd.s32 %v710, 296
    %v748 = vadd.s32 %v710, 304
    %v749 = vadd.s32 %v710, 312
    %v750 = vadd.s32 %v710, 320
    %v751 = vadd.s32 %v710, 328
    %v752 = vadd.s32 %v710, 336
    %v753 = vadd.s32 %v710, 344
    %v754 = vadd.s32 %v710, 352
    %v755 = vadd.s32 %v710, 360
    %v756 = vadd.s32 %v710, 368
    %v757 = vadd.s32 %v710, 376
    %v758 = vstv %s708
    %vm759 = vcmp.lt.s32.totalorder %v710, %v758
    %vm760 = vcmp.lt.s32.totalorder %v711, %v758
    %vm761 = vcmp.lt.s32.totalorder %v712, %v758
    %vm762 = vcmp.lt.s32.totalorder %v713, %v758
    %vm763 = vcmp.lt.s32.totalorder %v714, %v758
    %vm764 = vcmp.lt.s32.totalorder %v715, %v758
    %vm765 = vcmp.lt.s32.totalorder %v716, %v758
    %vm766 = vcmp.lt.s32.totalorder %v717, %v758
    %vm767 = vcmp.lt.s32.totalorder %v718, %v758
    %vm768 = vcmp.lt.s32.totalorder %v719, %v758
    %vm769 = vcmp.lt.s32.totalorder %v720, %v758
    %vm770 = vcmp.lt.s32.totalorder %v721, %v758
    %vm771 = vcmp.lt.s32.totalorder %v722, %v758
    %vm772 = vcmp.lt.s32.totalorder %v723, %v758
    %vm773 = vcmp.lt.s32.totalorder %v724, %v758
    %vm774 = vcmp.lt.s32.totalorder %v725, %v758
    %vm775 = vcmp.lt.s32.totalorder %v726, %v758
    %vm776 = vcmp.lt.s32.totalorder %v727, %v758
    %vm777 = vcmp.lt.s32.totalorder %v728, %v758
    %vm778 = vcmp.lt.s32.totalorder %v729, %v758
    %vm779 = vcmp.lt.s32.totalorder %v730, %v758
    %vm780 = vcmp.lt.s32.totalorder %v731, %v758
    %vm781 = vcmp.lt.s32.totalorder %v732, %v758
    %vm782 = vcmp.lt.s32.totalorder %v733, %v758
    %vm783 = vcmp.lt.s32.totalorder %v734, %v758
    %vm784 = vcmp.lt.s32.totalorder %v735, %v758
    %vm785 = vcmp.lt.s32.totalorder %v736, %v758
    %vm786 = vcmp.lt.s32.totalorder %v737, %v758
    %vm787 = vcmp.lt.s32.totalorder %v738, %v758
    %vm788 = vcmp.lt.s32.totalorder %v739, %v758
    %vm789 = vcmp.lt.s32.totalorder %v740, %v758
    %vm790 = vcmp.lt.s32.totalorder %v741, %v758
    %vm791 = vcmp.lt.s32.totalorder %v742, %v758
    %vm792 = vcmp.lt.s32.totalorder %v743, %v758
    %vm793 = vcmp.lt.s32.totalorder %v744, %v758
    %vm794 = vcmp.lt.s32.totalorder %v745, %v758
    %vm795 = vcmp.lt.s32.totalorder %v746, %v758
    %vm796 = vcmp.lt.s32.totalorder %v747, %v758
    %vm797 = vcmp.lt.s32.totalorder %v748, %v758
    %vm798 = vcmp.lt.s32.totalorder %v749, %v758
    %vm799 = vcmp.lt.s32.totalorder %v750, %v758
    %vm800 = vcmp.lt.s32.totalorder %v751, %v758
    %vm801 = vcmp.lt.s32.totalorder %v752, %v758
    %vm802 = vcmp.lt.s32.totalorder %v753, %v758
    %vm803 = vcmp.lt.s32.totalorder %v754, %v758
    %vm804 = vcmp.lt.s32.totalorder %v755, %v758
    %vm805 = vcmp.lt.s32.totalorder %v756, %v758
    %vm806 = vcmp.lt.s32.totalorder %v757, %v758
    %v855 = vcombine.high %v21, %v21
    %v857 = vunpack.c.l.s4 1966171168
    %v858 = vunpack.c.0.s8 %v857
    %v859 = vlaneseq
    %v860 = vshrl.u32 %v859, 7
    %v861 = vsub.s32 %v858, %v860
    %v862 = vrot.slane %v21, %v861
    %v864 = vunpack.c.l.s4 1966171168
    %v865 = vunpack.c.0.s8 %v864
    %v866 = vlaneseq
    %v867 = vshrl.u32 %v866, 7
    %v868 = vsub.s32 %v865, %v867
    %v869 = vrot.slane %v855, %v868
    %v870 = vcombine.high %v862, %v862
    %v871 = vcombine.high %v869, %v869
    %v873 = vunpack.c.l.s4 1966171168
    %v874 = vunpack.c.0.s8 %v873
    %v875 = vlaneseq
    %v876 = vshrl.u32 %v875, 7
    %v877 = vsub.s32 %v874, %v876
    %v878 = vrot.slane %v862, %v877
    %v880 = vunpack.c.l.s4 1966171168
    %v881 = vunpack.c.0.s8 %v880
    %v882 = vlaneseq
    %v883 = vshrl.u32 %v882, 7
    %v884 = vsub.s32 %v881, %v883
    %v885 = vrot.slane %v869, %v884
    %v887 = vunpack.c.l.s4 1966171168
    %v888 = vunpack.c.0.s8 %v887
    %v889 = vlaneseq
    %v890 = vshrl.u32 %v889, 7
    %v891 = vsub.s32 %v888, %v890
    %v892 = vrot.slane %v870, %v891
    %v894 = vunpack.c.l.s4 1966171168
    %v895 = vunpack.c.0.s8 %v894
    %v896 = vlaneseq
    %v897 = vshrl.u32 %v896, 7
    %v898 = vsub.s32 %v895, %v897
    %v899 = vrot.slane %v871, %v898
    %v900 = vcombine.high %v878, %v878
    %v901 = vcombine.high %v885, %v885
    %v902 = vcombine.high %v892, %v892
    %v903 = vcombine.high %v899, %v899
    %v904 = vcombine.high %v22, %v22
    %v906 = vunpack.c.l.s4 1966171168
    %v907 = vunpack.c.0.s8 %v906
    %v908 = vlaneseq
    %v909 = vshrl.u32 %v908, 7
    %v910 = vsub.s32 %v907, %v909
    %v911 = vrot.slane %v22, %v910
    %v913 = vunpack.c.l.s4 1966171168
    %v914 = vunpack.c.0.s8 %v913
    %v915 = vlaneseq
    %v916 = vshrl.u32 %v915, 7
    %v917 = vsub.s32 %v914, %v916
    %v918 = vrot.slane %v904, %v917
    %v919 = vcombine.high %v911, %v911
    %v920 = vcombine.high %v918, %v918
    %v922 = vunpack.c.l.s4 1966171168
    %v923 = vunpack.c.0.s8 %v922
    %v924 = vlaneseq
    %v925 = vshrl.u32 %v924, 7
    %v926 = vsub.s32 %v923, %v925
    %v927 = vrot.slane %v911, %v926
    %v929 = vunpack.c.l.s4 1966171168
    %v930 = vunpack.c.0.s8 %v929
    %v931 = vlaneseq
    %v932 = vshrl.u32 %v931, 7
    %v933 = vsub.s32 %v930, %v932
    %v934 = vrot.slane %v918, %v933
    %v936 = vunpack.c.l.s4 1966171168
    %v937 = vunpack.c.0.s8 %v936
    %v938 = vlaneseq
    %v939 = vshrl.u32 %v938, 7
    %v940 = vsub.s32 %v937, %v939
    %v941 = vrot.slane %v919, %v940
    %v943 = vunpack.c.l.s4 1966171168
    %v944 = vunpack.c.0.s8 %v943
    %v945 = vlaneseq
    %v946 = vshrl.u32 %v945, 7
    %v947 = vsub.s32 %v944, %v946
    %v948 = vrot.slane %v920, %v947
    %v949 = vcombine.high %v927, %v927
    %v950 = vcombine.high %v934, %v934
    %v951 = vcombine.high %v941, %v941
    %v952 = vcombine.high %v948, %v948
    %v953 = vcombine.high %v23, %v23
    %v955 = vunpack.c.l.s4 1966171168
    %v956 = vunpack.c.0.s8 %v955
    %v957 = vlaneseq
    %v958 = vshrl.u32 %v957, 7
    %v959 = vsub.s32 %v956, %v958
    %v960 = vrot.slane %v23, %v959
    %v962 = vunpack.c.l.s4 1966171168
    %v963 = vunpack.c.0.s8 %v962
    %v964 = vlaneseq
    %v965 = vshrl.u32 %v964, 7
    %v966 = vsub.s32 %v963, %v965
    %v967 = vrot.slane %v953, %v966
    %v968 = vcombine.high %v960, %v960
    %v969 = vcombine.high %v967, %v967
    %v971 = vunpack.c.l.s4 1966171168
    %v972 = vunpack.c.0.s8 %v971
    %v973 = vlaneseq
    %v974 = vshrl.u32 %v973, 7
    %v975 = vsub.s32 %v972, %v974
    %v976 = vrot.slane %v960, %v975
    %v978 = vunpack.c.l.s4 1966171168
    %v979 = vunpack.c.0.s8 %v978
    %v980 = vlaneseq
    %v981 = vshrl.u32 %v980, 7
    %v982 = vsub.s32 %v979, %v981
    %v983 = vrot.slane %v967, %v982
    %v985 = vunpack.c.l.s4 1966171168
    %v986 = vunpack.c.0.s8 %v985
    %v987 = vlaneseq
    %v988 = vshrl.u32 %v987, 7
    %v989 = vsub.s32 %v986, %v988
    %v990 = vrot.slane %v968, %v989
    %v992 = vunpack.c.l.s4 1966171168
    %v993 = vunpack.c.0.s8 %v992
    %v994 = vlaneseq
    %v995 = vshrl.u32 %v994, 7
    %v996 = vsub.s32 %v993, %v995
    %v997 = vrot.slane %v969, %v996
    %v998 = vcombine.high %v976, %v976
    %v999 = vcombine.high %v983, %v983
    %v1000 = vcombine.high %v990, %v990
    %v1001 = vcombine.high %v997, %v997
    %v1002 = vcombine.high %v24, %v24
    %v1004 = vunpack.c.l.s4 1966171168
    %v1005 = vunpack.c.0.s8 %v1004
    %v1006 = vlaneseq
    %v1007 = vshrl.u32 %v1006, 7
    %v1008 = vsub.s32 %v1005, %v1007
    %v1009 = vrot.slane %v24, %v1008
    %v1011 = vunpack.c.l.s4 1966171168
    %v1012 = vunpack.c.0.s8 %v1011
    %v1013 = vlaneseq
    %v1014 = vshrl.u32 %v1013, 7
    %v1015 = vsub.s32 %v1012, %v1014
    %v1016 = vrot.slane %v1002, %v1015
    %v1017 = vcombine.high %v1009, %v1009
    %v1018 = vcombine.high %v1016, %v1016
    %v1020 = vunpack.c.l.s4 1966171168
    %v1021 = vunpack.c.0.s8 %v1020
    %v1022 = vlaneseq
    %v1023 = vshrl.u32 %v1022, 7
    %v1024 = vsub.s32 %v1021, %v1023
    %v1025 = vrot.slane %v1009, %v1024
    %v1027 = vunpack.c.l.s4 1966171168
    %v1028 = vunpack.c.0.s8 %v1027
    %v1029 = vlaneseq
    %v1030 = vshrl.u32 %v1029, 7
    %v1031 = vsub.s32 %v1028, %v1030
    %v1032 = vrot.slane %v1016, %v1031
    %v1034 = vunpack.c.l.s4 1966171168
    %v1035 = vunpack.c.0.s8 %v1034
    %v1036 = vlaneseq
    %v1037 = vshrl.u32 %v1036, 7
    %v1038 = vsub.s32 %v1035, %v1037
    %v1039 = vrot.slane %v1017, %v1038
    %v1041 = vunpack.c.l.s4 1966171168
    %v1042 = vunpack.c.0.s8 %v1041
    %v1043 = vlaneseq
    %v1044 = vshrl.u32 %v1043, 7
    %v1045 = vsub.s32 %v1042, %v1044
    %v1046 = vrot.slane %v1018, %v1045
    %v1047 = vcombine.high %v1025, %v1025
    %v1048 = vcombine.high %v1032, %v1032
    %v1049 = vcombine.high %v1039, %v1039
    %v1050 = vcombine.high %v1046, %v1046
    %v1051 = vcombine.high %v25, %v25
    %v1053 = vunpack.c.l.s4 1966171168
    %v1054 = vunpack.c.0.s8 %v1053
    %v1055 = vlaneseq
    %v1056 = vshrl.u32 %v1055, 7
    %v1057 = vsub.s32 %v1054, %v1056
    %v1058 = vrot.slane %v25, %v1057
    %v1060 = vunpack.c.l.s4 1966171168
    %v1061 = vunpack.c.0.s8 %v1060
    %v1062 = vlaneseq
    %v1063 = vshrl.u32 %v1062, 7
    %v1064 = vsub.s32 %v1061, %v1063
    %v1065 = vrot.slane %v1051, %v1064
    %v1066 = vcombine.high %v1058, %v1058
    %v1067 = vcombine.high %v1065, %v1065
    %v1069 = vunpack.c.l.s4 1966171168
    %v1070 = vunpack.c.0.s8 %v1069
    %v1071 = vlaneseq
    %v1072 = vshrl.u32 %v1071, 7
    %v1073 = vsub.s32 %v1070, %v1072
    %v1074 = vrot.slane %v1058, %v1073
    %v1076 = vunpack.c.l.s4 1966171168
    %v1077 = vunpack.c.0.s8 %v1076
    %v1078 = vlaneseq
    %v1079 = vshrl.u32 %v1078, 7
    %v1080 = vsub.s32 %v1077, %v1079
    %v1081 = vrot.slane %v1065, %v1080
    %v1083 = vunpack.c.l.s4 1966171168
    %v1084 = vunpack.c.0.s8 %v1083
    %v1085 = vlaneseq
    %v1086 = vshrl.u32 %v1085, 7
    %v1087 = vsub.s32 %v1084, %v1086
    %v1088 = vrot.slane %v1066, %v1087
    %v1090 = vunpack.c.l.s4 1966171168
    %v1091 = vunpack.c.0.s8 %v1090
    %v1092 = vlaneseq
    %v1093 = vshrl.u32 %v1092, 7
    %v1094 = vsub.s32 %v1091, %v1093
    %v1095 = vrot.slane %v1067, %v1094
    %v1096 = vcombine.high %v1074, %v1074
    %v1097 = vcombine.high %v1081, %v1081
    %v1098 = vcombine.high %v1088, %v1088
    %v1099 = vcombine.high %v1095, %v1095
    %v1100 = vcombine.high %v26, %v26
    %v1102 = vunpack.c.l.s4 1966171168
    %v1103 = vunpack.c.0.s8 %v1102
    %v1104 = vlaneseq
    %v1105 = vshrl.u32 %v1104, 7
    %v1106 = vsub.s32 %v1103, %v1105
    %v1107 = vrot.slane %v26, %v1106
    %v1109 = vunpack.c.l.s4 1966171168
    %v1110 = vunpack.c.0.s8 %v1109
    %v1111 = vlaneseq
    %v1112 = vshrl.u32 %v1111, 7
    %v1113 = vsub.s32 %v1110, %v1112
    %v1114 = vrot.slane %v1100, %v1113
    %v1115 = vcombine.high %v1107, %v1107
    %v1116 = vcombine.high %v1114, %v1114
    %v1118 = vunpack.c.l.s4 1966171168
    %v1119 = vunpack.c.0.s8 %v1118
    %v1120 = vlaneseq
    %v1121 = vshrl.u32 %v1120, 7
    %v1122 = vsub.s32 %v1119, %v1121
    %v1123 = vrot.slane %v1107, %v1122
    %v1125 = vunpack.c.l.s4 1966171168
    %v1126 = vunpack.c.0.s8 %v1125
    %v1127 = vlaneseq
    %v1128 = vshrl.u32 %v1127, 7
    %v1129 = vsub.s32 %v1126, %v1128
    %v1130 = vrot.slane %v1114, %v1129
    %v1132 = vunpack.c.l.s4 1966171168
    %v1133 = vunpack.c.0.s8 %v1132
    %v1134 = vlaneseq
    %v1135 = vshrl.u32 %v1134, 7
    %v1136 = vsub.s32 %v1133, %v1135
    %v1137 = vrot.slane %v1115, %v1136
    %v1139 = vunpack.c.l.s4 1966171168
    %v1140 = vunpack.c.0.s8 %v1139
    %v1141 = vlaneseq
    %v1142 = vshrl.u32 %v1141, 7
    %v1143 = vsub.s32 %v1140, %v1142
    %v1144 = vrot.slane %v1116, %v1143
    %v1145 = vcombine.high %v1123, %v1123
    %v1146 = vcombine.high %v1130, %v1130
    %v1147 = vcombine.high %v1137, %v1137
    %v1148 = vcombine.high %v1144, %v1144
    %v1149 = vcombine.high %v27, %v27
    %v1151 = vunpack.c.l.s4 1966171168
    %v1152 = vunpack.c.0.s8 %v1151
    %v1153 = vlaneseq
    %v1154 = vshrl.u32 %v1153, 7
    %v1155 = vsub.s32 %v1152, %v1154
    %v1156 = vrot.slane %v27, %v1155
    %v1158 = vunpack.c.l.s4 1966171168
    %v1159 = vunpack.c.0.s8 %v1158
    %v1160 = vlaneseq
    %v1161 = vshrl.u32 %v1160, 7
    %v1162 = vsub.s32 %v1159, %v1161
    %v1163 = vrot.slane %v1149, %v1162
    %v1164 = vcombine.high %v1156, %v1156
    %v1165 = vcombine.high %v1163, %v1163
    %v1167 = vunpack.c.l.s4 1966171168
    %v1168 = vunpack.c.0.s8 %v1167
    %v1169 = vlaneseq
    %v1170 = vshrl.u32 %v1169, 7
    %v1171 = vsub.s32 %v1168, %v1170
    %v1172 = vrot.slane %v1156, %v1171
    %v1174 = vunpack.c.l.s4 1966171168
    %v1175 = vunpack.c.0.s8 %v1174
    %v1176 = vlaneseq
    %v1177 = vshrl.u32 %v1176, 7
    %v1178 = vsub.s32 %v1175, %v1177
    %v1179 = vrot.slane %v1163, %v1178
    %v1181 = vunpack.c.l.s4 1966171168
    %v1182 = vunpack.c.0.s8 %v1181
    %v1183 = vlaneseq
    %v1184 = vshrl.u32 %v1183, 7
    %v1185 = vsub.s32 %v1182, %v1184
    %v1186 = vrot.slane %v1164, %v1185
    %v1188 = vunpack.c.l.s4 1966171168
    %v1189 = vunpack.c.0.s8 %v1188
    %v1190 = vlaneseq
    %v1191 = vshrl.u32 %v1190, 7
    %v1192 = vsub.s32 %v1189, %v1191
    %v1193 = vrot.slane %v1165, %v1192
    %v1194 = vcombine.high %v1172, %v1172
    %v1195 = vcombine.high %v1179, %v1179
    %v1196 = vcombine.high %v1186, %v1186
    %v1197 = vcombine.high %v1193, %v1193
    %v1198 = vcombine.high %v28, %v28
    %v1200 = vunpack.c.l.s4 1966171168
    %v1201 = vunpack.c.0.s8 %v1200
    %v1202 = vlaneseq
    %v1203 = vshrl.u32 %v1202, 7
    %v1204 = vsub.s32 %v1201, %v1203
    %v1205 = vrot.slane %v28, %v1204
    %v1207 = vunpack.c.l.s4 1966171168
    %v1208 = vunpack.c.0.s8 %v1207
    %v1209 = vlaneseq
    %v1210 = vshrl.u32 %v1209, 7
    %v1211 = vsub.s32 %v1208, %v1210
    %v1212 = vrot.slane %v1198, %v1211
    %v1213 = vcombine.high %v1205, %v1205
    %v1214 = vcombine.high %v1212, %v1212
    %v1216 = vunpack.c.l.s4 1966171168
    %v1217 = vunpack.c.0.s8 %v1216
    %v1218 = vlaneseq
    %v1219 = vshrl.u32 %v1218, 7
    %v1220 = vsub.s32 %v1217, %v1219
    %v1221 = vrot.slane %v1205, %v1220
    %v1223 = vunpack.c.l.s4 1966171168
    %v1224 = vunpack.c.0.s8 %v1223
    %v1225 = vlaneseq
    %v1226 = vshrl.u32 %v1225, 7
    %v1227 = vsub.s32 %v1224, %v1226
    %v1228 = vrot.slane %v1212, %v1227
    %v1230 = vunpack.c.l.s4 1966171168
    %v1231 = vunpack.c.0.s8 %v1230
    %v1232 = vlaneseq
    %v1233 = vshrl.u32 %v1232, 7
    %v1234 = vsub.s32 %v1231, %v1233
    %v1235 = vrot.slane %v1213, %v1234
    %v1237 = vunpack.c.l.s4 1966171168
    %v1238 = vunpack.c.0.s8 %v1237
    %v1239 = vlaneseq
    %v1240 = vshrl.u32 %v1239, 7
    %v1241 = vsub.s32 %v1238, %v1240
    %v1242 = vrot.slane %v1214, %v1241
    %v1243 = vcombine.high %v1221, %v1221
    %v1244 = vcombine.high %v1228, %v1228
    %v1245 = vcombine.high %v1235, %v1235
    %v1246 = vcombine.high %v1242, %v1242
    %v1247 = vcombine.high %v29, %v29
    %v1249 = vunpack.c.l.s4 1966171168
    %v1250 = vunpack.c.0.s8 %v1249
    %v1251 = vlaneseq
    %v1252 = vshrl.u32 %v1251, 7
    %v1253 = vsub.s32 %v1250, %v1252
    %v1254 = vrot.slane %v29, %v1253
    %v1256 = vunpack.c.l.s4 1966171168
    %v1257 = vunpack.c.0.s8 %v1256
    %v1258 = vlaneseq
    %v1259 = vshrl.u32 %v1258, 7
    %v1260 = vsub.s32 %v1257, %v1259
    %v1261 = vrot.slane %v1247, %v1260
    %v1262 = vcombine.high %v1254, %v1254
    %v1263 = vcombine.high %v1261, %v1261
    %v1265 = vunpack.c.l.s4 1966171168
    %v1266 = vunpack.c.0.s8 %v1265
    %v1267 = vlaneseq
    %v1268 = vshrl.u32 %v1267, 7
    %v1269 = vsub.s32 %v1266, %v1268
    %v1270 = vrot.slane %v1254, %v1269
    %v1272 = vunpack.c.l.s4 1966171168
    %v1273 = vunpack.c.0.s8 %v1272
    %v1274 = vlaneseq
    %v1275 = vshrl.u32 %v1274, 7
    %v1276 = vsub.s32 %v1273, %v1275
    %v1277 = vrot.slane %v1261, %v1276
    %v1279 = vunpack.c.l.s4 1966171168
    %v1280 = vunpack.c.0.s8 %v1279
    %v1281 = vlaneseq
    %v1282 = vshrl.u32 %v1281, 7
    %v1283 = vsub.s32 %v1280, %v1282
    %v1284 = vrot.slane %v1262, %v1283
    %v1286 = vunpack.c.l.s4 1966171168
    %v1287 = vunpack.c.0.s8 %v1286
    %v1288 = vlaneseq
    %v1289 = vshrl.u32 %v1288, 7
    %v1290 = vsub.s32 %v1287, %v1289
    %v1291 = vrot.slane %v1263, %v1290
    %v1292 = vcombine.high %v1270, %v1270
    %v1293 = vcombine.high %v1277, %v1277
    %v1294 = vcombine.high %v1284, %v1284
    %v1295 = vcombine.high %v1291, %v1291
    %v1296 = vcombine.high %v30, %v30
    %v1298 = vunpack.c.l.s4 1966171168
    %v1299 = vunpack.c.0.s8 %v1298
    %v1300 = vlaneseq
    %v1301 = vshrl.u32 %v1300, 7
    %v1302 = vsub.s32 %v1299, %v1301
    %v1303 = vrot.slane %v30, %v1302
    %v1305 = vunpack.c.l.s4 1966171168
    %v1306 = vunpack.c.0.s8 %v1305
    %v1307 = vlaneseq
    %v1308 = vshrl.u32 %v1307, 7
    %v1309 = vsub.s32 %v1306, %v1308
    %v1310 = vrot.slane %v1296, %v1309
    %v1311 = vcombine.high %v1303, %v1303
    %v1312 = vcombine.high %v1310, %v1310
    %v1314 = vunpack.c.l.s4 1966171168
    %v1315 = vunpack.c.0.s8 %v1314
    %v1316 = vlaneseq
    %v1317 = vshrl.u32 %v1316, 7
    %v1318 = vsub.s32 %v1315, %v1317
    %v1319 = vrot.slane %v1303, %v1318
    %v1321 = vunpack.c.l.s4 1966171168
    %v1322 = vunpack.c.0.s8 %v1321
    %v1323 = vlaneseq
    %v1324 = vshrl.u32 %v1323, 7
    %v1325 = vsub.s32 %v1322, %v1324
    %v1326 = vrot.slane %v1310, %v1325
    %v1328 = vunpack.c.l.s4 1966171168
    %v1329 = vunpack.c.0.s8 %v1328
    %v1330 = vlaneseq
    %v1331 = vshrl.u32 %v1330, 7
    %v1332 = vsub.s32 %v1329, %v1331
    %v1333 = vrot.slane %v1311, %v1332
    %v1335 = vunpack.c.l.s4 1966171168
    %v1336 = vunpack.c.0.s8 %v1335
    %v1337 = vlaneseq
    %v1338 = vshrl.u32 %v1337, 7
    %v1339 = vsub.s32 %v1336, %v1338
    %v1340 = vrot.slane %v1312, %v1339
    %v1341 = vcombine.high %v1319, %v1319
    %v1342 = vcombine.high %v1326, %v1326
    %v1343 = vcombine.high %v1333, %v1333
    %v1344 = vcombine.high %v1340, %v1340
    %v1345 = vcombine.high %v31, %v31
    %v1347 = vunpack.c.l.s4 1966171168
    %v1348 = vunpack.c.0.s8 %v1347
    %v1349 = vlaneseq
    %v1350 = vshrl.u32 %v1349, 7
    %v1351 = vsub.s32 %v1348, %v1350
    %v1352 = vrot.slane %v31, %v1351
    %v1354 = vunpack.c.l.s4 1966171168
    %v1355 = vunpack.c.0.s8 %v1354
    %v1356 = vlaneseq
    %v1357 = vshrl.u32 %v1356, 7
    %v1358 = vsub.s32 %v1355, %v1357
    %v1359 = vrot.slane %v1345, %v1358
    %v1360 = vcombine.high %v1352, %v1352
    %v1361 = vcombine.high %v1359, %v1359
    %v1363 = vunpack.c.l.s4 1966171168
    %v1364 = vunpack.c.0.s8 %v1363
    %v1365 = vlaneseq
    %v1366 = vshrl.u32 %v1365, 7
    %v1367 = vsub.s32 %v1364, %v1366
    %v1368 = vrot.slane %v1352, %v1367
    %v1370 = vunpack.c.l.s4 1966171168
    %v1371 = vunpack.c.0.s8 %v1370
    %v1372 = vlaneseq
    %v1373 = vshrl.u32 %v1372, 7
    %v1374 = vsub.s32 %v1371, %v1373
    %v1375 = vrot.slane %v1359, %v1374
    %v1377 = vunpack.c.l.s4 1966171168
    %v1378 = vunpack.c.0.s8 %v1377
    %v1379 = vlaneseq
    %v1380 = vshrl.u32 %v1379, 7
    %v1381 = vsub.s32 %v1378, %v1380
    %v1382 = vrot.slane %v1360, %v1381
    %v1384 = vunpack.c.l.s4 1966171168
    %v1385 = vunpack.c.0.s8 %v1384
    %v1386 = vlaneseq
    %v1387 = vshrl.u32 %v1386, 7
    %v1388 = vsub.s32 %v1385, %v1387
    %v1389 = vrot.slane %v1361, %v1388
    %v1390 = vcombine.high %v1368, %v1368
    %v1391 = vcombine.high %v1375, %v1375
    %v1392 = vcombine.high %v1382, %v1382
    %v1393 = vcombine.high %v1389, %v1389
    %v1394 = vcombine.high %v32, %v32
    %v1396 = vunpack.c.l.s4 1966171168
    %v1397 = vunpack.c.0.s8 %v1396
    %v1398 = vlaneseq
    %v1399 = vshrl.u32 %v1398, 7
    %v1400 = vsub.s32 %v1397, %v1399
    %v1401 = vrot.slane %v32, %v1400
    %v1403 = vunpack.c.l.s4 1966171168
    %v1404 = vunpack.c.0.s8 %v1403
    %v1405 = vlaneseq
    %v1406 = vshrl.u32 %v1405, 7
    %v1407 = vsub.s32 %v1404, %v1406
    %v1408 = vrot.slane %v1394, %v1407
    %v1409 = vcombine.high %v1401, %v1401
    %v1410 = vcombine.high %v1408, %v1408
    %v1412 = vunpack.c.l.s4 1966171168
    %v1413 = vunpack.c.0.s8 %v1412
    %v1414 = vlaneseq
    %v1415 = vshrl.u32 %v1414, 7
    %v1416 = vsub.s32 %v1413, %v1415
    %v1417 = vrot.slane %v1401, %v1416
    %v1419 = vunpack.c.l.s4 1966171168
    %v1420 = vunpack.c.0.s8 %v1419
    %v1421 = vlaneseq
    %v1422 = vshrl.u32 %v1421, 7
    %v1423 = vsub.s32 %v1420, %v1422
    %v1424 = vrot.slane %v1408, %v1423
    %v1426 = vunpack.c.l.s4 1966171168
    %v1427 = vunpack.c.0.s8 %v1426
    %v1428 = vlaneseq
    %v1429 = vshrl.u32 %v1428, 7
    %v1430 = vsub.s32 %v1427, %v1429
    %v1431 = vrot.slane %v1409, %v1430
    %v1433 = vunpack.c.l.s4 1966171168
    %v1434 = vunpack.c.0.s8 %v1433
    %v1435 = vlaneseq
    %v1436 = vshrl.u32 %v1435, 7
    %v1437 = vsub.s32 %v1434, %v1436
    %v1438 = vrot.slane %v1410, %v1437
    %v1439 = vcombine.high %v1417, %v1417
    %v1440 = vcombine.high %v1424, %v1424
    %v1441 = vcombine.high %v1431, %v1431
    %v1442 = vcombine.high %v1438, %v1438
    %v1443 = vcombine.high %v33, %v33
    %v1445 = vunpack.c.l.s4 1966171168
    %v1446 = vunpack.c.0.s8 %v1445
    %v1447 = vlaneseq
    %v1448 = vshrl.u32 %v1447, 7
    %v1449 = vsub.s32 %v1446, %v1448
    %v1450 = vrot.slane %v33, %v1449
    %v1452 = vunpack.c.l.s4 1966171168
    %v1453 = vunpack.c.0.s8 %v1452
    %v1454 = vlaneseq
    %v1455 = vshrl.u32 %v1454, 7
    %v1456 = vsub.s32 %v1453, %v1455
    %v1457 = vrot.slane %v1443, %v1456
    %v1458 = vcombine.high %v1450, %v1450
    %v1459 = vcombine.high %v1457, %v1457
    %v1461 = vunpack.c.l.s4 1966171168
    %v1462 = vunpack.c.0.s8 %v1461
    %v1463 = vlaneseq
    %v1464 = vshrl.u32 %v1463, 7
    %v1465 = vsub.s32 %v1462, %v1464
    %v1466 = vrot.slane %v1450, %v1465
    %v1468 = vunpack.c.l.s4 1966171168
    %v1469 = vunpack.c.0.s8 %v1468
    %v1470 = vlaneseq
    %v1471 = vshrl.u32 %v1470, 7
    %v1472 = vsub.s32 %v1469, %v1471
    %v1473 = vrot.slane %v1457, %v1472
    %v1475 = vunpack.c.l.s4 1966171168
    %v1476 = vunpack.c.0.s8 %v1475
    %v1477 = vlaneseq
    %v1478 = vshrl.u32 %v1477, 7
    %v1479 = vsub.s32 %v1476, %v1478
    %v1480 = vrot.slane %v1458, %v1479
    %v1482 = vunpack.c.l.s4 1966171168
    %v1483 = vunpack.c.0.s8 %v1482
    %v1484 = vlaneseq
    %v1485 = vshrl.u32 %v1484, 7
    %v1486 = vsub.s32 %v1483, %v1485
    %v1487 = vrot.slane %v1459, %v1486
    %v1488 = vcombine.high %v1466, %v1466
    %v1489 = vcombine.high %v1473, %v1473
    %v1490 = vcombine.high %v1480, %v1480
    %v1491 = vcombine.high %v1487, %v1487
    %v1492 = vcombine.high %v34, %v34
    %v1494 = vunpack.c.l.s4 1966171168
    %v1495 = vunpack.c.0.s8 %v1494
    %v1496 = vlaneseq
    %v1497 = vshrl.u32 %v1496, 7
    %v1498 = vsub.s32 %v1495, %v1497
    %v1499 = vrot.slane %v34, %v1498
    %v1501 = vunpack.c.l.s4 1966171168
    %v1502 = vunpack.c.0.s8 %v1501
    %v1503 = vlaneseq
    %v1504 = vshrl.u32 %v1503, 7
    %v1505 = vsub.s32 %v1502, %v1504
    %v1506 = vrot.slane %v1492, %v1505
    %v1507 = vcombine.high %v1499, %v1499
    %v1508 = vcombine.high %v1506, %v1506
    %v1510 = vunpack.c.l.s4 1966171168
    %v1511 = vunpack.c.0.s8 %v1510
    %v1512 = vlaneseq
    %v1513 = vshrl.u32 %v1512, 7
    %v1514 = vsub.s32 %v1511, %v1513
    %v1515 = vrot.slane %v1499, %v1514
    %v1517 = vunpack.c.l.s4 1966171168
    %v1518 = vunpack.c.0.s8 %v1517
    %v1519 = vlaneseq
    %v1520 = vshrl.u32 %v1519, 7
    %v1521 = vsub.s32 %v1518, %v1520
    %v1522 = vrot.slane %v1506, %v1521
    %v1524 = vunpack.c.l.s4 1966171168
    %v1525 = vunpack.c.0.s8 %v1524
    %v1526 = vlaneseq
    %v1527 = vshrl.u32 %v1526, 7
    %v1528 = vsub.s32 %v1525, %v1527
    %v1529 = vrot.slane %v1507, %v1528
    %v1531 = vunpack.c.l.s4 1966171168
    %v1532 = vunpack.c.0.s8 %v1531
    %v1533 = vlaneseq
    %v1534 = vshrl.u32 %v1533, 7
    %v1535 = vsub.s32 %v1532, %v1534
    %v1536 = vrot.slane %v1508, %v1535
    %v1537 = vcombine.high %v1515, %v1515
    %v1538 = vcombine.high %v1522, %v1522
    %v1539 = vcombine.high %v1529, %v1529
    %v1540 = vcombine.high %v1536, %v1536
    %v1541 = vcombine.high %v35, %v35
    %v1543 = vunpack.c.l.s4 1966171168
    %v1544 = vunpack.c.0.s8 %v1543
    %v1545 = vlaneseq
    %v1546 = vshrl.u32 %v1545, 7
    %v1547 = vsub.s32 %v1544, %v1546
    %v1548 = vrot.slane %v35, %v1547
    %v1550 = vunpack.c.l.s4 1966171168
    %v1551 = vunpack.c.0.s8 %v1550
    %v1552 = vlaneseq
    %v1553 = vshrl.u32 %v1552, 7
    %v1554 = vsub.s32 %v1551, %v1553
    %v1555 = vrot.slane %v1541, %v1554
    %v1556 = vcombine.high %v1548, %v1548
    %v1557 = vcombine.high %v1555, %v1555
    %v1559 = vunpack.c.l.s4 1966171168
    %v1560 = vunpack.c.0.s8 %v1559
    %v1561 = vlaneseq
    %v1562 = vshrl.u32 %v1561, 7
    %v1563 = vsub.s32 %v1560, %v1562
    %v1564 = vrot.slane %v1548, %v1563
    %v1566 = vunpack.c.l.s4 1966171168
    %v1567 = vunpack.c.0.s8 %v1566
    %v1568 = vlaneseq
    %v1569 = vshrl.u32 %v1568, 7
    %v1570 = vsub.s32 %v1567, %v1569
    %v1571 = vrot.slane %v1555, %v1570
    %v1573 = vunpack.c.l.s4 1966171168
    %v1574 = vunpack.c.0.s8 %v1573
    %v1575 = vlaneseq
    %v1576 = vshrl.u32 %v1575, 7
    %v1577 = vsub.s32 %v1574, %v1576
    %v1578 = vrot.slane %v1556, %v1577
    %v1580 = vunpack.c.l.s4 1966171168
    %v1581 = vunpack.c.0.s8 %v1580
    %v1582 = vlaneseq
    %v1583 = vshrl.u32 %v1582, 7
    %v1584 = vsub.s32 %v1581, %v1583
    %v1585 = vrot.slane %v1557, %v1584
    %v1586 = vcombine.high %v1564, %v1564
    %v1587 = vcombine.high %v1571, %v1571
    %v1588 = vcombine.high %v1578, %v1578
    %v1589 = vcombine.high %v1585, %v1585
    %v1590 = vcombine.high %v36, %v36
    %v1592 = vunpack.c.l.s4 1966171168
    %v1593 = vunpack.c.0.s8 %v1592
    %v1594 = vlaneseq
    %v1595 = vshrl.u32 %v1594, 7
    %v1596 = vsub.s32 %v1593, %v1595
    %v1597 = vrot.slane %v36, %v1596
    %v1599 = vunpack.c.l.s4 1966171168
    %v1600 = vunpack.c.0.s8 %v1599
    %v1601 = vlaneseq
    %v1602 = vshrl.u32 %v1601, 7
    %v1603 = vsub.s32 %v1600, %v1602
    %v1604 = vrot.slane %v1590, %v1603
    %v1605 = vcombine.high %v1597, %v1597
    %v1606 = vcombine.high %v1604, %v1604
    %v1608 = vunpack.c.l.s4 1966171168
    %v1609 = vunpack.c.0.s8 %v1608
    %v1610 = vlaneseq
    %v1611 = vshrl.u32 %v1610, 7
    %v1612 = vsub.s32 %v1609, %v1611
    %v1613 = vrot.slane %v1597, %v1612
    %v1615 = vunpack.c.l.s4 1966171168
    %v1616 = vunpack.c.0.s8 %v1615
    %v1617 = vlaneseq
    %v1618 = vshrl.u32 %v1617, 7
    %v1619 = vsub.s32 %v1616, %v1618
    %v1620 = vrot.slane %v1604, %v1619
    %v1622 = vunpack.c.l.s4 1966171168
    %v1623 = vunpack.c.0.s8 %v1622
    %v1624 = vlaneseq
    %v1625 = vshrl.u32 %v1624, 7
    %v1626 = vsub.s32 %v1623, %v1625
    %v1627 = vrot.slane %v1605, %v1626
    %v1629 = vunpack.c.l.s4 1966171168
    %v1630 = vunpack.c.0.s8 %v1629
    %v1631 = vlaneseq
    %v1632 = vshrl.u32 %v1631, 7
    %v1633 = vsub.s32 %v1630, %v1632
    %v1634 = vrot.slane %v1606, %v1633
    %v1635 = vcombine.high %v1613, %v1613
    %v1636 = vcombine.high %v1620, %v1620
    %v1637 = vcombine.high %v1627, %v1627
    %v1638 = vcombine.high %v1634, %v1634
    %v1639 = vcombine.high %v37, %v37
    %v1641 = vunpack.c.l.s4 1966171168
    %v1642 = vunpack.c.0.s8 %v1641
    %v1643 = vlaneseq
    %v1644 = vshrl.u32 %v1643, 7
    %v1645 = vsub.s32 %v1642, %v1644
    %v1646 = vrot.slane %v37, %v1645
    %v1648 = vunpack.c.l.s4 1966171168
    %v1649 = vunpack.c.0.s8 %v1648
    %v1650 = vlaneseq
    %v1651 = vshrl.u32 %v1650, 7
    %v1652 = vsub.s32 %v1649, %v1651
    %v1653 = vrot.slane %v1639, %v1652
    %v1654 = vcombine.high %v1646, %v1646
    %v1655 = vcombine.high %v1653, %v1653
    %v1657 = vunpack.c.l.s4 1966171168
    %v1658 = vunpack.c.0.s8 %v1657
    %v1659 = vlaneseq
    %v1660 = vshrl.u32 %v1659, 7
    %v1661 = vsub.s32 %v1658, %v1660
    %v1662 = vrot.slane %v1646, %v1661
    %v1664 = vunpack.c.l.s4 1966171168
    %v1665 = vunpack.c.0.s8 %v1664
    %v1666 = vlaneseq
    %v1667 = vshrl.u32 %v1666, 7
    %v1668 = vsub.s32 %v1665, %v1667
    %v1669 = vrot.slane %v1653, %v1668
    %v1671 = vunpack.c.l.s4 1966171168
    %v1672 = vunpack.c.0.s8 %v1671
    %v1673 = vlaneseq
    %v1674 = vshrl.u32 %v1673, 7
    %v1675 = vsub.s32 %v1672, %v1674
    %v1676 = vrot.slane %v1654, %v1675
    %v1678 = vunpack.c.l.s4 1966171168
    %v1679 = vunpack.c.0.s8 %v1678
    %v1680 = vlaneseq
    %v1681 = vshrl.u32 %v1680, 7
    %v1682 = vsub.s32 %v1679, %v1681
    %v1683 = vrot.slane %v1655, %v1682
    %v1684 = vcombine.high %v1662, %v1662
    %v1685 = vcombine.high %v1669, %v1669
    %v1686 = vcombine.high %v1676, %v1676
    %v1687 = vcombine.high %v1683, %v1683
    %v1688 = vcombine.high %v38, %v38
    %v1690 = vunpack.c.l.s4 1966171168
    %v1691 = vunpack.c.0.s8 %v1690
    %v1692 = vlaneseq
    %v1693 = vshrl.u32 %v1692, 7
    %v1694 = vsub.s32 %v1691, %v1693
    %v1695 = vrot.slane %v38, %v1694
    %v1697 = vunpack.c.l.s4 1966171168
    %v1698 = vunpack.c.0.s8 %v1697
    %v1699 = vlaneseq
    %v1700 = vshrl.u32 %v1699, 7
    %v1701 = vsub.s32 %v1698, %v1700
    %v1702 = vrot.slane %v1688, %v1701
    %v1703 = vcombine.high %v1695, %v1695
    %v1704 = vcombine.high %v1702, %v1702
    %v1706 = vunpack.c.l.s4 1966171168
    %v1707 = vunpack.c.0.s8 %v1706
    %v1708 = vlaneseq
    %v1709 = vshrl.u32 %v1708, 7
    %v1710 = vsub.s32 %v1707, %v1709
    %v1711 = vrot.slane %v1695, %v1710
    %v1713 = vunpack.c.l.s4 1966171168
    %v1714 = vunpack.c.0.s8 %v1713
    %v1715 = vlaneseq
    %v1716 = vshrl.u32 %v1715, 7
    %v1717 = vsub.s32 %v1714, %v1716
    %v1718 = vrot.slane %v1702, %v1717
    %v1720 = vunpack.c.l.s4 1966171168
    %v1721 = vunpack.c.0.s8 %v1720
    %v1722 = vlaneseq
    %v1723 = vshrl.u32 %v1722, 7
    %v1724 = vsub.s32 %v1721, %v1723
    %v1725 = vrot.slane %v1703, %v1724
    %v1727 = vunpack.c.l.s4 1966171168
    %v1728 = vunpack.c.0.s8 %v1727
    %v1729 = vlaneseq
    %v1730 = vshrl.u32 %v1729, 7
    %v1731 = vsub.s32 %v1728, %v1730
    %v1732 = vrot.slane %v1704, %v1731
    %v1733 = vcombine.high %v1711, %v1711
    %v1734 = vcombine.high %v1718, %v1718
    %v1735 = vcombine.high %v1725, %v1725
    %v1736 = vcombine.high %v1732, %v1732
    %v1737 = vcombine.high %v39, %v39
    %v1739 = vunpack.c.l.s4 1966171168
    %v1740 = vunpack.c.0.s8 %v1739
    %v1741 = vlaneseq
    %v1742 = vshrl.u32 %v1741, 7
    %v1743 = vsub.s32 %v1740, %v1742
    %v1744 = vrot.slane %v39, %v1743
    %v1746 = vunpack.c.l.s4 1966171168
    %v1747 = vunpack.c.0.s8 %v1746
    %v1748 = vlaneseq
    %v1749 = vshrl.u32 %v1748, 7
    %v1750 = vsub.s32 %v1747, %v1749
    %v1751 = vrot.slane %v1737, %v1750
    %v1752 = vcombine.high %v1744, %v1744
    %v1753 = vcombine.high %v1751, %v1751
    %v1755 = vunpack.c.l.s4 1966171168
    %v1756 = vunpack.c.0.s8 %v1755
    %v1757 = vlaneseq
    %v1758 = vshrl.u32 %v1757, 7
    %v1759 = vsub.s32 %v1756, %v1758
    %v1760 = vrot.slane %v1744, %v1759
    %v1762 = vunpack.c.l.s4 1966171168
    %v1763 = vunpack.c.0.s8 %v1762
    %v1764 = vlaneseq
    %v1765 = vshrl.u32 %v1764, 7
    %v1766 = vsub.s32 %v1763, %v1765
    %v1767 = vrot.slane %v1751, %v1766
    %v1769 = vunpack.c.l.s4 1966171168
    %v1770 = vunpack.c.0.s8 %v1769
    %v1771 = vlaneseq
    %v1772 = vshrl.u32 %v1771, 7
    %v1773 = vsub.s32 %v1770, %v1772
    %v1774 = vrot.slane %v1752, %v1773
    %v1776 = vunpack.c.l.s4 1966171168
    %v1777 = vunpack.c.0.s8 %v1776
    %v1778 = vlaneseq
    %v1779 = vshrl.u32 %v1778, 7
    %v1780 = vsub.s32 %v1777, %v1779
    %v1781 = vrot.slane %v1753, %v1780
    %v1782 = vcombine.high %v1760, %v1760
    %v1783 = vcombine.high %v1767, %v1767
    %v1784 = vcombine.high %v1774, %v1774
    %v1785 = vcombine.high %v1781, %v1781
    %v1786 = vcombine.high %v40, %v40
    %v1788 = vunpack.c.l.s4 1966171168
    %v1789 = vunpack.c.0.s8 %v1788
    %v1790 = vlaneseq
    %v1791 = vshrl.u32 %v1790, 7
    %v1792 = vsub.s32 %v1789, %v1791
    %v1793 = vrot.slane %v40, %v1792
    %v1795 = vunpack.c.l.s4 1966171168
    %v1796 = vunpack.c.0.s8 %v1795
    %v1797 = vlaneseq
    %v1798 = vshrl.u32 %v1797, 7
    %v1799 = vsub.s32 %v1796, %v1798
    %v1800 = vrot.slane %v1786, %v1799
    %v1801 = vcombine.high %v1793, %v1793
    %v1802 = vcombine.high %v1800, %v1800
    %v1804 = vunpack.c.l.s4 1966171168
    %v1805 = vunpack.c.0.s8 %v1804
    %v1806 = vlaneseq
    %v1807 = vshrl.u32 %v1806, 7
    %v1808 = vsub.s32 %v1805, %v1807
    %v1809 = vrot.slane %v1793, %v1808
    %v1811 = vunpack.c.l.s4 1966171168
    %v1812 = vunpack.c.0.s8 %v1811
    %v1813 = vlaneseq
    %v1814 = vshrl.u32 %v1813, 7
    %v1815 = vsub.s32 %v1812, %v1814
    %v1816 = vrot.slane %v1800, %v1815
    %v1818 = vunpack.c.l.s4 1966171168
    %v1819 = vunpack.c.0.s8 %v1818
    %v1820 = vlaneseq
    %v1821 = vshrl.u32 %v1820, 7
    %v1822 = vsub.s32 %v1819, %v1821
    %v1823 = vrot.slane %v1801, %v1822
    %v1825 = vunpack.c.l.s4 1966171168
    %v1826 = vunpack.c.0.s8 %v1825
    %v1827 = vlaneseq
    %v1828 = vshrl.u32 %v1827, 7
    %v1829 = vsub.s32 %v1826, %v1828
    %v1830 = vrot.slane %v1802, %v1829
    %v1831 = vcombine.high %v1809, %v1809
    %v1832 = vcombine.high %v1816, %v1816
    %v1833 = vcombine.high %v1823, %v1823
    %v1834 = vcombine.high %v1830, %v1830
    %v1835 = vcombine.high %v41, %v41
    %v1837 = vunpack.c.l.s4 1966171168
    %v1838 = vunpack.c.0.s8 %v1837
    %v1839 = vlaneseq
    %v1840 = vshrl.u32 %v1839, 7
    %v1841 = vsub.s32 %v1838, %v1840
    %v1842 = vrot.slane %v41, %v1841
    %v1844 = vunpack.c.l.s4 1966171168
    %v1845 = vunpack.c.0.s8 %v1844
    %v1846 = vlaneseq
    %v1847 = vshrl.u32 %v1846, 7
    %v1848 = vsub.s32 %v1845, %v1847
    %v1849 = vrot.slane %v1835, %v1848
    %v1850 = vcombine.high %v1842, %v1842
    %v1851 = vcombine.high %v1849, %v1849
    %v1853 = vunpack.c.l.s4 1966171168
    %v1854 = vunpack.c.0.s8 %v1853
    %v1855 = vlaneseq
    %v1856 = vshrl.u32 %v1855, 7
    %v1857 = vsub.s32 %v1854, %v1856
    %v1858 = vrot.slane %v1842, %v1857
    %v1860 = vunpack.c.l.s4 1966171168
    %v1861 = vunpack.c.0.s8 %v1860
    %v1862 = vlaneseq
    %v1863 = vshrl.u32 %v1862, 7
    %v1864 = vsub.s32 %v1861, %v1863
    %v1865 = vrot.slane %v1849, %v1864
    %v1867 = vunpack.c.l.s4 1966171168
    %v1868 = vunpack.c.0.s8 %v1867
    %v1869 = vlaneseq
    %v1870 = vshrl.u32 %v1869, 7
    %v1871 = vsub.s32 %v1868, %v1870
    %v1872 = vrot.slane %v1850, %v1871
    %v1874 = vunpack.c.l.s4 1966171168
    %v1875 = vunpack.c.0.s8 %v1874
    %v1876 = vlaneseq
    %v1877 = vshrl.u32 %v1876, 7
    %v1878 = vsub.s32 %v1875, %v1877
    %v1879 = vrot.slane %v1851, %v1878
    %v1880 = vcombine.high %v1858, %v1858
    %v1881 = vcombine.high %v1865, %v1865
    %v1882 = vcombine.high %v1872, %v1872
    %v1883 = vcombine.high %v1879, %v1879
    %v1884 = vcombine.high %v42, %v42
    %v1886 = vunpack.c.l.s4 1966171168
    %v1887 = vunpack.c.0.s8 %v1886
    %v1888 = vlaneseq
    %v1889 = vshrl.u32 %v1888, 7
    %v1890 = vsub.s32 %v1887, %v1889
    %v1891 = vrot.slane %v42, %v1890
    %v1893 = vunpack.c.l.s4 1966171168
    %v1894 = vunpack.c.0.s8 %v1893
    %v1895 = vlaneseq
    %v1896 = vshrl.u32 %v1895, 7
    %v1897 = vsub.s32 %v1894, %v1896
    %v1898 = vrot.slane %v1884, %v1897
    %v1899 = vcombine.high %v1891, %v1891
    %v1900 = vcombine.high %v1898, %v1898
    %v1902 = vunpack.c.l.s4 1966171168
    %v1903 = vunpack.c.0.s8 %v1902
    %v1904 = vlaneseq
    %v1905 = vshrl.u32 %v1904, 7
    %v1906 = vsub.s32 %v1903, %v1905
    %v1907 = vrot.slane %v1891, %v1906
    %v1909 = vunpack.c.l.s4 1966171168
    %v1910 = vunpack.c.0.s8 %v1909
    %v1911 = vlaneseq
    %v1912 = vshrl.u32 %v1911, 7
    %v1913 = vsub.s32 %v1910, %v1912
    %v1914 = vrot.slane %v1898, %v1913
    %v1916 = vunpack.c.l.s4 1966171168
    %v1917 = vunpack.c.0.s8 %v1916
    %v1918 = vlaneseq
    %v1919 = vshrl.u32 %v1918, 7
    %v1920 = vsub.s32 %v1917, %v1919
    %v1921 = vrot.slane %v1899, %v1920
    %v1923 = vunpack.c.l.s4 1966171168
    %v1924 = vunpack.c.0.s8 %v1923
    %v1925 = vlaneseq
    %v1926 = vshrl.u32 %v1925, 7
    %v1927 = vsub.s32 %v1924, %v1926
    %v1928 = vrot.slane %v1900, %v1927
    %v1929 = vcombine.high %v1907, %v1907
    %v1930 = vcombine.high %v1914, %v1914
    %v1931 = vcombine.high %v1921, %v1921
    %v1932 = vcombine.high %v1928, %v1928
    %v1933 = vcombine.high %v43, %v43
    %v1935 = vunpack.c.l.s4 1966171168
    %v1936 = vunpack.c.0.s8 %v1935
    %v1937 = vlaneseq
    %v1938 = vshrl.u32 %v1937, 7
    %v1939 = vsub.s32 %v1936, %v1938
    %v1940 = vrot.slane %v43, %v1939
    %v1942 = vunpack.c.l.s4 1966171168
    %v1943 = vunpack.c.0.s8 %v1942
    %v1944 = vlaneseq
    %v1945 = vshrl.u32 %v1944, 7
    %v1946 = vsub.s32 %v1943, %v1945
    %v1947 = vrot.slane %v1933, %v1946
    %v1948 = vcombine.high %v1940, %v1940
    %v1949 = vcombine.high %v1947, %v1947
    %v1951 = vunpack.c.l.s4 1966171168
    %v1952 = vunpack.c.0.s8 %v1951
    %v1953 = vlaneseq
    %v1954 = vshrl.u32 %v1953, 7
    %v1955 = vsub.s32 %v1952, %v1954
    %v1956 = vrot.slane %v1940, %v1955
    %v1958 = vunpack.c.l.s4 1966171168
    %v1959 = vunpack.c.0.s8 %v1958
    %v1960 = vlaneseq
    %v1961 = vshrl.u32 %v1960, 7
    %v1962 = vsub.s32 %v1959, %v1961
    %v1963 = vrot.slane %v1947, %v1962
    %v1965 = vunpack.c.l.s4 1966171168
    %v1966 = vunpack.c.0.s8 %v1965
    %v1967 = vlaneseq
    %v1968 = vshrl.u32 %v1967, 7
    %v1969 = vsub.s32 %v1966, %v1968
    %v1970 = vrot.slane %v1948, %v1969
    %v1972 = vunpack.c.l.s4 1966171168
    %v1973 = vunpack.c.0.s8 %v1972
    %v1974 = vlaneseq
    %v1975 = vshrl.u32 %v1974, 7
    %v1976 = vsub.s32 %v1973, %v1975
    %v1977 = vrot.slane %v1949, %v1976
    %v1978 = vcombine.high %v1956, %v1956
    %v1979 = vcombine.high %v1963, %v1963
    %v1980 = vcombine.high %v1970, %v1970
    %v1981 = vcombine.high %v1977, %v1977
    %v1982 = vcombine.high %v44, %v44
    %v1984 = vunpack.c.l.s4 1966171168
    %v1985 = vunpack.c.0.s8 %v1984
    %v1986 = vlaneseq
    %v1987 = vshrl.u32 %v1986, 7
    %v1988 = vsub.s32 %v1985, %v1987
    %v1989 = vrot.slane %v44, %v1988
    %v1991 = vunpack.c.l.s4 1966171168
    %v1992 = vunpack.c.0.s8 %v1991
    %v1993 = vlaneseq
    %v1994 = vshrl.u32 %v1993, 7
    %v1995 = vsub.s32 %v1992, %v1994
    %v1996 = vrot.slane %v1982, %v1995
    %v1997 = vcombine.high %v1989, %v1989
    %v1998 = vcombine.high %v1996, %v1996
    %v2000 = vunpack.c.l.s4 1966171168
    %v2001 = vunpack.c.0.s8 %v2000
    %v2002 = vlaneseq
    %v2003 = vshrl.u32 %v2002, 7
    %v2004 = vsub.s32 %v2001, %v2003
    %v2005 = vrot.slane %v1989, %v2004
    %v2007 = vunpack.c.l.s4 1966171168
    %v2008 = vunpack.c.0.s8 %v2007
    %v2009 = vlaneseq
    %v2010 = vshrl.u32 %v2009, 7
    %v2011 = vsub.s32 %v2008, %v2010
    %v2012 = vrot.slane %v1996, %v2011
    %v2014 = vunpack.c.l.s4 1966171168
    %v2015 = vunpack.c.0.s8 %v2014
    %v2016 = vlaneseq
    %v2017 = vshrl.u32 %v2016, 7
    %v2018 = vsub.s32 %v2015, %v2017
    %v2019 = vrot.slane %v1997, %v2018
    %v2021 = vunpack.c.l.s4 1966171168
    %v2022 = vunpack.c.0.s8 %v2021
    %v2023 = vlaneseq
    %v2024 = vshrl.u32 %v2023, 7
    %v2025 = vsub.s32 %v2022, %v2024
    %v2026 = vrot.slane %v1998, %v2025
    %v2027 = vcombine.high %v2005, %v2005
    %v2028 = vcombine.high %v2012, %v2012
    %v2029 = vcombine.high %v2019, %v2019
    %v2030 = vcombine.high %v2026, %v2026
    %v2031 = vcombine.high %v45, %v45
    %v2033 = vunpack.c.l.s4 1966171168
    %v2034 = vunpack.c.0.s8 %v2033
    %v2035 = vlaneseq
    %v2036 = vshrl.u32 %v2035, 7
    %v2037 = vsub.s32 %v2034, %v2036
    %v2038 = vrot.slane %v45, %v2037
    %v2040 = vunpack.c.l.s4 1966171168
    %v2041 = vunpack.c.0.s8 %v2040
    %v2042 = vlaneseq
    %v2043 = vshrl.u32 %v2042, 7
    %v2044 = vsub.s32 %v2041, %v2043
    %v2045 = vrot.slane %v2031, %v2044
    %v2046 = vcombine.high %v2038, %v2038
    %v2047 = vcombine.high %v2045, %v2045
    %v2049 = vunpack.c.l.s4 1966171168
    %v2050 = vunpack.c.0.s8 %v2049
    %v2051 = vlaneseq
    %v2052 = vshrl.u32 %v2051, 7
    %v2053 = vsub.s32 %v2050, %v2052
    %v2054 = vrot.slane %v2038, %v2053
    %v2056 = vunpack.c.l.s4 1966171168
    %v2057 = vunpack.c.0.s8 %v2056
    %v2058 = vlaneseq
    %v2059 = vshrl.u32 %v2058, 7
    %v2060 = vsub.s32 %v2057, %v2059
    %v2061 = vrot.slane %v2045, %v2060
    %v2063 = vunpack.c.l.s4 1966171168
    %v2064 = vunpack.c.0.s8 %v2063
    %v2065 = vlaneseq
    %v2066 = vshrl.u32 %v2065, 7
    %v2067 = vsub.s32 %v2064, %v2066
    %v2068 = vrot.slane %v2046, %v2067
    %v2070 = vunpack.c.l.s4 1966171168
    %v2071 = vunpack.c.0.s8 %v2070
    %v2072 = vlaneseq
    %v2073 = vshrl.u32 %v2072, 7
    %v2074 = vsub.s32 %v2071, %v2073
    %v2075 = vrot.slane %v2047, %v2074
    %v2076 = vcombine.high %v2054, %v2054
    %v2077 = vcombine.high %v2061, %v2061
    %v2078 = vcombine.high %v2068, %v2068
    %v2079 = vcombine.high %v2075, %v2075
    %v2080 = vcombine.high %v46, %v46
    %v2082 = vunpack.c.l.s4 1966171168
    %v2083 = vunpack.c.0.s8 %v2082
    %v2084 = vlaneseq
    %v2085 = vshrl.u32 %v2084, 7
    %v2086 = vsub.s32 %v2083, %v2085
    %v2087 = vrot.slane %v46, %v2086
    %v2089 = vunpack.c.l.s4 1966171168
    %v2090 = vunpack.c.0.s8 %v2089
    %v2091 = vlaneseq
    %v2092 = vshrl.u32 %v2091, 7
    %v2093 = vsub.s32 %v2090, %v2092
    %v2094 = vrot.slane %v2080, %v2093
    %v2095 = vcombine.high %v2087, %v2087
    %v2096 = vcombine.high %v2094, %v2094
    %v2098 = vunpack.c.l.s4 1966171168
    %v2099 = vunpack.c.0.s8 %v2098
    %v2100 = vlaneseq
    %v2101 = vshrl.u32 %v2100, 7
    %v2102 = vsub.s32 %v2099, %v2101
    %v2103 = vrot.slane %v2087, %v2102
    %v2105 = vunpack.c.l.s4 1966171168
    %v2106 = vunpack.c.0.s8 %v2105
    %v2107 = vlaneseq
    %v2108 = vshrl.u32 %v2107, 7
    %v2109 = vsub.s32 %v2106, %v2108
    %v2110 = vrot.slane %v2094, %v2109
    %v2112 = vunpack.c.l.s4 1966171168
    %v2113 = vunpack.c.0.s8 %v2112
    %v2114 = vlaneseq
    %v2115 = vshrl.u32 %v2114, 7
    %v2116 = vsub.s32 %v2113, %v2115
    %v2117 = vrot.slane %v2095, %v2116
    %v2119 = vunpack.c.l.s4 1966171168
    %v2120 = vunpack.c.0.s8 %v2119
    %v2121 = vlaneseq
    %v2122 = vshrl.u32 %v2121, 7
    %v2123 = vsub.s32 %v2120, %v2122
    %v2124 = vrot.slane %v2096, %v2123
    %v2125 = vcombine.high %v2103, %v2103
    %v2126 = vcombine.high %v2110, %v2110
    %v2127 = vcombine.high %v2117, %v2117
    %v2128 = vcombine.high %v2124, %v2124
    %v2129 = vcombine.high %v47, %v47
    %v2131 = vunpack.c.l.s4 1966171168
    %v2132 = vunpack.c.0.s8 %v2131
    %v2133 = vlaneseq
    %v2134 = vshrl.u32 %v2133, 7
    %v2135 = vsub.s32 %v2132, %v2134
    %v2136 = vrot.slane %v47, %v2135
    %v2138 = vunpack.c.l.s4 1966171168
    %v2139 = vunpack.c.0.s8 %v2138
    %v2140 = vlaneseq
    %v2141 = vshrl.u32 %v2140, 7
    %v2142 = vsub.s32 %v2139, %v2141
    %v2143 = vrot.slane %v2129, %v2142
    %v2144 = vcombine.high %v2136, %v2136
    %v2145 = vcombine.high %v2143, %v2143
    %v2147 = vunpack.c.l.s4 1966171168
    %v2148 = vunpack.c.0.s8 %v2147
    %v2149 = vlaneseq
    %v2150 = vshrl.u32 %v2149, 7
    %v2151 = vsub.s32 %v2148, %v2150
    %v2152 = vrot.slane %v2136, %v2151
    %v2154 = vunpack.c.l.s4 1966171168
    %v2155 = vunpack.c.0.s8 %v2154
    %v2156 = vlaneseq
    %v2157 = vshrl.u32 %v2156, 7
    %v2158 = vsub.s32 %v2155, %v2157
    %v2159 = vrot.slane %v2143, %v2158
    %v2161 = vunpack.c.l.s4 1966171168
    %v2162 = vunpack.c.0.s8 %v2161
    %v2163 = vlaneseq
    %v2164 = vshrl.u32 %v2163, 7
    %v2165 = vsub.s32 %v2162, %v2164
    %v2166 = vrot.slane %v2144, %v2165
    %v2168 = vunpack.c.l.s4 1966171168
    %v2169 = vunpack.c.0.s8 %v2168
    %v2170 = vlaneseq
    %v2171 = vshrl.u32 %v2170, 7
    %v2172 = vsub.s32 %v2169, %v2171
    %v2173 = vrot.slane %v2145, %v2172
    %v2174 = vcombine.high %v2152, %v2152
    %v2175 = vcombine.high %v2159, %v2159
    %v2176 = vcombine.high %v2166, %v2166
    %v2177 = vcombine.high %v2173, %v2173
    %v2178 = vcombine.high %v48, %v48
    %v2180 = vunpack.c.l.s4 1966171168
    %v2181 = vunpack.c.0.s8 %v2180
    %v2182 = vlaneseq
    %v2183 = vshrl.u32 %v2182, 7
    %v2184 = vsub.s32 %v2181, %v2183
    %v2185 = vrot.slane %v48, %v2184
    %v2187 = vunpack.c.l.s4 1966171168
    %v2188 = vunpack.c.0.s8 %v2187
    %v2189 = vlaneseq
    %v2190 = vshrl.u32 %v2189, 7
    %v2191 = vsub.s32 %v2188, %v2190
    %v2192 = vrot.slane %v2178, %v2191
    %v2193 = vcombine.high %v2185, %v2185
    %v2194 = vcombine.high %v2192, %v2192
    %v2196 = vunpack.c.l.s4 1966171168
    %v2197 = vunpack.c.0.s8 %v2196
    %v2198 = vlaneseq
    %v2199 = vshrl.u32 %v2198, 7
    %v2200 = vsub.s32 %v2197, %v2199
    %v2201 = vrot.slane %v2185, %v2200
    %v2203 = vunpack.c.l.s4 1966171168
    %v2204 = vunpack.c.0.s8 %v2203
    %v2205 = vlaneseq
    %v2206 = vshrl.u32 %v2205, 7
    %v2207 = vsub.s32 %v2204, %v2206
    %v2208 = vrot.slane %v2192, %v2207
    %v2210 = vunpack.c.l.s4 1966171168
    %v2211 = vunpack.c.0.s8 %v2210
    %v2212 = vlaneseq
    %v2213 = vshrl.u32 %v2212, 7
    %v2214 = vsub.s32 %v2211, %v2213
    %v2215 = vrot.slane %v2193, %v2214
    %v2217 = vunpack.c.l.s4 1966171168
    %v2218 = vunpack.c.0.s8 %v2217
    %v2219 = vlaneseq
    %v2220 = vshrl.u32 %v2219, 7
    %v2221 = vsub.s32 %v2218, %v2220
    %v2222 = vrot.slane %v2194, %v2221
    %v2223 = vcombine.high %v2201, %v2201
    %v2224 = vcombine.high %v2208, %v2208
    %v2225 = vcombine.high %v2215, %v2215
    %v2226 = vcombine.high %v2222, %v2222
    %v2227 = vcombine.high %v49, %v49
    %v2229 = vunpack.c.l.s4 1966171168
    %v2230 = vunpack.c.0.s8 %v2229
    %v2231 = vlaneseq
    %v2232 = vshrl.u32 %v2231, 7
    %v2233 = vsub.s32 %v2230, %v2232
    %v2234 = vrot.slane %v49, %v2233
    %v2236 = vunpack.c.l.s4 1966171168
    %v2237 = vunpack.c.0.s8 %v2236
    %v2238 = vlaneseq
    %v2239 = vshrl.u32 %v2238, 7
    %v2240 = vsub.s32 %v2237, %v2239
    %v2241 = vrot.slane %v2227, %v2240
    %v2242 = vcombine.high %v2234, %v2234
    %v2243 = vcombine.high %v2241, %v2241
    %v2245 = vunpack.c.l.s4 1966171168
    %v2246 = vunpack.c.0.s8 %v2245
    %v2247 = vlaneseq
    %v2248 = vshrl.u32 %v2247, 7
    %v2249 = vsub.s32 %v2246, %v2248
    %v2250 = vrot.slane %v2234, %v2249
    %v2252 = vunpack.c.l.s4 1966171168
    %v2253 = vunpack.c.0.s8 %v2252
    %v2254 = vlaneseq
    %v2255 = vshrl.u32 %v2254, 7
    %v2256 = vsub.s32 %v2253, %v2255
    %v2257 = vrot.slane %v2241, %v2256
    %v2259 = vunpack.c.l.s4 1966171168
    %v2260 = vunpack.c.0.s8 %v2259
    %v2261 = vlaneseq
    %v2262 = vshrl.u32 %v2261, 7
    %v2263 = vsub.s32 %v2260, %v2262
    %v2264 = vrot.slane %v2242, %v2263
    %v2266 = vunpack.c.l.s4 1966171168
    %v2267 = vunpack.c.0.s8 %v2266
    %v2268 = vlaneseq
    %v2269 = vshrl.u32 %v2268, 7
    %v2270 = vsub.s32 %v2267, %v2269
    %v2271 = vrot.slane %v2243, %v2270
    %v2272 = vcombine.high %v2250, %v2250
    %v2273 = vcombine.high %v2257, %v2257
    %v2274 = vcombine.high %v2264, %v2264
    %v2275 = vcombine.high %v2271, %v2271
    %v2276 = vcombine.high %v50, %v50
    %v2278 = vunpack.c.l.s4 1966171168
    %v2279 = vunpack.c.0.s8 %v2278
    %v2280 = vlaneseq
    %v2281 = vshrl.u32 %v2280, 7
    %v2282 = vsub.s32 %v2279, %v2281
    %v2283 = vrot.slane %v50, %v2282
    %v2285 = vunpack.c.l.s4 1966171168
    %v2286 = vunpack.c.0.s8 %v2285
    %v2287 = vlaneseq
    %v2288 = vshrl.u32 %v2287, 7
    %v2289 = vsub.s32 %v2286, %v2288
    %v2290 = vrot.slane %v2276, %v2289
    %v2291 = vcombine.high %v2283, %v2283
    %v2292 = vcombine.high %v2290, %v2290
    %v2294 = vunpack.c.l.s4 1966171168
    %v2295 = vunpack.c.0.s8 %v2294
    %v2296 = vlaneseq
    %v2297 = vshrl.u32 %v2296, 7
    %v2298 = vsub.s32 %v2295, %v2297
    %v2299 = vrot.slane %v2283, %v2298
    %v2301 = vunpack.c.l.s4 1966171168
    %v2302 = vunpack.c.0.s8 %v2301
    %v2303 = vlaneseq
    %v2304 = vshrl.u32 %v2303, 7
    %v2305 = vsub.s32 %v2302, %v2304
    %v2306 = vrot.slane %v2290, %v2305
    %v2308 = vunpack.c.l.s4 1966171168
    %v2309 = vunpack.c.0.s8 %v2308
    %v2310 = vlaneseq
    %v2311 = vshrl.u32 %v2310, 7
    %v2312 = vsub.s32 %v2309, %v2311
    %v2313 = vrot.slane %v2291, %v2312
    %v2315 = vunpack.c.l.s4 1966171168
    %v2316 = vunpack.c.0.s8 %v2315
    %v2317 = vlaneseq
    %v2318 = vshrl.u32 %v2317, 7
    %v2319 = vsub.s32 %v2316, %v2318
    %v2320 = vrot.slane %v2292, %v2319
    %v2321 = vcombine.high %v2299, %v2299
    %v2322 = vcombine.high %v2306, %v2306
    %v2323 = vcombine.high %v2313, %v2313
    %v2324 = vcombine.high %v2320, %v2320
    %v2325 = vcombine.high %v51, %v51
    %v2327 = vunpack.c.l.s4 1966171168
    %v2328 = vunpack.c.0.s8 %v2327
    %v2329 = vlaneseq
    %v2330 = vshrl.u32 %v2329, 7
    %v2331 = vsub.s32 %v2328, %v2330
    %v2332 = vrot.slane %v51, %v2331
    %v2334 = vunpack.c.l.s4 1966171168
    %v2335 = vunpack.c.0.s8 %v2334
    %v2336 = vlaneseq
    %v2337 = vshrl.u32 %v2336, 7
    %v2338 = vsub.s32 %v2335, %v2337
    %v2339 = vrot.slane %v2325, %v2338
    %v2340 = vcombine.high %v2332, %v2332
    %v2341 = vcombine.high %v2339, %v2339
    %v2343 = vunpack.c.l.s4 1966171168
    %v2344 = vunpack.c.0.s8 %v2343
    %v2345 = vlaneseq
    %v2346 = vshrl.u32 %v2345, 7
    %v2347 = vsub.s32 %v2344, %v2346
    %v2348 = vrot.slane %v2332, %v2347
    %v2350 = vunpack.c.l.s4 1966171168
    %v2351 = vunpack.c.0.s8 %v2350
    %v2352 = vlaneseq
    %v2353 = vshrl.u32 %v2352, 7
    %v2354 = vsub.s32 %v2351, %v2353
    %v2355 = vrot.slane %v2339, %v2354
    %v2357 = vunpack.c.l.s4 1966171168
    %v2358 = vunpack.c.0.s8 %v2357
    %v2359 = vlaneseq
    %v2360 = vshrl.u32 %v2359, 7
    %v2361 = vsub.s32 %v2358, %v2360
    %v2362 = vrot.slane %v2340, %v2361
    %v2364 = vunpack.c.l.s4 1966171168
    %v2365 = vunpack.c.0.s8 %v2364
    %v2366 = vlaneseq
    %v2367 = vshrl.u32 %v2366, 7
    %v2368 = vsub.s32 %v2365, %v2367
    %v2369 = vrot.slane %v2341, %v2368
    %v2370 = vcombine.high %v2348, %v2348
    %v2371 = vcombine.high %v2355, %v2355
    %v2372 = vcombine.high %v2362, %v2362
    %v2373 = vcombine.high %v2369, %v2369
    %v2374 = vcombine.high %v52, %v52
    %v2376 = vunpack.c.l.s4 1966171168
    %v2377 = vunpack.c.0.s8 %v2376
    %v2378 = vlaneseq
    %v2379 = vshrl.u32 %v2378, 7
    %v2380 = vsub.s32 %v2377, %v2379
    %v2381 = vrot.slane %v52, %v2380
    %v2383 = vunpack.c.l.s4 1966171168
    %v2384 = vunpack.c.0.s8 %v2383
    %v2385 = vlaneseq
    %v2386 = vshrl.u32 %v2385, 7
    %v2387 = vsub.s32 %v2384, %v2386
    %v2388 = vrot.slane %v2374, %v2387
    %v2389 = vcombine.high %v2381, %v2381
    %v2390 = vcombine.high %v2388, %v2388
    %v2392 = vunpack.c.l.s4 1966171168
    %v2393 = vunpack.c.0.s8 %v2392
    %v2394 = vlaneseq
    %v2395 = vshrl.u32 %v2394, 7
    %v2396 = vsub.s32 %v2393, %v2395
    %v2397 = vrot.slane %v2381, %v2396
    %v2399 = vunpack.c.l.s4 1966171168
    %v2400 = vunpack.c.0.s8 %v2399
    %v2401 = vlaneseq
    %v2402 = vshrl.u32 %v2401, 7
    %v2403 = vsub.s32 %v2400, %v2402
    %v2404 = vrot.slane %v2388, %v2403
    %v2406 = vunpack.c.l.s4 1966171168
    %v2407 = vunpack.c.0.s8 %v2406
    %v2408 = vlaneseq
    %v2409 = vshrl.u32 %v2408, 7
    %v2410 = vsub.s32 %v2407, %v2409
    %v2411 = vrot.slane %v2389, %v2410
    %v2413 = vunpack.c.l.s4 1966171168
    %v2414 = vunpack.c.0.s8 %v2413
    %v2415 = vlaneseq
    %v2416 = vshrl.u32 %v2415, 7
    %v2417 = vsub.s32 %v2414, %v2416
    %v2418 = vrot.slane %v2390, %v2417
    %v2419 = vcombine.high %v2397, %v2397
    %v2420 = vcombine.high %v2404, %v2404
    %v2421 = vcombine.high %v2411, %v2411
    %v2422 = vcombine.high %v2418, %v2418
    %v2423 = vcombine.high %v53, %v53
    %v2425 = vunpack.c.l.s4 1966171168
    %v2426 = vunpack.c.0.s8 %v2425
    %v2427 = vlaneseq
    %v2428 = vshrl.u32 %v2427, 7
    %v2429 = vsub.s32 %v2426, %v2428
    %v2430 = vrot.slane %v53, %v2429
    %v2432 = vunpack.c.l.s4 1966171168
    %v2433 = vunpack.c.0.s8 %v2432
    %v2434 = vlaneseq
    %v2435 = vshrl.u32 %v2434, 7
    %v2436 = vsub.s32 %v2433, %v2435
    %v2437 = vrot.slane %v2423, %v2436
    %v2438 = vcombine.high %v2430, %v2430
    %v2439 = vcombine.high %v2437, %v2437
    %v2441 = vunpack.c.l.s4 1966171168
    %v2442 = vunpack.c.0.s8 %v2441
    %v2443 = vlaneseq
    %v2444 = vshrl.u32 %v2443, 7
    %v2445 = vsub.s32 %v2442, %v2444
    %v2446 = vrot.slane %v2430, %v2445
    %v2448 = vunpack.c.l.s4 1966171168
    %v2449 = vunpack.c.0.s8 %v2448
    %v2450 = vlaneseq
    %v2451 = vshrl.u32 %v2450, 7
    %v2452 = vsub.s32 %v2449, %v2451
    %v2453 = vrot.slane %v2437, %v2452
    %v2455 = vunpack.c.l.s4 1966171168
    %v2456 = vunpack.c.0.s8 %v2455
    %v2457 = vlaneseq
    %v2458 = vshrl.u32 %v2457, 7
    %v2459 = vsub.s32 %v2456, %v2458
    %v2460 = vrot.slane %v2438, %v2459
    %v2462 = vunpack.c.l.s4 1966171168
    %v2463 = vunpack.c.0.s8 %v2462
    %v2464 = vlaneseq
    %v2465 = vshrl.u32 %v2464, 7
    %v2466 = vsub.s32 %v2463, %v2465
    %v2467 = vrot.slane %v2439, %v2466
    %v2468 = vcombine.high %v2446, %v2446
    %v2469 = vcombine.high %v2453, %v2453
    %v2470 = vcombine.high %v2460, %v2460
    %v2471 = vcombine.high %v2467, %v2467
    %v2472 = vcombine.high %v54, %v54
    %v2474 = vunpack.c.l.s4 1966171168
    %v2475 = vunpack.c.0.s8 %v2474
    %v2476 = vlaneseq
    %v2477 = vshrl.u32 %v2476, 7
    %v2478 = vsub.s32 %v2475, %v2477
    %v2479 = vrot.slane %v54, %v2478
    %v2481 = vunpack.c.l.s4 1966171168
    %v2482 = vunpack.c.0.s8 %v2481
    %v2483 = vlaneseq
    %v2484 = vshrl.u32 %v2483, 7
    %v2485 = vsub.s32 %v2482, %v2484
    %v2486 = vrot.slane %v2472, %v2485
    %v2487 = vcombine.high %v2479, %v2479
    %v2488 = vcombine.high %v2486, %v2486
    %v2490 = vunpack.c.l.s4 1966171168
    %v2491 = vunpack.c.0.s8 %v2490
    %v2492 = vlaneseq
    %v2493 = vshrl.u32 %v2492, 7
    %v2494 = vsub.s32 %v2491, %v2493
    %v2495 = vrot.slane %v2479, %v2494
    %v2497 = vunpack.c.l.s4 1966171168
    %v2498 = vunpack.c.0.s8 %v2497
    %v2499 = vlaneseq
    %v2500 = vshrl.u32 %v2499, 7
    %v2501 = vsub.s32 %v2498, %v2500
    %v2502 = vrot.slane %v2486, %v2501
    %v2504 = vunpack.c.l.s4 1966171168
    %v2505 = vunpack.c.0.s8 %v2504
    %v2506 = vlaneseq
    %v2507 = vshrl.u32 %v2506, 7
    %v2508 = vsub.s32 %v2505, %v2507
    %v2509 = vrot.slane %v2487, %v2508
    %v2511 = vunpack.c.l.s4 1966171168
    %v2512 = vunpack.c.0.s8 %v2511
    %v2513 = vlaneseq
    %v2514 = vshrl.u32 %v2513, 7
    %v2515 = vsub.s32 %v2512, %v2514
    %v2516 = vrot.slane %v2488, %v2515
    %v2517 = vcombine.high %v2495, %v2495
    %v2518 = vcombine.high %v2502, %v2502
    %v2519 = vcombine.high %v2509, %v2509
    %v2520 = vcombine.high %v2516, %v2516
    %v2521 = vcombine.high %v55, %v55
    %v2523 = vunpack.c.l.s4 1966171168
    %v2524 = vunpack.c.0.s8 %v2523
    %v2525 = vlaneseq
    %v2526 = vshrl.u32 %v2525, 7
    %v2527 = vsub.s32 %v2524, %v2526
    %v2528 = vrot.slane %v55, %v2527
    %v2530 = vunpack.c.l.s4 1966171168
    %v2531 = vunpack.c.0.s8 %v2530
    %v2532 = vlaneseq
    %v2533 = vshrl.u32 %v2532, 7
    %v2534 = vsub.s32 %v2531, %v2533
    %v2535 = vrot.slane %v2521, %v2534
    %v2536 = vcombine.high %v2528, %v2528
    %v2537 = vcombine.high %v2535, %v2535
    %v2539 = vunpack.c.l.s4 1966171168
    %v2540 = vunpack.c.0.s8 %v2539
    %v2541 = vlaneseq
    %v2542 = vshrl.u32 %v2541, 7
    %v2543 = vsub.s32 %v2540, %v2542
    %v2544 = vrot.slane %v2528, %v2543
    %v2546 = vunpack.c.l.s4 1966171168
    %v2547 = vunpack.c.0.s8 %v2546
    %v2548 = vlaneseq
    %v2549 = vshrl.u32 %v2548, 7
    %v2550 = vsub.s32 %v2547, %v2549
    %v2551 = vrot.slane %v2535, %v2550
    %v2553 = vunpack.c.l.s4 1966171168
    %v2554 = vunpack.c.0.s8 %v2553
    %v2555 = vlaneseq
    %v2556 = vshrl.u32 %v2555, 7
    %v2557 = vsub.s32 %v2554, %v2556
    %v2558 = vrot.slane %v2536, %v2557
    %v2560 = vunpack.c.l.s4 1966171168
    %v2561 = vunpack.c.0.s8 %v2560
    %v2562 = vlaneseq
    %v2563 = vshrl.u32 %v2562, 7
    %v2564 = vsub.s32 %v2561, %v2563
    %v2565 = vrot.slane %v2537, %v2564
    %v2566 = vcombine.high %v2544, %v2544
    %v2567 = vcombine.high %v2551, %v2551
    %v2568 = vcombine.high %v2558, %v2558
    %v2569 = vcombine.high %v2565, %v2565
    %v2570 = vcombine.high %v56, %v56
    %v2572 = vunpack.c.l.s4 1966171168
    %v2573 = vunpack.c.0.s8 %v2572
    %v2574 = vlaneseq
    %v2575 = vshrl.u32 %v2574, 7
    %v2576 = vsub.s32 %v2573, %v2575
    %v2577 = vrot.slane %v56, %v2576
    %v2579 = vunpack.c.l.s4 1966171168
    %v2580 = vunpack.c.0.s8 %v2579
    %v2581 = vlaneseq
    %v2582 = vshrl.u32 %v2581, 7
    %v2583 = vsub.s32 %v2580, %v2582
    %v2584 = vrot.slane %v2570, %v2583
    %v2585 = vcombine.high %v2577, %v2577
    %v2586 = vcombine.high %v2584, %v2584
    %v2588 = vunpack.c.l.s4 1966171168
    %v2589 = vunpack.c.0.s8 %v2588
    %v2590 = vlaneseq
    %v2591 = vshrl.u32 %v2590, 7
    %v2592 = vsub.s32 %v2589, %v2591
    %v2593 = vrot.slane %v2577, %v2592
    %v2595 = vunpack.c.l.s4 1966171168
    %v2596 = vunpack.c.0.s8 %v2595
    %v2597 = vlaneseq
    %v2598 = vshrl.u32 %v2597, 7
    %v2599 = vsub.s32 %v2596, %v2598
    %v2600 = vrot.slane %v2584, %v2599
    %v2602 = vunpack.c.l.s4 1966171168
    %v2603 = vunpack.c.0.s8 %v2602
    %v2604 = vlaneseq
    %v2605 = vshrl.u32 %v2604, 7
    %v2606 = vsub.s32 %v2603, %v2605
    %v2607 = vrot.slane %v2585, %v2606
    %v2609 = vunpack.c.l.s4 1966171168
    %v2610 = vunpack.c.0.s8 %v2609
    %v2611 = vlaneseq
    %v2612 = vshrl.u32 %v2611, 7
    %v2613 = vsub.s32 %v2610, %v2612
    %v2614 = vrot.slane %v2586, %v2613
    %v2615 = vcombine.high %v2593, %v2593
    %v2616 = vcombine.high %v2600, %v2600
    %v2617 = vcombine.high %v2607, %v2607
    %v2618 = vcombine.high %v2614, %v2614
    %v2619 = vcombine.high %v57, %v57
    %v2621 = vunpack.c.l.s4 1966171168
    %v2622 = vunpack.c.0.s8 %v2621
    %v2623 = vlaneseq
    %v2624 = vshrl.u32 %v2623, 7
    %v2625 = vsub.s32 %v2622, %v2624
    %v2626 = vrot.slane %v57, %v2625
    %v2628 = vunpack.c.l.s4 1966171168
    %v2629 = vunpack.c.0.s8 %v2628
    %v2630 = vlaneseq
    %v2631 = vshrl.u32 %v2630, 7
    %v2632 = vsub.s32 %v2629, %v2631
    %v2633 = vrot.slane %v2619, %v2632
    %v2634 = vcombine.high %v2626, %v2626
    %v2635 = vcombine.high %v2633, %v2633
    %v2637 = vunpack.c.l.s4 1966171168
    %v2638 = vunpack.c.0.s8 %v2637
    %v2639 = vlaneseq
    %v2640 = vshrl.u32 %v2639, 7
    %v2641 = vsub.s32 %v2638, %v2640
    %v2642 = vrot.slane %v2626, %v2641
    %v2644 = vunpack.c.l.s4 1966171168
    %v2645 = vunpack.c.0.s8 %v2644
    %v2646 = vlaneseq
    %v2647 = vshrl.u32 %v2646, 7
    %v2648 = vsub.s32 %v2645, %v2647
    %v2649 = vrot.slane %v2633, %v2648
    %v2651 = vunpack.c.l.s4 1966171168
    %v2652 = vunpack.c.0.s8 %v2651
    %v2653 = vlaneseq
    %v2654 = vshrl.u32 %v2653, 7
    %v2655 = vsub.s32 %v2652, %v2654
    %v2656 = vrot.slane %v2634, %v2655
    %v2658 = vunpack.c.l.s4 1966171168
    %v2659 = vunpack.c.0.s8 %v2658
    %v2660 = vlaneseq
    %v2661 = vshrl.u32 %v2660, 7
    %v2662 = vsub.s32 %v2659, %v2661
    %v2663 = vrot.slane %v2635, %v2662
    %v2664 = vcombine.high %v2642, %v2642
    %v2665 = vcombine.high %v2649, %v2649
    %v2666 = vcombine.high %v2656, %v2656
    %v2667 = vcombine.high %v2663, %v2663
    %v2668 = vcombine.high %v58, %v58
    %v2670 = vunpack.c.l.s4 1966171168
    %v2671 = vunpack.c.0.s8 %v2670
    %v2672 = vlaneseq
    %v2673 = vshrl.u32 %v2672, 7
    %v2674 = vsub.s32 %v2671, %v2673
    %v2675 = vrot.slane %v58, %v2674
    %v2677 = vunpack.c.l.s4 1966171168
    %v2678 = vunpack.c.0.s8 %v2677
    %v2679 = vlaneseq
    %v2680 = vshrl.u32 %v2679, 7
    %v2681 = vsub.s32 %v2678, %v2680
    %v2682 = vrot.slane %v2668, %v2681
    %v2683 = vcombine.high %v2675, %v2675
    %v2684 = vcombine.high %v2682, %v2682
    %v2686 = vunpack.c.l.s4 1966171168
    %v2687 = vunpack.c.0.s8 %v2686
    %v2688 = vlaneseq
    %v2689 = vshrl.u32 %v2688, 7
    %v2690 = vsub.s32 %v2687, %v2689
    %v2691 = vrot.slane %v2675, %v2690
    %v2693 = vunpack.c.l.s4 1966171168
    %v2694 = vunpack.c.0.s8 %v2693
    %v2695 = vlaneseq
    %v2696 = vshrl.u32 %v2695, 7
    %v2697 = vsub.s32 %v2694, %v2696
    %v2698 = vrot.slane %v2682, %v2697
    %v2700 = vunpack.c.l.s4 1966171168
    %v2701 = vunpack.c.0.s8 %v2700
    %v2702 = vlaneseq
    %v2703 = vshrl.u32 %v2702, 7
    %v2704 = vsub.s32 %v2701, %v2703
    %v2705 = vrot.slane %v2683, %v2704
    %v2707 = vunpack.c.l.s4 1966171168
    %v2708 = vunpack.c.0.s8 %v2707
    %v2709 = vlaneseq
    %v2710 = vshrl.u32 %v2709, 7
    %v2711 = vsub.s32 %v2708, %v2710
    %v2712 = vrot.slane %v2684, %v2711
    %v2713 = vcombine.high %v2691, %v2691
    %v2714 = vcombine.high %v2698, %v2698
    %v2715 = vcombine.high %v2705, %v2705
    %v2716 = vcombine.high %v2712, %v2712
    %v2717 = vcombine.high %v59, %v59
    %v2719 = vunpack.c.l.s4 1966171168
    %v2720 = vunpack.c.0.s8 %v2719
    %v2721 = vlaneseq
    %v2722 = vshrl.u32 %v2721, 7
    %v2723 = vsub.s32 %v2720, %v2722
    %v2724 = vrot.slane %v59, %v2723
    %v2726 = vunpack.c.l.s4 1966171168
    %v2727 = vunpack.c.0.s8 %v2726
    %v2728 = vlaneseq
    %v2729 = vshrl.u32 %v2728, 7
    %v2730 = vsub.s32 %v2727, %v2729
    %v2731 = vrot.slane %v2717, %v2730
    %v2732 = vcombine.high %v2724, %v2724
    %v2733 = vcombine.high %v2731, %v2731
    %v2735 = vunpack.c.l.s4 1966171168
    %v2736 = vunpack.c.0.s8 %v2735
    %v2737 = vlaneseq
    %v2738 = vshrl.u32 %v2737, 7
    %v2739 = vsub.s32 %v2736, %v2738
    %v2740 = vrot.slane %v2724, %v2739
    %v2742 = vunpack.c.l.s4 1966171168
    %v2743 = vunpack.c.0.s8 %v2742
    %v2744 = vlaneseq
    %v2745 = vshrl.u32 %v2744, 7
    %v2746 = vsub.s32 %v2743, %v2745
    %v2747 = vrot.slane %v2731, %v2746
    %v2749 = vunpack.c.l.s4 1966171168
    %v2750 = vunpack.c.0.s8 %v2749
    %v2751 = vlaneseq
    %v2752 = vshrl.u32 %v2751, 7
    %v2753 = vsub.s32 %v2750, %v2752
    %v2754 = vrot.slane %v2732, %v2753
    %v2756 = vunpack.c.l.s4 1966171168
    %v2757 = vunpack.c.0.s8 %v2756
    %v2758 = vlaneseq
    %v2759 = vshrl.u32 %v2758, 7
    %v2760 = vsub.s32 %v2757, %v2759
    %v2761 = vrot.slane %v2733, %v2760
    %v2762 = vcombine.high %v2740, %v2740
    %v2763 = vcombine.high %v2747, %v2747
    %v2764 = vcombine.high %v2754, %v2754
    %v2765 = vcombine.high %v2761, %v2761
    %v2766 = vcombine.high %v60, %v60
    %v2768 = vunpack.c.l.s4 1966171168
    %v2769 = vunpack.c.0.s8 %v2768
    %v2770 = vlaneseq
    %v2771 = vshrl.u32 %v2770, 7
    %v2772 = vsub.s32 %v2769, %v2771
    %v2773 = vrot.slane %v60, %v2772
    %v2775 = vunpack.c.l.s4 1966171168
    %v2776 = vunpack.c.0.s8 %v2775
    %v2777 = vlaneseq
    %v2778 = vshrl.u32 %v2777, 7
    %v2779 = vsub.s32 %v2776, %v2778
    %v2780 = vrot.slane %v2766, %v2779
    %v2781 = vcombine.high %v2773, %v2773
    %v2782 = vcombine.high %v2780, %v2780
    %v2784 = vunpack.c.l.s4 1966171168
    %v2785 = vunpack.c.0.s8 %v2784
    %v2786 = vlaneseq
    %v2787 = vshrl.u32 %v2786, 7
    %v2788 = vsub.s32 %v2785, %v2787
    %v2789 = vrot.slane %v2773, %v2788
    %v2791 = vunpack.c.l.s4 1966171168
    %v2792 = vunpack.c.0.s8 %v2791
    %v2793 = vlaneseq
    %v2794 = vshrl.u32 %v2793, 7
    %v2795 = vsub.s32 %v2792, %v2794
    %v2796 = vrot.slane %v2780, %v2795
    %v2798 = vunpack.c.l.s4 1966171168
    %v2799 = vunpack.c.0.s8 %v2798
    %v2800 = vlaneseq
    %v2801 = vshrl.u32 %v2800, 7
    %v2802 = vsub.s32 %v2799, %v2801
    %v2803 = vrot.slane %v2781, %v2802
    %v2805 = vunpack.c.l.s4 1966171168
    %v2806 = vunpack.c.0.s8 %v2805
    %v2807 = vlaneseq
    %v2808 = vshrl.u32 %v2807, 7
    %v2809 = vsub.s32 %v2806, %v2808
    %v2810 = vrot.slane %v2782, %v2809
    %v2811 = vcombine.high %v2789, %v2789
    %v2812 = vcombine.high %v2796, %v2796
    %v2813 = vcombine.high %v2803, %v2803
    %v2814 = vcombine.high %v2810, %v2810
    %v2815 = vcombine.high %v61, %v61
    %v2817 = vunpack.c.l.s4 1966171168
    %v2818 = vunpack.c.0.s8 %v2817
    %v2819 = vlaneseq
    %v2820 = vshrl.u32 %v2819, 7
    %v2821 = vsub.s32 %v2818, %v2820
    %v2822 = vrot.slane %v61, %v2821
    %v2824 = vunpack.c.l.s4 1966171168
    %v2825 = vunpack.c.0.s8 %v2824
    %v2826 = vlaneseq
    %v2827 = vshrl.u32 %v2826, 7
    %v2828 = vsub.s32 %v2825, %v2827
    %v2829 = vrot.slane %v2815, %v2828
    %v2830 = vcombine.high %v2822, %v2822
    %v2831 = vcombine.high %v2829, %v2829
    %v2833 = vunpack.c.l.s4 1966171168
    %v2834 = vunpack.c.0.s8 %v2833
    %v2835 = vlaneseq
    %v2836 = vshrl.u32 %v2835, 7
    %v2837 = vsub.s32 %v2834, %v2836
    %v2838 = vrot.slane %v2822, %v2837
    %v2840 = vunpack.c.l.s4 1966171168
    %v2841 = vunpack.c.0.s8 %v2840
    %v2842 = vlaneseq
    %v2843 = vshrl.u32 %v2842, 7
    %v2844 = vsub.s32 %v2841, %v2843
    %v2845 = vrot.slane %v2829, %v2844
    %v2847 = vunpack.c.l.s4 1966171168
    %v2848 = vunpack.c.0.s8 %v2847
    %v2849 = vlaneseq
    %v2850 = vshrl.u32 %v2849, 7
    %v2851 = vsub.s32 %v2848, %v2850
    %v2852 = vrot.slane %v2830, %v2851
    %v2854 = vunpack.c.l.s4 1966171168
    %v2855 = vunpack.c.0.s8 %v2854
    %v2856 = vlaneseq
    %v2857 = vshrl.u32 %v2856, 7
    %v2858 = vsub.s32 %v2855, %v2857
    %v2859 = vrot.slane %v2831, %v2858
    %v2860 = vcombine.high %v2838, %v2838
    %v2861 = vcombine.high %v2845, %v2845
    %v2862 = vcombine.high %v2852, %v2852
    %v2863 = vcombine.high %v2859, %v2859
    %v2864 = vcombine.high %v62, %v62
    %v2866 = vunpack.c.l.s4 1966171168
    %v2867 = vunpack.c.0.s8 %v2866
    %v2868 = vlaneseq
    %v2869 = vshrl.u32 %v2868, 7
    %v2870 = vsub.s32 %v2867, %v2869
    %v2871 = vrot.slane %v62, %v2870
    %v2873 = vunpack.c.l.s4 1966171168
    %v2874 = vunpack.c.0.s8 %v2873
    %v2875 = vlaneseq
    %v2876 = vshrl.u32 %v2875, 7
    %v2877 = vsub.s32 %v2874, %v2876
    %v2878 = vrot.slane %v2864, %v2877
    %v2879 = vcombine.high %v2871, %v2871
    %v2880 = vcombine.high %v2878, %v2878
    %v2882 = vunpack.c.l.s4 1966171168
    %v2883 = vunpack.c.0.s8 %v2882
    %v2884 = vlaneseq
    %v2885 = vshrl.u32 %v2884, 7
    %v2886 = vsub.s32 %v2883, %v2885
    %v2887 = vrot.slane %v2871, %v2886
    %v2889 = vunpack.c.l.s4 1966171168
    %v2890 = vunpack.c.0.s8 %v2889
    %v2891 = vlaneseq
    %v2892 = vshrl.u32 %v2891, 7
    %v2893 = vsub.s32 %v2890, %v2892
    %v2894 = vrot.slane %v2878, %v2893
    %v2896 = vunpack.c.l.s4 1966171168
    %v2897 = vunpack.c.0.s8 %v2896
    %v2898 = vlaneseq
    %v2899 = vshrl.u32 %v2898, 7
    %v2900 = vsub.s32 %v2897, %v2899
    %v2901 = vrot.slane %v2879, %v2900
    %v2903 = vunpack.c.l.s4 1966171168
    %v2904 = vunpack.c.0.s8 %v2903
    %v2905 = vlaneseq
    %v2906 = vshrl.u32 %v2905, 7
    %v2907 = vsub.s32 %v2904, %v2906
    %v2908 = vrot.slane %v2880, %v2907
    %v2909 = vcombine.high %v2887, %v2887
    %v2910 = vcombine.high %v2894, %v2894
    %v2911 = vcombine.high %v2901, %v2901
    %v2912 = vcombine.high %v2908, %v2908
    %v2913 = vcombine.high %v63, %v63
    %v2915 = vunpack.c.l.s4 1966171168
    %v2916 = vunpack.c.0.s8 %v2915
    %v2917 = vlaneseq
    %v2918 = vshrl.u32 %v2917, 7
    %v2919 = vsub.s32 %v2916, %v2918
    %v2920 = vrot.slane %v63, %v2919
    %v2922 = vunpack.c.l.s4 1966171168
    %v2923 = vunpack.c.0.s8 %v2922
    %v2924 = vlaneseq
    %v2925 = vshrl.u32 %v2924, 7
    %v2926 = vsub.s32 %v2923, %v2925
    %v2927 = vrot.slane %v2913, %v2926
    %v2928 = vcombine.high %v2920, %v2920
    %v2929 = vcombine.high %v2927, %v2927
    %v2931 = vunpack.c.l.s4 1966171168
    %v2932 = vunpack.c.0.s8 %v2931
    %v2933 = vlaneseq
    %v2934 = vshrl.u32 %v2933, 7
    %v2935 = vsub.s32 %v2932, %v2934
    %v2936 = vrot.slane %v2920, %v2935
    %v2938 = vunpack.c.l.s4 1966171168
    %v2939 = vunpack.c.0.s8 %v2938
    %v2940 = vlaneseq
    %v2941 = vshrl.u32 %v2940, 7
    %v2942 = vsub.s32 %v2939, %v2941
    %v2943 = vrot.slane %v2927, %v2942
    %v2945 = vunpack.c.l.s4 1966171168
    %v2946 = vunpack.c.0.s8 %v2945
    %v2947 = vlaneseq
    %v2948 = vshrl.u32 %v2947, 7
    %v2949 = vsub.s32 %v2946, %v2948
    %v2950 = vrot.slane %v2928, %v2949
    %v2952 = vunpack.c.l.s4 1966171168
    %v2953 = vunpack.c.0.s8 %v2952
    %v2954 = vlaneseq
    %v2955 = vshrl.u32 %v2954, 7
    %v2956 = vsub.s32 %v2953, %v2955
    %v2957 = vrot.slane %v2929, %v2956
    %v2958 = vcombine.high %v2936, %v2936
    %v2959 = vcombine.high %v2943, %v2943
    %v2960 = vcombine.high %v2950, %v2950
    %v2961 = vcombine.high %v2957, %v2957
    %v2962 = vcombine.high %v64, %v64
    %v2964 = vunpack.c.l.s4 1966171168
    %v2965 = vunpack.c.0.s8 %v2964
    %v2966 = vlaneseq
    %v2967 = vshrl.u32 %v2966, 7
    %v2968 = vsub.s32 %v2965, %v2967
    %v2969 = vrot.slane %v64, %v2968
    %v2971 = vunpack.c.l.s4 1966171168
    %v2972 = vunpack.c.0.s8 %v2971
    %v2973 = vlaneseq
    %v2974 = vshrl.u32 %v2973, 7
    %v2975 = vsub.s32 %v2972, %v2974
    %v2976 = vrot.slane %v2962, %v2975
    %v2977 = vcombine.high %v2969, %v2969
    %v2978 = vcombine.high %v2976, %v2976
    %v2980 = vunpack.c.l.s4 1966171168
    %v2981 = vunpack.c.0.s8 %v2980
    %v2982 = vlaneseq
    %v2983 = vshrl.u32 %v2982, 7
    %v2984 = vsub.s32 %v2981, %v2983
    %v2985 = vrot.slane %v2969, %v2984
    %v2987 = vunpack.c.l.s4 1966171168
    %v2988 = vunpack.c.0.s8 %v2987
    %v2989 = vlaneseq
    %v2990 = vshrl.u32 %v2989, 7
    %v2991 = vsub.s32 %v2988, %v2990
    %v2992 = vrot.slane %v2976, %v2991
    %v2994 = vunpack.c.l.s4 1966171168
    %v2995 = vunpack.c.0.s8 %v2994
    %v2996 = vlaneseq
    %v2997 = vshrl.u32 %v2996, 7
    %v2998 = vsub.s32 %v2995, %v2997
    %v2999 = vrot.slane %v2977, %v2998
    %v3001 = vunpack.c.l.s4 1966171168
    %v3002 = vunpack.c.0.s8 %v3001
    %v3003 = vlaneseq
    %v3004 = vshrl.u32 %v3003, 7
    %v3005 = vsub.s32 %v3002, %v3004
    %v3006 = vrot.slane %v2978, %v3005
    %v3007 = vcombine.high %v2985, %v2985
    %v3008 = vcombine.high %v2992, %v2992
    %v3009 = vcombine.high %v2999, %v2999
    %v3010 = vcombine.high %v3006, %v3006
    %v3011 = vcombine.high %v65, %v65
    %v3013 = vunpack.c.l.s4 1966171168
    %v3014 = vunpack.c.0.s8 %v3013
    %v3015 = vlaneseq
    %v3016 = vshrl.u32 %v3015, 7
    %v3017 = vsub.s32 %v3014, %v3016
    %v3018 = vrot.slane %v65, %v3017
    %v3020 = vunpack.c.l.s4 1966171168
    %v3021 = vunpack.c.0.s8 %v3020
    %v3022 = vlaneseq
    %v3023 = vshrl.u32 %v3022, 7
    %v3024 = vsub.s32 %v3021, %v3023
    %v3025 = vrot.slane %v3011, %v3024
    %v3026 = vcombine.high %v3018, %v3018
    %v3027 = vcombine.high %v3025, %v3025
    %v3029 = vunpack.c.l.s4 1966171168
    %v3030 = vunpack.c.0.s8 %v3029
    %v3031 = vlaneseq
    %v3032 = vshrl.u32 %v3031, 7
    %v3033 = vsub.s32 %v3030, %v3032
    %v3034 = vrot.slane %v3018, %v3033
    %v3036 = vunpack.c.l.s4 1966171168
    %v3037 = vunpack.c.0.s8 %v3036
    %v3038 = vlaneseq
    %v3039 = vshrl.u32 %v3038, 7
    %v3040 = vsub.s32 %v3037, %v3039
    %v3041 = vrot.slane %v3025, %v3040
    %v3043 = vunpack.c.l.s4 1966171168
    %v3044 = vunpack.c.0.s8 %v3043
    %v3045 = vlaneseq
    %v3046 = vshrl.u32 %v3045, 7
    %v3047 = vsub.s32 %v3044, %v3046
    %v3048 = vrot.slane %v3026, %v3047
    %v3050 = vunpack.c.l.s4 1966171168
    %v3051 = vunpack.c.0.s8 %v3050
    %v3052 = vlaneseq
    %v3053 = vshrl.u32 %v3052, 7
    %v3054 = vsub.s32 %v3051, %v3053
    %v3055 = vrot.slane %v3027, %v3054
    %v3056 = vcombine.high %v3034, %v3034
    %v3057 = vcombine.high %v3041, %v3041
    %v3058 = vcombine.high %v3048, %v3048
    %v3059 = vcombine.high %v3055, %v3055
    %v3060 = vcombine.high %v66, %v66
    %v3062 = vunpack.c.l.s4 1966171168
    %v3063 = vunpack.c.0.s8 %v3062
    %v3064 = vlaneseq
    %v3065 = vshrl.u32 %v3064, 7
    %v3066 = vsub.s32 %v3063, %v3065
    %v3067 = vrot.slane %v66, %v3066
    %v3069 = vunpack.c.l.s4 1966171168
    %v3070 = vunpack.c.0.s8 %v3069
    %v3071 = vlaneseq
    %v3072 = vshrl.u32 %v3071, 7
    %v3073 = vsub.s32 %v3070, %v3072
    %v3074 = vrot.slane %v3060, %v3073
    %v3075 = vcombine.high %v3067, %v3067
    %v3076 = vcombine.high %v3074, %v3074
    %v3078 = vunpack.c.l.s4 1966171168
    %v3079 = vunpack.c.0.s8 %v3078
    %v3080 = vlaneseq
    %v3081 = vshrl.u32 %v3080, 7
    %v3082 = vsub.s32 %v3079, %v3081
    %v3083 = vrot.slane %v3067, %v3082
    %v3085 = vunpack.c.l.s4 1966171168
    %v3086 = vunpack.c.0.s8 %v3085
    %v3087 = vlaneseq
    %v3088 = vshrl.u32 %v3087, 7
    %v3089 = vsub.s32 %v3086, %v3088
    %v3090 = vrot.slane %v3074, %v3089
    %v3092 = vunpack.c.l.s4 1966171168
    %v3093 = vunpack.c.0.s8 %v3092
    %v3094 = vlaneseq
    %v3095 = vshrl.u32 %v3094, 7
    %v3096 = vsub.s32 %v3093, %v3095
    %v3097 = vrot.slane %v3075, %v3096
    %v3099 = vunpack.c.l.s4 1966171168
    %v3100 = vunpack.c.0.s8 %v3099
    %v3101 = vlaneseq
    %v3102 = vshrl.u32 %v3101, 7
    %v3103 = vsub.s32 %v3100, %v3102
    %v3104 = vrot.slane %v3076, %v3103
    %v3105 = vcombine.high %v3083, %v3083
    %v3106 = vcombine.high %v3090, %v3090
    %v3107 = vcombine.high %v3097, %v3097
    %v3108 = vcombine.high %v3104, %v3104
    %v3109 = vcombine.high %v67, %v67
    %v3111 = vunpack.c.l.s4 1966171168
    %v3112 = vunpack.c.0.s8 %v3111
    %v3113 = vlaneseq
    %v3114 = vshrl.u32 %v3113, 7
    %v3115 = vsub.s32 %v3112, %v3114
    %v3116 = vrot.slane %v67, %v3115
    %v3118 = vunpack.c.l.s4 1966171168
    %v3119 = vunpack.c.0.s8 %v3118
    %v3120 = vlaneseq
    %v3121 = vshrl.u32 %v3120, 7
    %v3122 = vsub.s32 %v3119, %v3121
    %v3123 = vrot.slane %v3109, %v3122
    %v3124 = vcombine.high %v3116, %v3116
    %v3125 = vcombine.high %v3123, %v3123
    %v3127 = vunpack.c.l.s4 1966171168
    %v3128 = vunpack.c.0.s8 %v3127
    %v3129 = vlaneseq
    %v3130 = vshrl.u32 %v3129, 7
    %v3131 = vsub.s32 %v3128, %v3130
    %v3132 = vrot.slane %v3116, %v3131
    %v3134 = vunpack.c.l.s4 1966171168
    %v3135 = vunpack.c.0.s8 %v3134
    %v3136 = vlaneseq
    %v3137 = vshrl.u32 %v3136, 7
    %v3138 = vsub.s32 %v3135, %v3137
    %v3139 = vrot.slane %v3123, %v3138
    %v3141 = vunpack.c.l.s4 1966171168
    %v3142 = vunpack.c.0.s8 %v3141
    %v3143 = vlaneseq
    %v3144 = vshrl.u32 %v3143, 7
    %v3145 = vsub.s32 %v3142, %v3144
    %v3146 = vrot.slane %v3124, %v3145
    %v3148 = vunpack.c.l.s4 1966171168
    %v3149 = vunpack.c.0.s8 %v3148
    %v3150 = vlaneseq
    %v3151 = vshrl.u32 %v3150, 7
    %v3152 = vsub.s32 %v3149, %v3151
    %v3153 = vrot.slane %v3125, %v3152
    %v3154 = vcombine.high %v3132, %v3132
    %v3155 = vcombine.high %v3139, %v3139
    %v3156 = vcombine.high %v3146, %v3146
    %v3157 = vcombine.high %v3153, %v3153
    %v3158 = vcombine.high %v68, %v68
    %v3160 = vunpack.c.l.s4 1966171168
    %v3161 = vunpack.c.0.s8 %v3160
    %v3162 = vlaneseq
    %v3163 = vshrl.u32 %v3162, 7
    %v3164 = vsub.s32 %v3161, %v3163
    %v3165 = vrot.slane %v68, %v3164
    %v3167 = vunpack.c.l.s4 1966171168
    %v3168 = vunpack.c.0.s8 %v3167
    %v3169 = vlaneseq
    %v3170 = vshrl.u32 %v3169, 7
    %v3171 = vsub.s32 %v3168, %v3170
    %v3172 = vrot.slane %v3158, %v3171
    %v3173 = vcombine.high %v3165, %v3165
    %v3174 = vcombine.high %v3172, %v3172
    %v3176 = vunpack.c.l.s4 1966171168
    %v3177 = vunpack.c.0.s8 %v3176
    %v3178 = vlaneseq
    %v3179 = vshrl.u32 %v3178, 7
    %v3180 = vsub.s32 %v3177, %v3179
    %v3181 = vrot.slane %v3165, %v3180
    %v3183 = vunpack.c.l.s4 1966171168
    %v3184 = vunpack.c.0.s8 %v3183
    %v3185 = vlaneseq
    %v3186 = vshrl.u32 %v3185, 7
    %v3187 = vsub.s32 %v3184, %v3186
    %v3188 = vrot.slane %v3172, %v3187
    %v3190 = vunpack.c.l.s4 1966171168
    %v3191 = vunpack.c.0.s8 %v3190
    %v3192 = vlaneseq
    %v3193 = vshrl.u32 %v3192, 7
    %v3194 = vsub.s32 %v3191, %v3193
    %v3195 = vrot.slane %v3173, %v3194
    %v3197 = vunpack.c.l.s4 1966171168
    %v3198 = vunpack.c.0.s8 %v3197
    %v3199 = vlaneseq
    %v3200 = vshrl.u32 %v3199, 7
    %v3201 = vsub.s32 %v3198, %v3200
    %v3202 = vrot.slane %v3174, %v3201
    %v3203 = vcombine.high %v3181, %v3181
    %v3204 = vcombine.high %v3188, %v3188
    %v3205 = vcombine.high %v3195, %v3195
    %v3206 = vcombine.high %v3202, %v3202
    %v3207 = vlaneseq
    %v3208 = vshrl.u32 %v3207, 7
    %v3209 = vsub.s32 0, %v3208
    %v3210 = vrot.slane %v878, %v3209
    %v3211 = vlaneseq
    %v3212 = vshrl.u32 %v3211, 7
    %v3213 = vsub.s32 0, %v3212
    %v3214 = vrot.slane %v892, %v3213
    %v3215 = vlaneseq
    %v3216 = vshrl.u32 %v3215, 7
    %v3217 = vsub.s32 0, %v3216
    %v3218 = vrot.slane %v900, %v3217
    %v3219 = vlaneseq
    %v3220 = vshrl.u32 %v3219, 7
    %v3221 = vsub.s32 0, %v3220
    %v3222 = vrot.slane %v902, %v3221
    %v3223 = vlaneseq
    %v3224 = vshrl.u32 %v3223, 7
    %v3225 = vsub.s32 0, %v3224
    %v3226 = vrot.slane %v885, %v3225
    %v3227 = vlaneseq
    %v3228 = vshrl.u32 %v3227, 7
    %v3229 = vsub.s32 0, %v3228
    %v3230 = vrot.slane %v899, %v3229
    %v3231 = vlaneseq
    %v3232 = vshrl.u32 %v3231, 7
    %v3233 = vsub.s32 0, %v3232
    %v3234 = vrot.slane %v901, %v3233
    %v3235 = vlaneseq
    %v3236 = vshrl.u32 %v3235, 7
    %v3237 = vsub.s32 0, %v3236
    %v3238 = vrot.slane %v903, %v3237
    %v3239 = vlaneseq
    %v3240 = vshrl.u32 %v3239, 7
    %v3241 = vsub.s32 0, %v3240
    %v3242 = vrot.slane %v927, %v3241
    %v3243 = vlaneseq
    %v3244 = vshrl.u32 %v3243, 7
    %v3245 = vsub.s32 0, %v3244
    %v3246 = vrot.slane %v941, %v3245
    %v3247 = vlaneseq
    %v3248 = vshrl.u32 %v3247, 7
    %v3249 = vsub.s32 0, %v3248
    %v3250 = vrot.slane %v949, %v3249
    %v3251 = vlaneseq
    %v3252 = vshrl.u32 %v3251, 7
    %v3253 = vsub.s32 0, %v3252
    %v3254 = vrot.slane %v951, %v3253
    %v3255 = vlaneseq
    %v3256 = vshrl.u32 %v3255, 7
    %v3257 = vsub.s32 0, %v3256
    %v3258 = vrot.slane %v934, %v3257
    %v3259 = vlaneseq
    %v3260 = vshrl.u32 %v3259, 7
    %v3261 = vsub.s32 0, %v3260
    %v3262 = vrot.slane %v948, %v3261
    %v3263 = vlaneseq
    %v3264 = vshrl.u32 %v3263, 7
    %v3265 = vsub.s32 0, %v3264
    %v3266 = vrot.slane %v950, %v3265
    %v3267 = vlaneseq
    %v3268 = vshrl.u32 %v3267, 7
    %v3269 = vsub.s32 0, %v3268
    %v3270 = vrot.slane %v952, %v3269
    %v3271 = vlaneseq
    %v3272 = vshrl.u32 %v3271, 7
    %v3273 = vsub.s32 0, %v3272
    %v3274 = vrot.slane %v976, %v3273
    %v3275 = vlaneseq
    %v3276 = vshrl.u32 %v3275, 7
    %v3277 = vsub.s32 0, %v3276
    %v3278 = vrot.slane %v990, %v3277
    %v3279 = vlaneseq
    %v3280 = vshrl.u32 %v3279, 7
    %v3281 = vsub.s32 0, %v3280
    %v3282 = vrot.slane %v998, %v3281
    %v3283 = vlaneseq
    %v3284 = vshrl.u32 %v3283, 7
    %v3285 = vsub.s32 0, %v3284
    %v3286 = vrot.slane %v1000, %v3285
    %v3287 = vlaneseq
    %v3288 = vshrl.u32 %v3287, 7
    %v3289 = vsub.s32 0, %v3288
    %v3290 = vrot.slane %v983, %v3289
    %v3291 = vlaneseq
    %v3292 = vshrl.u32 %v3291, 7
    %v3293 = vsub.s32 0, %v3292
    %v3294 = vrot.slane %v997, %v3293
    %v3295 = vlaneseq
    %v3296 = vshrl.u32 %v3295, 7
    %v3297 = vsub.s32 0, %v3296
    %v3298 = vrot.slane %v999, %v3297
    %v3299 = vlaneseq
    %v3300 = vshrl.u32 %v3299, 7
    %v3301 = vsub.s32 0, %v3300
    %v3302 = vrot.slane %v1001, %v3301
    %v3303 = vlaneseq
    %v3304 = vshrl.u32 %v3303, 7
    %v3305 = vsub.s32 0, %v3304
    %v3306 = vrot.slane %v1025, %v3305
    %v3307 = vlaneseq
    %v3308 = vshrl.u32 %v3307, 7
    %v3309 = vsub.s32 0, %v3308
    %v3310 = vrot.slane %v1039, %v3309
    %v3311 = vlaneseq
    %v3312 = vshrl.u32 %v3311, 7
    %v3313 = vsub.s32 0, %v3312
    %v3314 = vrot.slane %v1047, %v3313
    %v3315 = vlaneseq
    %v3316 = vshrl.u32 %v3315, 7
    %v3317 = vsub.s32 0, %v3316
    %v3318 = vrot.slane %v1049, %v3317
    %v3319 = vlaneseq
    %v3320 = vshrl.u32 %v3319, 7
    %v3321 = vsub.s32 0, %v3320
    %v3322 = vrot.slane %v1032, %v3321
    %v3323 = vlaneseq
    %v3324 = vshrl.u32 %v3323, 7
    %v3325 = vsub.s32 0, %v3324
    %v3326 = vrot.slane %v1046, %v3325
    %v3327 = vlaneseq
    %v3328 = vshrl.u32 %v3327, 7
    %v3329 = vsub.s32 0, %v3328
    %v3330 = vrot.slane %v1048, %v3329
    %v3331 = vlaneseq
    %v3332 = vshrl.u32 %v3331, 7
    %v3333 = vsub.s32 0, %v3332
    %v3334 = vrot.slane %v1050, %v3333
    %v3335 = vlaneseq
    %v3336 = vshrl.u32 %v3335, 7
    %v3337 = vsub.s32 0, %v3336
    %v3338 = vrot.slane %v1074, %v3337
    %v3339 = vlaneseq
    %v3340 = vshrl.u32 %v3339, 7
    %v3341 = vsub.s32 0, %v3340
    %v3342 = vrot.slane %v1088, %v3341
    %v3343 = vlaneseq
    %v3344 = vshrl.u32 %v3343, 7
    %v3345 = vsub.s32 0, %v3344
    %v3346 = vrot.slane %v1096, %v3345
    %v3347 = vlaneseq
    %v3348 = vshrl.u32 %v3347, 7
    %v3349 = vsub.s32 0, %v3348
    %v3350 = vrot.slane %v1098, %v3349
    %v3351 = vlaneseq
    %v3352 = vshrl.u32 %v3351, 7
    %v3353 = vsub.s32 0, %v3352
    %v3354 = vrot.slane %v1081, %v3353
    %v3355 = vlaneseq
    %v3356 = vshrl.u32 %v3355, 7
    %v3357 = vsub.s32 0, %v3356
    %v3358 = vrot.slane %v1095, %v3357
    %v3359 = vlaneseq
    %v3360 = vshrl.u32 %v3359, 7
    %v3361 = vsub.s32 0, %v3360
    %v3362 = vrot.slane %v1097, %v3361
    %v3363 = vlaneseq
    %v3364 = vshrl.u32 %v3363, 7
    %v3365 = vsub.s32 0, %v3364
    %v3366 = vrot.slane %v1099, %v3365
    %v3367 = vlaneseq
    %v3368 = vshrl.u32 %v3367, 7
    %v3369 = vsub.s32 0, %v3368
    %v3370 = vrot.slane %v1123, %v3369
    %v3371 = vlaneseq
    %v3372 = vshrl.u32 %v3371, 7
    %v3373 = vsub.s32 0, %v3372
    %v3374 = vrot.slane %v1137, %v3373
    %v3375 = vlaneseq
    %v3376 = vshrl.u32 %v3375, 7
    %v3377 = vsub.s32 0, %v3376
    %v3378 = vrot.slane %v1145, %v3377
    %v3379 = vlaneseq
    %v3380 = vshrl.u32 %v3379, 7
    %v3381 = vsub.s32 0, %v3380
    %v3382 = vrot.slane %v1147, %v3381
    %v3383 = vlaneseq
    %v3384 = vshrl.u32 %v3383, 7
    %v3385 = vsub.s32 0, %v3384
    %v3386 = vrot.slane %v1130, %v3385
    %v3387 = vlaneseq
    %v3388 = vshrl.u32 %v3387, 7
    %v3389 = vsub.s32 0, %v3388
    %v3390 = vrot.slane %v1144, %v3389
    %v3391 = vlaneseq
    %v3392 = vshrl.u32 %v3391, 7
    %v3393 = vsub.s32 0, %v3392
    %v3394 = vrot.slane %v1146, %v3393
    %v3395 = vlaneseq
    %v3396 = vshrl.u32 %v3395, 7
    %v3397 = vsub.s32 0, %v3396
    %v3398 = vrot.slane %v1148, %v3397
    %v3399 = vlaneseq
    %v3400 = vshrl.u32 %v3399, 7
    %v3401 = vsub.s32 0, %v3400
    %v3402 = vrot.slane %v1172, %v3401
    %v3403 = vlaneseq
    %v3404 = vshrl.u32 %v3403, 7
    %v3405 = vsub.s32 0, %v3404
    %v3406 = vrot.slane %v1186, %v3405
    %v3407 = vlaneseq
    %v3408 = vshrl.u32 %v3407, 7
    %v3409 = vsub.s32 0, %v3408
    %v3410 = vrot.slane %v1194, %v3409
    %v3411 = vlaneseq
    %v3412 = vshrl.u32 %v3411, 7
    %v3413 = vsub.s32 0, %v3412
    %v3414 = vrot.slane %v1196, %v3413
    %v3415 = vlaneseq
    %v3416 = vshrl.u32 %v3415, 7
    %v3417 = vsub.s32 0, %v3416
    %v3418 = vrot.slane %v1179, %v3417
    %v3419 = vlaneseq
    %v3420 = vshrl.u32 %v3419, 7
    %v3421 = vsub.s32 0, %v3420
    %v3422 = vrot.slane %v1193, %v3421
    %v3423 = vlaneseq
    %v3424 = vshrl.u32 %v3423, 7
    %v3425 = vsub.s32 0, %v3424
    %v3426 = vrot.slane %v1195, %v3425
    %v3427 = vlaneseq
    %v3428 = vshrl.u32 %v3427, 7
    %v3429 = vsub.s32 0, %v3428
    %v3430 = vrot.slane %v1197, %v3429
    %v3431 = vlaneseq
    %v3432 = vshrl.u32 %v3431, 7
    %v3433 = vsub.s32 0, %v3432
    %v3434 = vrot.slane %v1221, %v3433
    %v3435 = vlaneseq
    %v3436 = vshrl.u32 %v3435, 7
    %v3437 = vsub.s32 0, %v3436
    %v3438 = vrot.slane %v1235, %v3437
    %v3439 = vlaneseq
    %v3440 = vshrl.u32 %v3439, 7
    %v3441 = vsub.s32 0, %v3440
    %v3442 = vrot.slane %v1243, %v3441
    %v3443 = vlaneseq
    %v3444 = vshrl.u32 %v3443, 7
    %v3445 = vsub.s32 0, %v3444
    %v3446 = vrot.slane %v1245, %v3445
    %v3447 = vlaneseq
    %v3448 = vshrl.u32 %v3447, 7
    %v3449 = vsub.s32 0, %v3448
    %v3450 = vrot.slane %v1228, %v3449
    %v3451 = vlaneseq
    %v3452 = vshrl.u32 %v3451, 7
    %v3453 = vsub.s32 0, %v3452
    %v3454 = vrot.slane %v1242, %v3453
    %v3455 = vlaneseq
    %v3456 = vshrl.u32 %v3455, 7
    %v3457 = vsub.s32 0, %v3456
    %v3458 = vrot.slane %v1244, %v3457
    %v3459 = vlaneseq
    %v3460 = vshrl.u32 %v3459, 7
    %v3461 = vsub.s32 0, %v3460
    %v3462 = vrot.slane %v1246, %v3461
    %v3463 = vlaneseq
    %v3464 = vshrl.u32 %v3463, 7
    %v3465 = vsub.s32 0, %v3464
    %v3466 = vrot.slane %v1270, %v3465
    %v3467 = vlaneseq
    %v3468 = vshrl.u32 %v3467, 7
    %v3469 = vsub.s32 0, %v3468
    %v3470 = vrot.slane %v1284, %v3469
    %v3471 = vlaneseq
    %v3472 = vshrl.u32 %v3471, 7
    %v3473 = vsub.s32 0, %v3472
    %v3474 = vrot.slane %v1292, %v3473
    %v3475 = vlaneseq
    %v3476 = vshrl.u32 %v3475, 7
    %v3477 = vsub.s32 0, %v3476
    %v3478 = vrot.slane %v1294, %v3477
    %v3479 = vlaneseq
    %v3480 = vshrl.u32 %v3479, 7
    %v3481 = vsub.s32 0, %v3480
    %v3482 = vrot.slane %v1277, %v3481
    %v3483 = vlaneseq
    %v3484 = vshrl.u32 %v3483, 7
    %v3485 = vsub.s32 0, %v3484
    %v3486 = vrot.slane %v1291, %v3485
    %v3487 = vlaneseq
    %v3488 = vshrl.u32 %v3487, 7
    %v3489 = vsub.s32 0, %v3488
    %v3490 = vrot.slane %v1293, %v3489
    %v3491 = vlaneseq
    %v3492 = vshrl.u32 %v3491, 7
    %v3493 = vsub.s32 0, %v3492
    %v3494 = vrot.slane %v1295, %v3493
    %v3495 = vlaneseq
    %v3496 = vshrl.u32 %v3495, 7
    %v3497 = vsub.s32 0, %v3496
    %v3498 = vrot.slane %v1319, %v3497
    %v3499 = vlaneseq
    %v3500 = vshrl.u32 %v3499, 7
    %v3501 = vsub.s32 0, %v3500
    %v3502 = vrot.slane %v1333, %v3501
    %v3503 = vlaneseq
    %v3504 = vshrl.u32 %v3503, 7
    %v3505 = vsub.s32 0, %v3504
    %v3506 = vrot.slane %v1341, %v3505
    %v3507 = vlaneseq
    %v3508 = vshrl.u32 %v3507, 7
    %v3509 = vsub.s32 0, %v3508
    %v3510 = vrot.slane %v1343, %v3509
    %v3511 = vlaneseq
    %v3512 = vshrl.u32 %v3511, 7
    %v3513 = vsub.s32 0, %v3512
    %v3514 = vrot.slane %v1326, %v3513
    %v3515 = vlaneseq
    %v3516 = vshrl.u32 %v3515, 7
    %v3517 = vsub.s32 0, %v3516
    %v3518 = vrot.slane %v1340, %v3517
    %v3519 = vlaneseq
    %v3520 = vshrl.u32 %v3519, 7
    %v3521 = vsub.s32 0, %v3520
    %v3522 = vrot.slane %v1342, %v3521
    %v3523 = vlaneseq
    %v3524 = vshrl.u32 %v3523, 7
    %v3525 = vsub.s32 0, %v3524
    %v3526 = vrot.slane %v1344, %v3525
    %v3527 = vlaneseq
    %v3528 = vshrl.u32 %v3527, 7
    %v3529 = vsub.s32 0, %v3528
    %v3530 = vrot.slane %v1368, %v3529
    %v3531 = vlaneseq
    %v3532 = vshrl.u32 %v3531, 7
    %v3533 = vsub.s32 0, %v3532
    %v3534 = vrot.slane %v1382, %v3533
    %v3535 = vlaneseq
    %v3536 = vshrl.u32 %v3535, 7
    %v3537 = vsub.s32 0, %v3536
    %v3538 = vrot.slane %v1390, %v3537
    %v3539 = vlaneseq
    %v3540 = vshrl.u32 %v3539, 7
    %v3541 = vsub.s32 0, %v3540
    %v3542 = vrot.slane %v1392, %v3541
    %v3543 = vlaneseq
    %v3544 = vshrl.u32 %v3543, 7
    %v3545 = vsub.s32 0, %v3544
    %v3546 = vrot.slane %v1375, %v3545
    %v3547 = vlaneseq
    %v3548 = vshrl.u32 %v3547, 7
    %v3549 = vsub.s32 0, %v3548
    %v3550 = vrot.slane %v1389, %v3549
    %v3551 = vlaneseq
    %v3552 = vshrl.u32 %v3551, 7
    %v3553 = vsub.s32 0, %v3552
    %v3554 = vrot.slane %v1391, %v3553
    %v3555 = vlaneseq
    %v3556 = vshrl.u32 %v3555, 7
    %v3557 = vsub.s32 0, %v3556
    %v3558 = vrot.slane %v1393, %v3557
    %v3559 = vlaneseq
    %v3560 = vshrl.u32 %v3559, 7
    %v3561 = vsub.s32 0, %v3560
    %v3562 = vrot.slane %v1417, %v3561
    %v3563 = vlaneseq
    %v3564 = vshrl.u32 %v3563, 7
    %v3565 = vsub.s32 0, %v3564
    %v3566 = vrot.slane %v1431, %v3565
    %v3567 = vlaneseq
    %v3568 = vshrl.u32 %v3567, 7
    %v3569 = vsub.s32 0, %v3568
    %v3570 = vrot.slane %v1439, %v3569
    %v3571 = vlaneseq
    %v3572 = vshrl.u32 %v3571, 7
    %v3573 = vsub.s32 0, %v3572
    %v3574 = vrot.slane %v1441, %v3573
    %v3575 = vlaneseq
    %v3576 = vshrl.u32 %v3575, 7
    %v3577 = vsub.s32 0, %v3576
    %v3578 = vrot.slane %v1424, %v3577
    %v3579 = vlaneseq
    %v3580 = vshrl.u32 %v3579, 7
    %v3581 = vsub.s32 0, %v3580
    %v3582 = vrot.slane %v1438, %v3581
    %v3583 = vlaneseq
    %v3584 = vshrl.u32 %v3583, 7
    %v3585 = vsub.s32 0, %v3584
    %v3586 = vrot.slane %v1440, %v3585
    %v3587 = vlaneseq
    %v3588 = vshrl.u32 %v3587, 7
    %v3589 = vsub.s32 0, %v3588
    %v3590 = vrot.slane %v1442, %v3589
    %v3591 = vlaneseq
    %v3592 = vshrl.u32 %v3591, 7
    %v3593 = vsub.s32 0, %v3592
    %v3594 = vrot.slane %v1466, %v3593
    %v3595 = vlaneseq
    %v3596 = vshrl.u32 %v3595, 7
    %v3597 = vsub.s32 0, %v3596
    %v3598 = vrot.slane %v1480, %v3597
    %v3599 = vlaneseq
    %v3600 = vshrl.u32 %v3599, 7
    %v3601 = vsub.s32 0, %v3600
    %v3602 = vrot.slane %v1488, %v3601
    %v3603 = vlaneseq
    %v3604 = vshrl.u32 %v3603, 7
    %v3605 = vsub.s32 0, %v3604
    %v3606 = vrot.slane %v1490, %v3605
    %v3607 = vlaneseq
    %v3608 = vshrl.u32 %v3607, 7
    %v3609 = vsub.s32 0, %v3608
    %v3610 = vrot.slane %v1473, %v3609
    %v3611 = vlaneseq
    %v3612 = vshrl.u32 %v3611, 7
    %v3613 = vsub.s32 0, %v3612
    %v3614 = vrot.slane %v1487, %v3613
    %v3615 = vlaneseq
    %v3616 = vshrl.u32 %v3615, 7
    %v3617 = vsub.s32 0, %v3616
    %v3618 = vrot.slane %v1489, %v3617
    %v3619 = vlaneseq
    %v3620 = vshrl.u32 %v3619, 7
    %v3621 = vsub.s32 0, %v3620
    %v3622 = vrot.slane %v1491, %v3621
    %v3623 = vlaneseq
    %v3624 = vshrl.u32 %v3623, 7
    %v3625 = vsub.s32 0, %v3624
    %v3626 = vrot.slane %v1515, %v3625
    %v3627 = vlaneseq
    %v3628 = vshrl.u32 %v3627, 7
    %v3629 = vsub.s32 0, %v3628
    %v3630 = vrot.slane %v1529, %v3629
    %v3631 = vlaneseq
    %v3632 = vshrl.u32 %v3631, 7
    %v3633 = vsub.s32 0, %v3632
    %v3634 = vrot.slane %v1537, %v3633
    %v3635 = vlaneseq
    %v3636 = vshrl.u32 %v3635, 7
    %v3637 = vsub.s32 0, %v3636
    %v3638 = vrot.slane %v1539, %v3637
    %v3639 = vlaneseq
    %v3640 = vshrl.u32 %v3639, 7
    %v3641 = vsub.s32 0, %v3640
    %v3642 = vrot.slane %v1522, %v3641
    %v3643 = vlaneseq
    %v3644 = vshrl.u32 %v3643, 7
    %v3645 = vsub.s32 0, %v3644
    %v3646 = vrot.slane %v1536, %v3645
    %v3647 = vlaneseq
    %v3648 = vshrl.u32 %v3647, 7
    %v3649 = vsub.s32 0, %v3648
    %v3650 = vrot.slane %v1538, %v3649
    %v3651 = vlaneseq
    %v3652 = vshrl.u32 %v3651, 7
    %v3653 = vsub.s32 0, %v3652
    %v3654 = vrot.slane %v1540, %v3653
    %v3655 = vlaneseq
    %v3656 = vshrl.u32 %v3655, 7
    %v3657 = vsub.s32 0, %v3656
    %v3658 = vrot.slane %v1564, %v3657
    %v3659 = vlaneseq
    %v3660 = vshrl.u32 %v3659, 7
    %v3661 = vsub.s32 0, %v3660
    %v3662 = vrot.slane %v1578, %v3661
    %v3663 = vlaneseq
    %v3664 = vshrl.u32 %v3663, 7
    %v3665 = vsub.s32 0, %v3664
    %v3666 = vrot.slane %v1586, %v3665
    %v3667 = vlaneseq
    %v3668 = vshrl.u32 %v3667, 7
    %v3669 = vsub.s32 0, %v3668
    %v3670 = vrot.slane %v1588, %v3669
    %v3671 = vlaneseq
    %v3672 = vshrl.u32 %v3671, 7
    %v3673 = vsub.s32 0, %v3672
    %v3674 = vrot.slane %v1571, %v3673
    %v3675 = vlaneseq
    %v3676 = vshrl.u32 %v3675, 7
    %v3677 = vsub.s32 0, %v3676
    %v3678 = vrot.slane %v1585, %v3677
    %v3679 = vlaneseq
    %v3680 = vshrl.u32 %v3679, 7
    %v3681 = vsub.s32 0, %v3680
    %v3682 = vrot.slane %v1587, %v3681
    %v3683 = vlaneseq
    %v3684 = vshrl.u32 %v3683, 7
    %v3685 = vsub.s32 0, %v3684
    %v3686 = vrot.slane %v1589, %v3685
    %v3687 = vlaneseq
    %v3688 = vshrl.u32 %v3687, 7
    %v3689 = vsub.s32 0, %v3688
    %v3690 = vrot.slane %v1613, %v3689
    %v3691 = vlaneseq
    %v3692 = vshrl.u32 %v3691, 7
    %v3693 = vsub.s32 0, %v3692
    %v3694 = vrot.slane %v1627, %v3693
    %v3695 = vlaneseq
    %v3696 = vshrl.u32 %v3695, 7
    %v3697 = vsub.s32 0, %v3696
    %v3698 = vrot.slane %v1635, %v3697
    %v3699 = vlaneseq
    %v3700 = vshrl.u32 %v3699, 7
    %v3701 = vsub.s32 0, %v3700
    %v3702 = vrot.slane %v1637, %v3701
    %v3703 = vlaneseq
    %v3704 = vshrl.u32 %v3703, 7
    %v3705 = vsub.s32 0, %v3704
    %v3706 = vrot.slane %v1620, %v3705
    %v3707 = vlaneseq
    %v3708 = vshrl.u32 %v3707, 7
    %v3709 = vsub.s32 0, %v3708
    %v3710 = vrot.slane %v1634, %v3709
    %v3711 = vlaneseq
    %v3712 = vshrl.u32 %v3711, 7
    %v3713 = vsub.s32 0, %v3712
    %v3714 = vrot.slane %v1636, %v3713
    %v3715 = vlaneseq
    %v3716 = vshrl.u32 %v3715, 7
    %v3717 = vsub.s32 0, %v3716
    %v3718 = vrot.slane %v1638, %v3717
    %v3719 = vlaneseq
    %v3720 = vshrl.u32 %v3719, 7
    %v3721 = vsub.s32 0, %v3720
    %v3722 = vrot.slane %v1662, %v3721
    %v3723 = vlaneseq
    %v3724 = vshrl.u32 %v3723, 7
    %v3725 = vsub.s32 0, %v3724
    %v3726 = vrot.slane %v1676, %v3725
    %v3727 = vlaneseq
    %v3728 = vshrl.u32 %v3727, 7
    %v3729 = vsub.s32 0, %v3728
    %v3730 = vrot.slane %v1684, %v3729
    %v3731 = vlaneseq
    %v3732 = vshrl.u32 %v3731, 7
    %v3733 = vsub.s32 0, %v3732
    %v3734 = vrot.slane %v1686, %v3733
    %v3735 = vlaneseq
    %v3736 = vshrl.u32 %v3735, 7
    %v3737 = vsub.s32 0, %v3736
    %v3738 = vrot.slane %v1669, %v3737
    %v3739 = vlaneseq
    %v3740 = vshrl.u32 %v3739, 7
    %v3741 = vsub.s32 0, %v3740
    %v3742 = vrot.slane %v1683, %v3741
    %v3743 = vlaneseq
    %v3744 = vshrl.u32 %v3743, 7
    %v3745 = vsub.s32 0, %v3744
    %v3746 = vrot.slane %v1685, %v3745
    %v3747 = vlaneseq
    %v3748 = vshrl.u32 %v3747, 7
    %v3749 = vsub.s32 0, %v3748
    %v3750 = vrot.slane %v1687, %v3749
    %v3751 = vlaneseq
    %v3752 = vshrl.u32 %v3751, 7
    %v3753 = vsub.s32 0, %v3752
    %v3754 = vrot.slane %v1711, %v3753
    %v3755 = vlaneseq
    %v3756 = vshrl.u32 %v3755, 7
    %v3757 = vsub.s32 0, %v3756
    %v3758 = vrot.slane %v1725, %v3757
    %v3759 = vlaneseq
    %v3760 = vshrl.u32 %v3759, 7
    %v3761 = vsub.s32 0, %v3760
    %v3762 = vrot.slane %v1733, %v3761
    %v3763 = vlaneseq
    %v3764 = vshrl.u32 %v3763, 7
    %v3765 = vsub.s32 0, %v3764
    %v3766 = vrot.slane %v1735, %v3765
    %v3767 = vlaneseq
    %v3768 = vshrl.u32 %v3767, 7
    %v3769 = vsub.s32 0, %v3768
    %v3770 = vrot.slane %v1718, %v3769
    %v3771 = vlaneseq
    %v3772 = vshrl.u32 %v3771, 7
    %v3773 = vsub.s32 0, %v3772
    %v3774 = vrot.slane %v1732, %v3773
    %v3775 = vlaneseq
    %v3776 = vshrl.u32 %v3775, 7
    %v3777 = vsub.s32 0, %v3776
    %v3778 = vrot.slane %v1734, %v3777
    %v3779 = vlaneseq
    %v3780 = vshrl.u32 %v3779, 7
    %v3781 = vsub.s32 0, %v3780
    %v3782 = vrot.slane %v1736, %v3781
    %v3783 = vlaneseq
    %v3784 = vshrl.u32 %v3783, 7
    %v3785 = vsub.s32 0, %v3784
    %v3786 = vrot.slane %v1760, %v3785
    %v3787 = vlaneseq
    %v3788 = vshrl.u32 %v3787, 7
    %v3789 = vsub.s32 0, %v3788
    %v3790 = vrot.slane %v1774, %v3789
    %v3791 = vlaneseq
    %v3792 = vshrl.u32 %v3791, 7
    %v3793 = vsub.s32 0, %v3792
    %v3794 = vrot.slane %v1782, %v3793
    %v3795 = vlaneseq
    %v3796 = vshrl.u32 %v3795, 7
    %v3797 = vsub.s32 0, %v3796
    %v3798 = vrot.slane %v1784, %v3797
    %v3799 = vlaneseq
    %v3800 = vshrl.u32 %v3799, 7
    %v3801 = vsub.s32 0, %v3800
    %v3802 = vrot.slane %v1767, %v3801
    %v3803 = vlaneseq
    %v3804 = vshrl.u32 %v3803, 7
    %v3805 = vsub.s32 0, %v3804
    %v3806 = vrot.slane %v1781, %v3805
    %v3807 = vlaneseq
    %v3808 = vshrl.u32 %v3807, 7
    %v3809 = vsub.s32 0, %v3808
    %v3810 = vrot.slane %v1783, %v3809
    %v3811 = vlaneseq
    %v3812 = vshrl.u32 %v3811, 7
    %v3813 = vsub.s32 0, %v3812
    %v3814 = vrot.slane %v1785, %v3813
    %v3815 = vlaneseq
    %v3816 = vshrl.u32 %v3815, 7
    %v3817 = vsub.s32 0, %v3816
    %v3818 = vrot.slane %v1809, %v3817
    %v3819 = vlaneseq
    %v3820 = vshrl.u32 %v3819, 7
    %v3821 = vsub.s32 0, %v3820
    %v3822 = vrot.slane %v1823, %v3821
    %v3823 = vlaneseq
    %v3824 = vshrl.u32 %v3823, 7
    %v3825 = vsub.s32 0, %v3824
    %v3826 = vrot.slane %v1831, %v3825
    %v3827 = vlaneseq
    %v3828 = vshrl.u32 %v3827, 7
    %v3829 = vsub.s32 0, %v3828
    %v3830 = vrot.slane %v1833, %v3829
    %v3831 = vlaneseq
    %v3832 = vshrl.u32 %v3831, 7
    %v3833 = vsub.s32 0, %v3832
    %v3834 = vrot.slane %v1816, %v3833
    %v3835 = vlaneseq
    %v3836 = vshrl.u32 %v3835, 7
    %v3837 = vsub.s32 0, %v3836
    %v3838 = vrot.slane %v1830, %v3837
    %v3839 = vlaneseq
    %v3840 = vshrl.u32 %v3839, 7
    %v3841 = vsub.s32 0, %v3840
    %v3842 = vrot.slane %v1832, %v3841
    %v3843 = vlaneseq
    %v3844 = vshrl.u32 %v3843, 7
    %v3845 = vsub.s32 0, %v3844
    %v3846 = vrot.slane %v1834, %v3845
    %v3847 = vlaneseq
    %v3848 = vshrl.u32 %v3847, 7
    %v3849 = vsub.s32 0, %v3848
    %v3850 = vrot.slane %v1858, %v3849
    %v3851 = vlaneseq
    %v3852 = vshrl.u32 %v3851, 7
    %v3853 = vsub.s32 0, %v3852
    %v3854 = vrot.slane %v1872, %v3853
    %v3855 = vlaneseq
    %v3856 = vshrl.u32 %v3855, 7
    %v3857 = vsub.s32 0, %v3856
    %v3858 = vrot.slane %v1880, %v3857
    %v3859 = vlaneseq
    %v3860 = vshrl.u32 %v3859, 7
    %v3861 = vsub.s32 0, %v3860
    %v3862 = vrot.slane %v1882, %v3861
    %v3863 = vlaneseq
    %v3864 = vshrl.u32 %v3863, 7
    %v3865 = vsub.s32 0, %v3864
    %v3866 = vrot.slane %v1865, %v3865
    %v3867 = vlaneseq
    %v3868 = vshrl.u32 %v3867, 7
    %v3869 = vsub.s32 0, %v3868
    %v3870 = vrot.slane %v1879, %v3869
    %v3871 = vlaneseq
    %v3872 = vshrl.u32 %v3871, 7
    %v3873 = vsub.s32 0, %v3872
    %v3874 = vrot.slane %v1881, %v3873
    %v3875 = vlaneseq
    %v3876 = vshrl.u32 %v3875, 7
    %v3877 = vsub.s32 0, %v3876
    %v3878 = vrot.slane %v1883, %v3877
    %v3879 = vlaneseq
    %v3880 = vshrl.u32 %v3879, 7
    %v3881 = vsub.s32 0, %v3880
    %v3882 = vrot.slane %v1907, %v3881
    %v3883 = vlaneseq
    %v3884 = vshrl.u32 %v3883, 7
    %v3885 = vsub.s32 0, %v3884
    %v3886 = vrot.slane %v1921, %v3885
    %v3887 = vlaneseq
    %v3888 = vshrl.u32 %v3887, 7
    %v3889 = vsub.s32 0, %v3888
    %v3890 = vrot.slane %v1929, %v3889
    %v3891 = vlaneseq
    %v3892 = vshrl.u32 %v3891, 7
    %v3893 = vsub.s32 0, %v3892
    %v3894 = vrot.slane %v1931, %v3893
    %v3895 = vlaneseq
    %v3896 = vshrl.u32 %v3895, 7
    %v3897 = vsub.s32 0, %v3896
    %v3898 = vrot.slane %v1914, %v3897
    %v3899 = vlaneseq
    %v3900 = vshrl.u32 %v3899, 7
    %v3901 = vsub.s32 0, %v3900
    %v3902 = vrot.slane %v1928, %v3901
    %v3903 = vlaneseq
    %v3904 = vshrl.u32 %v3903, 7
    %v3905 = vsub.s32 0, %v3904
    %v3906 = vrot.slane %v1930, %v3905
    %v3907 = vlaneseq
    %v3908 = vshrl.u32 %v3907, 7
    %v3909 = vsub.s32 0, %v3908
    %v3910 = vrot.slane %v1932, %v3909
    %v3911 = vlaneseq
    %v3912 = vshrl.u32 %v3911, 7
    %v3913 = vsub.s32 0, %v3912
    %v3914 = vrot.slane %v1956, %v3913
    %v3915 = vlaneseq
    %v3916 = vshrl.u32 %v3915, 7
    %v3917 = vsub.s32 0, %v3916
    %v3918 = vrot.slane %v1970, %v3917
    %v3919 = vlaneseq
    %v3920 = vshrl.u32 %v3919, 7
    %v3921 = vsub.s32 0, %v3920
    %v3922 = vrot.slane %v1978, %v3921
    %v3923 = vlaneseq
    %v3924 = vshrl.u32 %v3923, 7
    %v3925 = vsub.s32 0, %v3924
    %v3926 = vrot.slane %v1980, %v3925
    %v3927 = vlaneseq
    %v3928 = vshrl.u32 %v3927, 7
    %v3929 = vsub.s32 0, %v3928
    %v3930 = vrot.slane %v1963, %v3929
    %v3931 = vlaneseq
    %v3932 = vshrl.u32 %v3931, 7
    %v3933 = vsub.s32 0, %v3932
    %v3934 = vrot.slane %v1977, %v3933
    %v3935 = vlaneseq
    %v3936 = vshrl.u32 %v3935, 7
    %v3937 = vsub.s32 0, %v3936
    %v3938 = vrot.slane %v1979, %v3937
    %v3939 = vlaneseq
    %v3940 = vshrl.u32 %v3939, 7
    %v3941 = vsub.s32 0, %v3940
    %v3942 = vrot.slane %v1981, %v3941
    %v3943 = vlaneseq
    %v3944 = vshrl.u32 %v3943, 7
    %v3945 = vsub.s32 0, %v3944
    %v3946 = vrot.slane %v2005, %v3945
    %v3947 = vlaneseq
    %v3948 = vshrl.u32 %v3947, 7
    %v3949 = vsub.s32 0, %v3948
    %v3950 = vrot.slane %v2019, %v3949
    %v3951 = vlaneseq
    %v3952 = vshrl.u32 %v3951, 7
    %v3953 = vsub.s32 0, %v3952
    %v3954 = vrot.slane %v2027, %v3953
    %v3955 = vlaneseq
    %v3956 = vshrl.u32 %v3955, 7
    %v3957 = vsub.s32 0, %v3956
    %v3958 = vrot.slane %v2029, %v3957
    %v3959 = vlaneseq
    %v3960 = vshrl.u32 %v3959, 7
    %v3961 = vsub.s32 0, %v3960
    %v3962 = vrot.slane %v2012, %v3961
    %v3963 = vlaneseq
    %v3964 = vshrl.u32 %v3963, 7
    %v3965 = vsub.s32 0, %v3964
    %v3966 = vrot.slane %v2026, %v3965
    %v3967 = vlaneseq
    %v3968 = vshrl.u32 %v3967, 7
    %v3969 = vsub.s32 0, %v3968
    %v3970 = vrot.slane %v2028, %v3969
    %v3971 = vlaneseq
    %v3972 = vshrl.u32 %v3971, 7
    %v3973 = vsub.s32 0, %v3972
    %v3974 = vrot.slane %v2030, %v3973
    %v3975 = vlaneseq
    %v3976 = vshrl.u32 %v3975, 7
    %v3977 = vsub.s32 0, %v3976
    %v3978 = vrot.slane %v2054, %v3977
    %v3979 = vlaneseq
    %v3980 = vshrl.u32 %v3979, 7
    %v3981 = vsub.s32 0, %v3980
    %v3982 = vrot.slane %v2068, %v3981
    %v3983 = vlaneseq
    %v3984 = vshrl.u32 %v3983, 7
    %v3985 = vsub.s32 0, %v3984
    %v3986 = vrot.slane %v2076, %v3985
    %v3987 = vlaneseq
    %v3988 = vshrl.u32 %v3987, 7
    %v3989 = vsub.s32 0, %v3988
    %v3990 = vrot.slane %v2078, %v3989
    %v3991 = vlaneseq
    %v3992 = vshrl.u32 %v3991, 7
    %v3993 = vsub.s32 0, %v3992
    %v3994 = vrot.slane %v2061, %v3993
    %v3995 = vlaneseq
    %v3996 = vshrl.u32 %v3995, 7
    %v3997 = vsub.s32 0, %v3996
    %v3998 = vrot.slane %v2075, %v3997
    %v3999 = vlaneseq
    %v4000 = vshrl.u32 %v3999, 7
    %v4001 = vsub.s32 0, %v4000
    %v4002 = vrot.slane %v2077, %v4001
    %v4003 = vlaneseq
    %v4004 = vshrl.u32 %v4003, 7
    %v4005 = vsub.s32 0, %v4004
    %v4006 = vrot.slane %v2079, %v4005
    %v4007 = vlaneseq
    %v4008 = vshrl.u32 %v4007, 7
    %v4009 = vsub.s32 0, %v4008
    %v4010 = vrot.slane %v2103, %v4009
    %v4011 = vlaneseq
    %v4012 = vshrl.u32 %v4011, 7
    %v4013 = vsub.s32 0, %v4012
    %v4014 = vrot.slane %v2117, %v4013
    %v4015 = vlaneseq
    %v4016 = vshrl.u32 %v4015, 7
    %v4017 = vsub.s32 0, %v4016
    %v4018 = vrot.slane %v2125, %v4017
    %v4019 = vlaneseq
    %v4020 = vshrl.u32 %v4019, 7
    %v4021 = vsub.s32 0, %v4020
    %v4022 = vrot.slane %v2127, %v4021
    %v4023 = vlaneseq
    %v4024 = vshrl.u32 %v4023, 7
    %v4025 = vsub.s32 0, %v4024
    %v4026 = vrot.slane %v2110, %v4025
    %v4027 = vlaneseq
    %v4028 = vshrl.u32 %v4027, 7
    %v4029 = vsub.s32 0, %v4028
    %v4030 = vrot.slane %v2124, %v4029
    %v4031 = vlaneseq
    %v4032 = vshrl.u32 %v4031, 7
    %v4033 = vsub.s32 0, %v4032
    %v4034 = vrot.slane %v2126, %v4033
    %v4035 = vlaneseq
    %v4036 = vshrl.u32 %v4035, 7
    %v4037 = vsub.s32 0, %v4036
    %v4038 = vrot.slane %v2128, %v4037
    %v4039 = vlaneseq
    %v4040 = vshrl.u32 %v4039, 7
    %v4041 = vsub.s32 0, %v4040
    %v4042 = vrot.slane %v2152, %v4041
    %v4043 = vlaneseq
    %v4044 = vshrl.u32 %v4043, 7
    %v4045 = vsub.s32 0, %v4044
    %v4046 = vrot.slane %v2166, %v4045
    %v4047 = vlaneseq
    %v4048 = vshrl.u32 %v4047, 7
    %v4049 = vsub.s32 0, %v4048
    %v4050 = vrot.slane %v2174, %v4049
    %v4051 = vlaneseq
    %v4052 = vshrl.u32 %v4051, 7
    %v4053 = vsub.s32 0, %v4052
    %v4054 = vrot.slane %v2176, %v4053
    %v4055 = vlaneseq
    %v4056 = vshrl.u32 %v4055, 7
    %v4057 = vsub.s32 0, %v4056
    %v4058 = vrot.slane %v2159, %v4057
    %v4059 = vlaneseq
    %v4060 = vshrl.u32 %v4059, 7
    %v4061 = vsub.s32 0, %v4060
    %v4062 = vrot.slane %v2173, %v4061
    %v4063 = vlaneseq
    %v4064 = vshrl.u32 %v4063, 7
    %v4065 = vsub.s32 0, %v4064
    %v4066 = vrot.slane %v2175, %v4065
    %v4067 = vlaneseq
    %v4068 = vshrl.u32 %v4067, 7
    %v4069 = vsub.s32 0, %v4068
    %v4070 = vrot.slane %v2177, %v4069
    %v4071 = vlaneseq
    %v4072 = vshrl.u32 %v4071, 7
    %v4073 = vsub.s32 0, %v4072
    %v4074 = vrot.slane %v2201, %v4073
    %v4075 = vlaneseq
    %v4076 = vshrl.u32 %v4075, 7
    %v4077 = vsub.s32 0, %v4076
    %v4078 = vrot.slane %v2215, %v4077
    %v4079 = vlaneseq
    %v4080 = vshrl.u32 %v4079, 7
    %v4081 = vsub.s32 0, %v4080
    %v4082 = vrot.slane %v2223, %v4081
    %v4083 = vlaneseq
    %v4084 = vshrl.u32 %v4083, 7
    %v4085 = vsub.s32 0, %v4084
    %v4086 = vrot.slane %v2225, %v4085
    %v4087 = vlaneseq
    %v4088 = vshrl.u32 %v4087, 7
    %v4089 = vsub.s32 0, %v4088
    %v4090 = vrot.slane %v2208, %v4089
    %v4091 = vlaneseq
    %v4092 = vshrl.u32 %v4091, 7
    %v4093 = vsub.s32 0, %v4092
    %v4094 = vrot.slane %v2222, %v4093
    %v4095 = vlaneseq
    %v4096 = vshrl.u32 %v4095, 7
    %v4097 = vsub.s32 0, %v4096
    %v4098 = vrot.slane %v2224, %v4097
    %v4099 = vlaneseq
    %v4100 = vshrl.u32 %v4099, 7
    %v4101 = vsub.s32 0, %v4100
    %v4102 = vrot.slane %v2226, %v4101
    %v4103 = vlaneseq
    %v4104 = vshrl.u32 %v4103, 7
    %v4105 = vsub.s32 0, %v4104
    %v4106 = vrot.slane %v2250, %v4105
    %v4107 = vlaneseq
    %v4108 = vshrl.u32 %v4107, 7
    %v4109 = vsub.s32 0, %v4108
    %v4110 = vrot.slane %v2264, %v4109
    %v4111 = vlaneseq
    %v4112 = vshrl.u32 %v4111, 7
    %v4113 = vsub.s32 0, %v4112
    %v4114 = vrot.slane %v2272, %v4113
    %v4115 = vlaneseq
    %v4116 = vshrl.u32 %v4115, 7
    %v4117 = vsub.s32 0, %v4116
    %v4118 = vrot.slane %v2274, %v4117
    %v4119 = vlaneseq
    %v4120 = vshrl.u32 %v4119, 7
    %v4121 = vsub.s32 0, %v4120
    %v4122 = vrot.slane %v2257, %v4121
    %v4123 = vlaneseq
    %v4124 = vshrl.u32 %v4123, 7
    %v4125 = vsub.s32 0, %v4124
    %v4126 = vrot.slane %v2271, %v4125
    %v4127 = vlaneseq
    %v4128 = vshrl.u32 %v4127, 7
    %v4129 = vsub.s32 0, %v4128
    %v4130 = vrot.slane %v2273, %v4129
    %v4131 = vlaneseq
    %v4132 = vshrl.u32 %v4131, 7
    %v4133 = vsub.s32 0, %v4132
    %v4134 = vrot.slane %v2275, %v4133
    %v4135 = vlaneseq
    %v4136 = vshrl.u32 %v4135, 7
    %v4137 = vsub.s32 0, %v4136
    %v4138 = vrot.slane %v2299, %v4137
    %v4139 = vlaneseq
    %v4140 = vshrl.u32 %v4139, 7
    %v4141 = vsub.s32 0, %v4140
    %v4142 = vrot.slane %v2313, %v4141
    %v4143 = vlaneseq
    %v4144 = vshrl.u32 %v4143, 7
    %v4145 = vsub.s32 0, %v4144
    %v4146 = vrot.slane %v2321, %v4145
    %v4147 = vlaneseq
    %v4148 = vshrl.u32 %v4147, 7
    %v4149 = vsub.s32 0, %v4148
    %v4150 = vrot.slane %v2323, %v4149
    %v4151 = vlaneseq
    %v4152 = vshrl.u32 %v4151, 7
    %v4153 = vsub.s32 0, %v4152
    %v4154 = vrot.slane %v2306, %v4153
    %v4155 = vlaneseq
    %v4156 = vshrl.u32 %v4155, 7
    %v4157 = vsub.s32 0, %v4156
    %v4158 = vrot.slane %v2320, %v4157
    %v4159 = vlaneseq
    %v4160 = vshrl.u32 %v4159, 7
    %v4161 = vsub.s32 0, %v4160
    %v4162 = vrot.slane %v2322, %v4161
    %v4163 = vlaneseq
    %v4164 = vshrl.u32 %v4163, 7
    %v4165 = vsub.s32 0, %v4164
    %v4166 = vrot.slane %v2324, %v4165
    %v4167 = vlaneseq
    %v4168 = vshrl.u32 %v4167, 7
    %v4169 = vsub.s32 0, %v4168
    %v4170 = vrot.slane %v2348, %v4169
    %v4171 = vlaneseq
    %v4172 = vshrl.u32 %v4171, 7
    %v4173 = vsub.s32 0, %v4172
    %v4174 = vrot.slane %v2362, %v4173
    %v4175 = vlaneseq
    %v4176 = vshrl.u32 %v4175, 7
    %v4177 = vsub.s32 0, %v4176
    %v4178 = vrot.slane %v2370, %v4177
    %v4179 = vlaneseq
    %v4180 = vshrl.u32 %v4179, 7
    %v4181 = vsub.s32 0, %v4180
    %v4182 = vrot.slane %v2372, %v4181
    %v4183 = vlaneseq
    %v4184 = vshrl.u32 %v4183, 7
    %v4185 = vsub.s32 0, %v4184
    %v4186 = vrot.slane %v2355, %v4185
    %v4187 = vlaneseq
    %v4188 = vshrl.u32 %v4187, 7
    %v4189 = vsub.s32 0, %v4188
    %v4190 = vrot.slane %v2369, %v4189
    %v4191 = vlaneseq
    %v4192 = vshrl.u32 %v4191, 7
    %v4193 = vsub.s32 0, %v4192
    %v4194 = vrot.slane %v2371, %v4193
    %v4195 = vlaneseq
    %v4196 = vshrl.u32 %v4195, 7
    %v4197 = vsub.s32 0, %v4196
    %v4198 = vrot.slane %v2373, %v4197
    %v4199 = vlaneseq
    %v4200 = vshrl.u32 %v4199, 7
    %v4201 = vsub.s32 0, %v4200
    %v4202 = vrot.slane %v2397, %v4201
    %v4203 = vlaneseq
    %v4204 = vshrl.u32 %v4203, 7
    %v4205 = vsub.s32 0, %v4204
    %v4206 = vrot.slane %v2411, %v4205
    %v4207 = vlaneseq
    %v4208 = vshrl.u32 %v4207, 7
    %v4209 = vsub.s32 0, %v4208
    %v4210 = vrot.slane %v2419, %v4209
    %v4211 = vlaneseq
    %v4212 = vshrl.u32 %v4211, 7
    %v4213 = vsub.s32 0, %v4212
    %v4214 = vrot.slane %v2421, %v4213
    %v4215 = vlaneseq
    %v4216 = vshrl.u32 %v4215, 7
    %v4217 = vsub.s32 0, %v4216
    %v4218 = vrot.slane %v2404, %v4217
    %v4219 = vlaneseq
    %v4220 = vshrl.u32 %v4219, 7
    %v4221 = vsub.s32 0, %v4220
    %v4222 = vrot.slane %v2418, %v4221
    %v4223 = vlaneseq
    %v4224 = vshrl.u32 %v4223, 7
    %v4225 = vsub.s32 0, %v4224
    %v4226 = vrot.slane %v2420, %v4225
    %v4227 = vlaneseq
    %v4228 = vshrl.u32 %v4227, 7
    %v4229 = vsub.s32 0, %v4228
    %v4230 = vrot.slane %v2422, %v4229
    %v4231 = vlaneseq
    %v4232 = vshrl.u32 %v4231, 7
    %v4233 = vsub.s32 0, %v4232
    %v4234 = vrot.slane %v2446, %v4233
    %v4235 = vlaneseq
    %v4236 = vshrl.u32 %v4235, 7
    %v4237 = vsub.s32 0, %v4236
    %v4238 = vrot.slane %v2460, %v4237
    %v4239 = vlaneseq
    %v4240 = vshrl.u32 %v4239, 7
    %v4241 = vsub.s32 0, %v4240
    %v4242 = vrot.slane %v2468, %v4241
    %v4243 = vlaneseq
    %v4244 = vshrl.u32 %v4243, 7
    %v4245 = vsub.s32 0, %v4244
    %v4246 = vrot.slane %v2470, %v4245
    %v4247 = vlaneseq
    %v4248 = vshrl.u32 %v4247, 7
    %v4249 = vsub.s32 0, %v4248
    %v4250 = vrot.slane %v2453, %v4249
    %v4251 = vlaneseq
    %v4252 = vshrl.u32 %v4251, 7
    %v4253 = vsub.s32 0, %v4252
    %v4254 = vrot.slane %v2467, %v4253
    %v4255 = vlaneseq
    %v4256 = vshrl.u32 %v4255, 7
    %v4257 = vsub.s32 0, %v4256
    %v4258 = vrot.slane %v2469, %v4257
    %v4259 = vlaneseq
    %v4260 = vshrl.u32 %v4259, 7
    %v4261 = vsub.s32 0, %v4260
    %v4262 = vrot.slane %v2471, %v4261
    %v4263 = vlaneseq
    %v4264 = vshrl.u32 %v4263, 7
    %v4265 = vsub.s32 0, %v4264
    %v4266 = vrot.slane %v2495, %v4265
    %v4267 = vlaneseq
    %v4268 = vshrl.u32 %v4267, 7
    %v4269 = vsub.s32 0, %v4268
    %v4270 = vrot.slane %v2509, %v4269
    %v4271 = vlaneseq
    %v4272 = vshrl.u32 %v4271, 7
    %v4273 = vsub.s32 0, %v4272
    %v4274 = vrot.slane %v2517, %v4273
    %v4275 = vlaneseq
    %v4276 = vshrl.u32 %v4275, 7
    %v4277 = vsub.s32 0, %v4276
    %v4278 = vrot.slane %v2519, %v4277
    %v4279 = vlaneseq
    %v4280 = vshrl.u32 %v4279, 7
    %v4281 = vsub.s32 0, %v4280
    %v4282 = vrot.slane %v2502, %v4281
    %v4283 = vlaneseq
    %v4284 = vshrl.u32 %v4283, 7
    %v4285 = vsub.s32 0, %v4284
    %v4286 = vrot.slane %v2516, %v4285
    %v4287 = vlaneseq
    %v4288 = vshrl.u32 %v4287, 7
    %v4289 = vsub.s32 0, %v4288
    %v4290 = vrot.slane %v2518, %v4289
    %v4291 = vlaneseq
    %v4292 = vshrl.u32 %v4291, 7
    %v4293 = vsub.s32 0, %v4292
    %v4294 = vrot.slane %v2520, %v4293
    %v4295 = vlaneseq
    %v4296 = vshrl.u32 %v4295, 7
    %v4297 = vsub.s32 0, %v4296
    %v4298 = vrot.slane %v2544, %v4297
    %v4299 = vlaneseq
    %v4300 = vshrl.u32 %v4299, 7
    %v4301 = vsub.s32 0, %v4300
    %v4302 = vrot.slane %v2558, %v4301
    %v4303 = vlaneseq
    %v4304 = vshrl.u32 %v4303, 7
    %v4305 = vsub.s32 0, %v4304
    %v4306 = vrot.slane %v2566, %v4305
    %v4307 = vlaneseq
    %v4308 = vshrl.u32 %v4307, 7
    %v4309 = vsub.s32 0, %v4308
    %v4310 = vrot.slane %v2568, %v4309
    %v4311 = vlaneseq
    %v4312 = vshrl.u32 %v4311, 7
    %v4313 = vsub.s32 0, %v4312
    %v4314 = vrot.slane %v2551, %v4313
    %v4315 = vlaneseq
    %v4316 = vshrl.u32 %v4315, 7
    %v4317 = vsub.s32 0, %v4316
    %v4318 = vrot.slane %v2565, %v4317
    %v4319 = vlaneseq
    %v4320 = vshrl.u32 %v4319, 7
    %v4321 = vsub.s32 0, %v4320
    %v4322 = vrot.slane %v2567, %v4321
    %v4323 = vlaneseq
    %v4324 = vshrl.u32 %v4323, 7
    %v4325 = vsub.s32 0, %v4324
    %v4326 = vrot.slane %v2569, %v4325
    %v4327 = vlaneseq
    %v4328 = vshrl.u32 %v4327, 7
    %v4329 = vsub.s32 0, %v4328
    %v4330 = vrot.slane %v2593, %v4329
    %v4331 = vlaneseq
    %v4332 = vshrl.u32 %v4331, 7
    %v4333 = vsub.s32 0, %v4332
    %v4334 = vrot.slane %v2607, %v4333
    %v4335 = vlaneseq
    %v4336 = vshrl.u32 %v4335, 7
    %v4337 = vsub.s32 0, %v4336
    %v4338 = vrot.slane %v2615, %v4337
    %v4339 = vlaneseq
    %v4340 = vshrl.u32 %v4339, 7
    %v4341 = vsub.s32 0, %v4340
    %v4342 = vrot.slane %v2617, %v4341
    %v4343 = vlaneseq
    %v4344 = vshrl.u32 %v4343, 7
    %v4345 = vsub.s32 0, %v4344
    %v4346 = vrot.slane %v2600, %v4345
    %v4347 = vlaneseq
    %v4348 = vshrl.u32 %v4347, 7
    %v4349 = vsub.s32 0, %v4348
    %v4350 = vrot.slane %v2614, %v4349
    %v4351 = vlaneseq
    %v4352 = vshrl.u32 %v4351, 7
    %v4353 = vsub.s32 0, %v4352
    %v4354 = vrot.slane %v2616, %v4353
    %v4355 = vlaneseq
    %v4356 = vshrl.u32 %v4355, 7
    %v4357 = vsub.s32 0, %v4356
    %v4358 = vrot.slane %v2618, %v4357
    %v4359 = vlaneseq
    %v4360 = vshrl.u32 %v4359, 7
    %v4361 = vsub.s32 0, %v4360
    %v4362 = vrot.slane %v2642, %v4361
    %v4363 = vlaneseq
    %v4364 = vshrl.u32 %v4363, 7
    %v4365 = vsub.s32 0, %v4364
    %v4366 = vrot.slane %v2656, %v4365
    %v4367 = vlaneseq
    %v4368 = vshrl.u32 %v4367, 7
    %v4369 = vsub.s32 0, %v4368
    %v4370 = vrot.slane %v2664, %v4369
    %v4371 = vlaneseq
    %v4372 = vshrl.u32 %v4371, 7
    %v4373 = vsub.s32 0, %v4372
    %v4374 = vrot.slane %v2666, %v4373
    %v4375 = vlaneseq
    %v4376 = vshrl.u32 %v4375, 7
    %v4377 = vsub.s32 0, %v4376
    %v4378 = vrot.slane %v2649, %v4377
    %v4379 = vlaneseq
    %v4380 = vshrl.u32 %v4379, 7
    %v4381 = vsub.s32 0, %v4380
    %v4382 = vrot.slane %v2663, %v4381
    %v4383 = vlaneseq
    %v4384 = vshrl.u32 %v4383, 7
    %v4385 = vsub.s32 0, %v4384
    %v4386 = vrot.slane %v2665, %v4385
    %v4387 = vlaneseq
    %v4388 = vshrl.u32 %v4387, 7
    %v4389 = vsub.s32 0, %v4388
    %v4390 = vrot.slane %v2667, %v4389
    %v4391 = vlaneseq
    %v4392 = vshrl.u32 %v4391, 7
    %v4393 = vsub.s32 0, %v4392
    %v4394 = vrot.slane %v2691, %v4393
    %v4395 = vlaneseq
    %v4396 = vshrl.u32 %v4395, 7
    %v4397 = vsub.s32 0, %v4396
    %v4398 = vrot.slane %v2705, %v4397
    %v4399 = vlaneseq
    %v4400 = vshrl.u32 %v4399, 7
    %v4401 = vsub.s32 0, %v4400
    %v4402 = vrot.slane %v2713, %v4401
    %v4403 = vlaneseq
    %v4404 = vshrl.u32 %v4403, 7
    %v4405 = vsub.s32 0, %v4404
    %v4406 = vrot.slane %v2715, %v4405
    %v4407 = vlaneseq
    %v4408 = vshrl.u32 %v4407, 7
    %v4409 = vsub.s32 0, %v4408
    %v4410 = vrot.slane %v2698, %v4409
    %v4411 = vlaneseq
    %v4412 = vshrl.u32 %v4411, 7
    %v4413 = vsub.s32 0, %v4412
    %v4414 = vrot.slane %v2712, %v4413
    %v4415 = vlaneseq
    %v4416 = vshrl.u32 %v4415, 7
    %v4417 = vsub.s32 0, %v4416
    %v4418 = vrot.slane %v2714, %v4417
    %v4419 = vlaneseq
    %v4420 = vshrl.u32 %v4419, 7
    %v4421 = vsub.s32 0, %v4420
    %v4422 = vrot.slane %v2716, %v4421
    %v4423 = vlaneseq
    %v4424 = vshrl.u32 %v4423, 7
    %v4425 = vsub.s32 0, %v4424
    %v4426 = vrot.slane %v2740, %v4425
    %v4427 = vlaneseq
    %v4428 = vshrl.u32 %v4427, 7
    %v4429 = vsub.s32 0, %v4428
    %v4430 = vrot.slane %v2754, %v4429
    %v4431 = vlaneseq
    %v4432 = vshrl.u32 %v4431, 7
    %v4433 = vsub.s32 0, %v4432
    %v4434 = vrot.slane %v2762, %v4433
    %v4435 = vlaneseq
    %v4436 = vshrl.u32 %v4435, 7
    %v4437 = vsub.s32 0, %v4436
    %v4438 = vrot.slane %v2764, %v4437
    %v4439 = vlaneseq
    %v4440 = vshrl.u32 %v4439, 7
    %v4441 = vsub.s32 0, %v4440
    %v4442 = vrot.slane %v2747, %v4441
    %v4443 = vlaneseq
    %v4444 = vshrl.u32 %v4443, 7
    %v4445 = vsub.s32 0, %v4444
    %v4446 = vrot.slane %v2761, %v4445
    %v4447 = vlaneseq
    %v4448 = vshrl.u32 %v4447, 7
    %v4449 = vsub.s32 0, %v4448
    %v4450 = vrot.slane %v2763, %v4449
    %v4451 = vlaneseq
    %v4452 = vshrl.u32 %v4451, 7
    %v4453 = vsub.s32 0, %v4452
    %v4454 = vrot.slane %v2765, %v4453
    %v4455 = vlaneseq
    %v4456 = vshrl.u32 %v4455, 7
    %v4457 = vsub.s32 0, %v4456
    %v4458 = vrot.slane %v2789, %v4457
    %v4459 = vlaneseq
    %v4460 = vshrl.u32 %v4459, 7
    %v4461 = vsub.s32 0, %v4460
    %v4462 = vrot.slane %v2803, %v4461
    %v4463 = vlaneseq
    %v4464 = vshrl.u32 %v4463, 7
    %v4465 = vsub.s32 0, %v4464
    %v4466 = vrot.slane %v2811, %v4465
    %v4467 = vlaneseq
    %v4468 = vshrl.u32 %v4467, 7
    %v4469 = vsub.s32 0, %v4468
    %v4470 = vrot.slane %v2813, %v4469
    %v4471 = vlaneseq
    %v4472 = vshrl.u32 %v4471, 7
    %v4473 = vsub.s32 0, %v4472
    %v4474 = vrot.slane %v2796, %v4473
    %v4475 = vlaneseq
    %v4476 = vshrl.u32 %v4475, 7
    %v4477 = vsub.s32 0, %v4476
    %v4478 = vrot.slane %v2810, %v4477
    %v4479 = vlaneseq
    %v4480 = vshrl.u32 %v4479, 7
    %v4481 = vsub.s32 0, %v4480
    %v4482 = vrot.slane %v2812, %v4481
    %v4483 = vlaneseq
    %v4484 = vshrl.u32 %v4483, 7
    %v4485 = vsub.s32 0, %v4484
    %v4486 = vrot.slane %v2814, %v4485
    %v4487 = vlaneseq
    %v4488 = vshrl.u32 %v4487, 7
    %v4489 = vsub.s32 0, %v4488
    %v4490 = vrot.slane %v2838, %v4489
    %v4491 = vlaneseq
    %v4492 = vshrl.u32 %v4491, 7
    %v4493 = vsub.s32 0, %v4492
    %v4494 = vrot.slane %v2852, %v4493
    %v4495 = vlaneseq
    %v4496 = vshrl.u32 %v4495, 7
    %v4497 = vsub.s32 0, %v4496
    %v4498 = vrot.slane %v2860, %v4497
    %v4499 = vlaneseq
    %v4500 = vshrl.u32 %v4499, 7
    %v4501 = vsub.s32 0, %v4500
    %v4502 = vrot.slane %v2862, %v4501
    %v4503 = vlaneseq
    %v4504 = vshrl.u32 %v4503, 7
    %v4505 = vsub.s32 0, %v4504
    %v4506 = vrot.slane %v2845, %v4505
    %v4507 = vlaneseq
    %v4508 = vshrl.u32 %v4507, 7
    %v4509 = vsub.s32 0, %v4508
    %v4510 = vrot.slane %v2859, %v4509
    %v4511 = vlaneseq
    %v4512 = vshrl.u32 %v4511, 7
    %v4513 = vsub.s32 0, %v4512
    %v4514 = vrot.slane %v2861, %v4513
    %v4515 = vlaneseq
    %v4516 = vshrl.u32 %v4515, 7
    %v4517 = vsub.s32 0, %v4516
    %v4518 = vrot.slane %v2863, %v4517
    %v4519 = vlaneseq
    %v4520 = vshrl.u32 %v4519, 7
    %v4521 = vsub.s32 0, %v4520
    %v4522 = vrot.slane %v2887, %v4521
    %v4523 = vlaneseq
    %v4524 = vshrl.u32 %v4523, 7
    %v4525 = vsub.s32 0, %v4524
    %v4526 = vrot.slane %v2901, %v4525
    %v4527 = vlaneseq
    %v4528 = vshrl.u32 %v4527, 7
    %v4529 = vsub.s32 0, %v4528
    %v4530 = vrot.slane %v2909, %v4529
    %v4531 = vlaneseq
    %v4532 = vshrl.u32 %v4531, 7
    %v4533 = vsub.s32 0, %v4532
    %v4534 = vrot.slane %v2911, %v4533
    %v4535 = vlaneseq
    %v4536 = vshrl.u32 %v4535, 7
    %v4537 = vsub.s32 0, %v4536
    %v4538 = vrot.slane %v2894, %v4537
    %v4539 = vlaneseq
    %v4540 = vshrl.u32 %v4539, 7
    %v4541 = vsub.s32 0, %v4540
    %v4542 = vrot.slane %v2908, %v4541
    %v4543 = vlaneseq
    %v4544 = vshrl.u32 %v4543, 7
    %v4545 = vsub.s32 0, %v4544
    %v4546 = vrot.slane %v2910, %v4545
    %v4547 = vlaneseq
    %v4548 = vshrl.u32 %v4547, 7
    %v4549 = vsub.s32 0, %v4548
    %v4550 = vrot.slane %v2912, %v4549
    %v4551 = vlaneseq
    %v4552 = vshrl.u32 %v4551, 7
    %v4553 = vsub.s32 0, %v4552
    %v4554 = vrot.slane %v2936, %v4553
    %v4555 = vlaneseq
    %v4556 = vshrl.u32 %v4555, 7
    %v4557 = vsub.s32 0, %v4556
    %v4558 = vrot.slane %v2950, %v4557
    %v4559 = vlaneseq
    %v4560 = vshrl.u32 %v4559, 7
    %v4561 = vsub.s32 0, %v4560
    %v4562 = vrot.slane %v2958, %v4561
    %v4563 = vlaneseq
    %v4564 = vshrl.u32 %v4563, 7
    %v4565 = vsub.s32 0, %v4564
    %v4566 = vrot.slane %v2960, %v4565
    %v4567 = vlaneseq
    %v4568 = vshrl.u32 %v4567, 7
    %v4569 = vsub.s32 0, %v4568
    %v4570 = vrot.slane %v2943, %v4569
    %v4571 = vlaneseq
    %v4572 = vshrl.u32 %v4571, 7
    %v4573 = vsub.s32 0, %v4572
    %v4574 = vrot.slane %v2957, %v4573
    %v4575 = vlaneseq
    %v4576 = vshrl.u32 %v4575, 7
    %v4577 = vsub.s32 0, %v4576
    %v4578 = vrot.slane %v2959, %v4577
    %v4579 = vlaneseq
    %v4580 = vshrl.u32 %v4579, 7
    %v4581 = vsub.s32 0, %v4580
    %v4582 = vrot.slane %v2961, %v4581
    %v4583 = vlaneseq
    %v4584 = vshrl.u32 %v4583, 7
    %v4585 = vsub.s32 0, %v4584
    %v4586 = vrot.slane %v2985, %v4585
    %v4587 = vlaneseq
    %v4588 = vshrl.u32 %v4587, 7
    %v4589 = vsub.s32 0, %v4588
    %v4590 = vrot.slane %v2999, %v4589
    %v4591 = vlaneseq
    %v4592 = vshrl.u32 %v4591, 7
    %v4593 = vsub.s32 0, %v4592
    %v4594 = vrot.slane %v3007, %v4593
    %v4595 = vlaneseq
    %v4596 = vshrl.u32 %v4595, 7
    %v4597 = vsub.s32 0, %v4596
    %v4598 = vrot.slane %v3009, %v4597
    %v4599 = vlaneseq
    %v4600 = vshrl.u32 %v4599, 7
    %v4601 = vsub.s32 0, %v4600
    %v4602 = vrot.slane %v2992, %v4601
    %v4603 = vlaneseq
    %v4604 = vshrl.u32 %v4603, 7
    %v4605 = vsub.s32 0, %v4604
    %v4606 = vrot.slane %v3006, %v4605
    %v4607 = vlaneseq
    %v4608 = vshrl.u32 %v4607, 7
    %v4609 = vsub.s32 0, %v4608
    %v4610 = vrot.slane %v3008, %v4609
    %v4611 = vlaneseq
    %v4612 = vshrl.u32 %v4611, 7
    %v4613 = vsub.s32 0, %v4612
    %v4614 = vrot.slane %v3010, %v4613
    %v4615 = vlaneseq
    %v4616 = vshrl.u32 %v4615, 7
    %v4617 = vsub.s32 0, %v4616
    %v4618 = vrot.slane %v3034, %v4617
    %v4619 = vlaneseq
    %v4620 = vshrl.u32 %v4619, 7
    %v4621 = vsub.s32 0, %v4620
    %v4622 = vrot.slane %v3048, %v4621
    %v4623 = vlaneseq
    %v4624 = vshrl.u32 %v4623, 7
    %v4625 = vsub.s32 0, %v4624
    %v4626 = vrot.slane %v3056, %v4625
    %v4627 = vlaneseq
    %v4628 = vshrl.u32 %v4627, 7
    %v4629 = vsub.s32 0, %v4628
    %v4630 = vrot.slane %v3058, %v4629
    %v4631 = vlaneseq
    %v4632 = vshrl.u32 %v4631, 7
    %v4633 = vsub.s32 0, %v4632
    %v4634 = vrot.slane %v3041, %v4633
    %v4635 = vlaneseq
    %v4636 = vshrl.u32 %v4635, 7
    %v4637 = vsub.s32 0, %v4636
    %v4638 = vrot.slane %v3055, %v4637
    %v4639 = vlaneseq
    %v4640 = vshrl.u32 %v4639, 7
    %v4641 = vsub.s32 0, %v4640
    %v4642 = vrot.slane %v3057, %v4641
    %v4643 = vlaneseq
    %v4644 = vshrl.u32 %v4643, 7
    %v4645 = vsub.s32 0, %v4644
    %v4646 = vrot.slane %v3059, %v4645
    %v4647 = vlaneseq
    %v4648 = vshrl.u32 %v4647, 7
    %v4649 = vsub.s32 0, %v4648
    %v4650 = vrot.slane %v3083, %v4649
    %v4651 = vlaneseq
    %v4652 = vshrl.u32 %v4651, 7
    %v4653 = vsub.s32 0, %v4652
    %v4654 = vrot.slane %v3097, %v4653
    %v4655 = vlaneseq
    %v4656 = vshrl.u32 %v4655, 7
    %v4657 = vsub.s32 0, %v4656
    %v4658 = vrot.slane %v3105, %v4657
    %v4659 = vlaneseq
    %v4660 = vshrl.u32 %v4659, 7
    %v4661 = vsub.s32 0, %v4660
    %v4662 = vrot.slane %v3107, %v4661
    %v4663 = vlaneseq
    %v4664 = vshrl.u32 %v4663, 7
    %v4665 = vsub.s32 0, %v4664
    %v4666 = vrot.slane %v3090, %v4665
    %v4667 = vlaneseq
    %v4668 = vshrl.u32 %v4667, 7
    %v4669 = vsub.s32 0, %v4668
    %v4670 = vrot.slane %v3104, %v4669
    %v4671 = vlaneseq
    %v4672 = vshrl.u32 %v4671, 7
    %v4673 = vsub.s32 0, %v4672
    %v4674 = vrot.slane %v3106, %v4673
    %v4675 = vlaneseq
    %v4676 = vshrl.u32 %v4675, 7
    %v4677 = vsub.s32 0, %v4676
    %v4678 = vrot.slane %v3108, %v4677
    %v4679 = vlaneseq
    %v4680 = vshrl.u32 %v4679, 7
    %v4681 = vsub.s32 0, %v4680
    %v4682 = vrot.slane %v3132, %v4681
    %v4683 = vlaneseq
    %v4684 = vshrl.u32 %v4683, 7
    %v4685 = vsub.s32 0, %v4684
    %v4686 = vrot.slane %v3146, %v4685
    %v4687 = vlaneseq
    %v4688 = vshrl.u32 %v4687, 7
    %v4689 = vsub.s32 0, %v4688
    %v4690 = vrot.slane %v3154, %v4689
    %v4691 = vlaneseq
    %v4692 = vshrl.u32 %v4691, 7
    %v4693 = vsub.s32 0, %v4692
    %v4694 = vrot.slane %v3156, %v4693
    %v4695 = vlaneseq
    %v4696 = vshrl.u32 %v4695, 7
    %v4697 = vsub.s32 0, %v4696
    %v4698 = vrot.slane %v3139, %v4697
    %v4699 = vlaneseq
    %v4700 = vshrl.u32 %v4699, 7
    %v4701 = vsub.s32 0, %v4700
    %v4702 = vrot.slane %v3153, %v4701
    %v4703 = vlaneseq
    %v4704 = vshrl.u32 %v4703, 7
    %v4705 = vsub.s32 0, %v4704
    %v4706 = vrot.slane %v3155, %v4705
    %v4707 = vlaneseq
    %v4708 = vshrl.u32 %v4707, 7
    %v4709 = vsub.s32 0, %v4708
    %v4710 = vrot.slane %v3157, %v4709
    %v4711 = vlaneseq
    %v4712 = vshrl.u32 %v4711, 7
    %v4713 = vsub.s32 0, %v4712
    %v4714 = vrot.slane %v3181, %v4713
    %v4715 = vlaneseq
    %v4716 = vshrl.u32 %v4715, 7
    %v4717 = vsub.s32 0, %v4716
    %v4718 = vrot.slane %v3195, %v4717
    %v4719 = vlaneseq
    %v4720 = vshrl.u32 %v4719, 7
    %v4721 = vsub.s32 0, %v4720
    %v4722 = vrot.slane %v3203, %v4721
    %v4723 = vlaneseq
    %v4724 = vshrl.u32 %v4723, 7
    %v4725 = vsub.s32 0, %v4724
    %v4726 = vrot.slane %v3205, %v4725
    %v4727 = vlaneseq
    %v4728 = vshrl.u32 %v4727, 7
    %v4729 = vsub.s32 0, %v4728
    %v4730 = vrot.slane %v3188, %v4729
    %v4731 = vlaneseq
    %v4732 = vshrl.u32 %v4731, 7
    %v4733 = vsub.s32 0, %v4732
    %v4734 = vrot.slane %v3202, %v4733
    %v4735 = vlaneseq
    %v4736 = vshrl.u32 %v4735, 7
    %v4737 = vsub.s32 0, %v4736
    %v4738 = vrot.slane %v3204, %v4737
    %v4739 = vlaneseq
    %v4740 = vshrl.u32 %v4739, 7
    %v4741 = vsub.s32 0, %v4740
    %v4742 = vrot.slane %v3206, %v4741
    %v5127 = vmul.f32 %v69, %v3210
    %v5128 = vmul.f32 %v70, %v3214
    %v5129 = vmul.f32 %v71, %v3218
    %v5130 = vmul.f32 %v72, %v3222
    %v5131 = vmul.f32 %v73, %v3226
    %v5132 = vmul.f32 %v74, %v3230
    %v5133 = vmul.f32 %v75, %v3234
    %v5134 = vmul.f32 %v76, %v3238
    %v5135 = vmul.f32 %v77, %v3242
    %v5136 = vmul.f32 %v78, %v3246
    %v5137 = vmul.f32 %v79, %v3250
    %v5138 = vmul.f32 %v80, %v3254
    %v5139 = vmul.f32 %v81, %v3258
    %v5140 = vmul.f32 %v82, %v3262
    %v5141 = vmul.f32 %v83, %v3266
    %v5142 = vmul.f32 %v84, %v3270
    %v5143 = vmul.f32 %v85, %v3274
    %v5144 = vmul.f32 %v86, %v3278
    %v5145 = vmul.f32 %v87, %v3282
    %v5146 = vmul.f32 %v88, %v3286
    %v5147 = vmul.f32 %v89, %v3290
    %v5148 = vmul.f32 %v90, %v3294
    %v5149 = vmul.f32 %v91, %v3298
    %v5150 = vmul.f32 %v92, %v3302
    %v5151 = vmul.f32 %v93, %v3306
    %v5152 = vmul.f32 %v94, %v3310
    %v5153 = vmul.f32 %v95, %v3314
    %v5154 = vmul.f32 %v96, %v3318
    %v5155 = vmul.f32 %v97, %v3322
    %v5156 = vmul.f32 %v98, %v3326
    %v5157 = vmul.f32 %v99, %v3330
    %v5158 = vmul.f32 %v100, %v3334
    %v5159 = vmul.f32 %v101, %v3338
    %v5160 = vmul.f32 %v102, %v3342
    %v5161 = vmul.f32 %v103, %v3346
    %v5162 = vmul.f32 %v104, %v3350
    %v5163 = vmul.f32 %v105, %v3354
    %v5164 = vmul.f32 %v106, %v3358
    %v5165 = vmul.f32 %v107, %v3362
    %v5166 = vmul.f32 %v108, %v3366
    %v5167 = vmul.f32 %v109, %v3370
    %v5168 = vmul.f32 %v110, %v3374
    %v5169 = vmul.f32 %v111, %v3378
    %v5170 = vmul.f32 %v112, %v3382
    %v5171 = vmul.f32 %v113, %v3386
    %v5172 = vmul.f32 %v114, %v3390
    %v5173 = vmul.f32 %v115, %v3394
    %v5174 = vmul.f32 %v116, %v3398
    %v5175 = vmul.f32 %v117, %v3402
    %v5176 = vmul.f32 %v118, %v3406
    %v5177 = vmul.f32 %v119, %v3410
    %v5178 = vmul.f32 %v120, %v3414
    %v5179 = vmul.f32 %v121, %v3418
    %v5180 = vmul.f32 %v122, %v3422
    %v5181 = vmul.f32 %v123, %v3426
    %v5182 = vmul.f32 %v124, %v3430
    %v5183 = vmul.f32 %v125, %v3434
    %v5184 = vmul.f32 %v126, %v3438
    %v5185 = vmul.f32 %v127, %v3442
    %v5186 = vmul.f32 %v128, %v3446
    %v5187 = vmul.f32 %v129, %v3450
    %v5188 = vmul.f32 %v130, %v3454
    %v5189 = vmul.f32 %v131, %v3458
    %v5190 = vmul.f32 %v132, %v3462
    %v5191 = vmul.f32 %v133, %v3466
    %v5192 = vmul.f32 %v134, %v3470
    %v5193 = vmul.f32 %v135, %v3474
    %v5194 = vmul.f32 %v136, %v3478
    %v5195 = vmul.f32 %v137, %v3482
    %v5196 = vmul.f32 %v138, %v3486
    %v5197 = vmul.f32 %v139, %v3490
    %v5198 = vmul.f32 %v140, %v3494
    %v5199 = vmul.f32 %v141, %v3498
    %v5200 = vmul.f32 %v142, %v3502
    %v5201 = vmul.f32 %v143, %v3506
    %v5202 = vmul.f32 %v144, %v3510
    %v5203 = vmul.f32 %v145, %v3514
    %v5204 = vmul.f32 %v146, %v3518
    %v5205 = vmul.f32 %v147, %v3522
    %v5206 = vmul.f32 %v148, %v3526
    %v5207 = vmul.f32 %v149, %v3530
    %v5208 = vmul.f32 %v150, %v3534
    %v5209 = vmul.f32 %v151, %v3538
    %v5210 = vmul.f32 %v152, %v3542
    %v5211 = vmul.f32 %v153, %v3546
    %v5212 = vmul.f32 %v154, %v3550
    %v5213 = vmul.f32 %v155, %v3554
    %v5214 = vmul.f32 %v156, %v3558
    %v5215 = vmul.f32 %v157, %v3562
    %v5216 = vmul.f32 %v158, %v3566
    %v5217 = vmul.f32 %v159, %v3570
    %v5218 = vmul.f32 %v160, %v3574
    %v5219 = vmul.f32 %v161, %v3578
    %v5220 = vmul.f32 %v162, %v3582
    %v5221 = vmul.f32 %v163, %v3586
    %v5222 = vmul.f32 %v164, %v3590
    %v5223 = vmul.f32 %v165, %v3594
    %v5224 = vmul.f32 %v166, %v3598
    %v5225 = vmul.f32 %v167, %v3602
    %v5226 = vmul.f32 %v168, %v3606
    %v5227 = vmul.f32 %v169, %v3610
    %v5228 = vmul.f32 %v170, %v3614
    %v5229 = vmul.f32 %v171, %v3618
    %v5230 = vmul.f32 %v172, %v3622
    %v5231 = vmul.f32 %v173, %v3626
    %v5232 = vmul.f32 %v174, %v3630
    %v5233 = vmul.f32 %v175, %v3634
    %v5234 = vmul.f32 %v176, %v3638
    %v5235 = vmul.f32 %v177, %v3642
    %v5236 = vmul.f32 %v178, %v3646
    %v5237 = vmul.f32 %v179, %v3650
    %v5238 = vmul.f32 %v180, %v3654
    %v5239 = vmul.f32 %v181, %v3658
    %v5240 = vmul.f32 %v182, %v3662
    %v5241 = vmul.f32 %v183, %v3666
    %v5242 = vmul.f32 %v184, %v3670
    %v5243 = vmul.f32 %v185, %v3674
    %v5244 = vmul.f32 %v186, %v3678
    %v5245 = vmul.f32 %v187, %v3682
    %v5246 = vmul.f32 %v188, %v3686
    %v5247 = vmul.f32 %v189, %v3690
    %v5248 = vmul.f32 %v190, %v3694
    %v5249 = vmul.f32 %v191, %v3698
    %v5250 = vmul.f32 %v192, %v3702
    %v5251 = vmul.f32 %v193, %v3706
    %v5252 = vmul.f32 %v194, %v3710
    %v5253 = vmul.f32 %v195, %v3714
    %v5254 = vmul.f32 %v196, %v3718
    %v5255 = vmul.f32 %v197, %v3722
    %v5256 = vmul.f32 %v198, %v3726
    %v5257 = vmul.f32 %v199, %v3730
    %v5258 = vmul.f32 %v200, %v3734
    %v5259 = vmul.f32 %v201, %v3738
    %v5260 = vmul.f32 %v202, %v3742
    %v5261 = vmul.f32 %v203, %v3746
    %v5262 = vmul.f32 %v204, %v3750
    %v5263 = vmul.f32 %v205, %v3754
    %v5264 = vmul.f32 %v206, %v3758
    %v5265 = vmul.f32 %v207, %v3762
    %v5266 = vmul.f32 %v208, %v3766
    %v5267 = vmul.f32 %v209, %v3770
    %v5268 = vmul.f32 %v210, %v3774
    %v5269 = vmul.f32 %v211, %v3778
    %v5270 = vmul.f32 %v212, %v3782
    %v5271 = vmul.f32 %v213, %v3786
    %v5272 = vmul.f32 %v214, %v3790
    %v5273 = vmul.f32 %v215, %v3794
    %v5274 = vmul.f32 %v216, %v3798
    %v5275 = vmul.f32 %v217, %v3802
    %v5276 = vmul.f32 %v218, %v3806
    %v5277 = vmul.f32 %v219, %v3810
    %v5278 = vmul.f32 %v220, %v3814
    %v5279 = vmul.f32 %v221, %v3818
    %v5280 = vmul.f32 %v222, %v3822
    %v5281 = vmul.f32 %v223, %v3826
    %v5282 = vmul.f32 %v224, %v3830
    %v5283 = vmul.f32 %v225, %v3834
    %v5284 = vmul.f32 %v226, %v3838
    %v5285 = vmul.f32 %v227, %v3842
    %v5286 = vmul.f32 %v228, %v3846
    %v5287 = vmul.f32 %v229, %v3850
    %v5288 = vmul.f32 %v230, %v3854
    %v5289 = vmul.f32 %v231, %v3858
    %v5290 = vmul.f32 %v232, %v3862
    %v5291 = vmul.f32 %v233, %v3866
    %v5292 = vmul.f32 %v234, %v3870
    %v5293 = vmul.f32 %v235, %v3874
    %v5294 = vmul.f32 %v236, %v3878
    %v5295 = vmul.f32 %v237, %v3882
    %v5296 = vmul.f32 %v238, %v3886
    %v5297 = vmul.f32 %v239, %v3890
    %v5298 = vmul.f32 %v240, %v3894
    %v5299 = vmul.f32 %v241, %v3898
    %v5300 = vmul.f32 %v242, %v3902
    %v5301 = vmul.f32 %v243, %v3906
    %v5302 = vmul.f32 %v244, %v3910
    %v5303 = vmul.f32 %v245, %v3914
    %v5304 = vmul.f32 %v246, %v3918
    %v5305 = vmul.f32 %v247, %v3922
    %v5306 = vmul.f32 %v248, %v3926
    %v5307 = vmul.f32 %v249, %v3930
    %v5308 = vmul.f32 %v250, %v3934
    %v5309 = vmul.f32 %v251, %v3938
    %v5310 = vmul.f32 %v252, %v3942
    %v5311 = vmul.f32 %v253, %v3946
    %v5312 = vmul.f32 %v254, %v3950
    %v5313 = vmul.f32 %v255, %v3954
    %v5314 = vmul.f32 %v256, %v3958
    %v5315 = vmul.f32 %v257, %v3962
    %v5316 = vmul.f32 %v258, %v3966
    %v5317 = vmul.f32 %v259, %v3970
    %v5318 = vmul.f32 %v260, %v3974
    %v5319 = vmul.f32 %v261, %v3978
    %v5320 = vmul.f32 %v262, %v3982
    %v5321 = vmul.f32 %v263, %v3986
    %v5322 = vmul.f32 %v264, %v3990
    %v5323 = vmul.f32 %v265, %v3994
    %v5324 = vmul.f32 %v266, %v3998
    %v5325 = vmul.f32 %v267, %v4002
    %v5326 = vmul.f32 %v268, %v4006
    %v5327 = vmul.f32 %v269, %v4010
    %v5328 = vmul.f32 %v270, %v4014
    %v5329 = vmul.f32 %v271, %v4018
    %v5330 = vmul.f32 %v272, %v4022
    %v5331 = vmul.f32 %v273, %v4026
    %v5332 = vmul.f32 %v274, %v4030
    %v5333 = vmul.f32 %v275, %v4034
    %v5334 = vmul.f32 %v276, %v4038
    %v5335 = vmul.f32 %v277, %v4042
    %v5336 = vmul.f32 %v278, %v4046
    %v5337 = vmul.f32 %v279, %v4050
    %v5338 = vmul.f32 %v280, %v4054
    %v5339 = vmul.f32 %v281, %v4058
    %v5340 = vmul.f32 %v282, %v4062
    %v5341 = vmul.f32 %v283, %v4066
    %v5342 = vmul.f32 %v284, %v4070
    %v5343 = vmul.f32 %v285, %v4074
    %v5344 = vmul.f32 %v286, %v4078
    %v5345 = vmul.f32 %v287, %v4082
    %v5346 = vmul.f32 %v288, %v4086
    %v5347 = vmul.f32 %v289, %v4090
    %v5348 = vmul.f32 %v290, %v4094
    %v5349 = vmul.f32 %v291, %v4098
    %v5350 = vmul.f32 %v292, %v4102
    %v5351 = vmul.f32 %v293, %v4106
    %v5352 = vmul.f32 %v294, %v4110
    %v5353 = vmul.f32 %v295, %v4114
    %v5354 = vmul.f32 %v296, %v4118
    %v5355 = vmul.f32 %v297, %v4122
    %v5356 = vmul.f32 %v298, %v4126
    %v5357 = vmul.f32 %v299, %v4130
    %v5358 = vmul.f32 %v300, %v4134
    %v5359 = vmul.f32 %v301, %v4138
    %v5360 = vmul.f32 %v302, %v4142
    %v5361 = vmul.f32 %v303, %v4146
    %v5362 = vmul.f32 %v304, %v4150
    %v5363 = vmul.f32 %v305, %v4154
    %v5364 = vmul.f32 %v306, %v4158
    %v5365 = vmul.f32 %v307, %v4162
    %v5366 = vmul.f32 %v308, %v4166
    %v5367 = vmul.f32 %v309, %v4170
    %v5368 = vmul.f32 %v310, %v4174
    %v5369 = vmul.f32 %v311, %v4178
    %v5370 = vmul.f32 %v312, %v4182
    %v5371 = vmul.f32 %v313, %v4186
    %v5372 = vmul.f32 %v314, %v4190
    %v5373 = vmul.f32 %v315, %v4194
    %v5374 = vmul.f32 %v316, %v4198
    %v5375 = vmul.f32 %v317, %v4202
    %v5376 = vmul.f32 %v318, %v4206
    %v5377 = vmul.f32 %v319, %v4210
    %v5378 = vmul.f32 %v320, %v4214
    %v5379 = vmul.f32 %v321, %v4218
    %v5380 = vmul.f32 %v322, %v4222
    %v5381 = vmul.f32 %v323, %v4226
    %v5382 = vmul.f32 %v324, %v4230
    %v5383 = vmul.f32 %v325, %v4234
    %v5384 = vmul.f32 %v326, %v4238
    %v5385 = vmul.f32 %v327, %v4242
    %v5386 = vmul.f32 %v328, %v4246
    %v5387 = vmul.f32 %v329, %v4250
    %v5388 = vmul.f32 %v330, %v4254
    %v5389 = vmul.f32 %v331, %v4258
    %v5390 = vmul.f32 %v332, %v4262
    %v5391 = vmul.f32 %v333, %v4266
    %v5392 = vmul.f32 %v334, %v4270
    %v5393 = vmul.f32 %v335, %v4274
    %v5394 = vmul.f32 %v336, %v4278
    %v5395 = vmul.f32 %v337, %v4282
    %v5396 = vmul.f32 %v338, %v4286
    %v5397 = vmul.f32 %v339, %v4290
    %v5398 = vmul.f32 %v340, %v4294
    %v5399 = vmul.f32 %v341, %v4298
    %v5400 = vmul.f32 %v342, %v4302
    %v5401 = vmul.f32 %v343, %v4306
    %v5402 = vmul.f32 %v344, %v4310
    %v5403 = vmul.f32 %v345, %v4314
    %v5404 = vmul.f32 %v346, %v4318
    %v5405 = vmul.f32 %v347, %v4322
    %v5406 = vmul.f32 %v348, %v4326
    %v5407 = vmul.f32 %v349, %v4330
    %v5408 = vmul.f32 %v350, %v4334
    %v5409 = vmul.f32 %v351, %v4338
    %v5410 = vmul.f32 %v352, %v4342
    %v5411 = vmul.f32 %v353, %v4346
    %v5412 = vmul.f32 %v354, %v4350
    %v5413 = vmul.f32 %v355, %v4354
    %v5414 = vmul.f32 %v356, %v4358
    %v5415 = vmul.f32 %v357, %v4362
    %v5416 = vmul.f32 %v358, %v4366
    %v5417 = vmul.f32 %v359, %v4370
    %v5418 = vmul.f32 %v360, %v4374
    %v5419 = vmul.f32 %v361, %v4378
    %v5420 = vmul.f32 %v362, %v4382
    %v5421 = vmul.f32 %v363, %v4386
    %v5422 = vmul.f32 %v364, %v4390
    %v5423 = vmul.f32 %v365, %v4394
    %v5424 = vmul.f32 %v366, %v4398
    %v5425 = vmul.f32 %v367, %v4402
    %v5426 = vmul.f32 %v368, %v4406
    %v5427 = vmul.f32 %v369, %v4410
    %v5428 = vmul.f32 %v370, %v4414
    %v5429 = vmul.f32 %v371, %v4418
    %v5430 = vmul.f32 %v372, %v4422
    %v5431 = vmul.f32 %v373, %v4426
    %v5432 = vmul.f32 %v374, %v4430
    %v5433 = vmul.f32 %v375, %v4434
    %v5434 = vmul.f32 %v376, %v4438
    %v5435 = vmul.f32 %v377, %v4442
    %v5436 = vmul.f32 %v378, %v4446
    %v5437 = vmul.f32 %v379, %v4450
    %v5438 = vmul.f32 %v380, %v4454
    %v5439 = vmul.f32 %v381, %v4458
    %v5440 = vmul.f32 %v382, %v4462
    %v5441 = vmul.f32 %v383, %v4466
    %v5442 = vmul.f32 %v384, %v4470
    %v5443 = vmul.f32 %v385, %v4474
    %v5444 = vmul.f32 %v386, %v4478
    %v5445 = vmul.f32 %v387, %v4482
    %v5446 = vmul.f32 %v388, %v4486
    %v5447 = vmul.f32 %v389, %v4490
    %v5448 = vmul.f32 %v390, %v4494
    %v5449 = vmul.f32 %v391, %v4498
    %v5450 = vmul.f32 %v392, %v4502
    %v5451 = vmul.f32 %v393, %v4506
    %v5452 = vmul.f32 %v394, %v4510
    %v5453 = vmul.f32 %v395, %v4514
    %v5454 = vmul.f32 %v396, %v4518
    %v5455 = vmul.f32 %v397, %v4522
    %v5456 = vmul.f32 %v398, %v4526
    %v5457 = vmul.f32 %v399, %v4530
    %v5458 = vmul.f32 %v400, %v4534
    %v5459 = vmul.f32 %v401, %v4538
    %v5460 = vmul.f32 %v402, %v4542
    %v5461 = vmul.f32 %v403, %v4546
    %v5462 = vmul.f32 %v404, %v4550
    %v5463 = vmul.f32 %v405, %v4554
    %v5464 = vmul.f32 %v406, %v4558
    %v5465 = vmul.f32 %v407, %v4562
    %v5466 = vmul.f32 %v408, %v4566
    %v5467 = vmul.f32 %v409, %v4570
    %v5468 = vmul.f32 %v410, %v4574
    %v5469 = vmul.f32 %v411, %v4578
    %v5470 = vmul.f32 %v412, %v4582
    %v5471 = vmul.f32 %v413, %v4586
    %v5472 = vmul.f32 %v414, %v4590
    %v5473 = vmul.f32 %v415, %v4594
    %v5474 = vmul.f32 %v416, %v4598
    %v5475 = vmul.f32 %v417, %v4602
    %v5476 = vmul.f32 %v418, %v4606
    %v5477 = vmul.f32 %v419, %v4610
    %v5478 = vmul.f32 %v420, %v4614
    %v5479 = vmul.f32 %v421, %v4618
    %v5480 = vmul.f32 %v422, %v4622
    %v5481 = vmul.f32 %v423, %v4626
    %v5482 = vmul.f32 %v424, %v4630
    %v5483 = vmul.f32 %v425, %v4634
    %v5484 = vmul.f32 %v426, %v4638
    %v5485 = vmul.f32 %v427, %v4642
    %v5486 = vmul.f32 %v428, %v4646
    %v5487 = vmul.f32 %v429, %v4650
    %v5488 = vmul.f32 %v430, %v4654
    %v5489 = vmul.f32 %v431, %v4658
    %v5490 = vmul.f32 %v432, %v4662
    %v5491 = vmul.f32 %v433, %v4666
    %v5492 = vmul.f32 %v434, %v4670
    %v5493 = vmul.f32 %v435, %v4674
    %v5494 = vmul.f32 %v436, %v4678
    %v5495 = vmul.f32 %v437, %v4682
    %v5496 = vmul.f32 %v438, %v4686
    %v5497 = vmul.f32 %v439, %v4690
    %v5498 = vmul.f32 %v440, %v4694
    %v5499 = vmul.f32 %v441, %v4698
    %v5500 = vmul.f32 %v442, %v4702
    %v5501 = vmul.f32 %v443, %v4706
    %v5502 = vmul.f32 %v444, %v4710
    %v5503 = vmul.f32 %v445, %v4714
    %v5504 = vmul.f32 %v446, %v4718
    %v5505 = vmul.f32 %v447, %v4722
    %v5506 = vmul.f32 %v448, %v4726
    %v5507 = vmul.f32 %v449, %v4730
    %v5508 = vmul.f32 %v450, %v4734
    %v5509 = vmul.f32 %v451, %v4738
    %v5510 = vmul.f32 %v452, %v4742
    %vm5511 = vcmask 1046528
    %v5512 = vsel %vm5511, %v5127, 0.0
    %5513 = vadd.xlane.f32.xlu0 %v5512
    %v5514 = vpop.xlane.xlu0 %5513
    %v5515 = vsel %vm5511, %v5128, 0.0
    %5516 = vadd.xlane.f32.xlu0 %v5515
    %v5517 = vpop.xlane.xlu0 %5516
    %v5518 = vsel %vm5511, %v5129, 0.0
    %5519 = vadd.xlane.f32.xlu0 %v5518
    %v5520 = vpop.xlane.xlu0 %5519
    %v5521 = vsel %vm5511, %v5130, 0.0
    %5522 = vadd.xlane.f32.xlu0 %v5521
    %v5523 = vpop.xlane.xlu0 %5522
    %v5524 = vsel %vm5511, %v5131, 0.0
    %5525 = vadd.xlane.f32.xlu0 %v5524
    %v5526 = vpop.xlane.xlu0 %5525
    %v5527 = vsel %vm5511, %v5132, 0.0
    %5528 = vadd.xlane.f32.xlu0 %v5527
    %v5529 = vpop.xlane.xlu0 %5528
    %v5530 = vsel %vm5511, %v5133, 0.0
    %5531 = vadd.xlane.f32.xlu0 %v5530
    %v5532 = vpop.xlane.xlu0 %5531
    %v5533 = vsel %vm5511, %v5134, 0.0
    %5534 = vadd.xlane.f32.xlu0 %v5533
    %v5535 = vpop.xlane.xlu0 %5534
    %v5536 = vsel %vm5511, %v5135, 0.0
    %5537 = vadd.xlane.f32.xlu0 %v5536
    %v5538 = vpop.xlane.xlu0 %5537
    %v5539 = vsel %vm5511, %v5136, 0.0
    %5540 = vadd.xlane.f32.xlu0 %v5539
    %v5541 = vpop.xlane.xlu0 %5540
    %v5542 = vsel %vm5511, %v5137, 0.0
    %5543 = vadd.xlane.f32.xlu0 %v5542
    %v5544 = vpop.xlane.xlu0 %5543
    %v5545 = vsel %vm5511, %v5138, 0.0
    %5546 = vadd.xlane.f32.xlu0 %v5545
    %v5547 = vpop.xlane.xlu0 %5546
    %v5548 = vsel %vm5511, %v5139, 0.0
    %5549 = vadd.xlane.f32.xlu0 %v5548
    %v5550 = vpop.xlane.xlu0 %5549
    %v5551 = vsel %vm5511, %v5140, 0.0
    %5552 = vadd.xlane.f32.xlu0 %v5551
    %v5553 = vpop.xlane.xlu0 %5552
    %v5554 = vsel %vm5511, %v5141, 0.0
    %5555 = vadd.xlane.f32.xlu0 %v5554
    %v5556 = vpop.xlane.xlu0 %5555
    %v5557 = vsel %vm5511, %v5142, 0.0
    %5558 = vadd.xlane.f32.xlu0 %v5557
    %v5559 = vpop.xlane.xlu0 %5558
    %v5560 = vsel %vm5511, %v5143, 0.0
    %5561 = vadd.xlane.f32.xlu0 %v5560
    %v5562 = vpop.xlane.xlu0 %5561
    %v5563 = vsel %vm5511, %v5144, 0.0
    %5564 = vadd.xlane.f32.xlu0 %v5563
    %v5565 = vpop.xlane.xlu0 %5564
    %v5566 = vsel %vm5511, %v5145, 0.0
    %5567 = vadd.xlane.f32.xlu0 %v5566
    %v5568 = vpop.xlane.xlu0 %5567
    %v5569 = vsel %vm5511, %v5146, 0.0
    %5570 = vadd.xlane.f32.xlu0 %v5569
    %v5571 = vpop.xlane.xlu0 %5570
    %v5572 = vsel %vm5511, %v5147, 0.0
    %5573 = vadd.xlane.f32.xlu0 %v5572
    %v5574 = vpop.xlane.xlu0 %5573
    %v5575 = vsel %vm5511, %v5148, 0.0
    %5576 = vadd.xlane.f32.xlu0 %v5575
    %v5577 = vpop.xlane.xlu0 %5576
    %v5578 = vsel %vm5511, %v5149, 0.0
    %5579 = vadd.xlane.f32.xlu0 %v5578
    %v5580 = vpop.xlane.xlu0 %5579
    %v5581 = vsel %vm5511, %v5150, 0.0
    %5582 = vadd.xlane.f32.xlu0 %v5581
    %v5583 = vpop.xlane.xlu0 %5582
    %v5584 = vsel %vm5511, %v5151, 0.0
    %5585 = vadd.xlane.f32.xlu0 %v5584
    %v5586 = vpop.xlane.xlu0 %5585
    %v5587 = vsel %vm5511, %v5152, 0.0
    %5588 = vadd.xlane.f32.xlu0 %v5587
    %v5589 = vpop.xlane.xlu0 %5588
    %v5590 = vsel %vm5511, %v5153, 0.0
    %5591 = vadd.xlane.f32.xlu0 %v5590
    %v5592 = vpop.xlane.xlu0 %5591
    %v5593 = vsel %vm5511, %v5154, 0.0
    %5594 = vadd.xlane.f32.xlu0 %v5593
    %v5595 = vpop.xlane.xlu0 %5594
    %v5596 = vsel %vm5511, %v5155, 0.0
    %5597 = vadd.xlane.f32.xlu0 %v5596
    %v5598 = vpop.xlane.xlu0 %5597
    %v5599 = vsel %vm5511, %v5156, 0.0
    %5600 = vadd.xlane.f32.xlu0 %v5599
    %v5601 = vpop.xlane.xlu0 %5600
    %v5602 = vsel %vm5511, %v5157, 0.0
    %5603 = vadd.xlane.f32.xlu0 %v5602
    %v5604 = vpop.xlane.xlu0 %5603
    %v5605 = vsel %vm5511, %v5158, 0.0
    %5606 = vadd.xlane.f32.xlu0 %v5605
    %v5607 = vpop.xlane.xlu0 %5606
    %v5608 = vsel %vm5511, %v5159, 0.0
    %5609 = vadd.xlane.f32.xlu0 %v5608
    %v5610 = vpop.xlane.xlu0 %5609
    %v5611 = vsel %vm5511, %v5160, 0.0
    %5612 = vadd.xlane.f32.xlu0 %v5611
    %v5613 = vpop.xlane.xlu0 %5612
    %v5614 = vsel %vm5511, %v5161, 0.0
    %5615 = vadd.xlane.f32.xlu0 %v5614
    %v5616 = vpop.xlane.xlu0 %5615
    %v5617 = vsel %vm5511, %v5162, 0.0
    %5618 = vadd.xlane.f32.xlu0 %v5617
    %v5619 = vpop.xlane.xlu0 %5618
    %v5620 = vsel %vm5511, %v5163, 0.0
    %5621 = vadd.xlane.f32.xlu0 %v5620
    %v5622 = vpop.xlane.xlu0 %5621
    %v5623 = vsel %vm5511, %v5164, 0.0
    %5624 = vadd.xlane.f32.xlu0 %v5623
    %v5625 = vpop.xlane.xlu0 %5624
    %v5626 = vsel %vm5511, %v5165, 0.0
    %5627 = vadd.xlane.f32.xlu0 %v5626
    %v5628 = vpop.xlane.xlu0 %5627
    %v5629 = vsel %vm5511, %v5166, 0.0
    %5630 = vadd.xlane.f32.xlu0 %v5629
    %v5631 = vpop.xlane.xlu0 %5630
    %v5632 = vsel %vm5511, %v5167, 0.0
    %5633 = vadd.xlane.f32.xlu0 %v5632
    %v5634 = vpop.xlane.xlu0 %5633
    %v5635 = vsel %vm5511, %v5168, 0.0
    %5636 = vadd.xlane.f32.xlu0 %v5635
    %v5637 = vpop.xlane.xlu0 %5636
    %v5638 = vsel %vm5511, %v5169, 0.0
    %5639 = vadd.xlane.f32.xlu0 %v5638
    %v5640 = vpop.xlane.xlu0 %5639
    %v5641 = vsel %vm5511, %v5170, 0.0
    %5642 = vadd.xlane.f32.xlu0 %v5641
    %v5643 = vpop.xlane.xlu0 %5642
    %v5644 = vsel %vm5511, %v5171, 0.0
    %5645 = vadd.xlane.f32.xlu0 %v5644
    %v5646 = vpop.xlane.xlu0 %5645
    %v5647 = vsel %vm5511, %v5172, 0.0
    %5648 = vadd.xlane.f32.xlu0 %v5647
    %v5649 = vpop.xlane.xlu0 %5648
    %v5650 = vsel %vm5511, %v5173, 0.0
    %5651 = vadd.xlane.f32.xlu0 %v5650
    %v5652 = vpop.xlane.xlu0 %5651
    %v5653 = vsel %vm5511, %v5174, 0.0
    %5654 = vadd.xlane.f32.xlu0 %v5653
    %v5655 = vpop.xlane.xlu0 %5654
    %v5656 = vsel %vm5511, %v5175, 0.0
    %5657 = vadd.xlane.f32.xlu0 %v5656
    %v5658 = vpop.xlane.xlu0 %5657
    %v5659 = vsel %vm5511, %v5176, 0.0
    %5660 = vadd.xlane.f32.xlu0 %v5659
    %v5661 = vpop.xlane.xlu0 %5660
    %v5662 = vsel %vm5511, %v5177, 0.0
    %5663 = vadd.xlane.f32.xlu0 %v5662
    %v5664 = vpop.xlane.xlu0 %5663
    %v5665 = vsel %vm5511, %v5178, 0.0
    %5666 = vadd.xlane.f32.xlu0 %v5665
    %v5667 = vpop.xlane.xlu0 %5666
    %v5668 = vsel %vm5511, %v5179, 0.0
    %5669 = vadd.xlane.f32.xlu0 %v5668
    %v5670 = vpop.xlane.xlu0 %5669
    %v5671 = vsel %vm5511, %v5180, 0.0
    %5672 = vadd.xlane.f32.xlu0 %v5671
    %v5673 = vpop.xlane.xlu0 %5672
    %v5674 = vsel %vm5511, %v5181, 0.0
    %5675 = vadd.xlane.f32.xlu0 %v5674
    %v5676 = vpop.xlane.xlu0 %5675
    %v5677 = vsel %vm5511, %v5182, 0.0
    %5678 = vadd.xlane.f32.xlu0 %v5677
    %v5679 = vpop.xlane.xlu0 %5678
    %v5680 = vsel %vm5511, %v5183, 0.0
    %5681 = vadd.xlane.f32.xlu0 %v5680
    %v5682 = vpop.xlane.xlu0 %5681
    %v5683 = vsel %vm5511, %v5184, 0.0
    %5684 = vadd.xlane.f32.xlu0 %v5683
    %v5685 = vpop.xlane.xlu0 %5684
    %v5686 = vsel %vm5511, %v5185, 0.0
    %5687 = vadd.xlane.f32.xlu0 %v5686
    %v5688 = vpop.xlane.xlu0 %5687
    %v5689 = vsel %vm5511, %v5186, 0.0
    %5690 = vadd.xlane.f32.xlu0 %v5689
    %v5691 = vpop.xlane.xlu0 %5690
    %v5692 = vsel %vm5511, %v5187, 0.0
    %5693 = vadd.xlane.f32.xlu0 %v5692
    %v5694 = vpop.xlane.xlu0 %5693
    %v5695 = vsel %vm5511, %v5188, 0.0
    %5696 = vadd.xlane.f32.xlu0 %v5695
    %v5697 = vpop.xlane.xlu0 %5696
    %v5698 = vsel %vm5511, %v5189, 0.0
    %5699 = vadd.xlane.f32.xlu0 %v5698
    %v5700 = vpop.xlane.xlu0 %5699
    %v5701 = vsel %vm5511, %v5190, 0.0
    %5702 = vadd.xlane.f32.xlu0 %v5701
    %v5703 = vpop.xlane.xlu0 %5702
    %v5704 = vsel %vm5511, %v5191, 0.0
    %5705 = vadd.xlane.f32.xlu0 %v5704
    %v5706 = vpop.xlane.xlu0 %5705
    %v5707 = vsel %vm5511, %v5192, 0.0
    %5708 = vadd.xlane.f32.xlu0 %v5707
    %v5709 = vpop.xlane.xlu0 %5708
    %v5710 = vsel %vm5511, %v5193, 0.0
    %5711 = vadd.xlane.f32.xlu0 %v5710
    %v5712 = vpop.xlane.xlu0 %5711
    %v5713 = vsel %vm5511, %v5194, 0.0
    %5714 = vadd.xlane.f32.xlu0 %v5713
    %v5715 = vpop.xlane.xlu0 %5714
    %v5716 = vsel %vm5511, %v5195, 0.0
    %5717 = vadd.xlane.f32.xlu0 %v5716
    %v5718 = vpop.xlane.xlu0 %5717
    %v5719 = vsel %vm5511, %v5196, 0.0
    %5720 = vadd.xlane.f32.xlu0 %v5719
    %v5721 = vpop.xlane.xlu0 %5720
    %v5722 = vsel %vm5511, %v5197, 0.0
    %5723 = vadd.xlane.f32.xlu0 %v5722
    %v5724 = vpop.xlane.xlu0 %5723
    %v5725 = vsel %vm5511, %v5198, 0.0
    %5726 = vadd.xlane.f32.xlu0 %v5725
    %v5727 = vpop.xlane.xlu0 %5726
    %v5728 = vsel %vm5511, %v5199, 0.0
    %5729 = vadd.xlane.f32.xlu0 %v5728
    %v5730 = vpop.xlane.xlu0 %5729
    %v5731 = vsel %vm5511, %v5200, 0.0
    %5732 = vadd.xlane.f32.xlu0 %v5731
    %v5733 = vpop.xlane.xlu0 %5732
    %v5734 = vsel %vm5511, %v5201, 0.0
    %5735 = vadd.xlane.f32.xlu0 %v5734
    %v5736 = vpop.xlane.xlu0 %5735
    %v5737 = vsel %vm5511, %v5202, 0.0
    %5738 = vadd.xlane.f32.xlu0 %v5737
    %v5739 = vpop.xlane.xlu0 %5738
    %v5740 = vsel %vm5511, %v5203, 0.0
    %5741 = vadd.xlane.f32.xlu0 %v5740
    %v5742 = vpop.xlane.xlu0 %5741
    %v5743 = vsel %vm5511, %v5204, 0.0
    %5744 = vadd.xlane.f32.xlu0 %v5743
    %v5745 = vpop.xlane.xlu0 %5744
    %v5746 = vsel %vm5511, %v5205, 0.0
    %5747 = vadd.xlane.f32.xlu0 %v5746
    %v5748 = vpop.xlane.xlu0 %5747
    %v5749 = vsel %vm5511, %v5206, 0.0
    %5750 = vadd.xlane.f32.xlu0 %v5749
    %v5751 = vpop.xlane.xlu0 %5750
    %v5752 = vsel %vm5511, %v5207, 0.0
    %5753 = vadd.xlane.f32.xlu0 %v5752
    %v5754 = vpop.xlane.xlu0 %5753
    %v5755 = vsel %vm5511, %v5208, 0.0
    %5756 = vadd.xlane.f32.xlu0 %v5755
    %v5757 = vpop.xlane.xlu0 %5756
    %v5758 = vsel %vm5511, %v5209, 0.0
    %5759 = vadd.xlane.f32.xlu0 %v5758
    %v5760 = vpop.xlane.xlu0 %5759
    %v5761 = vsel %vm5511, %v5210, 0.0
    %5762 = vadd.xlane.f32.xlu0 %v5761
    %v5763 = vpop.xlane.xlu0 %5762
    %v5764 = vsel %vm5511, %v5211, 0.0
    %5765 = vadd.xlane.f32.xlu0 %v5764
    %v5766 = vpop.xlane.xlu0 %5765
    %v5767 = vsel %vm5511, %v5212, 0.0
    %5768 = vadd.xlane.f32.xlu0 %v5767
    %v5769 = vpop.xlane.xlu0 %5768
    %v5770 = vsel %vm5511, %v5213, 0.0
    %5771 = vadd.xlane.f32.xlu0 %v5770
    %v5772 = vpop.xlane.xlu0 %5771
    %v5773 = vsel %vm5511, %v5214, 0.0
    %5774 = vadd.xlane.f32.xlu0 %v5773
    %v5775 = vpop.xlane.xlu0 %5774
    %v5776 = vsel %vm5511, %v5215, 0.0
    %5777 = vadd.xlane.f32.xlu0 %v5776
    %v5778 = vpop.xlane.xlu0 %5777
    %v5779 = vsel %vm5511, %v5216, 0.0
    %5780 = vadd.xlane.f32.xlu0 %v5779
    %v5781 = vpop.xlane.xlu0 %5780
    %v5782 = vsel %vm5511, %v5217, 0.0
    %5783 = vadd.xlane.f32.xlu0 %v5782
    %v5784 = vpop.xlane.xlu0 %5783
    %v5785 = vsel %vm5511, %v5218, 0.0
    %5786 = vadd.xlane.f32.xlu0 %v5785
    %v5787 = vpop.xlane.xlu0 %5786
    %v5788 = vsel %vm5511, %v5219, 0.0
    %5789 = vadd.xlane.f32.xlu0 %v5788
    %v5790 = vpop.xlane.xlu0 %5789
    %v5791 = vsel %vm5511, %v5220, 0.0
    %5792 = vadd.xlane.f32.xlu0 %v5791
    %v5793 = vpop.xlane.xlu0 %5792
    %v5794 = vsel %vm5511, %v5221, 0.0
    %5795 = vadd.xlane.f32.xlu0 %v5794
    %v5796 = vpop.xlane.xlu0 %5795
    %v5797 = vsel %vm5511, %v5222, 0.0
    %5798 = vadd.xlane.f32.xlu0 %v5797
    %v5799 = vpop.xlane.xlu0 %5798
    %v5800 = vsel %vm5511, %v5223, 0.0
    %5801 = vadd.xlane.f32.xlu0 %v5800
    %v5802 = vpop.xlane.xlu0 %5801
    %v5803 = vsel %vm5511, %v5224, 0.0
    %5804 = vadd.xlane.f32.xlu0 %v5803
    %v5805 = vpop.xlane.xlu0 %5804
    %v5806 = vsel %vm5511, %v5225, 0.0
    %5807 = vadd.xlane.f32.xlu0 %v5806
    %v5808 = vpop.xlane.xlu0 %5807
    %v5809 = vsel %vm5511, %v5226, 0.0
    %5810 = vadd.xlane.f32.xlu0 %v5809
    %v5811 = vpop.xlane.xlu0 %5810
    %v5812 = vsel %vm5511, %v5227, 0.0
    %5813 = vadd.xlane.f32.xlu0 %v5812
    %v5814 = vpop.xlane.xlu0 %5813
    %v5815 = vsel %vm5511, %v5228, 0.0
    %5816 = vadd.xlane.f32.xlu0 %v5815
    %v5817 = vpop.xlane.xlu0 %5816
    %v5818 = vsel %vm5511, %v5229, 0.0
    %5819 = vadd.xlane.f32.xlu0 %v5818
    %v5820 = vpop.xlane.xlu0 %5819
    %v5821 = vsel %vm5511, %v5230, 0.0
    %5822 = vadd.xlane.f32.xlu0 %v5821
    %v5823 = vpop.xlane.xlu0 %5822
    %v5824 = vsel %vm5511, %v5231, 0.0
    %5825 = vadd.xlane.f32.xlu0 %v5824
    %v5826 = vpop.xlane.xlu0 %5825
    %v5827 = vsel %vm5511, %v5232, 0.0
    %5828 = vadd.xlane.f32.xlu0 %v5827
    %v5829 = vpop.xlane.xlu0 %5828
    %v5830 = vsel %vm5511, %v5233, 0.0
    %5831 = vadd.xlane.f32.xlu0 %v5830
    %v5832 = vpop.xlane.xlu0 %5831
    %v5833 = vsel %vm5511, %v5234, 0.0
    %5834 = vadd.xlane.f32.xlu0 %v5833
    %v5835 = vpop.xlane.xlu0 %5834
    %v5836 = vsel %vm5511, %v5235, 0.0
    %5837 = vadd.xlane.f32.xlu0 %v5836
    %v5838 = vpop.xlane.xlu0 %5837
    %v5839 = vsel %vm5511, %v5236, 0.0
    %5840 = vadd.xlane.f32.xlu0 %v5839
    %v5841 = vpop.xlane.xlu0 %5840
    %v5842 = vsel %vm5511, %v5237, 0.0
    %5843 = vadd.xlane.f32.xlu0 %v5842
    %v5844 = vpop.xlane.xlu0 %5843
    %v5845 = vsel %vm5511, %v5238, 0.0
    %5846 = vadd.xlane.f32.xlu0 %v5845
    %v5847 = vpop.xlane.xlu0 %5846
    %v5848 = vsel %vm5511, %v5239, 0.0
    %5849 = vadd.xlane.f32.xlu0 %v5848
    %v5850 = vpop.xlane.xlu0 %5849
    %v5851 = vsel %vm5511, %v5240, 0.0
    %5852 = vadd.xlane.f32.xlu0 %v5851
    %v5853 = vpop.xlane.xlu0 %5852
    %v5854 = vsel %vm5511, %v5241, 0.0
    %5855 = vadd.xlane.f32.xlu0 %v5854
    %v5856 = vpop.xlane.xlu0 %5855
    %v5857 = vsel %vm5511, %v5242, 0.0
    %5858 = vadd.xlane.f32.xlu0 %v5857
    %v5859 = vpop.xlane.xlu0 %5858
    %v5860 = vsel %vm5511, %v5243, 0.0
    %5861 = vadd.xlane.f32.xlu0 %v5860
    %v5862 = vpop.xlane.xlu0 %5861
    %v5863 = vsel %vm5511, %v5244, 0.0
    %5864 = vadd.xlane.f32.xlu0 %v5863
    %v5865 = vpop.xlane.xlu0 %5864
    %v5866 = vsel %vm5511, %v5245, 0.0
    %5867 = vadd.xlane.f32.xlu0 %v5866
    %v5868 = vpop.xlane.xlu0 %5867
    %v5869 = vsel %vm5511, %v5246, 0.0
    %5870 = vadd.xlane.f32.xlu0 %v5869
    %v5871 = vpop.xlane.xlu0 %5870
    %v5872 = vsel %vm5511, %v5247, 0.0
    %5873 = vadd.xlane.f32.xlu0 %v5872
    %v5874 = vpop.xlane.xlu0 %5873
    %v5875 = vsel %vm5511, %v5248, 0.0
    %5876 = vadd.xlane.f32.xlu0 %v5875
    %v5877 = vpop.xlane.xlu0 %5876
    %v5878 = vsel %vm5511, %v5249, 0.0
    %5879 = vadd.xlane.f32.xlu0 %v5878
    %v5880 = vpop.xlane.xlu0 %5879
    %v5881 = vsel %vm5511, %v5250, 0.0
    %5882 = vadd.xlane.f32.xlu0 %v5881
    %v5883 = vpop.xlane.xlu0 %5882
    %v5884 = vsel %vm5511, %v5251, 0.0
    %5885 = vadd.xlane.f32.xlu0 %v5884
    %v5886 = vpop.xlane.xlu0 %5885
    %v5887 = vsel %vm5511, %v5252, 0.0
    %5888 = vadd.xlane.f32.xlu0 %v5887
    %v5889 = vpop.xlane.xlu0 %5888
    %v5890 = vsel %vm5511, %v5253, 0.0
    %5891 = vadd.xlane.f32.xlu0 %v5890
    %v5892 = vpop.xlane.xlu0 %5891
    %v5893 = vsel %vm5511, %v5254, 0.0
    %5894 = vadd.xlane.f32.xlu0 %v5893
    %v5895 = vpop.xlane.xlu0 %5894
    %v5896 = vsel %vm5511, %v5255, 0.0
    %5897 = vadd.xlane.f32.xlu0 %v5896
    %v5898 = vpop.xlane.xlu0 %5897
    %v5899 = vsel %vm5511, %v5256, 0.0
    %5900 = vadd.xlane.f32.xlu0 %v5899
    %v5901 = vpop.xlane.xlu0 %5900
    %v5902 = vsel %vm5511, %v5257, 0.0
    %5903 = vadd.xlane.f32.xlu0 %v5902
    %v5904 = vpop.xlane.xlu0 %5903
    %v5905 = vsel %vm5511, %v5258, 0.0
    %5906 = vadd.xlane.f32.xlu0 %v5905
    %v5907 = vpop.xlane.xlu0 %5906
    %v5908 = vsel %vm5511, %v5259, 0.0
    %5909 = vadd.xlane.f32.xlu0 %v5908
    %v5910 = vpop.xlane.xlu0 %5909
    %v5911 = vsel %vm5511, %v5260, 0.0
    %5912 = vadd.xlane.f32.xlu0 %v5911
    %v5913 = vpop.xlane.xlu0 %5912
    %v5914 = vsel %vm5511, %v5261, 0.0
    %5915 = vadd.xlane.f32.xlu0 %v5914
    %v5916 = vpop.xlane.xlu0 %5915
    %v5917 = vsel %vm5511, %v5262, 0.0
    %5918 = vadd.xlane.f32.xlu0 %v5917
    %v5919 = vpop.xlane.xlu0 %5918
    %v5920 = vsel %vm5511, %v5263, 0.0
    %5921 = vadd.xlane.f32.xlu0 %v5920
    %v5922 = vpop.xlane.xlu0 %5921
    %v5923 = vsel %vm5511, %v5264, 0.0
    %5924 = vadd.xlane.f32.xlu0 %v5923
    %v5925 = vpop.xlane.xlu0 %5924
    %v5926 = vsel %vm5511, %v5265, 0.0
    %5927 = vadd.xlane.f32.xlu0 %v5926
    %v5928 = vpop.xlane.xlu0 %5927
    %v5929 = vsel %vm5511, %v5266, 0.0
    %5930 = vadd.xlane.f32.xlu0 %v5929
    %v5931 = vpop.xlane.xlu0 %5930
    %v5932 = vsel %vm5511, %v5267, 0.0
    %5933 = vadd.xlane.f32.xlu0 %v5932
    %v5934 = vpop.xlane.xlu0 %5933
    %v5935 = vsel %vm5511, %v5268, 0.0
    %5936 = vadd.xlane.f32.xlu0 %v5935
    %v5937 = vpop.xlane.xlu0 %5936
    %v5938 = vsel %vm5511, %v5269, 0.0
    %5939 = vadd.xlane.f32.xlu0 %v5938
    %v5940 = vpop.xlane.xlu0 %5939
    %v5941 = vsel %vm5511, %v5270, 0.0
    %5942 = vadd.xlane.f32.xlu0 %v5941
    %v5943 = vpop.xlane.xlu0 %5942
    %v5944 = vsel %vm5511, %v5271, 0.0
    %5945 = vadd.xlane.f32.xlu0 %v5944
    %v5946 = vpop.xlane.xlu0 %5945
    %v5947 = vsel %vm5511, %v5272, 0.0
    %5948 = vadd.xlane.f32.xlu0 %v5947
    %v5949 = vpop.xlane.xlu0 %5948
    %v5950 = vsel %vm5511, %v5273, 0.0
    %5951 = vadd.xlane.f32.xlu0 %v5950
    %v5952 = vpop.xlane.xlu0 %5951
    %v5953 = vsel %vm5511, %v5274, 0.0
    %5954 = vadd.xlane.f32.xlu0 %v5953
    %v5955 = vpop.xlane.xlu0 %5954
    %v5956 = vsel %vm5511, %v5275, 0.0
    %5957 = vadd.xlane.f32.xlu0 %v5956
    %v5958 = vpop.xlane.xlu0 %5957
    %v5959 = vsel %vm5511, %v5276, 0.0
    %5960 = vadd.xlane.f32.xlu0 %v5959
    %v5961 = vpop.xlane.xlu0 %5960
    %v5962 = vsel %vm5511, %v5277, 0.0
    %5963 = vadd.xlane.f32.xlu0 %v5962
    %v5964 = vpop.xlane.xlu0 %5963
    %v5965 = vsel %vm5511, %v5278, 0.0
    %5966 = vadd.xlane.f32.xlu0 %v5965
    %v5967 = vpop.xlane.xlu0 %5966
    %v5968 = vsel %vm5511, %v5279, 0.0
    %5969 = vadd.xlane.f32.xlu0 %v5968
    %v5970 = vpop.xlane.xlu0 %5969
    %v5971 = vsel %vm5511, %v5280, 0.0
    %5972 = vadd.xlane.f32.xlu0 %v5971
    %v5973 = vpop.xlane.xlu0 %5972
    %v5974 = vsel %vm5511, %v5281, 0.0
    %5975 = vadd.xlane.f32.xlu0 %v5974
    %v5976 = vpop.xlane.xlu0 %5975
    %v5977 = vsel %vm5511, %v5282, 0.0
    %5978 = vadd.xlane.f32.xlu0 %v5977
    %v5979 = vpop.xlane.xlu0 %5978
    %v5980 = vsel %vm5511, %v5283, 0.0
    %5981 = vadd.xlane.f32.xlu0 %v5980
    %v5982 = vpop.xlane.xlu0 %5981
    %v5983 = vsel %vm5511, %v5284, 0.0
    %5984 = vadd.xlane.f32.xlu0 %v5983
    %v5985 = vpop.xlane.xlu0 %5984
    %v5986 = vsel %vm5511, %v5285, 0.0
    %5987 = vadd.xlane.f32.xlu0 %v5986
    %v5988 = vpop.xlane.xlu0 %5987
    %v5989 = vsel %vm5511, %v5286, 0.0
    %5990 = vadd.xlane.f32.xlu0 %v5989
    %v5991 = vpop.xlane.xlu0 %5990
    %v5992 = vsel %vm5511, %v5287, 0.0
    %5993 = vadd.xlane.f32.xlu0 %v5992
    %v5994 = vpop.xlane.xlu0 %5993
    %v5995 = vsel %vm5511, %v5288, 0.0
    %5996 = vadd.xlane.f32.xlu0 %v5995
    %v5997 = vpop.xlane.xlu0 %5996
    %v5998 = vsel %vm5511, %v5289, 0.0
    %5999 = vadd.xlane.f32.xlu0 %v5998
    %v6000 = vpop.xlane.xlu0 %5999
    %v6001 = vsel %vm5511, %v5290, 0.0
    %6002 = vadd.xlane.f32.xlu0 %v6001
    %v6003 = vpop.xlane.xlu0 %6002
    %v6004 = vsel %vm5511, %v5291, 0.0
    %6005 = vadd.xlane.f32.xlu0 %v6004
    %v6006 = vpop.xlane.xlu0 %6005
    %v6007 = vsel %vm5511, %v5292, 0.0
    %6008 = vadd.xlane.f32.xlu0 %v6007
    %v6009 = vpop.xlane.xlu0 %6008
    %v6010 = vsel %vm5511, %v5293, 0.0
    %6011 = vadd.xlane.f32.xlu0 %v6010
    %v6012 = vpop.xlane.xlu0 %6011
    %v6013 = vsel %vm5511, %v5294, 0.0
    %6014 = vadd.xlane.f32.xlu0 %v6013
    %v6015 = vpop.xlane.xlu0 %6014
    %v6016 = vsel %vm5511, %v5295, 0.0
    %6017 = vadd.xlane.f32.xlu0 %v6016
    %v6018 = vpop.xlane.xlu0 %6017
    %v6019 = vsel %vm5511, %v5296, 0.0
    %6020 = vadd.xlane.f32.xlu0 %v6019
    %v6021 = vpop.xlane.xlu0 %6020
    %v6022 = vsel %vm5511, %v5297, 0.0
    %6023 = vadd.xlane.f32.xlu0 %v6022
    %v6024 = vpop.xlane.xlu0 %6023
    %v6025 = vsel %vm5511, %v5298, 0.0
    %6026 = vadd.xlane.f32.xlu0 %v6025
    %v6027 = vpop.xlane.xlu0 %6026
    %v6028 = vsel %vm5511, %v5299, 0.0
    %6029 = vadd.xlane.f32.xlu0 %v6028
    %v6030 = vpop.xlane.xlu0 %6029
    %v6031 = vsel %vm5511, %v5300, 0.0
    %6032 = vadd.xlane.f32.xlu0 %v6031
    %v6033 = vpop.xlane.xlu0 %6032
    %v6034 = vsel %vm5511, %v5301, 0.0
    %6035 = vadd.xlane.f32.xlu0 %v6034
    %v6036 = vpop.xlane.xlu0 %6035
    %v6037 = vsel %vm5511, %v5302, 0.0
    %6038 = vadd.xlane.f32.xlu0 %v6037
    %v6039 = vpop.xlane.xlu0 %6038
    %v6040 = vsel %vm5511, %v5303, 0.0
    %6041 = vadd.xlane.f32.xlu0 %v6040
    %v6042 = vpop.xlane.xlu0 %6041
    %v6043 = vsel %vm5511, %v5304, 0.0
    %6044 = vadd.xlane.f32.xlu0 %v6043
    %v6045 = vpop.xlane.xlu0 %6044
    %v6046 = vsel %vm5511, %v5305, 0.0
    %6047 = vadd.xlane.f32.xlu0 %v6046
    %v6048 = vpop.xlane.xlu0 %6047
    %v6049 = vsel %vm5511, %v5306, 0.0
    %6050 = vadd.xlane.f32.xlu0 %v6049
    %v6051 = vpop.xlane.xlu0 %6050
    %v6052 = vsel %vm5511, %v5307, 0.0
    %6053 = vadd.xlane.f32.xlu0 %v6052
    %v6054 = vpop.xlane.xlu0 %6053
    %v6055 = vsel %vm5511, %v5308, 0.0
    %6056 = vadd.xlane.f32.xlu0 %v6055
    %v6057 = vpop.xlane.xlu0 %6056
    %v6058 = vsel %vm5511, %v5309, 0.0
    %6059 = vadd.xlane.f32.xlu0 %v6058
    %v6060 = vpop.xlane.xlu0 %6059
    %v6061 = vsel %vm5511, %v5310, 0.0
    %6062 = vadd.xlane.f32.xlu0 %v6061
    %v6063 = vpop.xlane.xlu0 %6062
    %v6064 = vsel %vm5511, %v5311, 0.0
    %6065 = vadd.xlane.f32.xlu0 %v6064
    %v6066 = vpop.xlane.xlu0 %6065
    %v6067 = vsel %vm5511, %v5312, 0.0
    %6068 = vadd.xlane.f32.xlu0 %v6067
    %v6069 = vpop.xlane.xlu0 %6068
    %v6070 = vsel %vm5511, %v5313, 0.0
    %6071 = vadd.xlane.f32.xlu0 %v6070
    %v6072 = vpop.xlane.xlu0 %6071
    %v6073 = vsel %vm5511, %v5314, 0.0
    %6074 = vadd.xlane.f32.xlu0 %v6073
    %v6075 = vpop.xlane.xlu0 %6074
    %v6076 = vsel %vm5511, %v5315, 0.0
    %6077 = vadd.xlane.f32.xlu0 %v6076
    %v6078 = vpop.xlane.xlu0 %6077
    %v6079 = vsel %vm5511, %v5316, 0.0
    %6080 = vadd.xlane.f32.xlu0 %v6079
    %v6081 = vpop.xlane.xlu0 %6080
    %v6082 = vsel %vm5511, %v5317, 0.0
    %6083 = vadd.xlane.f32.xlu0 %v6082
    %v6084 = vpop.xlane.xlu0 %6083
    %v6085 = vsel %vm5511, %v5318, 0.0
    %6086 = vadd.xlane.f32.xlu0 %v6085
    %v6087 = vpop.xlane.xlu0 %6086
    %v6088 = vsel %vm5511, %v5319, 0.0
    %6089 = vadd.xlane.f32.xlu0 %v6088
    %v6090 = vpop.xlane.xlu0 %6089
    %v6091 = vsel %vm5511, %v5320, 0.0
    %6092 = vadd.xlane.f32.xlu0 %v6091
    %v6093 = vpop.xlane.xlu0 %6092
    %v6094 = vsel %vm5511, %v5321, 0.0
    %6095 = vadd.xlane.f32.xlu0 %v6094
    %v6096 = vpop.xlane.xlu0 %6095
    %v6097 = vsel %vm5511, %v5322, 0.0
    %6098 = vadd.xlane.f32.xlu0 %v6097
    %v6099 = vpop.xlane.xlu0 %6098
    %v6100 = vsel %vm5511, %v5323, 0.0
    %6101 = vadd.xlane.f32.xlu0 %v6100
    %v6102 = vpop.xlane.xlu0 %6101
    %v6103 = vsel %vm5511, %v5324, 0.0
    %6104 = vadd.xlane.f32.xlu0 %v6103
    %v6105 = vpop.xlane.xlu0 %6104
    %v6106 = vsel %vm5511, %v5325, 0.0
    %6107 = vadd.xlane.f32.xlu0 %v6106
    %v6108 = vpop.xlane.xlu0 %6107
    %v6109 = vsel %vm5511, %v5326, 0.0
    %6110 = vadd.xlane.f32.xlu0 %v6109
    %v6111 = vpop.xlane.xlu0 %6110
    %v6112 = vsel %vm5511, %v5327, 0.0
    %6113 = vadd.xlane.f32.xlu0 %v6112
    %v6114 = vpop.xlane.xlu0 %6113
    %v6115 = vsel %vm5511, %v5328, 0.0
    %6116 = vadd.xlane.f32.xlu0 %v6115
    %v6117 = vpop.xlane.xlu0 %6116
    %v6118 = vsel %vm5511, %v5329, 0.0
    %6119 = vadd.xlane.f32.xlu0 %v6118
    %v6120 = vpop.xlane.xlu0 %6119
    %v6121 = vsel %vm5511, %v5330, 0.0
    %6122 = vadd.xlane.f32.xlu0 %v6121
    %v6123 = vpop.xlane.xlu0 %6122
    %v6124 = vsel %vm5511, %v5331, 0.0
    %6125 = vadd.xlane.f32.xlu0 %v6124
    %v6126 = vpop.xlane.xlu0 %6125
    %v6127 = vsel %vm5511, %v5332, 0.0
    %6128 = vadd.xlane.f32.xlu0 %v6127
    %v6129 = vpop.xlane.xlu0 %6128
    %v6130 = vsel %vm5511, %v5333, 0.0
    %6131 = vadd.xlane.f32.xlu0 %v6130
    %v6132 = vpop.xlane.xlu0 %6131
    %v6133 = vsel %vm5511, %v5334, 0.0
    %6134 = vadd.xlane.f32.xlu0 %v6133
    %v6135 = vpop.xlane.xlu0 %6134
    %v6136 = vsel %vm5511, %v5335, 0.0
    %6137 = vadd.xlane.f32.xlu0 %v6136
    %v6138 = vpop.xlane.xlu0 %6137
    %v6139 = vsel %vm5511, %v5336, 0.0
    %6140 = vadd.xlane.f32.xlu0 %v6139
    %v6141 = vpop.xlane.xlu0 %6140
    %v6142 = vsel %vm5511, %v5337, 0.0
    %6143 = vadd.xlane.f32.xlu0 %v6142
    %v6144 = vpop.xlane.xlu0 %6143
    %v6145 = vsel %vm5511, %v5338, 0.0
    %6146 = vadd.xlane.f32.xlu0 %v6145
    %v6147 = vpop.xlane.xlu0 %6146
    %v6148 = vsel %vm5511, %v5339, 0.0
    %6149 = vadd.xlane.f32.xlu0 %v6148
    %v6150 = vpop.xlane.xlu0 %6149
    %v6151 = vsel %vm5511, %v5340, 0.0
    %6152 = vadd.xlane.f32.xlu0 %v6151
    %v6153 = vpop.xlane.xlu0 %6152
    %v6154 = vsel %vm5511, %v5341, 0.0
    %6155 = vadd.xlane.f32.xlu0 %v6154
    %v6156 = vpop.xlane.xlu0 %6155
    %v6157 = vsel %vm5511, %v5342, 0.0
    %6158 = vadd.xlane.f32.xlu0 %v6157
    %v6159 = vpop.xlane.xlu0 %6158
    %v6160 = vsel %vm5511, %v5343, 0.0
    %6161 = vadd.xlane.f32.xlu0 %v6160
    %v6162 = vpop.xlane.xlu0 %6161
    %v6163 = vsel %vm5511, %v5344, 0.0
    %6164 = vadd.xlane.f32.xlu0 %v6163
    %v6165 = vpop.xlane.xlu0 %6164
    %v6166 = vsel %vm5511, %v5345, 0.0
    %6167 = vadd.xlane.f32.xlu0 %v6166
    %v6168 = vpop.xlane.xlu0 %6167
    %v6169 = vsel %vm5511, %v5346, 0.0
    %6170 = vadd.xlane.f32.xlu0 %v6169
    %v6171 = vpop.xlane.xlu0 %6170
    %v6172 = vsel %vm5511, %v5347, 0.0
    %6173 = vadd.xlane.f32.xlu0 %v6172
    %v6174 = vpop.xlane.xlu0 %6173
    %v6175 = vsel %vm5511, %v5348, 0.0
    %6176 = vadd.xlane.f32.xlu0 %v6175
    %v6177 = vpop.xlane.xlu0 %6176
    %v6178 = vsel %vm5511, %v5349, 0.0
    %6179 = vadd.xlane.f32.xlu0 %v6178
    %v6180 = vpop.xlane.xlu0 %6179
    %v6181 = vsel %vm5511, %v5350, 0.0
    %6182 = vadd.xlane.f32.xlu0 %v6181
    %v6183 = vpop.xlane.xlu0 %6182
    %v6184 = vsel %vm5511, %v5351, 0.0
    %6185 = vadd.xlane.f32.xlu0 %v6184
    %v6186 = vpop.xlane.xlu0 %6185
    %v6187 = vsel %vm5511, %v5352, 0.0
    %6188 = vadd.xlane.f32.xlu0 %v6187
    %v6189 = vpop.xlane.xlu0 %6188
    %v6190 = vsel %vm5511, %v5353, 0.0
    %6191 = vadd.xlane.f32.xlu0 %v6190
    %v6192 = vpop.xlane.xlu0 %6191
    %v6193 = vsel %vm5511, %v5354, 0.0
    %6194 = vadd.xlane.f32.xlu0 %v6193
    %v6195 = vpop.xlane.xlu0 %6194
    %v6196 = vsel %vm5511, %v5355, 0.0
    %6197 = vadd.xlane.f32.xlu0 %v6196
    %v6198 = vpop.xlane.xlu0 %6197
    %v6199 = vsel %vm5511, %v5356, 0.0
    %6200 = vadd.xlane.f32.xlu0 %v6199
    %v6201 = vpop.xlane.xlu0 %6200
    %v6202 = vsel %vm5511, %v5357, 0.0
    %6203 = vadd.xlane.f32.xlu0 %v6202
    %v6204 = vpop.xlane.xlu0 %6203
    %v6205 = vsel %vm5511, %v5358, 0.0
    %6206 = vadd.xlane.f32.xlu0 %v6205
    %v6207 = vpop.xlane.xlu0 %6206
    %v6208 = vsel %vm5511, %v5359, 0.0
    %6209 = vadd.xlane.f32.xlu0 %v6208
    %v6210 = vpop.xlane.xlu0 %6209
    %v6211 = vsel %vm5511, %v5360, 0.0
    %6212 = vadd.xlane.f32.xlu0 %v6211
    %v6213 = vpop.xlane.xlu0 %6212
    %v6214 = vsel %vm5511, %v5361, 0.0
    %6215 = vadd.xlane.f32.xlu0 %v6214
    %v6216 = vpop.xlane.xlu0 %6215
    %v6217 = vsel %vm5511, %v5362, 0.0
    %6218 = vadd.xlane.f32.xlu0 %v6217
    %v6219 = vpop.xlane.xlu0 %6218
    %v6220 = vsel %vm5511, %v5363, 0.0
    %6221 = vadd.xlane.f32.xlu0 %v6220
    %v6222 = vpop.xlane.xlu0 %6221
    %v6223 = vsel %vm5511, %v5364, 0.0
    %6224 = vadd.xlane.f32.xlu0 %v6223
    %v6225 = vpop.xlane.xlu0 %6224
    %v6226 = vsel %vm5511, %v5365, 0.0
    %6227 = vadd.xlane.f32.xlu0 %v6226
    %v6228 = vpop.xlane.xlu0 %6227
    %v6229 = vsel %vm5511, %v5366, 0.0
    %6230 = vadd.xlane.f32.xlu0 %v6229
    %v6231 = vpop.xlane.xlu0 %6230
    %v6232 = vsel %vm5511, %v5367, 0.0
    %6233 = vadd.xlane.f32.xlu0 %v6232
    %v6234 = vpop.xlane.xlu0 %6233
    %v6235 = vsel %vm5511, %v5368, 0.0
    %6236 = vadd.xlane.f32.xlu0 %v6235
    %v6237 = vpop.xlane.xlu0 %6236
    %v6238 = vsel %vm5511, %v5369, 0.0
    %6239 = vadd.xlane.f32.xlu0 %v6238
    %v6240 = vpop.xlane.xlu0 %6239
    %v6241 = vsel %vm5511, %v5370, 0.0
    %6242 = vadd.xlane.f32.xlu0 %v6241
    %v6243 = vpop.xlane.xlu0 %6242
    %v6244 = vsel %vm5511, %v5371, 0.0
    %6245 = vadd.xlane.f32.xlu0 %v6244
    %v6246 = vpop.xlane.xlu0 %6245
    %v6247 = vsel %vm5511, %v5372, 0.0
    %6248 = vadd.xlane.f32.xlu0 %v6247
    %v6249 = vpop.xlane.xlu0 %6248
    %v6250 = vsel %vm5511, %v5373, 0.0
    %6251 = vadd.xlane.f32.xlu0 %v6250
    %v6252 = vpop.xlane.xlu0 %6251
    %v6253 = vsel %vm5511, %v5374, 0.0
    %6254 = vadd.xlane.f32.xlu0 %v6253
    %v6255 = vpop.xlane.xlu0 %6254
    %v6256 = vsel %vm5511, %v5375, 0.0
    %6257 = vadd.xlane.f32.xlu0 %v6256
    %v6258 = vpop.xlane.xlu0 %6257
    %v6259 = vsel %vm5511, %v5376, 0.0
    %6260 = vadd.xlane.f32.xlu0 %v6259
    %v6261 = vpop.xlane.xlu0 %6260
    %v6262 = vsel %vm5511, %v5377, 0.0
    %6263 = vadd.xlane.f32.xlu0 %v6262
    %v6264 = vpop.xlane.xlu0 %6263
    %v6265 = vsel %vm5511, %v5378, 0.0
    %6266 = vadd.xlane.f32.xlu0 %v6265
    %v6267 = vpop.xlane.xlu0 %6266
    %v6268 = vsel %vm5511, %v5379, 0.0
    %6269 = vadd.xlane.f32.xlu0 %v6268
    %v6270 = vpop.xlane.xlu0 %6269
    %v6271 = vsel %vm5511, %v5380, 0.0
    %6272 = vadd.xlane.f32.xlu0 %v6271
    %v6273 = vpop.xlane.xlu0 %6272
    %v6274 = vsel %vm5511, %v5381, 0.0
    %6275 = vadd.xlane.f32.xlu0 %v6274
    %v6276 = vpop.xlane.xlu0 %6275
    %v6277 = vsel %vm5511, %v5382, 0.0
    %6278 = vadd.xlane.f32.xlu0 %v6277
    %v6279 = vpop.xlane.xlu0 %6278
    %v6280 = vsel %vm5511, %v5383, 0.0
    %6281 = vadd.xlane.f32.xlu0 %v6280
    %v6282 = vpop.xlane.xlu0 %6281
    %v6283 = vsel %vm5511, %v5384, 0.0
    %6284 = vadd.xlane.f32.xlu0 %v6283
    %v6285 = vpop.xlane.xlu0 %6284
    %v6286 = vsel %vm5511, %v5385, 0.0
    %6287 = vadd.xlane.f32.xlu0 %v6286
    %v6288 = vpop.xlane.xlu0 %6287
    %v6289 = vsel %vm5511, %v5386, 0.0
    %6290 = vadd.xlane.f32.xlu0 %v6289
    %v6291 = vpop.xlane.xlu0 %6290
    %v6292 = vsel %vm5511, %v5387, 0.0
    %6293 = vadd.xlane.f32.xlu0 %v6292
    %v6294 = vpop.xlane.xlu0 %6293
    %v6295 = vsel %vm5511, %v5388, 0.0
    %6296 = vadd.xlane.f32.xlu0 %v6295
    %v6297 = vpop.xlane.xlu0 %6296
    %v6298 = vsel %vm5511, %v5389, 0.0
    %6299 = vadd.xlane.f32.xlu0 %v6298
    %v6300 = vpop.xlane.xlu0 %6299
    %v6301 = vsel %vm5511, %v5390, 0.0
    %6302 = vadd.xlane.f32.xlu0 %v6301
    %v6303 = vpop.xlane.xlu0 %6302
    %v6304 = vsel %vm5511, %v5391, 0.0
    %6305 = vadd.xlane.f32.xlu0 %v6304
    %v6306 = vpop.xlane.xlu0 %6305
    %v6307 = vsel %vm5511, %v5392, 0.0
    %6308 = vadd.xlane.f32.xlu0 %v6307
    %v6309 = vpop.xlane.xlu0 %6308
    %v6310 = vsel %vm5511, %v5393, 0.0
    %6311 = vadd.xlane.f32.xlu0 %v6310
    %v6312 = vpop.xlane.xlu0 %6311
    %v6313 = vsel %vm5511, %v5394, 0.0
    %6314 = vadd.xlane.f32.xlu0 %v6313
    %v6315 = vpop.xlane.xlu0 %6314
    %v6316 = vsel %vm5511, %v5395, 0.0
    %6317 = vadd.xlane.f32.xlu0 %v6316
    %v6318 = vpop.xlane.xlu0 %6317
    %v6319 = vsel %vm5511, %v5396, 0.0
    %6320 = vadd.xlane.f32.xlu0 %v6319
    %v6321 = vpop.xlane.xlu0 %6320
    %v6322 = vsel %vm5511, %v5397, 0.0
    %6323 = vadd.xlane.f32.xlu0 %v6322
    %v6324 = vpop.xlane.xlu0 %6323
    %v6325 = vsel %vm5511, %v5398, 0.0
    %6326 = vadd.xlane.f32.xlu0 %v6325
    %v6327 = vpop.xlane.xlu0 %6326
    %v6328 = vsel %vm5511, %v5399, 0.0
    %6329 = vadd.xlane.f32.xlu0 %v6328
    %v6330 = vpop.xlane.xlu0 %6329
    %v6331 = vsel %vm5511, %v5400, 0.0
    %6332 = vadd.xlane.f32.xlu0 %v6331
    %v6333 = vpop.xlane.xlu0 %6332
    %v6334 = vsel %vm5511, %v5401, 0.0
    %6335 = vadd.xlane.f32.xlu0 %v6334
    %v6336 = vpop.xlane.xlu0 %6335
    %v6337 = vsel %vm5511, %v5402, 0.0
    %6338 = vadd.xlane.f32.xlu0 %v6337
    %v6339 = vpop.xlane.xlu0 %6338
    %v6340 = vsel %vm5511, %v5403, 0.0
    %6341 = vadd.xlane.f32.xlu0 %v6340
    %v6342 = vpop.xlane.xlu0 %6341
    %v6343 = vsel %vm5511, %v5404, 0.0
    %6344 = vadd.xlane.f32.xlu0 %v6343
    %v6345 = vpop.xlane.xlu0 %6344
    %v6346 = vsel %vm5511, %v5405, 0.0
    %6347 = vadd.xlane.f32.xlu0 %v6346
    %v6348 = vpop.xlane.xlu0 %6347
    %v6349 = vsel %vm5511, %v5406, 0.0
    %6350 = vadd.xlane.f32.xlu0 %v6349
    %v6351 = vpop.xlane.xlu0 %6350
    %v6352 = vsel %vm5511, %v5407, 0.0
    %6353 = vadd.xlane.f32.xlu0 %v6352
    %v6354 = vpop.xlane.xlu0 %6353
    %v6355 = vsel %vm5511, %v5408, 0.0
    %6356 = vadd.xlane.f32.xlu0 %v6355
    %v6357 = vpop.xlane.xlu0 %6356
    %v6358 = vsel %vm5511, %v5409, 0.0
    %6359 = vadd.xlane.f32.xlu0 %v6358
    %v6360 = vpop.xlane.xlu0 %6359
    %v6361 = vsel %vm5511, %v5410, 0.0
    %6362 = vadd.xlane.f32.xlu0 %v6361
    %v6363 = vpop.xlane.xlu0 %6362
    %v6364 = vsel %vm5511, %v5411, 0.0
    %6365 = vadd.xlane.f32.xlu0 %v6364
    %v6366 = vpop.xlane.xlu0 %6365
    %v6367 = vsel %vm5511, %v5412, 0.0
    %6368 = vadd.xlane.f32.xlu0 %v6367
    %v6369 = vpop.xlane.xlu0 %6368
    %v6370 = vsel %vm5511, %v5413, 0.0
    %6371 = vadd.xlane.f32.xlu0 %v6370
    %v6372 = vpop.xlane.xlu0 %6371
    %v6373 = vsel %vm5511, %v5414, 0.0
    %6374 = vadd.xlane.f32.xlu0 %v6373
    %v6375 = vpop.xlane.xlu0 %6374
    %v6376 = vsel %vm5511, %v5415, 0.0
    %6377 = vadd.xlane.f32.xlu0 %v6376
    %v6378 = vpop.xlane.xlu0 %6377
    %v6379 = vsel %vm5511, %v5416, 0.0
    %6380 = vadd.xlane.f32.xlu0 %v6379
    %v6381 = vpop.xlane.xlu0 %6380
    %v6382 = vsel %vm5511, %v5417, 0.0
    %6383 = vadd.xlane.f32.xlu0 %v6382
    %v6384 = vpop.xlane.xlu0 %6383
    %v6385 = vsel %vm5511, %v5418, 0.0
    %6386 = vadd.xlane.f32.xlu0 %v6385
    %v6387 = vpop.xlane.xlu0 %6386
    %v6388 = vsel %vm5511, %v5419, 0.0
    %6389 = vadd.xlane.f32.xlu0 %v6388
    %v6390 = vpop.xlane.xlu0 %6389
    %v6391 = vsel %vm5511, %v5420, 0.0
    %6392 = vadd.xlane.f32.xlu0 %v6391
    %v6393 = vpop.xlane.xlu0 %6392
    %v6394 = vsel %vm5511, %v5421, 0.0
    %6395 = vadd.xlane.f32.xlu0 %v6394
    %v6396 = vpop.xlane.xlu0 %6395
    %v6397 = vsel %vm5511, %v5422, 0.0
    %6398 = vadd.xlane.f32.xlu0 %v6397
    %v6399 = vpop.xlane.xlu0 %6398
    %v6400 = vsel %vm5511, %v5423, 0.0
    %6401 = vadd.xlane.f32.xlu0 %v6400
    %v6402 = vpop.xlane.xlu0 %6401
    %v6403 = vsel %vm5511, %v5424, 0.0
    %6404 = vadd.xlane.f32.xlu0 %v6403
    %v6405 = vpop.xlane.xlu0 %6404
    %v6406 = vsel %vm5511, %v5425, 0.0
    %6407 = vadd.xlane.f32.xlu0 %v6406
    %v6408 = vpop.xlane.xlu0 %6407
    %v6409 = vsel %vm5511, %v5426, 0.0
    %6410 = vadd.xlane.f32.xlu0 %v6409
    %v6411 = vpop.xlane.xlu0 %6410
    %v6412 = vsel %vm5511, %v5427, 0.0
    %6413 = vadd.xlane.f32.xlu0 %v6412
    %v6414 = vpop.xlane.xlu0 %6413
    %v6415 = vsel %vm5511, %v5428, 0.0
    %6416 = vadd.xlane.f32.xlu0 %v6415
    %v6417 = vpop.xlane.xlu0 %6416
    %v6418 = vsel %vm5511, %v5429, 0.0
    %6419 = vadd.xlane.f32.xlu0 %v6418
    %v6420 = vpop.xlane.xlu0 %6419
    %v6421 = vsel %vm5511, %v5430, 0.0
    %6422 = vadd.xlane.f32.xlu0 %v6421
    %v6423 = vpop.xlane.xlu0 %6422
    %v6424 = vsel %vm5511, %v5431, 0.0
    %6425 = vadd.xlane.f32.xlu0 %v6424
    %v6426 = vpop.xlane.xlu0 %6425
    %v6427 = vsel %vm5511, %v5432, 0.0
    %6428 = vadd.xlane.f32.xlu0 %v6427
    %v6429 = vpop.xlane.xlu0 %6428
    %v6430 = vsel %vm5511, %v5433, 0.0
    %6431 = vadd.xlane.f32.xlu0 %v6430
    %v6432 = vpop.xlane.xlu0 %6431
    %v6433 = vsel %vm5511, %v5434, 0.0
    %6434 = vadd.xlane.f32.xlu0 %v6433
    %v6435 = vpop.xlane.xlu0 %6434
    %v6436 = vsel %vm5511, %v5435, 0.0
    %6437 = vadd.xlane.f32.xlu0 %v6436
    %v6438 = vpop.xlane.xlu0 %6437
    %v6439 = vsel %vm5511, %v5436, 0.0
    %6440 = vadd.xlane.f32.xlu0 %v6439
    %v6441 = vpop.xlane.xlu0 %6440
    %v6442 = vsel %vm5511, %v5437, 0.0
    %6443 = vadd.xlane.f32.xlu0 %v6442
    %v6444 = vpop.xlane.xlu0 %6443
    %v6445 = vsel %vm5511, %v5438, 0.0
    %6446 = vadd.xlane.f32.xlu0 %v6445
    %v6447 = vpop.xlane.xlu0 %6446
    %v6448 = vsel %vm5511, %v5439, 0.0
    %6449 = vadd.xlane.f32.xlu0 %v6448
    %v6450 = vpop.xlane.xlu0 %6449
    %v6451 = vsel %vm5511, %v5440, 0.0
    %6452 = vadd.xlane.f32.xlu0 %v6451
    %v6453 = vpop.xlane.xlu0 %6452
    %v6454 = vsel %vm5511, %v5441, 0.0
    %6455 = vadd.xlane.f32.xlu0 %v6454
    %v6456 = vpop.xlane.xlu0 %6455
    %v6457 = vsel %vm5511, %v5442, 0.0
    %6458 = vadd.xlane.f32.xlu0 %v6457
    %v6459 = vpop.xlane.xlu0 %6458
    %v6460 = vsel %vm5511, %v5443, 0.0
    %6461 = vadd.xlane.f32.xlu0 %v6460
    %v6462 = vpop.xlane.xlu0 %6461
    %v6463 = vsel %vm5511, %v5444, 0.0
    %6464 = vadd.xlane.f32.xlu0 %v6463
    %v6465 = vpop.xlane.xlu0 %6464
    %v6466 = vsel %vm5511, %v5445, 0.0
    %6467 = vadd.xlane.f32.xlu0 %v6466
    %v6468 = vpop.xlane.xlu0 %6467
    %v6469 = vsel %vm5511, %v5446, 0.0
    %6470 = vadd.xlane.f32.xlu0 %v6469
    %v6471 = vpop.xlane.xlu0 %6470
    %v6472 = vsel %vm5511, %v5447, 0.0
    %6473 = vadd.xlane.f32.xlu0 %v6472
    %v6474 = vpop.xlane.xlu0 %6473
    %v6475 = vsel %vm5511, %v5448, 0.0
    %6476 = vadd.xlane.f32.xlu0 %v6475
    %v6477 = vpop.xlane.xlu0 %6476
    %v6478 = vsel %vm5511, %v5449, 0.0
    %6479 = vadd.xlane.f32.xlu0 %v6478
    %v6480 = vpop.xlane.xlu0 %6479
    %v6481 = vsel %vm5511, %v5450, 0.0
    %6482 = vadd.xlane.f32.xlu0 %v6481
    %v6483 = vpop.xlane.xlu0 %6482
    %v6484 = vsel %vm5511, %v5451, 0.0
    %6485 = vadd.xlane.f32.xlu0 %v6484
    %v6486 = vpop.xlane.xlu0 %6485
    %v6487 = vsel %vm5511, %v5452, 0.0
    %6488 = vadd.xlane.f32.xlu0 %v6487
    %v6489 = vpop.xlane.xlu0 %6488
    %v6490 = vsel %vm5511, %v5453, 0.0
    %6491 = vadd.xlane.f32.xlu0 %v6490
    %v6492 = vpop.xlane.xlu0 %6491
    %v6493 = vsel %vm5511, %v5454, 0.0
    %6494 = vadd.xlane.f32.xlu0 %v6493
    %v6495 = vpop.xlane.xlu0 %6494
    %v6496 = vsel %vm5511, %v5455, 0.0
    %6497 = vadd.xlane.f32.xlu0 %v6496
    %v6498 = vpop.xlane.xlu0 %6497
    %v6499 = vsel %vm5511, %v5456, 0.0
    %6500 = vadd.xlane.f32.xlu0 %v6499
    %v6501 = vpop.xlane.xlu0 %6500
    %v6502 = vsel %vm5511, %v5457, 0.0
    %6503 = vadd.xlane.f32.xlu0 %v6502
    %v6504 = vpop.xlane.xlu0 %6503
    %v6505 = vsel %vm5511, %v5458, 0.0
    %6506 = vadd.xlane.f32.xlu0 %v6505
    %v6507 = vpop.xlane.xlu0 %6506
    %v6508 = vsel %vm5511, %v5459, 0.0
    %6509 = vadd.xlane.f32.xlu0 %v6508
    %v6510 = vpop.xlane.xlu0 %6509
    %v6511 = vsel %vm5511, %v5460, 0.0
    %6512 = vadd.xlane.f32.xlu0 %v6511
    %v6513 = vpop.xlane.xlu0 %6512
    %v6514 = vsel %vm5511, %v5461, 0.0
    %6515 = vadd.xlane.f32.xlu0 %v6514
    %v6516 = vpop.xlane.xlu0 %6515
    %v6517 = vsel %vm5511, %v5462, 0.0
    %6518 = vadd.xlane.f32.xlu0 %v6517
    %v6519 = vpop.xlane.xlu0 %6518
    %v6520 = vsel %vm5511, %v5463, 0.0
    %6521 = vadd.xlane.f32.xlu0 %v6520
    %v6522 = vpop.xlane.xlu0 %6521
    %v6523 = vsel %vm5511, %v5464, 0.0
    %6524 = vadd.xlane.f32.xlu0 %v6523
    %v6525 = vpop.xlane.xlu0 %6524
    %v6526 = vsel %vm5511, %v5465, 0.0
    %6527 = vadd.xlane.f32.xlu0 %v6526
    %v6528 = vpop.xlane.xlu0 %6527
    %v6529 = vsel %vm5511, %v5466, 0.0
    %6530 = vadd.xlane.f32.xlu0 %v6529
    %v6531 = vpop.xlane.xlu0 %6530
    %v6532 = vsel %vm5511, %v5467, 0.0
    %6533 = vadd.xlane.f32.xlu0 %v6532
    %v6534 = vpop.xlane.xlu0 %6533
    %v6535 = vsel %vm5511, %v5468, 0.0
    %6536 = vadd.xlane.f32.xlu0 %v6535
    %v6537 = vpop.xlane.xlu0 %6536
    %v6538 = vsel %vm5511, %v5469, 0.0
    %6539 = vadd.xlane.f32.xlu0 %v6538
    %v6540 = vpop.xlane.xlu0 %6539
    %v6541 = vsel %vm5511, %v5470, 0.0
    %6542 = vadd.xlane.f32.xlu0 %v6541
    %v6543 = vpop.xlane.xlu0 %6542
    %v6544 = vsel %vm5511, %v5471, 0.0
    %6545 = vadd.xlane.f32.xlu0 %v6544
    %v6546 = vpop.xlane.xlu0 %6545
    %v6547 = vsel %vm5511, %v5472, 0.0
    %6548 = vadd.xlane.f32.xlu0 %v6547
    %v6549 = vpop.xlane.xlu0 %6548
    %v6550 = vsel %vm5511, %v5473, 0.0
    %6551 = vadd.xlane.f32.xlu0 %v6550
    %v6552 = vpop.xlane.xlu0 %6551
    %v6553 = vsel %vm5511, %v5474, 0.0
    %6554 = vadd.xlane.f32.xlu0 %v6553
    %v6555 = vpop.xlane.xlu0 %6554
    %v6556 = vsel %vm5511, %v5475, 0.0
    %6557 = vadd.xlane.f32.xlu0 %v6556
    %v6558 = vpop.xlane.xlu0 %6557
    %v6559 = vsel %vm5511, %v5476, 0.0
    %6560 = vadd.xlane.f32.xlu0 %v6559
    %v6561 = vpop.xlane.xlu0 %6560
    %v6562 = vsel %vm5511, %v5477, 0.0
    %6563 = vadd.xlane.f32.xlu0 %v6562
    %v6564 = vpop.xlane.xlu0 %6563
    %v6565 = vsel %vm5511, %v5478, 0.0
    %6566 = vadd.xlane.f32.xlu0 %v6565
    %v6567 = vpop.xlane.xlu0 %6566
    %v6568 = vsel %vm5511, %v5479, 0.0
    %6569 = vadd.xlane.f32.xlu0 %v6568
    %v6570 = vpop.xlane.xlu0 %6569
    %v6571 = vsel %vm5511, %v5480, 0.0
    %6572 = vadd.xlane.f32.xlu0 %v6571
    %v6573 = vpop.xlane.xlu0 %6572
    %v6574 = vsel %vm5511, %v5481, 0.0
    %6575 = vadd.xlane.f32.xlu0 %v6574
    %v6576 = vpop.xlane.xlu0 %6575
    %v6577 = vsel %vm5511, %v5482, 0.0
    %6578 = vadd.xlane.f32.xlu0 %v6577
    %v6579 = vpop.xlane.xlu0 %6578
    %v6580 = vsel %vm5511, %v5483, 0.0
    %6581 = vadd.xlane.f32.xlu0 %v6580
    %v6582 = vpop.xlane.xlu0 %6581
    %v6583 = vsel %vm5511, %v5484, 0.0
    %6584 = vadd.xlane.f32.xlu0 %v6583
    %v6585 = vpop.xlane.xlu0 %6584
    %v6586 = vsel %vm5511, %v5485, 0.0
    %6587 = vadd.xlane.f32.xlu0 %v6586
    %v6588 = vpop.xlane.xlu0 %6587
    %v6589 = vsel %vm5511, %v5486, 0.0
    %6590 = vadd.xlane.f32.xlu0 %v6589
    %v6591 = vpop.xlane.xlu0 %6590
    %v6592 = vsel %vm5511, %v5487, 0.0
    %6593 = vadd.xlane.f32.xlu0 %v6592
    %v6594 = vpop.xlane.xlu0 %6593
    %v6595 = vsel %vm5511, %v5488, 0.0
    %6596 = vadd.xlane.f32.xlu0 %v6595
    %v6597 = vpop.xlane.xlu0 %6596
    %v6598 = vsel %vm5511, %v5489, 0.0
    %6599 = vadd.xlane.f32.xlu0 %v6598
    %v6600 = vpop.xlane.xlu0 %6599
    %v6601 = vsel %vm5511, %v5490, 0.0
    %6602 = vadd.xlane.f32.xlu0 %v6601
    %v6603 = vpop.xlane.xlu0 %6602
    %v6604 = vsel %vm5511, %v5491, 0.0
    %6605 = vadd.xlane.f32.xlu0 %v6604
    %v6606 = vpop.xlane.xlu0 %6605
    %v6607 = vsel %vm5511, %v5492, 0.0
    %6608 = vadd.xlane.f32.xlu0 %v6607
    %v6609 = vpop.xlane.xlu0 %6608
    %v6610 = vsel %vm5511, %v5493, 0.0
    %6611 = vadd.xlane.f32.xlu0 %v6610
    %v6612 = vpop.xlane.xlu0 %6611
    %v6613 = vsel %vm5511, %v5494, 0.0
    %6614 = vadd.xlane.f32.xlu0 %v6613
    %v6615 = vpop.xlane.xlu0 %6614
    %v6616 = vsel %vm5511, %v5495, 0.0
    %6617 = vadd.xlane.f32.xlu0 %v6616
    %v6618 = vpop.xlane.xlu0 %6617
    %v6619 = vsel %vm5511, %v5496, 0.0
    %6620 = vadd.xlane.f32.xlu0 %v6619
    %v6621 = vpop.xlane.xlu0 %6620
    %v6622 = vsel %vm5511, %v5497, 0.0
    %6623 = vadd.xlane.f32.xlu0 %v6622
    %v6624 = vpop.xlane.xlu0 %6623
    %v6625 = vsel %vm5511, %v5498, 0.0
    %6626 = vadd.xlane.f32.xlu0 %v6625
    %v6627 = vpop.xlane.xlu0 %6626
    %v6628 = vsel %vm5511, %v5499, 0.0
    %6629 = vadd.xlane.f32.xlu0 %v6628
    %v6630 = vpop.xlane.xlu0 %6629
    %v6631 = vsel %vm5511, %v5500, 0.0
    %6632 = vadd.xlane.f32.xlu0 %v6631
    %v6633 = vpop.xlane.xlu0 %6632
    %v6634 = vsel %vm5511, %v5501, 0.0
    %6635 = vadd.xlane.f32.xlu0 %v6634
    %v6636 = vpop.xlane.xlu0 %6635
    %v6637 = vsel %vm5511, %v5502, 0.0
    %6638 = vadd.xlane.f32.xlu0 %v6637
    %v6639 = vpop.xlane.xlu0 %6638
    %v6640 = vsel %vm5511, %v5503, 0.0
    %6641 = vadd.xlane.f32.xlu0 %v6640
    %v6642 = vpop.xlane.xlu0 %6641
    %v6643 = vsel %vm5511, %v5504, 0.0
    %6644 = vadd.xlane.f32.xlu0 %v6643
    %v6645 = vpop.xlane.xlu0 %6644
    %v6646 = vsel %vm5511, %v5505, 0.0
    %6647 = vadd.xlane.f32.xlu0 %v6646
    %v6648 = vpop.xlane.xlu0 %6647
    %v6649 = vsel %vm5511, %v5506, 0.0
    %6650 = vadd.xlane.f32.xlu0 %v6649
    %v6651 = vpop.xlane.xlu0 %6650
    %v6652 = vsel %vm5511, %v5507, 0.0
    %6653 = vadd.xlane.f32.xlu0 %v6652
    %v6654 = vpop.xlane.xlu0 %6653
    %v6655 = vsel %vm5511, %v5508, 0.0
    %6656 = vadd.xlane.f32.xlu0 %v6655
    %v6657 = vpop.xlane.xlu0 %6656
    %v6658 = vsel %vm5511, %v5509, 0.0
    %6659 = vadd.xlane.f32.xlu0 %v6658
    %v6660 = vpop.xlane.xlu0 %6659
    %v6661 = vsel %vm5511, %v5510, 0.0
    %6662 = vadd.xlane.f32.xlu0 %v6661
    %v6663 = vpop.xlane.xlu0 %6662
    %v6664 = vmax.f32 %v5514, -10.0
    %v6665 = vmax.f32 %v5517, -10.0
    %v6666 = vmax.f32 %v5520, -10.0
    %v6667 = vmax.f32 %v5523, -10.0
    %v6668 = vmax.f32 %v5526, -10.0
    %v6669 = vmax.f32 %v5529, -10.0
    %v6670 = vmax.f32 %v5532, -10.0
    %v6671 = vmax.f32 %v5535, -10.0
    %v6672 = vmax.f32 %v5538, -10.0
    %v6673 = vmax.f32 %v5541, -10.0
    %v6674 = vmax.f32 %v5544, -10.0
    %v6675 = vmax.f32 %v5547, -10.0
    %v6676 = vmax.f32 %v5550, -10.0
    %v6677 = vmax.f32 %v5553, -10.0
    %v6678 = vmax.f32 %v5556, -10.0
    %v6679 = vmax.f32 %v5559, -10.0
    %v6680 = vmax.f32 %v5562, -10.0
    %v6681 = vmax.f32 %v5565, -10.0
    %v6682 = vmax.f32 %v5568, -10.0
    %v6683 = vmax.f32 %v5571, -10.0
    %v6684 = vmax.f32 %v5574, -10.0
    %v6685 = vmax.f32 %v5577, -10.0
    %v6686 = vmax.f32 %v5580, -10.0
    %v6687 = vmax.f32 %v5583, -10.0
    %v6688 = vmax.f32 %v5586, -10.0
    %v6689 = vmax.f32 %v5589, -10.0
    %v6690 = vmax.f32 %v5592, -10.0
    %v6691 = vmax.f32 %v5595, -10.0
    %v6692 = vmax.f32 %v5598, -10.0
    %v6693 = vmax.f32 %v5601, -10.0
    %v6694 = vmax.f32 %v5604, -10.0
    %v6695 = vmax.f32 %v5607, -10.0
    %v6696 = vmax.f32 %v5610, -10.0
    %v6697 = vmax.f32 %v5613, -10.0
    %v6698 = vmax.f32 %v5616, -10.0
    %v6699 = vmax.f32 %v5619, -10.0
    %v6700 = vmax.f32 %v5622, -10.0
    %v6701 = vmax.f32 %v5625, -10.0
    %v6702 = vmax.f32 %v5628, -10.0
    %v6703 = vmax.f32 %v5631, -10.0
    %v6704 = vmax.f32 %v5634, -10.0
    %v6705 = vmax.f32 %v5637, -10.0
    %v6706 = vmax.f32 %v5640, -10.0
    %v6707 = vmax.f32 %v5643, -10.0
    %v6708 = vmax.f32 %v5646, -10.0
    %v6709 = vmax.f32 %v5649, -10.0
    %v6710 = vmax.f32 %v5652, -10.0
    %v6711 = vmax.f32 %v5655, -10.0
    %v6712 = vmax.f32 %v5658, -10.0
    %v6713 = vmax.f32 %v5661, -10.0
    %v6714 = vmax.f32 %v5664, -10.0
    %v6715 = vmax.f32 %v5667, -10.0
    %v6716 = vmax.f32 %v5670, -10.0
    %v6717 = vmax.f32 %v5673, -10.0
    %v6718 = vmax.f32 %v5676, -10.0
    %v6719 = vmax.f32 %v5679, -10.0
    %v6720 = vmax.f32 %v5682, -10.0
    %v6721 = vmax.f32 %v5685, -10.0
    %v6722 = vmax.f32 %v5688, -10.0
    %v6723 = vmax.f32 %v5691, -10.0
    %v6724 = vmax.f32 %v5694, -10.0
    %v6725 = vmax.f32 %v5697, -10.0
    %v6726 = vmax.f32 %v5700, -10.0
    %v6727 = vmax.f32 %v5703, -10.0
    %v6728 = vmax.f32 %v5706, -10.0
    %v6729 = vmax.f32 %v5709, -10.0
    %v6730 = vmax.f32 %v5712, -10.0
    %v6731 = vmax.f32 %v5715, -10.0
    %v6732 = vmax.f32 %v5718, -10.0
    %v6733 = vmax.f32 %v5721, -10.0
    %v6734 = vmax.f32 %v5724, -10.0
    %v6735 = vmax.f32 %v5727, -10.0
    %v6736 = vmax.f32 %v5730, -10.0
    %v6737 = vmax.f32 %v5733, -10.0
    %v6738 = vmax.f32 %v5736, -10.0
    %v6739 = vmax.f32 %v5739, -10.0
    %v6740 = vmax.f32 %v5742, -10.0
    %v6741 = vmax.f32 %v5745, -10.0
    %v6742 = vmax.f32 %v5748, -10.0
    %v6743 = vmax.f32 %v5751, -10.0
    %v6744 = vmax.f32 %v5754, -10.0
    %v6745 = vmax.f32 %v5757, -10.0
    %v6746 = vmax.f32 %v5760, -10.0
    %v6747 = vmax.f32 %v5763, -10.0
    %v6748 = vmax.f32 %v5766, -10.0
    %v6749 = vmax.f32 %v5769, -10.0
    %v6750 = vmax.f32 %v5772, -10.0
    %v6751 = vmax.f32 %v5775, -10.0
    %v6752 = vmax.f32 %v5778, -10.0
    %v6753 = vmax.f32 %v5781, -10.0
    %v6754 = vmax.f32 %v5784, -10.0
    %v6755 = vmax.f32 %v5787, -10.0
    %v6756 = vmax.f32 %v5790, -10.0
    %v6757 = vmax.f32 %v5793, -10.0
    %v6758 = vmax.f32 %v5796, -10.0
    %v6759 = vmax.f32 %v5799, -10.0
    %v6760 = vmax.f32 %v5802, -10.0
    %v6761 = vmax.f32 %v5805, -10.0
    %v6762 = vmax.f32 %v5808, -10.0
    %v6763 = vmax.f32 %v5811, -10.0
    %v6764 = vmax.f32 %v5814, -10.0
    %v6765 = vmax.f32 %v5817, -10.0
    %v6766 = vmax.f32 %v5820, -10.0
    %v6767 = vmax.f32 %v5823, -10.0
    %v6768 = vmax.f32 %v5826, -10.0
    %v6769 = vmax.f32 %v5829, -10.0
    %v6770 = vmax.f32 %v5832, -10.0
    %v6771 = vmax.f32 %v5835, -10.0
    %v6772 = vmax.f32 %v5838, -10.0
    %v6773 = vmax.f32 %v5841, -10.0
    %v6774 = vmax.f32 %v5844, -10.0
    %v6775 = vmax.f32 %v5847, -10.0
    %v6776 = vmax.f32 %v5850, -10.0
    %v6777 = vmax.f32 %v5853, -10.0
    %v6778 = vmax.f32 %v5856, -10.0
    %v6779 = vmax.f32 %v5859, -10.0
    %v6780 = vmax.f32 %v5862, -10.0
    %v6781 = vmax.f32 %v5865, -10.0
    %v6782 = vmax.f32 %v5868, -10.0
    %v6783 = vmax.f32 %v5871, -10.0
    %v6784 = vmax.f32 %v5874, -10.0
    %v6785 = vmax.f32 %v5877, -10.0
    %v6786 = vmax.f32 %v5880, -10.0
    %v6787 = vmax.f32 %v5883, -10.0
    %v6788 = vmax.f32 %v5886, -10.0
    %v6789 = vmax.f32 %v5889, -10.0
    %v6790 = vmax.f32 %v5892, -10.0
    %v6791 = vmax.f32 %v5895, -10.0
    %v6792 = vmax.f32 %v5898, -10.0
    %v6793 = vmax.f32 %v5901, -10.0
    %v6794 = vmax.f32 %v5904, -10.0
    %v6795 = vmax.f32 %v5907, -10.0
    %v6796 = vmax.f32 %v5910, -10.0
    %v6797 = vmax.f32 %v5913, -10.0
    %v6798 = vmax.f32 %v5916, -10.0
    %v6799 = vmax.f32 %v5919, -10.0
    %v6800 = vmax.f32 %v5922, -10.0
    %v6801 = vmax.f32 %v5925, -10.0
    %v6802 = vmax.f32 %v5928, -10.0
    %v6803 = vmax.f32 %v5931, -10.0
    %v6804 = vmax.f32 %v5934, -10.0
    %v6805 = vmax.f32 %v5937, -10.0
    %v6806 = vmax.f32 %v5940, -10.0
    %v6807 = vmax.f32 %v5943, -10.0
    %v6808 = vmax.f32 %v5946, -10.0
    %v6809 = vmax.f32 %v5949, -10.0
    %v6810 = vmax.f32 %v5952, -10.0
    %v6811 = vmax.f32 %v5955, -10.0
    %v6812 = vmax.f32 %v5958, -10.0
    %v6813 = vmax.f32 %v5961, -10.0
    %v6814 = vmax.f32 %v5964, -10.0
    %v6815 = vmax.f32 %v5967, -10.0
    %v6816 = vmax.f32 %v5970, -10.0
    %v6817 = vmax.f32 %v5973, -10.0
    %v6818 = vmax.f32 %v5976, -10.0
    %v6819 = vmax.f32 %v5979, -10.0
    %v6820 = vmax.f32 %v5982, -10.0
    %v6821 = vmax.f32 %v5985, -10.0
    %v6822 = vmax.f32 %v5988, -10.0
    %v6823 = vmax.f32 %v5991, -10.0
    %v6824 = vmax.f32 %v5994, -10.0
    %v6825 = vmax.f32 %v5997, -10.0
    %v6826 = vmax.f32 %v6000, -10.0
    %v6827 = vmax.f32 %v6003, -10.0
    %v6828 = vmax.f32 %v6006, -10.0
    %v6829 = vmax.f32 %v6009, -10.0
    %v6830 = vmax.f32 %v6012, -10.0
    %v6831 = vmax.f32 %v6015, -10.0
    %v6832 = vmax.f32 %v6018, -10.0
    %v6833 = vmax.f32 %v6021, -10.0
    %v6834 = vmax.f32 %v6024, -10.0
    %v6835 = vmax.f32 %v6027, -10.0
    %v6836 = vmax.f32 %v6030, -10.0
    %v6837 = vmax.f32 %v6033, -10.0
    %v6838 = vmax.f32 %v6036, -10.0
    %v6839 = vmax.f32 %v6039, -10.0
    %v6840 = vmax.f32 %v6042, -10.0
    %v6841 = vmax.f32 %v6045, -10.0
    %v6842 = vmax.f32 %v6048, -10.0
    %v6843 = vmax.f32 %v6051, -10.0
    %v6844 = vmax.f32 %v6054, -10.0
    %v6845 = vmax.f32 %v6057, -10.0
    %v6846 = vmax.f32 %v6060, -10.0
    %v6847 = vmax.f32 %v6063, -10.0
    %v6848 = vmax.f32 %v6066, -10.0
    %v6849 = vmax.f32 %v6069, -10.0
    %v6850 = vmax.f32 %v6072, -10.0
    %v6851 = vmax.f32 %v6075, -10.0
    %v6852 = vmax.f32 %v6078, -10.0
    %v6853 = vmax.f32 %v6081, -10.0
    %v6854 = vmax.f32 %v6084, -10.0
    %v6855 = vmax.f32 %v6087, -10.0
    %v6856 = vmax.f32 %v6090, -10.0
    %v6857 = vmax.f32 %v6093, -10.0
    %v6858 = vmax.f32 %v6096, -10.0
    %v6859 = vmax.f32 %v6099, -10.0
    %v6860 = vmax.f32 %v6102, -10.0
    %v6861 = vmax.f32 %v6105, -10.0
    %v6862 = vmax.f32 %v6108, -10.0
    %v6863 = vmax.f32 %v6111, -10.0
    %v6864 = vmax.f32 %v6114, -10.0
    %v6865 = vmax.f32 %v6117, -10.0
    %v6866 = vmax.f32 %v6120, -10.0
    %v6867 = vmax.f32 %v6123, -10.0
    %v6868 = vmax.f32 %v6126, -10.0
    %v6869 = vmax.f32 %v6129, -10.0
    %v6870 = vmax.f32 %v6132, -10.0
    %v6871 = vmax.f32 %v6135, -10.0
    %v6872 = vmax.f32 %v6138, -10.0
    %v6873 = vmax.f32 %v6141, -10.0
    %v6874 = vmax.f32 %v6144, -10.0
    %v6875 = vmax.f32 %v6147, -10.0
    %v6876 = vmax.f32 %v6150, -10.0
    %v6877 = vmax.f32 %v6153, -10.0
    %v6878 = vmax.f32 %v6156, -10.0
    %v6879 = vmax.f32 %v6159, -10.0
    %v6880 = vmax.f32 %v6162, -10.0
    %v6881 = vmax.f32 %v6165, -10.0
    %v6882 = vmax.f32 %v6168, -10.0
    %v6883 = vmax.f32 %v6171, -10.0
    %v6884 = vmax.f32 %v6174, -10.0
    %v6885 = vmax.f32 %v6177, -10.0
    %v6886 = vmax.f32 %v6180, -10.0
    %v6887 = vmax.f32 %v6183, -10.0
    %v6888 = vmax.f32 %v6186, -10.0
    %v6889 = vmax.f32 %v6189, -10.0
    %v6890 = vmax.f32 %v6192, -10.0
    %v6891 = vmax.f32 %v6195, -10.0
    %v6892 = vmax.f32 %v6198, -10.0
    %v6893 = vmax.f32 %v6201, -10.0
    %v6894 = vmax.f32 %v6204, -10.0
    %v6895 = vmax.f32 %v6207, -10.0
    %v6896 = vmax.f32 %v6210, -10.0
    %v6897 = vmax.f32 %v6213, -10.0
    %v6898 = vmax.f32 %v6216, -10.0
    %v6899 = vmax.f32 %v6219, -10.0
    %v6900 = vmax.f32 %v6222, -10.0
    %v6901 = vmax.f32 %v6225, -10.0
    %v6902 = vmax.f32 %v6228, -10.0
    %v6903 = vmax.f32 %v6231, -10.0
    %v6904 = vmax.f32 %v6234, -10.0
    %v6905 = vmax.f32 %v6237, -10.0
    %v6906 = vmax.f32 %v6240, -10.0
    %v6907 = vmax.f32 %v6243, -10.0
    %v6908 = vmax.f32 %v6246, -10.0
    %v6909 = vmax.f32 %v6249, -10.0
    %v6910 = vmax.f32 %v6252, -10.0
    %v6911 = vmax.f32 %v6255, -10.0
    %v6912 = vmax.f32 %v6258, -10.0
    %v6913 = vmax.f32 %v6261, -10.0
    %v6914 = vmax.f32 %v6264, -10.0
    %v6915 = vmax.f32 %v6267, -10.0
    %v6916 = vmax.f32 %v6270, -10.0
    %v6917 = vmax.f32 %v6273, -10.0
    %v6918 = vmax.f32 %v6276, -10.0
    %v6919 = vmax.f32 %v6279, -10.0
    %v6920 = vmax.f32 %v6282, -10.0
    %v6921 = vmax.f32 %v6285, -10.0
    %v6922 = vmax.f32 %v6288, -10.0
    %v6923 = vmax.f32 %v6291, -10.0
    %v6924 = vmax.f32 %v6294, -10.0
    %v6925 = vmax.f32 %v6297, -10.0
    %v6926 = vmax.f32 %v6300, -10.0
    %v6927 = vmax.f32 %v6303, -10.0
    %v6928 = vmax.f32 %v6306, -10.0
    %v6929 = vmax.f32 %v6309, -10.0
    %v6930 = vmax.f32 %v6312, -10.0
    %v6931 = vmax.f32 %v6315, -10.0
    %v6932 = vmax.f32 %v6318, -10.0
    %v6933 = vmax.f32 %v6321, -10.0
    %v6934 = vmax.f32 %v6324, -10.0
    %v6935 = vmax.f32 %v6327, -10.0
    %v6936 = vmax.f32 %v6330, -10.0
    %v6937 = vmax.f32 %v6333, -10.0
    %v6938 = vmax.f32 %v6336, -10.0
    %v6939 = vmax.f32 %v6339, -10.0
    %v6940 = vmax.f32 %v6342, -10.0
    %v6941 = vmax.f32 %v6345, -10.0
    %v6942 = vmax.f32 %v6348, -10.0
    %v6943 = vmax.f32 %v6351, -10.0
    %v6944 = vmax.f32 %v6354, -10.0
    %v6945 = vmax.f32 %v6357, -10.0
    %v6946 = vmax.f32 %v6360, -10.0
    %v6947 = vmax.f32 %v6363, -10.0
    %v6948 = vmax.f32 %v6366, -10.0
    %v6949 = vmax.f32 %v6369, -10.0
    %v6950 = vmax.f32 %v6372, -10.0
    %v6951 = vmax.f32 %v6375, -10.0
    %v6952 = vmax.f32 %v6378, -10.0
    %v6953 = vmax.f32 %v6381, -10.0
    %v6954 = vmax.f32 %v6384, -10.0
    %v6955 = vmax.f32 %v6387, -10.0
    %v6956 = vmax.f32 %v6390, -10.0
    %v6957 = vmax.f32 %v6393, -10.0
    %v6958 = vmax.f32 %v6396, -10.0
    %v6959 = vmax.f32 %v6399, -10.0
    %v6960 = vmax.f32 %v6402, -10.0
    %v6961 = vmax.f32 %v6405, -10.0
    %v6962 = vmax.f32 %v6408, -10.0
    %v6963 = vmax.f32 %v6411, -10.0
    %v6964 = vmax.f32 %v6414, -10.0
    %v6965 = vmax.f32 %v6417, -10.0
    %v6966 = vmax.f32 %v6420, -10.0
    %v6967 = vmax.f32 %v6423, -10.0
    %v6968 = vmax.f32 %v6426, -10.0
    %v6969 = vmax.f32 %v6429, -10.0
    %v6970 = vmax.f32 %v6432, -10.0
    %v6971 = vmax.f32 %v6435, -10.0
    %v6972 = vmax.f32 %v6438, -10.0
    %v6973 = vmax.f32 %v6441, -10.0
    %v6974 = vmax.f32 %v6444, -10.0
    %v6975 = vmax.f32 %v6447, -10.0
    %v6976 = vmax.f32 %v6450, -10.0
    %v6977 = vmax.f32 %v6453, -10.0
    %v6978 = vmax.f32 %v6456, -10.0
    %v6979 = vmax.f32 %v6459, -10.0
    %v6980 = vmax.f32 %v6462, -10.0
    %v6981 = vmax.f32 %v6465, -10.0
    %v6982 = vmax.f32 %v6468, -10.0
    %v6983 = vmax.f32 %v6471, -10.0
    %v6984 = vmax.f32 %v6474, -10.0
    %v6985 = vmax.f32 %v6477, -10.0
    %v6986 = vmax.f32 %v6480, -10.0
    %v6987 = vmax.f32 %v6483, -10.0
    %v6988 = vmax.f32 %v6486, -10.0
    %v6989 = vmax.f32 %v6489, -10.0
    %v6990 = vmax.f32 %v6492, -10.0
    %v6991 = vmax.f32 %v6495, -10.0
    %v6992 = vmax.f32 %v6498, -10.0
    %v6993 = vmax.f32 %v6501, -10.0
    %v6994 = vmax.f32 %v6504, -10.0
    %v6995 = vmax.f32 %v6507, -10.0
    %v6996 = vmax.f32 %v6510, -10.0
    %v6997 = vmax.f32 %v6513, -10.0
    %v6998 = vmax.f32 %v6516, -10.0
    %v6999 = vmax.f32 %v6519, -10.0
    %v7000 = vmax.f32 %v6522, -10.0
    %v7001 = vmax.f32 %v6525, -10.0
    %v7002 = vmax.f32 %v6528, -10.0
    %v7003 = vmax.f32 %v6531, -10.0
    %v7004 = vmax.f32 %v6534, -10.0
    %v7005 = vmax.f32 %v6537, -10.0
    %v7006 = vmax.f32 %v6540, -10.0
    %v7007 = vmax.f32 %v6543, -10.0
    %v7008 = vmax.f32 %v6546, -10.0
    %v7009 = vmax.f32 %v6549, -10.0
    %v7010 = vmax.f32 %v6552, -10.0
    %v7011 = vmax.f32 %v6555, -10.0
    %v7012 = vmax.f32 %v6558, -10.0
    %v7013 = vmax.f32 %v6561, -10.0
    %v7014 = vmax.f32 %v6564, -10.0
    %v7015 = vmax.f32 %v6567, -10.0
    %v7016 = vmax.f32 %v6570, -10.0
    %v7017 = vmax.f32 %v6573, -10.0
    %v7018 = vmax.f32 %v6576, -10.0
    %v7019 = vmax.f32 %v6579, -10.0
    %v7020 = vmax.f32 %v6582, -10.0
    %v7021 = vmax.f32 %v6585, -10.0
    %v7022 = vmax.f32 %v6588, -10.0
    %v7023 = vmax.f32 %v6591, -10.0
    %v7024 = vmax.f32 %v6594, -10.0
    %v7025 = vmax.f32 %v6597, -10.0
    %v7026 = vmax.f32 %v6600, -10.0
    %v7027 = vmax.f32 %v6603, -10.0
    %v7028 = vmax.f32 %v6606, -10.0
    %v7029 = vmax.f32 %v6609, -10.0
    %v7030 = vmax.f32 %v6612, -10.0
    %v7031 = vmax.f32 %v6615, -10.0
    %v7032 = vmax.f32 %v6618, -10.0
    %v7033 = vmax.f32 %v6621, -10.0
    %v7034 = vmax.f32 %v6624, -10.0
    %v7035 = vmax.f32 %v6627, -10.0
    %v7036 = vmax.f32 %v6630, -10.0
    %v7037 = vmax.f32 %v6633, -10.0
    %v7038 = vmax.f32 %v6636, -10.0
    %v7039 = vmax.f32 %v6639, -10.0
    %v7040 = vmax.f32 %v6642, -10.0
    %v7041 = vmax.f32 %v6645, -10.0
    %v7042 = vmax.f32 %v6648, -10.0
    %v7043 = vmax.f32 %v6651, -10.0
    %v7044 = vmax.f32 %v6654, -10.0
    %v7045 = vmax.f32 %v6657, -10.0
    %v7046 = vmax.f32 %v6660, -10.0
    %v7047 = vmax.f32 %v6663, -10.0
    %v7048 = vmin.f32 %v6664, 10.0
    %v7049 = vmin.f32 %v6665, 10.0
    %v7050 = vmin.f32 %v6666, 10.0
    %v7051 = vmin.f32 %v6667, 10.0
    %v7052 = vmin.f32 %v6668, 10.0
    %v7053 = vmin.f32 %v6669, 10.0
    %v7054 = vmin.f32 %v6670, 10.0
    %v7055 = vmin.f32 %v6671, 10.0
    %v7056 = vmin.f32 %v6672, 10.0
    %v7057 = vmin.f32 %v6673, 10.0
    %v7058 = vmin.f32 %v6674, 10.0
    %v7059 = vmin.f32 %v6675, 10.0
    %v7060 = vmin.f32 %v6676, 10.0
    %v7061 = vmin.f32 %v6677, 10.0
    %v7062 = vmin.f32 %v6678, 10.0
    %v7063 = vmin.f32 %v6679, 10.0
    %v7064 = vmin.f32 %v6680, 10.0
    %v7065 = vmin.f32 %v6681, 10.0
    %v7066 = vmin.f32 %v6682, 10.0
    %v7067 = vmin.f32 %v6683, 10.0
    %v7068 = vmin.f32 %v6684, 10.0
    %v7069 = vmin.f32 %v6685, 10.0
    %v7070 = vmin.f32 %v6686, 10.0
    %v7071 = vmin.f32 %v6687, 10.0
    %v7072 = vmin.f32 %v6688, 10.0
    %v7073 = vmin.f32 %v6689, 10.0
    %v7074 = vmin.f32 %v6690, 10.0
    %v7075 = vmin.f32 %v6691, 10.0
    %v7076 = vmin.f32 %v6692, 10.0
    %v7077 = vmin.f32 %v6693, 10.0
    %v7078 = vmin.f32 %v6694, 10.0
    %v7079 = vmin.f32 %v6695, 10.0
    %v7080 = vmin.f32 %v6696, 10.0
    %v7081 = vmin.f32 %v6697, 10.0
    %v7082 = vmin.f32 %v6698, 10.0
    %v7083 = vmin.f32 %v6699, 10.0
    %v7084 = vmin.f32 %v6700, 10.0
    %v7085 = vmin.f32 %v6701, 10.0
    %v7086 = vmin.f32 %v6702, 10.0
    %v7087 = vmin.f32 %v6703, 10.0
    %v7088 = vmin.f32 %v6704, 10.0
    %v7089 = vmin.f32 %v6705, 10.0
    %v7090 = vmin.f32 %v6706, 10.0
    %v7091 = vmin.f32 %v6707, 10.0
    %v7092 = vmin.f32 %v6708, 10.0
    %v7093 = vmin.f32 %v6709, 10.0
    %v7094 = vmin.f32 %v6710, 10.0
    %v7095 = vmin.f32 %v6711, 10.0
    %v7096 = vmin.f32 %v6712, 10.0
    %v7097 = vmin.f32 %v6713, 10.0
    %v7098 = vmin.f32 %v6714, 10.0
    %v7099 = vmin.f32 %v6715, 10.0
    %v7100 = vmin.f32 %v6716, 10.0
    %v7101 = vmin.f32 %v6717, 10.0
    %v7102 = vmin.f32 %v6718, 10.0
    %v7103 = vmin.f32 %v6719, 10.0
    %v7104 = vmin.f32 %v6720, 10.0
    %v7105 = vmin.f32 %v6721, 10.0
    %v7106 = vmin.f32 %v6722, 10.0
    %v7107 = vmin.f32 %v6723, 10.0
    %v7108 = vmin.f32 %v6724, 10.0
    %v7109 = vmin.f32 %v6725, 10.0
    %v7110 = vmin.f32 %v6726, 10.0
    %v7111 = vmin.f32 %v6727, 10.0
    %v7112 = vmin.f32 %v6728, 10.0
    %v7113 = vmin.f32 %v6729, 10.0
    %v7114 = vmin.f32 %v6730, 10.0
    %v7115 = vmin.f32 %v6731, 10.0
    %v7116 = vmin.f32 %v6732, 10.0
    %v7117 = vmin.f32 %v6733, 10.0
    %v7118 = vmin.f32 %v6734, 10.0
    %v7119 = vmin.f32 %v6735, 10.0
    %v7120 = vmin.f32 %v6736, 10.0
    %v7121 = vmin.f32 %v6737, 10.0
    %v7122 = vmin.f32 %v6738, 10.0
    %v7123 = vmin.f32 %v6739, 10.0
    %v7124 = vmin.f32 %v6740, 10.0
    %v7125 = vmin.f32 %v6741, 10.0
    %v7126 = vmin.f32 %v6742, 10.0
    %v7127 = vmin.f32 %v6743, 10.0
    %v7128 = vmin.f32 %v6744, 10.0
    %v7129 = vmin.f32 %v6745, 10.0
    %v7130 = vmin.f32 %v6746, 10.0
    %v7131 = vmin.f32 %v6747, 10.0
    %v7132 = vmin.f32 %v6748, 10.0
    %v7133 = vmin.f32 %v6749, 10.0
    %v7134 = vmin.f32 %v6750, 10.0
    %v7135 = vmin.f32 %v6751, 10.0
    %v7136 = vmin.f32 %v6752, 10.0
    %v7137 = vmin.f32 %v6753, 10.0
    %v7138 = vmin.f32 %v6754, 10.0
    %v7139 = vmin.f32 %v6755, 10.0
    %v7140 = vmin.f32 %v6756, 10.0
    %v7141 = vmin.f32 %v6757, 10.0
    %v7142 = vmin.f32 %v6758, 10.0
    %v7143 = vmin.f32 %v6759, 10.0
    %v7144 = vmin.f32 %v6760, 10.0
    %v7145 = vmin.f32 %v6761, 10.0
    %v7146 = vmin.f32 %v6762, 10.0
    %v7147 = vmin.f32 %v6763, 10.0
    %v7148 = vmin.f32 %v6764, 10.0
    %v7149 = vmin.f32 %v6765, 10.0
    %v7150 = vmin.f32 %v6766, 10.0
    %v7151 = vmin.f32 %v6767, 10.0
    %v7152 = vmin.f32 %v6768, 10.0
    %v7153 = vmin.f32 %v6769, 10.0
    %v7154 = vmin.f32 %v6770, 10.0
    %v7155 = vmin.f32 %v6771, 10.0
    %v7156 = vmin.f32 %v6772, 10.0
    %v7157 = vmin.f32 %v6773, 10.0
    %v7158 = vmin.f32 %v6774, 10.0
    %v7159 = vmin.f32 %v6775, 10.0
    %v7160 = vmin.f32 %v6776, 10.0
    %v7161 = vmin.f32 %v6777, 10.0
    %v7162 = vmin.f32 %v6778, 10.0
    %v7163 = vmin.f32 %v6779, 10.0
    %v7164 = vmin.f32 %v6780, 10.0
    %v7165 = vmin.f32 %v6781, 10.0
    %v7166 = vmin.f32 %v6782, 10.0
    %v7167 = vmin.f32 %v6783, 10.0
    %v7168 = vmin.f32 %v6784, 10.0
    %v7169 = vmin.f32 %v6785, 10.0
    %v7170 = vmin.f32 %v6786, 10.0
    %v7171 = vmin.f32 %v6787, 10.0
    %v7172 = vmin.f32 %v6788, 10.0
    %v7173 = vmin.f32 %v6789, 10.0
    %v7174 = vmin.f32 %v6790, 10.0
    %v7175 = vmin.f32 %v6791, 10.0
    %v7176 = vmin.f32 %v6792, 10.0
    %v7177 = vmin.f32 %v6793, 10.0
    %v7178 = vmin.f32 %v6794, 10.0
    %v7179 = vmin.f32 %v6795, 10.0
    %v7180 = vmin.f32 %v6796, 10.0
    %v7181 = vmin.f32 %v6797, 10.0
    %v7182 = vmin.f32 %v6798, 10.0
    %v7183 = vmin.f32 %v6799, 10.0
    %v7184 = vmin.f32 %v6800, 10.0
    %v7185 = vmin.f32 %v6801, 10.0
    %v7186 = vmin.f32 %v6802, 10.0
    %v7187 = vmin.f32 %v6803, 10.0
    %v7188 = vmin.f32 %v6804, 10.0
    %v7189 = vmin.f32 %v6805, 10.0
    %v7190 = vmin.f32 %v6806, 10.0
    %v7191 = vmin.f32 %v6807, 10.0
    %v7192 = vmin.f32 %v6808, 10.0
    %v7193 = vmin.f32 %v6809, 10.0
    %v7194 = vmin.f32 %v6810, 10.0
    %v7195 = vmin.f32 %v6811, 10.0
    %v7196 = vmin.f32 %v6812, 10.0
    %v7197 = vmin.f32 %v6813, 10.0
    %v7198 = vmin.f32 %v6814, 10.0
    %v7199 = vmin.f32 %v6815, 10.0
    %v7200 = vmin.f32 %v6816, 10.0
    %v7201 = vmin.f32 %v6817, 10.0
    %v7202 = vmin.f32 %v6818, 10.0
    %v7203 = vmin.f32 %v6819, 10.0
    %v7204 = vmin.f32 %v6820, 10.0
    %v7205 = vmin.f32 %v6821, 10.0
    %v7206 = vmin.f32 %v6822, 10.0
    %v7207 = vmin.f32 %v6823, 10.0
    %v7208 = vmin.f32 %v6824, 10.0
    %v7209 = vmin.f32 %v6825, 10.0
    %v7210 = vmin.f32 %v6826, 10.0
    %v7211 = vmin.f32 %v6827, 10.0
    %v7212 = vmin.f32 %v6828, 10.0
    %v7213 = vmin.f32 %v6829, 10.0
    %v7214 = vmin.f32 %v6830, 10.0
    %v7215 = vmin.f32 %v6831, 10.0
    %v7216 = vmin.f32 %v6832, 10.0
    %v7217 = vmin.f32 %v6833, 10.0
    %v7218 = vmin.f32 %v6834, 10.0
    %v7219 = vmin.f32 %v6835, 10.0
    %v7220 = vmin.f32 %v6836, 10.0
    %v7221 = vmin.f32 %v6837, 10.0
    %v7222 = vmin.f32 %v6838, 10.0
    %v7223 = vmin.f32 %v6839, 10.0
    %v7224 = vmin.f32 %v6840, 10.0
    %v7225 = vmin.f32 %v6841, 10.0
    %v7226 = vmin.f32 %v6842, 10.0
    %v7227 = vmin.f32 %v6843, 10.0
    %v7228 = vmin.f32 %v6844, 10.0
    %v7229 = vmin.f32 %v6845, 10.0
    %v7230 = vmin.f32 %v6846, 10.0
    %v7231 = vmin.f32 %v6847, 10.0
    %v7232 = vmin.f32 %v6848, 10.0
    %v7233 = vmin.f32 %v6849, 10.0
    %v7234 = vmin.f32 %v6850, 10.0
    %v7235 = vmin.f32 %v6851, 10.0
    %v7236 = vmin.f32 %v6852, 10.0
    %v7237 = vmin.f32 %v6853, 10.0
    %v7238 = vmin.f32 %v6854, 10.0
    %v7239 = vmin.f32 %v6855, 10.0
    %v7240 = vmin.f32 %v6856, 10.0
    %v7241 = vmin.f32 %v6857, 10.0
    %v7242 = vmin.f32 %v6858, 10.0
    %v7243 = vmin.f32 %v6859, 10.0
    %v7244 = vmin.f32 %v6860, 10.0
    %v7245 = vmin.f32 %v6861, 10.0
    %v7246 = vmin.f32 %v6862, 10.0
    %v7247 = vmin.f32 %v6863, 10.0
    %v7248 = vmin.f32 %v6864, 10.0
    %v7249 = vmin.f32 %v6865, 10.0
    %v7250 = vmin.f32 %v6866, 10.0
    %v7251 = vmin.f32 %v6867, 10.0
    %v7252 = vmin.f32 %v6868, 10.0
    %v7253 = vmin.f32 %v6869, 10.0
    %v7254 = vmin.f32 %v6870, 10.0
    %v7255 = vmin.f32 %v6871, 10.0
    %v7256 = vmin.f32 %v6872, 10.0
    %v7257 = vmin.f32 %v6873, 10.0
    %v7258 = vmin.f32 %v6874, 10.0
    %v7259 = vmin.f32 %v6875, 10.0
    %v7260 = vmin.f32 %v6876, 10.0
    %v7261 = vmin.f32 %v6877, 10.0
    %v7262 = vmin.f32 %v6878, 10.0
    %v7263 = vmin.f32 %v6879, 10.0
    %v7264 = vmin.f32 %v6880, 10.0
    %v7265 = vmin.f32 %v6881, 10.0
    %v7266 = vmin.f32 %v6882, 10.0
    %v7267 = vmin.f32 %v6883, 10.0
    %v7268 = vmin.f32 %v6884, 10.0
    %v7269 = vmin.f32 %v6885, 10.0
    %v7270 = vmin.f32 %v6886, 10.0
    %v7271 = vmin.f32 %v6887, 10.0
    %v7272 = vmin.f32 %v6888, 10.0
    %v7273 = vmin.f32 %v6889, 10.0
    %v7274 = vmin.f32 %v6890, 10.0
    %v7275 = vmin.f32 %v6891, 10.0
    %v7276 = vmin.f32 %v6892, 10.0
    %v7277 = vmin.f32 %v6893, 10.0
    %v7278 = vmin.f32 %v6894, 10.0
    %v7279 = vmin.f32 %v6895, 10.0
    %v7280 = vmin.f32 %v6896, 10.0
    %v7281 = vmin.f32 %v6897, 10.0
    %v7282 = vmin.f32 %v6898, 10.0
    %v7283 = vmin.f32 %v6899, 10.0
    %v7284 = vmin.f32 %v6900, 10.0
    %v7285 = vmin.f32 %v6901, 10.0
    %v7286 = vmin.f32 %v6902, 10.0
    %v7287 = vmin.f32 %v6903, 10.0
    %v7288 = vmin.f32 %v6904, 10.0
    %v7289 = vmin.f32 %v6905, 10.0
    %v7290 = vmin.f32 %v6906, 10.0
    %v7291 = vmin.f32 %v6907, 10.0
    %v7292 = vmin.f32 %v6908, 10.0
    %v7293 = vmin.f32 %v6909, 10.0
    %v7294 = vmin.f32 %v6910, 10.0
    %v7295 = vmin.f32 %v6911, 10.0
    %v7296 = vmin.f32 %v6912, 10.0
    %v7297 = vmin.f32 %v6913, 10.0
    %v7298 = vmin.f32 %v6914, 10.0
    %v7299 = vmin.f32 %v6915, 10.0
    %v7300 = vmin.f32 %v6916, 10.0
    %v7301 = vmin.f32 %v6917, 10.0
    %v7302 = vmin.f32 %v6918, 10.0
    %v7303 = vmin.f32 %v6919, 10.0
    %v7304 = vmin.f32 %v6920, 10.0
    %v7305 = vmin.f32 %v6921, 10.0
    %v7306 = vmin.f32 %v6922, 10.0
    %v7307 = vmin.f32 %v6923, 10.0
    %v7308 = vmin.f32 %v6924, 10.0
    %v7309 = vmin.f32 %v6925, 10.0
    %v7310 = vmin.f32 %v6926, 10.0
    %v7311 = vmin.f32 %v6927, 10.0
    %v7312 = vmin.f32 %v6928, 10.0
    %v7313 = vmin.f32 %v6929, 10.0
    %v7314 = vmin.f32 %v6930, 10.0
    %v7315 = vmin.f32 %v6931, 10.0
    %v7316 = vmin.f32 %v6932, 10.0
    %v7317 = vmin.f32 %v6933, 10.0
    %v7318 = vmin.f32 %v6934, 10.0
    %v7319 = vmin.f32 %v6935, 10.0
    %v7320 = vmin.f32 %v6936, 10.0
    %v7321 = vmin.f32 %v6937, 10.0
    %v7322 = vmin.f32 %v6938, 10.0
    %v7323 = vmin.f32 %v6939, 10.0
    %v7324 = vmin.f32 %v6940, 10.0
    %v7325 = vmin.f32 %v6941, 10.0
    %v7326 = vmin.f32 %v6942, 10.0
    %v7327 = vmin.f32 %v6943, 10.0
    %v7328 = vmin.f32 %v6944, 10.0
    %v7329 = vmin.f32 %v6945, 10.0
    %v7330 = vmin.f32 %v6946, 10.0
    %v7331 = vmin.f32 %v6947, 10.0
    %v7332 = vmin.f32 %v6948, 10.0
    %v7333 = vmin.f32 %v6949, 10.0
    %v7334 = vmin.f32 %v6950, 10.0
    %v7335 = vmin.f32 %v6951, 10.0
    %v7336 = vmin.f32 %v6952, 10.0
    %v7337 = vmin.f32 %v6953, 10.0
    %v7338 = vmin.f32 %v6954, 10.0
    %v7339 = vmin.f32 %v6955, 10.0
    %v7340 = vmin.f32 %v6956, 10.0
    %v7341 = vmin.f32 %v6957, 10.0
    %v7342 = vmin.f32 %v6958, 10.0
    %v7343 = vmin.f32 %v6959, 10.0
    %v7344 = vmin.f32 %v6960, 10.0
    %v7345 = vmin.f32 %v6961, 10.0
    %v7346 = vmin.f32 %v6962, 10.0
    %v7347 = vmin.f32 %v6963, 10.0
    %v7348 = vmin.f32 %v6964, 10.0
    %v7349 = vmin.f32 %v6965, 10.0
    %v7350 = vmin.f32 %v6966, 10.0
    %v7351 = vmin.f32 %v6967, 10.0
    %v7352 = vmin.f32 %v6968, 10.0
    %v7353 = vmin.f32 %v6969, 10.0
    %v7354 = vmin.f32 %v6970, 10.0
    %v7355 = vmin.f32 %v6971, 10.0
    %v7356 = vmin.f32 %v6972, 10.0
    %v7357 = vmin.f32 %v6973, 10.0
    %v7358 = vmin.f32 %v6974, 10.0
    %v7359 = vmin.f32 %v6975, 10.0
    %v7360 = vmin.f32 %v6976, 10.0
    %v7361 = vmin.f32 %v6977, 10.0
    %v7362 = vmin.f32 %v6978, 10.0
    %v7363 = vmin.f32 %v6979, 10.0
    %v7364 = vmin.f32 %v6980, 10.0
    %v7365 = vmin.f32 %v6981, 10.0
    %v7366 = vmin.f32 %v6982, 10.0
    %v7367 = vmin.f32 %v6983, 10.0
    %v7368 = vmin.f32 %v6984, 10.0
    %v7369 = vmin.f32 %v6985, 10.0
    %v7370 = vmin.f32 %v6986, 10.0
    %v7371 = vmin.f32 %v6987, 10.0
    %v7372 = vmin.f32 %v6988, 10.0
    %v7373 = vmin.f32 %v6989, 10.0
    %v7374 = vmin.f32 %v6990, 10.0
    %v7375 = vmin.f32 %v6991, 10.0
    %v7376 = vmin.f32 %v6992, 10.0
    %v7377 = vmin.f32 %v6993, 10.0
    %v7378 = vmin.f32 %v6994, 10.0
    %v7379 = vmin.f32 %v6995, 10.0
    %v7380 = vmin.f32 %v6996, 10.0
    %v7381 = vmin.f32 %v6997, 10.0
    %v7382 = vmin.f32 %v6998, 10.0
    %v7383 = vmin.f32 %v6999, 10.0
    %v7384 = vmin.f32 %v7000, 10.0
    %v7385 = vmin.f32 %v7001, 10.0
    %v7386 = vmin.f32 %v7002, 10.0
    %v7387 = vmin.f32 %v7003, 10.0
    %v7388 = vmin.f32 %v7004, 10.0
    %v7389 = vmin.f32 %v7005, 10.0
    %v7390 = vmin.f32 %v7006, 10.0
    %v7391 = vmin.f32 %v7007, 10.0
    %v7392 = vmin.f32 %v7008, 10.0
    %v7393 = vmin.f32 %v7009, 10.0
    %v7394 = vmin.f32 %v7010, 10.0
    %v7395 = vmin.f32 %v7011, 10.0
    %v7396 = vmin.f32 %v7012, 10.0
    %v7397 = vmin.f32 %v7013, 10.0
    %v7398 = vmin.f32 %v7014, 10.0
    %v7399 = vmin.f32 %v7015, 10.0
    %v7400 = vmin.f32 %v7016, 10.0
    %v7401 = vmin.f32 %v7017, 10.0
    %v7402 = vmin.f32 %v7018, 10.0
    %v7403 = vmin.f32 %v7019, 10.0
    %v7404 = vmin.f32 %v7020, 10.0
    %v7405 = vmin.f32 %v7021, 10.0
    %v7406 = vmin.f32 %v7022, 10.0
    %v7407 = vmin.f32 %v7023, 10.0
    %v7408 = vmin.f32 %v7024, 10.0
    %v7409 = vmin.f32 %v7025, 10.0
    %v7410 = vmin.f32 %v7026, 10.0
    %v7411 = vmin.f32 %v7027, 10.0
    %v7412 = vmin.f32 %v7028, 10.0
    %v7413 = vmin.f32 %v7029, 10.0
    %v7414 = vmin.f32 %v7030, 10.0
    %v7415 = vmin.f32 %v7031, 10.0
    %v7416 = vmin.f32 %v7032, 10.0
    %v7417 = vmin.f32 %v7033, 10.0
    %v7418 = vmin.f32 %v7034, 10.0
    %v7419 = vmin.f32 %v7035, 10.0
    %v7420 = vmin.f32 %v7036, 10.0
    %v7421 = vmin.f32 %v7037, 10.0
    %v7422 = vmin.f32 %v7038, 10.0
    %v7423 = vmin.f32 %v7039, 10.0
    %v7424 = vmin.f32 %v7040, 10.0
    %v7425 = vmin.f32 %v7041, 10.0
    %v7426 = vmin.f32 %v7042, 10.0
    %v7427 = vmin.f32 %v7043, 10.0
    %v7428 = vmin.f32 %v7044, 10.0
    %v7429 = vmin.f32 %v7045, 10.0
    %v7430 = vmin.f32 %v7046, 10.0
    %v7431 = vmin.f32 %v7047, 10.0
    %v7432 = vlaneseq
    %v7433 = vand.u32 %v7432, 127
    %vm7434 = vcmp.eq.s32.totalorder %v7433, 0
    %v7435 = vsub.f32 0.0, %v7048
    %v7436 = vsub.f32 0.0, %v7049
    %v7437 = vsub.f32 0.0, %v7050
    %v7438 = vsub.f32 0.0, %v7051
    %v7439 = vsub.f32 0.0, %v7052
    %v7440 = vsub.f32 0.0, %v7053
    %v7441 = vsub.f32 0.0, %v7054
    %v7442 = vsub.f32 0.0, %v7055
    %v7443 = vsub.f32 0.0, %v7056
    %v7444 = vsub.f32 0.0, %v7057
    %v7445 = vsub.f32 0.0, %v7058
    %v7446 = vsub.f32 0.0, %v7059
    %v7447 = vsub.f32 0.0, %v7060
    %v7448 = vsub.f32 0.0, %v7061
    %v7449 = vsub.f32 0.0, %v7062
    %v7450 = vsub.f32 0.0, %v7063
    %v7451 = vsub.f32 0.0, %v7064
    %v7452 = vsub.f32 0.0, %v7065
    %v7453 = vsub.f32 0.0, %v7066
    %v7454 = vsub.f32 0.0, %v7067
    %v7455 = vsub.f32 0.0, %v7068
    %v7456 = vsub.f32 0.0, %v7069
    %v7457 = vsub.f32 0.0, %v7070
    %v7458 = vsub.f32 0.0, %v7071
    %v7459 = vsub.f32 0.0, %v7072
    %v7460 = vsub.f32 0.0, %v7073
    %v7461 = vsub.f32 0.0, %v7074
    %v7462 = vsub.f32 0.0, %v7075
    %v7463 = vsub.f32 0.0, %v7076
    %v7464 = vsub.f32 0.0, %v7077
    %v7465 = vsub.f32 0.0, %v7078
    %v7466 = vsub.f32 0.0, %v7079
    %v7467 = vsub.f32 0.0, %v7080
    %v7468 = vsub.f32 0.0, %v7081
    %v7469 = vsub.f32 0.0, %v7082
    %v7470 = vsub.f32 0.0, %v7083
    %v7471 = vsub.f32 0.0, %v7084
    %v7472 = vsub.f32 0.0, %v7085
    %v7473 = vsub.f32 0.0, %v7086
    %v7474 = vsub.f32 0.0, %v7087
    %v7475 = vsub.f32 0.0, %v7088
    %v7476 = vsub.f32 0.0, %v7089
    %v7477 = vsub.f32 0.0, %v7090
    %v7478 = vsub.f32 0.0, %v7091
    %v7479 = vsub.f32 0.0, %v7092
    %v7480 = vsub.f32 0.0, %v7093
    %v7481 = vsub.f32 0.0, %v7094
    %v7482 = vsub.f32 0.0, %v7095
    %v7483 = vsub.f32 0.0, %v7096
    %v7484 = vsub.f32 0.0, %v7097
    %v7485 = vsub.f32 0.0, %v7098
    %v7486 = vsub.f32 0.0, %v7099
    %v7487 = vsub.f32 0.0, %v7100
    %v7488 = vsub.f32 0.0, %v7101
    %v7489 = vsub.f32 0.0, %v7102
    %v7490 = vsub.f32 0.0, %v7103
    %v7491 = vsub.f32 0.0, %v7104
    %v7492 = vsub.f32 0.0, %v7105
    %v7493 = vsub.f32 0.0, %v7106
    %v7494 = vsub.f32 0.0, %v7107
    %v7495 = vsub.f32 0.0, %v7108
    %v7496 = vsub.f32 0.0, %v7109
    %v7497 = vsub.f32 0.0, %v7110
    %v7498 = vsub.f32 0.0, %v7111
    %v7499 = vsub.f32 0.0, %v7112
    %v7500 = vsub.f32 0.0, %v7113
    %v7501 = vsub.f32 0.0, %v7114
    %v7502 = vsub.f32 0.0, %v7115
    %v7503 = vsub.f32 0.0, %v7116
    %v7504 = vsub.f32 0.0, %v7117
    %v7505 = vsub.f32 0.0, %v7118
    %v7506 = vsub.f32 0.0, %v7119
    %v7507 = vsub.f32 0.0, %v7120
    %v7508 = vsub.f32 0.0, %v7121
    %v7509 = vsub.f32 0.0, %v7122
    %v7510 = vsub.f32 0.0, %v7123
    %v7511 = vsub.f32 0.0, %v7124
    %v7512 = vsub.f32 0.0, %v7125
    %v7513 = vsub.f32 0.0, %v7126
    %v7514 = vsub.f32 0.0, %v7127
    %v7515 = vsub.f32 0.0, %v7128
    %v7516 = vsub.f32 0.0, %v7129
    %v7517 = vsub.f32 0.0, %v7130
    %v7518 = vsub.f32 0.0, %v7131
    %v7519 = vsub.f32 0.0, %v7132
    %v7520 = vsub.f32 0.0, %v7133
    %v7521 = vsub.f32 0.0, %v7134
    %v7522 = vsub.f32 0.0, %v7135
    %v7523 = vsub.f32 0.0, %v7136
    %v7524 = vsub.f32 0.0, %v7137
    %v7525 = vsub.f32 0.0, %v7138
    %v7526 = vsub.f32 0.0, %v7139
    %v7527 = vsub.f32 0.0, %v7140
    %v7528 = vsub.f32 0.0, %v7141
    %v7529 = vsub.f32 0.0, %v7142
    %v7530 = vsub.f32 0.0, %v7143
    %v7531 = vsub.f32 0.0, %v7144
    %v7532 = vsub.f32 0.0, %v7145
    %v7533 = vsub.f32 0.0, %v7146
    %v7534 = vsub.f32 0.0, %v7147
    %v7535 = vsub.f32 0.0, %v7148
    %v7536 = vsub.f32 0.0, %v7149
    %v7537 = vsub.f32 0.0, %v7150
    %v7538 = vsub.f32 0.0, %v7151
    %v7539 = vsub.f32 0.0, %v7152
    %v7540 = vsub.f32 0.0, %v7153
    %v7541 = vsub.f32 0.0, %v7154
    %v7542 = vsub.f32 0.0, %v7155
    %v7543 = vsub.f32 0.0, %v7156
    %v7544 = vsub.f32 0.0, %v7157
    %v7545 = vsub.f32 0.0, %v7158
    %v7546 = vsub.f32 0.0, %v7159
    %v7547 = vsub.f32 0.0, %v7160
    %v7548 = vsub.f32 0.0, %v7161
    %v7549 = vsub.f32 0.0, %v7162
    %v7550 = vsub.f32 0.0, %v7163
    %v7551 = vsub.f32 0.0, %v7164
    %v7552 = vsub.f32 0.0, %v7165
    %v7553 = vsub.f32 0.0, %v7166
    %v7554 = vsub.f32 0.0, %v7167
    %v7555 = vsub.f32 0.0, %v7168
    %v7556 = vsub.f32 0.0, %v7169
    %v7557 = vsub.f32 0.0, %v7170
    %v7558 = vsub.f32 0.0, %v7171
    %v7559 = vsub.f32 0.0, %v7172
    %v7560 = vsub.f32 0.0, %v7173
    %v7561 = vsub.f32 0.0, %v7174
    %v7562 = vsub.f32 0.0, %v7175
    %v7563 = vsub.f32 0.0, %v7176
    %v7564 = vsub.f32 0.0, %v7177
    %v7565 = vsub.f32 0.0, %v7178
    %v7566 = vsub.f32 0.0, %v7179
    %v7567 = vsub.f32 0.0, %v7180
    %v7568 = vsub.f32 0.0, %v7181
    %v7569 = vsub.f32 0.0, %v7182
    %v7570 = vsub.f32 0.0, %v7183
    %v7571 = vsub.f32 0.0, %v7184
    %v7572 = vsub.f32 0.0, %v7185
    %v7573 = vsub.f32 0.0, %v7186
    %v7574 = vsub.f32 0.0, %v7187
    %v7575 = vsub.f32 0.0, %v7188
    %v7576 = vsub.f32 0.0, %v7189
    %v7577 = vsub.f32 0.0, %v7190
    %v7578 = vsub.f32 0.0, %v7191
    %v7579 = vsub.f32 0.0, %v7192
    %v7580 = vsub.f32 0.0, %v7193
    %v7581 = vsub.f32 0.0, %v7194
    %v7582 = vsub.f32 0.0, %v7195
    %v7583 = vsub.f32 0.0, %v7196
    %v7584 = vsub.f32 0.0, %v7197
    %v7585 = vsub.f32 0.0, %v7198
    %v7586 = vsub.f32 0.0, %v7199
    %v7587 = vsub.f32 0.0, %v7200
    %v7588 = vsub.f32 0.0, %v7201
    %v7589 = vsub.f32 0.0, %v7202
    %v7590 = vsub.f32 0.0, %v7203
    %v7591 = vsub.f32 0.0, %v7204
    %v7592 = vsub.f32 0.0, %v7205
    %v7593 = vsub.f32 0.0, %v7206
    %v7594 = vsub.f32 0.0, %v7207
    %v7595 = vsub.f32 0.0, %v7208
    %v7596 = vsub.f32 0.0, %v7209
    %v7597 = vsub.f32 0.0, %v7210
    %v7598 = vsub.f32 0.0, %v7211
    %v7599 = vsub.f32 0.0, %v7212
    %v7600 = vsub.f32 0.0, %v7213
    %v7601 = vsub.f32 0.0, %v7214
    %v7602 = vsub.f32 0.0, %v7215
    %v7603 = vsub.f32 0.0, %v7216
    %v7604 = vsub.f32 0.0, %v7217
    %v7605 = vsub.f32 0.0, %v7218
    %v7606 = vsub.f32 0.0, %v7219
    %v7607 = vsub.f32 0.0, %v7220
    %v7608 = vsub.f32 0.0, %v7221
    %v7609 = vsub.f32 0.0, %v7222
    %v7610 = vsub.f32 0.0, %v7223
    %v7611 = vsub.f32 0.0, %v7224
    %v7612 = vsub.f32 0.0, %v7225
    %v7613 = vsub.f32 0.0, %v7226
    %v7614 = vsub.f32 0.0, %v7227
    %v7615 = vsub.f32 0.0, %v7228
    %v7616 = vsub.f32 0.0, %v7229
    %v7617 = vsub.f32 0.0, %v7230
    %v7618 = vsub.f32 0.0, %v7231
    %v7619 = vsub.f32 0.0, %v7232
    %v7620 = vsub.f32 0.0, %v7233
    %v7621 = vsub.f32 0.0, %v7234
    %v7622 = vsub.f32 0.0, %v7235
    %v7623 = vsub.f32 0.0, %v7236
    %v7624 = vsub.f32 0.0, %v7237
    %v7625 = vsub.f32 0.0, %v7238
    %v7626 = vsub.f32 0.0, %v7239
    %v7627 = vsub.f32 0.0, %v7240
    %v7628 = vsub.f32 0.0, %v7241
    %v7629 = vsub.f32 0.0, %v7242
    %v7630 = vsub.f32 0.0, %v7243
    %v7631 = vsub.f32 0.0, %v7244
    %v7632 = vsub.f32 0.0, %v7245
    %v7633 = vsub.f32 0.0, %v7246
    %v7634 = vsub.f32 0.0, %v7247
    %v7635 = vsub.f32 0.0, %v7248
    %v7636 = vsub.f32 0.0, %v7249
    %v7637 = vsub.f32 0.0, %v7250
    %v7638 = vsub.f32 0.0, %v7251
    %v7639 = vsub.f32 0.0, %v7252
    %v7640 = vsub.f32 0.0, %v7253
    %v7641 = vsub.f32 0.0, %v7254
    %v7642 = vsub.f32 0.0, %v7255
    %v7643 = vsub.f32 0.0, %v7256
    %v7644 = vsub.f32 0.0, %v7257
    %v7645 = vsub.f32 0.0, %v7258
    %v7646 = vsub.f32 0.0, %v7259
    %v7647 = vsub.f32 0.0, %v7260
    %v7648 = vsub.f32 0.0, %v7261
    %v7649 = vsub.f32 0.0, %v7262
    %v7650 = vsub.f32 0.0, %v7263
    %v7651 = vsub.f32 0.0, %v7264
    %v7652 = vsub.f32 0.0, %v7265
    %v7653 = vsub.f32 0.0, %v7266
    %v7654 = vsub.f32 0.0, %v7267
    %v7655 = vsub.f32 0.0, %v7268
    %v7656 = vsub.f32 0.0, %v7269
    %v7657 = vsub.f32 0.0, %v7270
    %v7658 = vsub.f32 0.0, %v7271
    %v7659 = vsub.f32 0.0, %v7272
    %v7660 = vsub.f32 0.0, %v7273
    %v7661 = vsub.f32 0.0, %v7274
    %v7662 = vsub.f32 0.0, %v7275
    %v7663 = vsub.f32 0.0, %v7276
    %v7664 = vsub.f32 0.0, %v7277
    %v7665 = vsub.f32 0.0, %v7278
    %v7666 = vsub.f32 0.0, %v7279
    %v7667 = vsub.f32 0.0, %v7280
    %v7668 = vsub.f32 0.0, %v7281
    %v7669 = vsub.f32 0.0, %v7282
    %v7670 = vsub.f32 0.0, %v7283
    %v7671 = vsub.f32 0.0, %v7284
    %v7672 = vsub.f32 0.0, %v7285
    %v7673 = vsub.f32 0.0, %v7286
    %v7674 = vsub.f32 0.0, %v7287
    %v7675 = vsub.f32 0.0, %v7288
    %v7676 = vsub.f32 0.0, %v7289
    %v7677 = vsub.f32 0.0, %v7290
    %v7678 = vsub.f32 0.0, %v7291
    %v7679 = vsub.f32 0.0, %v7292
    %v7680 = vsub.f32 0.0, %v7293
    %v7681 = vsub.f32 0.0, %v7294
    %v7682 = vsub.f32 0.0, %v7295
    %v7683 = vsub.f32 0.0, %v7296
    %v7684 = vsub.f32 0.0, %v7297
    %v7685 = vsub.f32 0.0, %v7298
    %v7686 = vsub.f32 0.0, %v7299
    %v7687 = vsub.f32 0.0, %v7300
    %v7688 = vsub.f32 0.0, %v7301
    %v7689 = vsub.f32 0.0, %v7302
    %v7690 = vsub.f32 0.0, %v7303
    %v7691 = vsub.f32 0.0, %v7304
    %v7692 = vsub.f32 0.0, %v7305
    %v7693 = vsub.f32 0.0, %v7306
    %v7694 = vsub.f32 0.0, %v7307
    %v7695 = vsub.f32 0.0, %v7308
    %v7696 = vsub.f32 0.0, %v7309
    %v7697 = vsub.f32 0.0, %v7310
    %v7698 = vsub.f32 0.0, %v7311
    %v7699 = vsub.f32 0.0, %v7312
    %v7700 = vsub.f32 0.0, %v7313
    %v7701 = vsub.f32 0.0, %v7314
    %v7702 = vsub.f32 0.0, %v7315
    %v7703 = vsub.f32 0.0, %v7316
    %v7704 = vsub.f32 0.0, %v7317
    %v7705 = vsub.f32 0.0, %v7318
    %v7706 = vsub.f32 0.0, %v7319
    %v7707 = vsub.f32 0.0, %v7320
    %v7708 = vsub.f32 0.0, %v7321
    %v7709 = vsub.f32 0.0, %v7322
    %v7710 = vsub.f32 0.0, %v7323
    %v7711 = vsub.f32 0.0, %v7324
    %v7712 = vsub.f32 0.0, %v7325
    %v7713 = vsub.f32 0.0, %v7326
    %v7714 = vsub.f32 0.0, %v7327
    %v7715 = vsub.f32 0.0, %v7328
    %v7716 = vsub.f32 0.0, %v7329
    %v7717 = vsub.f32 0.0, %v7330
    %v7718 = vsub.f32 0.0, %v7331
    %v7719 = vsub.f32 0.0, %v7332
    %v7720 = vsub.f32 0.0, %v7333
    %v7721 = vsub.f32 0.0, %v7334
    %v7722 = vsub.f32 0.0, %v7335
    %v7723 = vsub.f32 0.0, %v7336
    %v7724 = vsub.f32 0.0, %v7337
    %v7725 = vsub.f32 0.0, %v7338
    %v7726 = vsub.f32 0.0, %v7339
    %v7727 = vsub.f32 0.0, %v7340
    %v7728 = vsub.f32 0.0, %v7341
    %v7729 = vsub.f32 0.0, %v7342
    %v7730 = vsub.f32 0.0, %v7343
    %v7731 = vsub.f32 0.0, %v7344
    %v7732 = vsub.f32 0.0, %v7345
    %v7733 = vsub.f32 0.0, %v7346
    %v7734 = vsub.f32 0.0, %v7347
    %v7735 = vsub.f32 0.0, %v7348
    %v7736 = vsub.f32 0.0, %v7349
    %v7737 = vsub.f32 0.0, %v7350
    %v7738 = vsub.f32 0.0, %v7351
    %v7739 = vsub.f32 0.0, %v7352
    %v7740 = vsub.f32 0.0, %v7353
    %v7741 = vsub.f32 0.0, %v7354
    %v7742 = vsub.f32 0.0, %v7355
    %v7743 = vsub.f32 0.0, %v7356
    %v7744 = vsub.f32 0.0, %v7357
    %v7745 = vsub.f32 0.0, %v7358
    %v7746 = vsub.f32 0.0, %v7359
    %v7747 = vsub.f32 0.0, %v7360
    %v7748 = vsub.f32 0.0, %v7361
    %v7749 = vsub.f32 0.0, %v7362
    %v7750 = vsub.f32 0.0, %v7363
    %v7751 = vsub.f32 0.0, %v7364
    %v7752 = vsub.f32 0.0, %v7365
    %v7753 = vsub.f32 0.0, %v7366
    %v7754 = vsub.f32 0.0, %v7367
    %v7755 = vsub.f32 0.0, %v7368
    %v7756 = vsub.f32 0.0, %v7369
    %v7757 = vsub.f32 0.0, %v7370
    %v7758 = vsub.f32 0.0, %v7371
    %v7759 = vsub.f32 0.0, %v7372
    %v7760 = vsub.f32 0.0, %v7373
    %v7761 = vsub.f32 0.0, %v7374
    %v7762 = vsub.f32 0.0, %v7375
    %v7763 = vsub.f32 0.0, %v7376
    %v7764 = vsub.f32 0.0, %v7377
    %v7765 = vsub.f32 0.0, %v7378
    %v7766 = vsub.f32 0.0, %v7379
    %v7767 = vsub.f32 0.0, %v7380
    %v7768 = vsub.f32 0.0, %v7381
    %v7769 = vsub.f32 0.0, %v7382
    %v7770 = vsub.f32 0.0, %v7383
    %v7771 = vsub.f32 0.0, %v7384
    %v7772 = vsub.f32 0.0, %v7385
    %v7773 = vsub.f32 0.0, %v7386
    %v7774 = vsub.f32 0.0, %v7387
    %v7775 = vsub.f32 0.0, %v7388
    %v7776 = vsub.f32 0.0, %v7389
    %v7777 = vsub.f32 0.0, %v7390
    %v7778 = vsub.f32 0.0, %v7391
    %v7779 = vsub.f32 0.0, %v7392
    %v7780 = vsub.f32 0.0, %v7393
    %v7781 = vsub.f32 0.0, %v7394
    %v7782 = vsub.f32 0.0, %v7395
    %v7783 = vsub.f32 0.0, %v7396
    %v7784 = vsub.f32 0.0, %v7397
    %v7785 = vsub.f32 0.0, %v7398
    %v7786 = vsub.f32 0.0, %v7399
    %v7787 = vsub.f32 0.0, %v7400
    %v7788 = vsub.f32 0.0, %v7401
    %v7789 = vsub.f32 0.0, %v7402
    %v7790 = vsub.f32 0.0, %v7403
    %v7791 = vsub.f32 0.0, %v7404
    %v7792 = vsub.f32 0.0, %v7405
    %v7793 = vsub.f32 0.0, %v7406
    %v7794 = vsub.f32 0.0, %v7407
    %v7795 = vsub.f32 0.0, %v7408
    %v7796 = vsub.f32 0.0, %v7409
    %v7797 = vsub.f32 0.0, %v7410
    %v7798 = vsub.f32 0.0, %v7411
    %v7799 = vsub.f32 0.0, %v7412
    %v7800 = vsub.f32 0.0, %v7413
    %v7801 = vsub.f32 0.0, %v7414
    %v7802 = vsub.f32 0.0, %v7415
    %v7803 = vsub.f32 0.0, %v7416
    %v7804 = vsub.f32 0.0, %v7417
    %v7805 = vsub.f32 0.0, %v7418
    %v7806 = vsub.f32 0.0, %v7419
    %v7807 = vsub.f32 0.0, %v7420
    %v7808 = vsub.f32 0.0, %v7421
    %v7809 = vsub.f32 0.0, %v7422
    %v7810 = vsub.f32 0.0, %v7423
    %v7811 = vsub.f32 0.0, %v7424
    %v7812 = vsub.f32 0.0, %v7425
    %v7813 = vsub.f32 0.0, %v7426
    %v7814 = vsub.f32 0.0, %v7427
    %v7815 = vsub.f32 0.0, %v7428
    %v7816 = vsub.f32 0.0, %v7429
    %v7817 = vsub.f32 0.0, %v7430
    %v7818 = vsub.f32 0.0, %v7431
    %v8203 = vlaneseq
    %v8204 = vshrl.u32 %v8203, 7
    %v8205 = vsub.s32 %v7433, %v8204
    %v8206 = vrot.slane %v7048, %v8205
    %v8207 = vlaneseq
    %v8208 = vshrl.u32 %v8207, 7
    %v8209 = vsub.s32 %v7433, %v8208
    %v8210 = vrot.slane %v7049, %v8209
    %v8211 = vlaneseq
    %v8212 = vshrl.u32 %v8211, 7
    %v8213 = vsub.s32 %v7433, %v8212
    %v8214 = vrot.slane %v7050, %v8213
    %v8215 = vlaneseq
    %v8216 = vshrl.u32 %v8215, 7
    %v8217 = vsub.s32 %v7433, %v8216
    %v8218 = vrot.slane %v7051, %v8217
    %v8219 = vlaneseq
    %v8220 = vshrl.u32 %v8219, 7
    %v8221 = vsub.s32 %v7433, %v8220
    %v8222 = vrot.slane %v7052, %v8221
    %v8223 = vlaneseq
    %v8224 = vshrl.u32 %v8223, 7
    %v8225 = vsub.s32 %v7433, %v8224
    %v8226 = vrot.slane %v7053, %v8225
    %v8227 = vlaneseq
    %v8228 = vshrl.u32 %v8227, 7
    %v8229 = vsub.s32 %v7433, %v8228
    %v8230 = vrot.slane %v7054, %v8229
    %v8231 = vlaneseq
    %v8232 = vshrl.u32 %v8231, 7
    %v8233 = vsub.s32 %v7433, %v8232
    %v8234 = vrot.slane %v7055, %v8233
    %v8235 = vlaneseq
    %v8236 = vshrl.u32 %v8235, 7
    %v8237 = vsub.s32 %v7433, %v8236
    %v8238 = vrot.slane %v7056, %v8237
    %v8239 = vlaneseq
    %v8240 = vshrl.u32 %v8239, 7
    %v8241 = vsub.s32 %v7433, %v8240
    %v8242 = vrot.slane %v7057, %v8241
    %v8243 = vlaneseq
    %v8244 = vshrl.u32 %v8243, 7
    %v8245 = vsub.s32 %v7433, %v8244
    %v8246 = vrot.slane %v7058, %v8245
    %v8247 = vlaneseq
    %v8248 = vshrl.u32 %v8247, 7
    %v8249 = vsub.s32 %v7433, %v8248
    %v8250 = vrot.slane %v7059, %v8249
    %v8251 = vlaneseq
    %v8252 = vshrl.u32 %v8251, 7
    %v8253 = vsub.s32 %v7433, %v8252
    %v8254 = vrot.slane %v7060, %v8253
    %v8255 = vlaneseq
    %v8256 = vshrl.u32 %v8255, 7
    %v8257 = vsub.s32 %v7433, %v8256
    %v8258 = vrot.slane %v7061, %v8257
    %v8259 = vlaneseq
    %v8260 = vshrl.u32 %v8259, 7
    %v8261 = vsub.s32 %v7433, %v8260
    %v8262 = vrot.slane %v7062, %v8261
    %v8263 = vlaneseq
    %v8264 = vshrl.u32 %v8263, 7
    %v8265 = vsub.s32 %v7433, %v8264
    %v8266 = vrot.slane %v7063, %v8265
    %v8267 = vlaneseq
    %v8268 = vshrl.u32 %v8267, 7
    %v8269 = vsub.s32 %v7433, %v8268
    %v8270 = vrot.slane %v7064, %v8269
    %v8271 = vlaneseq
    %v8272 = vshrl.u32 %v8271, 7
    %v8273 = vsub.s32 %v7433, %v8272
    %v8274 = vrot.slane %v7065, %v8273
    %v8275 = vlaneseq
    %v8276 = vshrl.u32 %v8275, 7
    %v8277 = vsub.s32 %v7433, %v8276
    %v8278 = vrot.slane %v7066, %v8277
    %v8279 = vlaneseq
    %v8280 = vshrl.u32 %v8279, 7
    %v8281 = vsub.s32 %v7433, %v8280
    %v8282 = vrot.slane %v7067, %v8281
    %v8283 = vlaneseq
    %v8284 = vshrl.u32 %v8283, 7
    %v8285 = vsub.s32 %v7433, %v8284
    %v8286 = vrot.slane %v7068, %v8285
    %v8287 = vlaneseq
    %v8288 = vshrl.u32 %v8287, 7
    %v8289 = vsub.s32 %v7433, %v8288
    %v8290 = vrot.slane %v7069, %v8289
    %v8291 = vlaneseq
    %v8292 = vshrl.u32 %v8291, 7
    %v8293 = vsub.s32 %v7433, %v8292
    %v8294 = vrot.slane %v7070, %v8293
    %v8295 = vlaneseq
    %v8296 = vshrl.u32 %v8295, 7
    %v8297 = vsub.s32 %v7433, %v8296
    %v8298 = vrot.slane %v7071, %v8297
    %v8299 = vlaneseq
    %v8300 = vshrl.u32 %v8299, 7
    %v8301 = vsub.s32 %v7433, %v8300
    %v8302 = vrot.slane %v7072, %v8301
    %v8303 = vlaneseq
    %v8304 = vshrl.u32 %v8303, 7
    %v8305 = vsub.s32 %v7433, %v8304
    %v8306 = vrot.slane %v7073, %v8305
    %v8307 = vlaneseq
    %v8308 = vshrl.u32 %v8307, 7
    %v8309 = vsub.s32 %v7433, %v8308
    %v8310 = vrot.slane %v7074, %v8309
    %v8311 = vlaneseq
    %v8312 = vshrl.u32 %v8311, 7
    %v8313 = vsub.s32 %v7433, %v8312
    %v8314 = vrot.slane %v7075, %v8313
    %v8315 = vlaneseq
    %v8316 = vshrl.u32 %v8315, 7
    %v8317 = vsub.s32 %v7433, %v8316
    %v8318 = vrot.slane %v7076, %v8317
    %v8319 = vlaneseq
    %v8320 = vshrl.u32 %v8319, 7
    %v8321 = vsub.s32 %v7433, %v8320
    %v8322 = vrot.slane %v7077, %v8321
    %v8323 = vlaneseq
    %v8324 = vshrl.u32 %v8323, 7
    %v8325 = vsub.s32 %v7433, %v8324
    %v8326 = vrot.slane %v7078, %v8325
    %v8327 = vlaneseq
    %v8328 = vshrl.u32 %v8327, 7
    %v8329 = vsub.s32 %v7433, %v8328
    %v8330 = vrot.slane %v7079, %v8329
    %v8331 = vlaneseq
    %v8332 = vshrl.u32 %v8331, 7
    %v8333 = vsub.s32 %v7433, %v8332
    %v8334 = vrot.slane %v7080, %v8333
    %v8335 = vlaneseq
    %v8336 = vshrl.u32 %v8335, 7
    %v8337 = vsub.s32 %v7433, %v8336
    %v8338 = vrot.slane %v7081, %v8337
    %v8339 = vlaneseq
    %v8340 = vshrl.u32 %v8339, 7
    %v8341 = vsub.s32 %v7433, %v8340
    %v8342 = vrot.slane %v7082, %v8341
    %v8343 = vlaneseq
    %v8344 = vshrl.u32 %v8343, 7
    %v8345 = vsub.s32 %v7433, %v8344
    %v8346 = vrot.slane %v7083, %v8345
    %v8347 = vlaneseq
    %v8348 = vshrl.u32 %v8347, 7
    %v8349 = vsub.s32 %v7433, %v8348
    %v8350 = vrot.slane %v7084, %v8349
    %v8351 = vlaneseq
    %v8352 = vshrl.u32 %v8351, 7
    %v8353 = vsub.s32 %v7433, %v8352
    %v8354 = vrot.slane %v7085, %v8353
    %v8355 = vlaneseq
    %v8356 = vshrl.u32 %v8355, 7
    %v8357 = vsub.s32 %v7433, %v8356
    %v8358 = vrot.slane %v7086, %v8357
    %v8359 = vlaneseq
    %v8360 = vshrl.u32 %v8359, 7
    %v8361 = vsub.s32 %v7433, %v8360
    %v8362 = vrot.slane %v7087, %v8361
    %v8363 = vlaneseq
    %v8364 = vshrl.u32 %v8363, 7
    %v8365 = vsub.s32 %v7433, %v8364
    %v8366 = vrot.slane %v7088, %v8365
    %v8367 = vlaneseq
    %v8368 = vshrl.u32 %v8367, 7
    %v8369 = vsub.s32 %v7433, %v8368
    %v8370 = vrot.slane %v7089, %v8369
    %v8371 = vlaneseq
    %v8372 = vshrl.u32 %v8371, 7
    %v8373 = vsub.s32 %v7433, %v8372
    %v8374 = vrot.slane %v7090, %v8373
    %v8375 = vlaneseq
    %v8376 = vshrl.u32 %v8375, 7
    %v8377 = vsub.s32 %v7433, %v8376
    %v8378 = vrot.slane %v7091, %v8377
    %v8379 = vlaneseq
    %v8380 = vshrl.u32 %v8379, 7
    %v8381 = vsub.s32 %v7433, %v8380
    %v8382 = vrot.slane %v7092, %v8381
    %v8383 = vlaneseq
    %v8384 = vshrl.u32 %v8383, 7
    %v8385 = vsub.s32 %v7433, %v8384
    %v8386 = vrot.slane %v7093, %v8385
    %v8387 = vlaneseq
    %v8388 = vshrl.u32 %v8387, 7
    %v8389 = vsub.s32 %v7433, %v8388
    %v8390 = vrot.slane %v7094, %v8389
    %v8391 = vlaneseq
    %v8392 = vshrl.u32 %v8391, 7
    %v8393 = vsub.s32 %v7433, %v8392
    %v8394 = vrot.slane %v7095, %v8393
    %v8395 = vlaneseq
    %v8396 = vshrl.u32 %v8395, 7
    %v8397 = vsub.s32 %v7433, %v8396
    %v8398 = vrot.slane %v7096, %v8397
    %v8399 = vlaneseq
    %v8400 = vshrl.u32 %v8399, 7
    %v8401 = vsub.s32 %v7433, %v8400
    %v8402 = vrot.slane %v7097, %v8401
    %v8403 = vlaneseq
    %v8404 = vshrl.u32 %v8403, 7
    %v8405 = vsub.s32 %v7433, %v8404
    %v8406 = vrot.slane %v7098, %v8405
    %v8407 = vlaneseq
    %v8408 = vshrl.u32 %v8407, 7
    %v8409 = vsub.s32 %v7433, %v8408
    %v8410 = vrot.slane %v7099, %v8409
    %v8411 = vlaneseq
    %v8412 = vshrl.u32 %v8411, 7
    %v8413 = vsub.s32 %v7433, %v8412
    %v8414 = vrot.slane %v7100, %v8413
    %v8415 = vlaneseq
    %v8416 = vshrl.u32 %v8415, 7
    %v8417 = vsub.s32 %v7433, %v8416
    %v8418 = vrot.slane %v7101, %v8417
    %v8419 = vlaneseq
    %v8420 = vshrl.u32 %v8419, 7
    %v8421 = vsub.s32 %v7433, %v8420
    %v8422 = vrot.slane %v7102, %v8421
    %v8423 = vlaneseq
    %v8424 = vshrl.u32 %v8423, 7
    %v8425 = vsub.s32 %v7433, %v8424
    %v8426 = vrot.slane %v7103, %v8425
    %v8427 = vlaneseq
    %v8428 = vshrl.u32 %v8427, 7
    %v8429 = vsub.s32 %v7433, %v8428
    %v8430 = vrot.slane %v7104, %v8429
    %v8431 = vlaneseq
    %v8432 = vshrl.u32 %v8431, 7
    %v8433 = vsub.s32 %v7433, %v8432
    %v8434 = vrot.slane %v7105, %v8433
    %v8435 = vlaneseq
    %v8436 = vshrl.u32 %v8435, 7
    %v8437 = vsub.s32 %v7433, %v8436
    %v8438 = vrot.slane %v7106, %v8437
    %v8439 = vlaneseq
    %v8440 = vshrl.u32 %v8439, 7
    %v8441 = vsub.s32 %v7433, %v8440
    %v8442 = vrot.slane %v7107, %v8441
    %v8443 = vlaneseq
    %v8444 = vshrl.u32 %v8443, 7
    %v8445 = vsub.s32 %v7433, %v8444
    %v8446 = vrot.slane %v7108, %v8445
    %v8447 = vlaneseq
    %v8448 = vshrl.u32 %v8447, 7
    %v8449 = vsub.s32 %v7433, %v8448
    %v8450 = vrot.slane %v7109, %v8449
    %v8451 = vlaneseq
    %v8452 = vshrl.u32 %v8451, 7
    %v8453 = vsub.s32 %v7433, %v8452
    %v8454 = vrot.slane %v7110, %v8453
    %v8455 = vlaneseq
    %v8456 = vshrl.u32 %v8455, 7
    %v8457 = vsub.s32 %v7433, %v8456
    %v8458 = vrot.slane %v7111, %v8457
    %v8459 = vlaneseq
    %v8460 = vshrl.u32 %v8459, 7
    %v8461 = vsub.s32 %v7433, %v8460
    %v8462 = vrot.slane %v7112, %v8461
    %v8463 = vlaneseq
    %v8464 = vshrl.u32 %v8463, 7
    %v8465 = vsub.s32 %v7433, %v8464
    %v8466 = vrot.slane %v7113, %v8465
    %v8467 = vlaneseq
    %v8468 = vshrl.u32 %v8467, 7
    %v8469 = vsub.s32 %v7433, %v8468
    %v8470 = vrot.slane %v7114, %v8469
    %v8471 = vlaneseq
    %v8472 = vshrl.u32 %v8471, 7
    %v8473 = vsub.s32 %v7433, %v8472
    %v8474 = vrot.slane %v7115, %v8473
    %v8475 = vlaneseq
    %v8476 = vshrl.u32 %v8475, 7
    %v8477 = vsub.s32 %v7433, %v8476
    %v8478 = vrot.slane %v7116, %v8477
    %v8479 = vlaneseq
    %v8480 = vshrl.u32 %v8479, 7
    %v8481 = vsub.s32 %v7433, %v8480
    %v8482 = vrot.slane %v7117, %v8481
    %v8483 = vlaneseq
    %v8484 = vshrl.u32 %v8483, 7
    %v8485 = vsub.s32 %v7433, %v8484
    %v8486 = vrot.slane %v7118, %v8485
    %v8487 = vlaneseq
    %v8488 = vshrl.u32 %v8487, 7
    %v8489 = vsub.s32 %v7433, %v8488
    %v8490 = vrot.slane %v7119, %v8489
    %v8491 = vlaneseq
    %v8492 = vshrl.u32 %v8491, 7
    %v8493 = vsub.s32 %v7433, %v8492
    %v8494 = vrot.slane %v7120, %v8493
    %v8495 = vlaneseq
    %v8496 = vshrl.u32 %v8495, 7
    %v8497 = vsub.s32 %v7433, %v8496
    %v8498 = vrot.slane %v7121, %v8497
    %v8499 = vlaneseq
    %v8500 = vshrl.u32 %v8499, 7
    %v8501 = vsub.s32 %v7433, %v8500
    %v8502 = vrot.slane %v7122, %v8501
    %v8503 = vlaneseq
    %v8504 = vshrl.u32 %v8503, 7
    %v8505 = vsub.s32 %v7433, %v8504
    %v8506 = vrot.slane %v7123, %v8505
    %v8507 = vlaneseq
    %v8508 = vshrl.u32 %v8507, 7
    %v8509 = vsub.s32 %v7433, %v8508
    %v8510 = vrot.slane %v7124, %v8509
    %v8511 = vlaneseq
    %v8512 = vshrl.u32 %v8511, 7
    %v8513 = vsub.s32 %v7433, %v8512
    %v8514 = vrot.slane %v7125, %v8513
    %v8515 = vlaneseq
    %v8516 = vshrl.u32 %v8515, 7
    %v8517 = vsub.s32 %v7433, %v8516
    %v8518 = vrot.slane %v7126, %v8517
    %v8519 = vlaneseq
    %v8520 = vshrl.u32 %v8519, 7
    %v8521 = vsub.s32 %v7433, %v8520
    %v8522 = vrot.slane %v7127, %v8521
    %v8523 = vlaneseq
    %v8524 = vshrl.u32 %v8523, 7
    %v8525 = vsub.s32 %v7433, %v8524
    %v8526 = vrot.slane %v7128, %v8525
    %v8527 = vlaneseq
    %v8528 = vshrl.u32 %v8527, 7
    %v8529 = vsub.s32 %v7433, %v8528
    %v8530 = vrot.slane %v7129, %v8529
    %v8531 = vlaneseq
    %v8532 = vshrl.u32 %v8531, 7
    %v8533 = vsub.s32 %v7433, %v8532
    %v8534 = vrot.slane %v7130, %v8533
    %v8535 = vlaneseq
    %v8536 = vshrl.u32 %v8535, 7
    %v8537 = vsub.s32 %v7433, %v8536
    %v8538 = vrot.slane %v7131, %v8537
    %v8539 = vlaneseq
    %v8540 = vshrl.u32 %v8539, 7
    %v8541 = vsub.s32 %v7433, %v8540
    %v8542 = vrot.slane %v7132, %v8541
    %v8543 = vlaneseq
    %v8544 = vshrl.u32 %v8543, 7
    %v8545 = vsub.s32 %v7433, %v8544
    %v8546 = vrot.slane %v7133, %v8545
    %v8547 = vlaneseq
    %v8548 = vshrl.u32 %v8547, 7
    %v8549 = vsub.s32 %v7433, %v8548
    %v8550 = vrot.slane %v7134, %v8549
    %v8551 = vlaneseq
    %v8552 = vshrl.u32 %v8551, 7
    %v8553 = vsub.s32 %v7433, %v8552
    %v8554 = vrot.slane %v7135, %v8553
    %v8555 = vlaneseq
    %v8556 = vshrl.u32 %v8555, 7
    %v8557 = vsub.s32 %v7433, %v8556
    %v8558 = vrot.slane %v7136, %v8557
    %v8559 = vlaneseq
    %v8560 = vshrl.u32 %v8559, 7
    %v8561 = vsub.s32 %v7433, %v8560
    %v8562 = vrot.slane %v7137, %v8561
    %v8563 = vlaneseq
    %v8564 = vshrl.u32 %v8563, 7
    %v8565 = vsub.s32 %v7433, %v8564
    %v8566 = vrot.slane %v7138, %v8565
    %v8567 = vlaneseq
    %v8568 = vshrl.u32 %v8567, 7
    %v8569 = vsub.s32 %v7433, %v8568
    %v8570 = vrot.slane %v7139, %v8569
    %v8571 = vlaneseq
    %v8572 = vshrl.u32 %v8571, 7
    %v8573 = vsub.s32 %v7433, %v8572
    %v8574 = vrot.slane %v7140, %v8573
    %v8575 = vlaneseq
    %v8576 = vshrl.u32 %v8575, 7
    %v8577 = vsub.s32 %v7433, %v8576
    %v8578 = vrot.slane %v7141, %v8577
    %v8579 = vlaneseq
    %v8580 = vshrl.u32 %v8579, 7
    %v8581 = vsub.s32 %v7433, %v8580
    %v8582 = vrot.slane %v7142, %v8581
    %v8583 = vlaneseq
    %v8584 = vshrl.u32 %v8583, 7
    %v8585 = vsub.s32 %v7433, %v8584
    %v8586 = vrot.slane %v7143, %v8585
    %v8587 = vlaneseq
    %v8588 = vshrl.u32 %v8587, 7
    %v8589 = vsub.s32 %v7433, %v8588
    %v8590 = vrot.slane %v7144, %v8589
    %v8591 = vlaneseq
    %v8592 = vshrl.u32 %v8591, 7
    %v8593 = vsub.s32 %v7433, %v8592
    %v8594 = vrot.slane %v7145, %v8593
    %v8595 = vlaneseq
    %v8596 = vshrl.u32 %v8595, 7
    %v8597 = vsub.s32 %v7433, %v8596
    %v8598 = vrot.slane %v7146, %v8597
    %v8599 = vlaneseq
    %v8600 = vshrl.u32 %v8599, 7
    %v8601 = vsub.s32 %v7433, %v8600
    %v8602 = vrot.slane %v7147, %v8601
    %v8603 = vlaneseq
    %v8604 = vshrl.u32 %v8603, 7
    %v8605 = vsub.s32 %v7433, %v8604
    %v8606 = vrot.slane %v7148, %v8605
    %v8607 = vlaneseq
    %v8608 = vshrl.u32 %v8607, 7
    %v8609 = vsub.s32 %v7433, %v8608
    %v8610 = vrot.slane %v7149, %v8609
    %v8611 = vlaneseq
    %v8612 = vshrl.u32 %v8611, 7
    %v8613 = vsub.s32 %v7433, %v8612
    %v8614 = vrot.slane %v7150, %v8613
    %v8615 = vlaneseq
    %v8616 = vshrl.u32 %v8615, 7
    %v8617 = vsub.s32 %v7433, %v8616
    %v8618 = vrot.slane %v7151, %v8617
    %v8619 = vlaneseq
    %v8620 = vshrl.u32 %v8619, 7
    %v8621 = vsub.s32 %v7433, %v8620
    %v8622 = vrot.slane %v7152, %v8621
    %v8623 = vlaneseq
    %v8624 = vshrl.u32 %v8623, 7
    %v8625 = vsub.s32 %v7433, %v8624
    %v8626 = vrot.slane %v7153, %v8625
    %v8627 = vlaneseq
    %v8628 = vshrl.u32 %v8627, 7
    %v8629 = vsub.s32 %v7433, %v8628
    %v8630 = vrot.slane %v7154, %v8629
    %v8631 = vlaneseq
    %v8632 = vshrl.u32 %v8631, 7
    %v8633 = vsub.s32 %v7433, %v8632
    %v8634 = vrot.slane %v7155, %v8633
    %v8635 = vlaneseq
    %v8636 = vshrl.u32 %v8635, 7
    %v8637 = vsub.s32 %v7433, %v8636
    %v8638 = vrot.slane %v7156, %v8637
    %v8639 = vlaneseq
    %v8640 = vshrl.u32 %v8639, 7
    %v8641 = vsub.s32 %v7433, %v8640
    %v8642 = vrot.slane %v7157, %v8641
    %v8643 = vlaneseq
    %v8644 = vshrl.u32 %v8643, 7
    %v8645 = vsub.s32 %v7433, %v8644
    %v8646 = vrot.slane %v7158, %v8645
    %v8647 = vlaneseq
    %v8648 = vshrl.u32 %v8647, 7
    %v8649 = vsub.s32 %v7433, %v8648
    %v8650 = vrot.slane %v7159, %v8649
    %v8651 = vlaneseq
    %v8652 = vshrl.u32 %v8651, 7
    %v8653 = vsub.s32 %v7433, %v8652
    %v8654 = vrot.slane %v7160, %v8653
    %v8655 = vlaneseq
    %v8656 = vshrl.u32 %v8655, 7
    %v8657 = vsub.s32 %v7433, %v8656
    %v8658 = vrot.slane %v7161, %v8657
    %v8659 = vlaneseq
    %v8660 = vshrl.u32 %v8659, 7
    %v8661 = vsub.s32 %v7433, %v8660
    %v8662 = vrot.slane %v7162, %v8661
    %v8663 = vlaneseq
    %v8664 = vshrl.u32 %v8663, 7
    %v8665 = vsub.s32 %v7433, %v8664
    %v8666 = vrot.slane %v7163, %v8665
    %v8667 = vlaneseq
    %v8668 = vshrl.u32 %v8667, 7
    %v8669 = vsub.s32 %v7433, %v8668
    %v8670 = vrot.slane %v7164, %v8669
    %v8671 = vlaneseq
    %v8672 = vshrl.u32 %v8671, 7
    %v8673 = vsub.s32 %v7433, %v8672
    %v8674 = vrot.slane %v7165, %v8673
    %v8675 = vlaneseq
    %v8676 = vshrl.u32 %v8675, 7
    %v8677 = vsub.s32 %v7433, %v8676
    %v8678 = vrot.slane %v7166, %v8677
    %v8679 = vlaneseq
    %v8680 = vshrl.u32 %v8679, 7
    %v8681 = vsub.s32 %v7433, %v8680
    %v8682 = vrot.slane %v7167, %v8681
    %v8683 = vlaneseq
    %v8684 = vshrl.u32 %v8683, 7
    %v8685 = vsub.s32 %v7433, %v8684
    %v8686 = vrot.slane %v7168, %v8685
    %v8687 = vlaneseq
    %v8688 = vshrl.u32 %v8687, 7
    %v8689 = vsub.s32 %v7433, %v8688
    %v8690 = vrot.slane %v7169, %v8689
    %v8691 = vlaneseq
    %v8692 = vshrl.u32 %v8691, 7
    %v8693 = vsub.s32 %v7433, %v8692
    %v8694 = vrot.slane %v7170, %v8693
    %v8695 = vlaneseq
    %v8696 = vshrl.u32 %v8695, 7
    %v8697 = vsub.s32 %v7433, %v8696
    %v8698 = vrot.slane %v7171, %v8697
    %v8699 = vlaneseq
    %v8700 = vshrl.u32 %v8699, 7
    %v8701 = vsub.s32 %v7433, %v8700
    %v8702 = vrot.slane %v7172, %v8701
    %v8703 = vlaneseq
    %v8704 = vshrl.u32 %v8703, 7
    %v8705 = vsub.s32 %v7433, %v8704
    %v8706 = vrot.slane %v7173, %v8705
    %v8707 = vlaneseq
    %v8708 = vshrl.u32 %v8707, 7
    %v8709 = vsub.s32 %v7433, %v8708
    %v8710 = vrot.slane %v7174, %v8709
    %v8711 = vlaneseq
    %v8712 = vshrl.u32 %v8711, 7
    %v8713 = vsub.s32 %v7433, %v8712
    %v8714 = vrot.slane %v7175, %v8713
    %v8715 = vlaneseq
    %v8716 = vshrl.u32 %v8715, 7
    %v8717 = vsub.s32 %v7433, %v8716
    %v8718 = vrot.slane %v7176, %v8717
    %v8719 = vlaneseq
    %v8720 = vshrl.u32 %v8719, 7
    %v8721 = vsub.s32 %v7433, %v8720
    %v8722 = vrot.slane %v7177, %v8721
    %v8723 = vlaneseq
    %v8724 = vshrl.u32 %v8723, 7
    %v8725 = vsub.s32 %v7433, %v8724
    %v8726 = vrot.slane %v7178, %v8725
    %v8727 = vlaneseq
    %v8728 = vshrl.u32 %v8727, 7
    %v8729 = vsub.s32 %v7433, %v8728
    %v8730 = vrot.slane %v7179, %v8729
    %v8731 = vlaneseq
    %v8732 = vshrl.u32 %v8731, 7
    %v8733 = vsub.s32 %v7433, %v8732
    %v8734 = vrot.slane %v7180, %v8733
    %v8735 = vlaneseq
    %v8736 = vshrl.u32 %v8735, 7
    %v8737 = vsub.s32 %v7433, %v8736
    %v8738 = vrot.slane %v7181, %v8737
    %v8739 = vlaneseq
    %v8740 = vshrl.u32 %v8739, 7
    %v8741 = vsub.s32 %v7433, %v8740
    %v8742 = vrot.slane %v7182, %v8741
    %v8743 = vlaneseq
    %v8744 = vshrl.u32 %v8743, 7
    %v8745 = vsub.s32 %v7433, %v8744
    %v8746 = vrot.slane %v7183, %v8745
    %v8747 = vlaneseq
    %v8748 = vshrl.u32 %v8747, 7
    %v8749 = vsub.s32 %v7433, %v8748
    %v8750 = vrot.slane %v7184, %v8749
    %v8751 = vlaneseq
    %v8752 = vshrl.u32 %v8751, 7
    %v8753 = vsub.s32 %v7433, %v8752
    %v8754 = vrot.slane %v7185, %v8753
    %v8755 = vlaneseq
    %v8756 = vshrl.u32 %v8755, 7
    %v8757 = vsub.s32 %v7433, %v8756
    %v8758 = vrot.slane %v7186, %v8757
    %v8759 = vlaneseq
    %v8760 = vshrl.u32 %v8759, 7
    %v8761 = vsub.s32 %v7433, %v8760
    %v8762 = vrot.slane %v7187, %v8761
    %v8763 = vlaneseq
    %v8764 = vshrl.u32 %v8763, 7
    %v8765 = vsub.s32 %v7433, %v8764
    %v8766 = vrot.slane %v7188, %v8765
    %v8767 = vlaneseq
    %v8768 = vshrl.u32 %v8767, 7
    %v8769 = vsub.s32 %v7433, %v8768
    %v8770 = vrot.slane %v7189, %v8769
    %v8771 = vlaneseq
    %v8772 = vshrl.u32 %v8771, 7
    %v8773 = vsub.s32 %v7433, %v8772
    %v8774 = vrot.slane %v7190, %v8773
    %v8775 = vlaneseq
    %v8776 = vshrl.u32 %v8775, 7
    %v8777 = vsub.s32 %v7433, %v8776
    %v8778 = vrot.slane %v7191, %v8777
    %v8779 = vlaneseq
    %v8780 = vshrl.u32 %v8779, 7
    %v8781 = vsub.s32 %v7433, %v8780
    %v8782 = vrot.slane %v7192, %v8781
    %v8783 = vlaneseq
    %v8784 = vshrl.u32 %v8783, 7
    %v8785 = vsub.s32 %v7433, %v8784
    %v8786 = vrot.slane %v7193, %v8785
    %v8787 = vlaneseq
    %v8788 = vshrl.u32 %v8787, 7
    %v8789 = vsub.s32 %v7433, %v8788
    %v8790 = vrot.slane %v7194, %v8789
    %v8791 = vlaneseq
    %v8792 = vshrl.u32 %v8791, 7
    %v8793 = vsub.s32 %v7433, %v8792
    %v8794 = vrot.slane %v7195, %v8793
    %v8795 = vlaneseq
    %v8796 = vshrl.u32 %v8795, 7
    %v8797 = vsub.s32 %v7433, %v8796
    %v8798 = vrot.slane %v7196, %v8797
    %v8799 = vlaneseq
    %v8800 = vshrl.u32 %v8799, 7
    %v8801 = vsub.s32 %v7433, %v8800
    %v8802 = vrot.slane %v7197, %v8801
    %v8803 = vlaneseq
    %v8804 = vshrl.u32 %v8803, 7
    %v8805 = vsub.s32 %v7433, %v8804
    %v8806 = vrot.slane %v7198, %v8805
    %v8807 = vlaneseq
    %v8808 = vshrl.u32 %v8807, 7
    %v8809 = vsub.s32 %v7433, %v8808
    %v8810 = vrot.slane %v7199, %v8809
    %v8811 = vlaneseq
    %v8812 = vshrl.u32 %v8811, 7
    %v8813 = vsub.s32 %v7433, %v8812
    %v8814 = vrot.slane %v7200, %v8813
    %v8815 = vlaneseq
    %v8816 = vshrl.u32 %v8815, 7
    %v8817 = vsub.s32 %v7433, %v8816
    %v8818 = vrot.slane %v7201, %v8817
    %v8819 = vlaneseq
    %v8820 = vshrl.u32 %v8819, 7
    %v8821 = vsub.s32 %v7433, %v8820
    %v8822 = vrot.slane %v7202, %v8821
    %v8823 = vlaneseq
    %v8824 = vshrl.u32 %v8823, 7
    %v8825 = vsub.s32 %v7433, %v8824
    %v8826 = vrot.slane %v7203, %v8825
    %v8827 = vlaneseq
    %v8828 = vshrl.u32 %v8827, 7
    %v8829 = vsub.s32 %v7433, %v8828
    %v8830 = vrot.slane %v7204, %v8829
    %v8831 = vlaneseq
    %v8832 = vshrl.u32 %v8831, 7
    %v8833 = vsub.s32 %v7433, %v8832
    %v8834 = vrot.slane %v7205, %v8833
    %v8835 = vlaneseq
    %v8836 = vshrl.u32 %v8835, 7
    %v8837 = vsub.s32 %v7433, %v8836
    %v8838 = vrot.slane %v7206, %v8837
    %v8839 = vlaneseq
    %v8840 = vshrl.u32 %v8839, 7
    %v8841 = vsub.s32 %v7433, %v8840
    %v8842 = vrot.slane %v7207, %v8841
    %v8843 = vlaneseq
    %v8844 = vshrl.u32 %v8843, 7
    %v8845 = vsub.s32 %v7433, %v8844
    %v8846 = vrot.slane %v7208, %v8845
    %v8847 = vlaneseq
    %v8848 = vshrl.u32 %v8847, 7
    %v8849 = vsub.s32 %v7433, %v8848
    %v8850 = vrot.slane %v7209, %v8849
    %v8851 = vlaneseq
    %v8852 = vshrl.u32 %v8851, 7
    %v8853 = vsub.s32 %v7433, %v8852
    %v8854 = vrot.slane %v7210, %v8853
    %v8855 = vlaneseq
    %v8856 = vshrl.u32 %v8855, 7
    %v8857 = vsub.s32 %v7433, %v8856
    %v8858 = vrot.slane %v7211, %v8857
    %v8859 = vlaneseq
    %v8860 = vshrl.u32 %v8859, 7
    %v8861 = vsub.s32 %v7433, %v8860
    %v8862 = vrot.slane %v7212, %v8861
    %v8863 = vlaneseq
    %v8864 = vshrl.u32 %v8863, 7
    %v8865 = vsub.s32 %v7433, %v8864
    %v8866 = vrot.slane %v7213, %v8865
    %v8867 = vlaneseq
    %v8868 = vshrl.u32 %v8867, 7
    %v8869 = vsub.s32 %v7433, %v8868
    %v8870 = vrot.slane %v7214, %v8869
    %v8871 = vlaneseq
    %v8872 = vshrl.u32 %v8871, 7
    %v8873 = vsub.s32 %v7433, %v8872
    %v8874 = vrot.slane %v7215, %v8873
    %v8875 = vlaneseq
    %v8876 = vshrl.u32 %v8875, 7
    %v8877 = vsub.s32 %v7433, %v8876
    %v8878 = vrot.slane %v7216, %v8877
    %v8879 = vlaneseq
    %v8880 = vshrl.u32 %v8879, 7
    %v8881 = vsub.s32 %v7433, %v8880
    %v8882 = vrot.slane %v7217, %v8881
    %v8883 = vlaneseq
    %v8884 = vshrl.u32 %v8883, 7
    %v8885 = vsub.s32 %v7433, %v8884
    %v8886 = vrot.slane %v7218, %v8885
    %v8887 = vlaneseq
    %v8888 = vshrl.u32 %v8887, 7
    %v8889 = vsub.s32 %v7433, %v8888
    %v8890 = vrot.slane %v7219, %v8889
    %v8891 = vlaneseq
    %v8892 = vshrl.u32 %v8891, 7
    %v8893 = vsub.s32 %v7433, %v8892
    %v8894 = vrot.slane %v7220, %v8893
    %v8895 = vlaneseq
    %v8896 = vshrl.u32 %v8895, 7
    %v8897 = vsub.s32 %v7433, %v8896
    %v8898 = vrot.slane %v7221, %v8897
    %v8899 = vlaneseq
    %v8900 = vshrl.u32 %v8899, 7
    %v8901 = vsub.s32 %v7433, %v8900
    %v8902 = vrot.slane %v7222, %v8901
    %v8903 = vlaneseq
    %v8904 = vshrl.u32 %v8903, 7
    %v8905 = vsub.s32 %v7433, %v8904
    %v8906 = vrot.slane %v7223, %v8905
    %v8907 = vlaneseq
    %v8908 = vshrl.u32 %v8907, 7
    %v8909 = vsub.s32 %v7433, %v8908
    %v8910 = vrot.slane %v7224, %v8909
    %v8911 = vlaneseq
    %v8912 = vshrl.u32 %v8911, 7
    %v8913 = vsub.s32 %v7433, %v8912
    %v8914 = vrot.slane %v7225, %v8913
    %v8915 = vlaneseq
    %v8916 = vshrl.u32 %v8915, 7
    %v8917 = vsub.s32 %v7433, %v8916
    %v8918 = vrot.slane %v7226, %v8917
    %v8919 = vlaneseq
    %v8920 = vshrl.u32 %v8919, 7
    %v8921 = vsub.s32 %v7433, %v8920
    %v8922 = vrot.slane %v7227, %v8921
    %v8923 = vlaneseq
    %v8924 = vshrl.u32 %v8923, 7
    %v8925 = vsub.s32 %v7433, %v8924
    %v8926 = vrot.slane %v7228, %v8925
    %v8927 = vlaneseq
    %v8928 = vshrl.u32 %v8927, 7
    %v8929 = vsub.s32 %v7433, %v8928
    %v8930 = vrot.slane %v7229, %v8929
    %v8931 = vlaneseq
    %v8932 = vshrl.u32 %v8931, 7
    %v8933 = vsub.s32 %v7433, %v8932
    %v8934 = vrot.slane %v7230, %v8933
    %v8935 = vlaneseq
    %v8936 = vshrl.u32 %v8935, 7
    %v8937 = vsub.s32 %v7433, %v8936
    %v8938 = vrot.slane %v7231, %v8937
    %v8939 = vlaneseq
    %v8940 = vshrl.u32 %v8939, 7
    %v8941 = vsub.s32 %v7433, %v8940
    %v8942 = vrot.slane %v7232, %v8941
    %v8943 = vlaneseq
    %v8944 = vshrl.u32 %v8943, 7
    %v8945 = vsub.s32 %v7433, %v8944
    %v8946 = vrot.slane %v7233, %v8945
    %v8947 = vlaneseq
    %v8948 = vshrl.u32 %v8947, 7
    %v8949 = vsub.s32 %v7433, %v8948
    %v8950 = vrot.slane %v7234, %v8949
    %v8951 = vlaneseq
    %v8952 = vshrl.u32 %v8951, 7
    %v8953 = vsub.s32 %v7433, %v8952
    %v8954 = vrot.slane %v7235, %v8953
    %v8955 = vlaneseq
    %v8956 = vshrl.u32 %v8955, 7
    %v8957 = vsub.s32 %v7433, %v8956
    %v8958 = vrot.slane %v7236, %v8957
    %v8959 = vlaneseq
    %v8960 = vshrl.u32 %v8959, 7
    %v8961 = vsub.s32 %v7433, %v8960
    %v8962 = vrot.slane %v7237, %v8961
    %v8963 = vlaneseq
    %v8964 = vshrl.u32 %v8963, 7
    %v8965 = vsub.s32 %v7433, %v8964
    %v8966 = vrot.slane %v7238, %v8965
    %v8967 = vlaneseq
    %v8968 = vshrl.u32 %v8967, 7
    %v8969 = vsub.s32 %v7433, %v8968
    %v8970 = vrot.slane %v7239, %v8969
    %v8971 = vlaneseq
    %v8972 = vshrl.u32 %v8971, 7
    %v8973 = vsub.s32 %v7433, %v8972
    %v8974 = vrot.slane %v7240, %v8973
    %v8975 = vlaneseq
    %v8976 = vshrl.u32 %v8975, 7
    %v8977 = vsub.s32 %v7433, %v8976
    %v8978 = vrot.slane %v7241, %v8977
    %v8979 = vlaneseq
    %v8980 = vshrl.u32 %v8979, 7
    %v8981 = vsub.s32 %v7433, %v8980
    %v8982 = vrot.slane %v7242, %v8981
    %v8983 = vlaneseq
    %v8984 = vshrl.u32 %v8983, 7
    %v8985 = vsub.s32 %v7433, %v8984
    %v8986 = vrot.slane %v7243, %v8985
    %v8987 = vlaneseq
    %v8988 = vshrl.u32 %v8987, 7
    %v8989 = vsub.s32 %v7433, %v8988
    %v8990 = vrot.slane %v7244, %v8989
    %v8991 = vlaneseq
    %v8992 = vshrl.u32 %v8991, 7
    %v8993 = vsub.s32 %v7433, %v8992
    %v8994 = vrot.slane %v7245, %v8993
    %v8995 = vlaneseq
    %v8996 = vshrl.u32 %v8995, 7
    %v8997 = vsub.s32 %v7433, %v8996
    %v8998 = vrot.slane %v7246, %v8997
    %v8999 = vlaneseq
    %v9000 = vshrl.u32 %v8999, 7
    %v9001 = vsub.s32 %v7433, %v9000
    %v9002 = vrot.slane %v7247, %v9001
    %v9003 = vlaneseq
    %v9004 = vshrl.u32 %v9003, 7
    %v9005 = vsub.s32 %v7433, %v9004
    %v9006 = vrot.slane %v7248, %v9005
    %v9007 = vlaneseq
    %v9008 = vshrl.u32 %v9007, 7
    %v9009 = vsub.s32 %v7433, %v9008
    %v9010 = vrot.slane %v7249, %v9009
    %v9011 = vlaneseq
    %v9012 = vshrl.u32 %v9011, 7
    %v9013 = vsub.s32 %v7433, %v9012
    %v9014 = vrot.slane %v7250, %v9013
    %v9015 = vlaneseq
    %v9016 = vshrl.u32 %v9015, 7
    %v9017 = vsub.s32 %v7433, %v9016
    %v9018 = vrot.slane %v7251, %v9017
    %v9019 = vlaneseq
    %v9020 = vshrl.u32 %v9019, 7
    %v9021 = vsub.s32 %v7433, %v9020
    %v9022 = vrot.slane %v7252, %v9021
    %v9023 = vlaneseq
    %v9024 = vshrl.u32 %v9023, 7
    %v9025 = vsub.s32 %v7433, %v9024
    %v9026 = vrot.slane %v7253, %v9025
    %v9027 = vlaneseq
    %v9028 = vshrl.u32 %v9027, 7
    %v9029 = vsub.s32 %v7433, %v9028
    %v9030 = vrot.slane %v7254, %v9029
    %v9031 = vlaneseq
    %v9032 = vshrl.u32 %v9031, 7
    %v9033 = vsub.s32 %v7433, %v9032
    %v9034 = vrot.slane %v7255, %v9033
    %v9035 = vlaneseq
    %v9036 = vshrl.u32 %v9035, 7
    %v9037 = vsub.s32 %v7433, %v9036
    %v9038 = vrot.slane %v7256, %v9037
    %v9039 = vlaneseq
    %v9040 = vshrl.u32 %v9039, 7
    %v9041 = vsub.s32 %v7433, %v9040
    %v9042 = vrot.slane %v7257, %v9041
    %v9043 = vlaneseq
    %v9044 = vshrl.u32 %v9043, 7
    %v9045 = vsub.s32 %v7433, %v9044
    %v9046 = vrot.slane %v7258, %v9045
    %v9047 = vlaneseq
    %v9048 = vshrl.u32 %v9047, 7
    %v9049 = vsub.s32 %v7433, %v9048
    %v9050 = vrot.slane %v7259, %v9049
    %v9051 = vlaneseq
    %v9052 = vshrl.u32 %v9051, 7
    %v9053 = vsub.s32 %v7433, %v9052
    %v9054 = vrot.slane %v7260, %v9053
    %v9055 = vlaneseq
    %v9056 = vshrl.u32 %v9055, 7
    %v9057 = vsub.s32 %v7433, %v9056
    %v9058 = vrot.slane %v7261, %v9057
    %v9059 = vlaneseq
    %v9060 = vshrl.u32 %v9059, 7
    %v9061 = vsub.s32 %v7433, %v9060
    %v9062 = vrot.slane %v7262, %v9061
    %v9063 = vlaneseq
    %v9064 = vshrl.u32 %v9063, 7
    %v9065 = vsub.s32 %v7433, %v9064
    %v9066 = vrot.slane %v7263, %v9065
    %v9067 = vlaneseq
    %v9068 = vshrl.u32 %v9067, 7
    %v9069 = vsub.s32 %v7433, %v9068
    %v9070 = vrot.slane %v7264, %v9069
    %v9071 = vlaneseq
    %v9072 = vshrl.u32 %v9071, 7
    %v9073 = vsub.s32 %v7433, %v9072
    %v9074 = vrot.slane %v7265, %v9073
    %v9075 = vlaneseq
    %v9076 = vshrl.u32 %v9075, 7
    %v9077 = vsub.s32 %v7433, %v9076
    %v9078 = vrot.slane %v7266, %v9077
    %v9079 = vlaneseq
    %v9080 = vshrl.u32 %v9079, 7
    %v9081 = vsub.s32 %v7433, %v9080
    %v9082 = vrot.slane %v7267, %v9081
    %v9083 = vlaneseq
    %v9084 = vshrl.u32 %v9083, 7
    %v9085 = vsub.s32 %v7433, %v9084
    %v9086 = vrot.slane %v7268, %v9085
    %v9087 = vlaneseq
    %v9088 = vshrl.u32 %v9087, 7
    %v9089 = vsub.s32 %v7433, %v9088
    %v9090 = vrot.slane %v7269, %v9089
    %v9091 = vlaneseq
    %v9092 = vshrl.u32 %v9091, 7
    %v9093 = vsub.s32 %v7433, %v9092
    %v9094 = vrot.slane %v7270, %v9093
    %v9095 = vlaneseq
    %v9096 = vshrl.u32 %v9095, 7
    %v9097 = vsub.s32 %v7433, %v9096
    %v9098 = vrot.slane %v7271, %v9097
    %v9099 = vlaneseq
    %v9100 = vshrl.u32 %v9099, 7
    %v9101 = vsub.s32 %v7433, %v9100
    %v9102 = vrot.slane %v7272, %v9101
    %v9103 = vlaneseq
    %v9104 = vshrl.u32 %v9103, 7
    %v9105 = vsub.s32 %v7433, %v9104
    %v9106 = vrot.slane %v7273, %v9105
    %v9107 = vlaneseq
    %v9108 = vshrl.u32 %v9107, 7
    %v9109 = vsub.s32 %v7433, %v9108
    %v9110 = vrot.slane %v7274, %v9109
    %v9111 = vlaneseq
    %v9112 = vshrl.u32 %v9111, 7
    %v9113 = vsub.s32 %v7433, %v9112
    %v9114 = vrot.slane %v7275, %v9113
    %v9115 = vlaneseq
    %v9116 = vshrl.u32 %v9115, 7
    %v9117 = vsub.s32 %v7433, %v9116
    %v9118 = vrot.slane %v7276, %v9117
    %v9119 = vlaneseq
    %v9120 = vshrl.u32 %v9119, 7
    %v9121 = vsub.s32 %v7433, %v9120
    %v9122 = vrot.slane %v7277, %v9121
    %v9123 = vlaneseq
    %v9124 = vshrl.u32 %v9123, 7
    %v9125 = vsub.s32 %v7433, %v9124
    %v9126 = vrot.slane %v7278, %v9125
    %v9127 = vlaneseq
    %v9128 = vshrl.u32 %v9127, 7
    %v9129 = vsub.s32 %v7433, %v9128
    %v9130 = vrot.slane %v7279, %v9129
    %v9131 = vlaneseq
    %v9132 = vshrl.u32 %v9131, 7
    %v9133 = vsub.s32 %v7433, %v9132
    %v9134 = vrot.slane %v7280, %v9133
    %v9135 = vlaneseq
    %v9136 = vshrl.u32 %v9135, 7
    %v9137 = vsub.s32 %v7433, %v9136
    %v9138 = vrot.slane %v7281, %v9137
    %v9139 = vlaneseq
    %v9140 = vshrl.u32 %v9139, 7
    %v9141 = vsub.s32 %v7433, %v9140
    %v9142 = vrot.slane %v7282, %v9141
    %v9143 = vlaneseq
    %v9144 = vshrl.u32 %v9143, 7
    %v9145 = vsub.s32 %v7433, %v9144
    %v9146 = vrot.slane %v7283, %v9145
    %v9147 = vlaneseq
    %v9148 = vshrl.u32 %v9147, 7
    %v9149 = vsub.s32 %v7433, %v9148
    %v9150 = vrot.slane %v7284, %v9149
    %v9151 = vlaneseq
    %v9152 = vshrl.u32 %v9151, 7
    %v9153 = vsub.s32 %v7433, %v9152
    %v9154 = vrot.slane %v7285, %v9153
    %v9155 = vlaneseq
    %v9156 = vshrl.u32 %v9155, 7
    %v9157 = vsub.s32 %v7433, %v9156
    %v9158 = vrot.slane %v7286, %v9157
    %v9159 = vlaneseq
    %v9160 = vshrl.u32 %v9159, 7
    %v9161 = vsub.s32 %v7433, %v9160
    %v9162 = vrot.slane %v7287, %v9161
    %v9163 = vlaneseq
    %v9164 = vshrl.u32 %v9163, 7
    %v9165 = vsub.s32 %v7433, %v9164
    %v9166 = vrot.slane %v7288, %v9165
    %v9167 = vlaneseq
    %v9168 = vshrl.u32 %v9167, 7
    %v9169 = vsub.s32 %v7433, %v9168
    %v9170 = vrot.slane %v7289, %v9169
    %v9171 = vlaneseq
    %v9172 = vshrl.u32 %v9171, 7
    %v9173 = vsub.s32 %v7433, %v9172
    %v9174 = vrot.slane %v7290, %v9173
    %v9175 = vlaneseq
    %v9176 = vshrl.u32 %v9175, 7
    %v9177 = vsub.s32 %v7433, %v9176
    %v9178 = vrot.slane %v7291, %v9177
    %v9179 = vlaneseq
    %v9180 = vshrl.u32 %v9179, 7
    %v9181 = vsub.s32 %v7433, %v9180
    %v9182 = vrot.slane %v7292, %v9181
    %v9183 = vlaneseq
    %v9184 = vshrl.u32 %v9183, 7
    %v9185 = vsub.s32 %v7433, %v9184
    %v9186 = vrot.slane %v7293, %v9185
    %v9187 = vlaneseq
    %v9188 = vshrl.u32 %v9187, 7
    %v9189 = vsub.s32 %v7433, %v9188
    %v9190 = vrot.slane %v7294, %v9189
    %v9191 = vlaneseq
    %v9192 = vshrl.u32 %v9191, 7
    %v9193 = vsub.s32 %v7433, %v9192
    %v9194 = vrot.slane %v7295, %v9193
    %v9195 = vlaneseq
    %v9196 = vshrl.u32 %v9195, 7
    %v9197 = vsub.s32 %v7433, %v9196
    %v9198 = vrot.slane %v7296, %v9197
    %v9199 = vlaneseq
    %v9200 = vshrl.u32 %v9199, 7
    %v9201 = vsub.s32 %v7433, %v9200
    %v9202 = vrot.slane %v7297, %v9201
    %v9203 = vlaneseq
    %v9204 = vshrl.u32 %v9203, 7
    %v9205 = vsub.s32 %v7433, %v9204
    %v9206 = vrot.slane %v7298, %v9205
    %v9207 = vlaneseq
    %v9208 = vshrl.u32 %v9207, 7
    %v9209 = vsub.s32 %v7433, %v9208
    %v9210 = vrot.slane %v7299, %v9209
    %v9211 = vlaneseq
    %v9212 = vshrl.u32 %v9211, 7
    %v9213 = vsub.s32 %v7433, %v9212
    %v9214 = vrot.slane %v7300, %v9213
    %v9215 = vlaneseq
    %v9216 = vshrl.u32 %v9215, 7
    %v9217 = vsub.s32 %v7433, %v9216
    %v9218 = vrot.slane %v7301, %v9217
    %v9219 = vlaneseq
    %v9220 = vshrl.u32 %v9219, 7
    %v9221 = vsub.s32 %v7433, %v9220
    %v9222 = vrot.slane %v7302, %v9221
    %v9223 = vlaneseq
    %v9224 = vshrl.u32 %v9223, 7
    %v9225 = vsub.s32 %v7433, %v9224
    %v9226 = vrot.slane %v7303, %v9225
    %v9227 = vlaneseq
    %v9228 = vshrl.u32 %v9227, 7
    %v9229 = vsub.s32 %v7433, %v9228
    %v9230 = vrot.slane %v7304, %v9229
    %v9231 = vlaneseq
    %v9232 = vshrl.u32 %v9231, 7
    %v9233 = vsub.s32 %v7433, %v9232
    %v9234 = vrot.slane %v7305, %v9233
    %v9235 = vlaneseq
    %v9236 = vshrl.u32 %v9235, 7
    %v9237 = vsub.s32 %v7433, %v9236
    %v9238 = vrot.slane %v7306, %v9237
    %v9239 = vlaneseq
    %v9240 = vshrl.u32 %v9239, 7
    %v9241 = vsub.s32 %v7433, %v9240
    %v9242 = vrot.slane %v7307, %v9241
    %v9243 = vlaneseq
    %v9244 = vshrl.u32 %v9243, 7
    %v9245 = vsub.s32 %v7433, %v9244
    %v9246 = vrot.slane %v7308, %v9245
    %v9247 = vlaneseq
    %v9248 = vshrl.u32 %v9247, 7
    %v9249 = vsub.s32 %v7433, %v9248
    %v9250 = vrot.slane %v7309, %v9249
    %v9251 = vlaneseq
    %v9252 = vshrl.u32 %v9251, 7
    %v9253 = vsub.s32 %v7433, %v9252
    %v9254 = vrot.slane %v7310, %v9253
    %v9255 = vlaneseq
    %v9256 = vshrl.u32 %v9255, 7
    %v9257 = vsub.s32 %v7433, %v9256
    %v9258 = vrot.slane %v7311, %v9257
    %v9259 = vlaneseq
    %v9260 = vshrl.u32 %v9259, 7
    %v9261 = vsub.s32 %v7433, %v9260
    %v9262 = vrot.slane %v7312, %v9261
    %v9263 = vlaneseq
    %v9264 = vshrl.u32 %v9263, 7
    %v9265 = vsub.s32 %v7433, %v9264
    %v9266 = vrot.slane %v7313, %v9265
    %v9267 = vlaneseq
    %v9268 = vshrl.u32 %v9267, 7
    %v9269 = vsub.s32 %v7433, %v9268
    %v9270 = vrot.slane %v7314, %v9269
    %v9271 = vlaneseq
    %v9272 = vshrl.u32 %v9271, 7
    %v9273 = vsub.s32 %v7433, %v9272
    %v9274 = vrot.slane %v7315, %v9273
    %v9275 = vlaneseq
    %v9276 = vshrl.u32 %v9275, 7
    %v9277 = vsub.s32 %v7433, %v9276
    %v9278 = vrot.slane %v7316, %v9277
    %v9279 = vlaneseq
    %v9280 = vshrl.u32 %v9279, 7
    %v9281 = vsub.s32 %v7433, %v9280
    %v9282 = vrot.slane %v7317, %v9281
    %v9283 = vlaneseq
    %v9284 = vshrl.u32 %v9283, 7
    %v9285 = vsub.s32 %v7433, %v9284
    %v9286 = vrot.slane %v7318, %v9285
    %v9287 = vlaneseq
    %v9288 = vshrl.u32 %v9287, 7
    %v9289 = vsub.s32 %v7433, %v9288
    %v9290 = vrot.slane %v7319, %v9289
    %v9291 = vlaneseq
    %v9292 = vshrl.u32 %v9291, 7
    %v9293 = vsub.s32 %v7433, %v9292
    %v9294 = vrot.slane %v7320, %v9293
    %v9295 = vlaneseq
    %v9296 = vshrl.u32 %v9295, 7
    %v9297 = vsub.s32 %v7433, %v9296
    %v9298 = vrot.slane %v7321, %v9297
    %v9299 = vlaneseq
    %v9300 = vshrl.u32 %v9299, 7
    %v9301 = vsub.s32 %v7433, %v9300
    %v9302 = vrot.slane %v7322, %v9301
    %v9303 = vlaneseq
    %v9304 = vshrl.u32 %v9303, 7
    %v9305 = vsub.s32 %v7433, %v9304
    %v9306 = vrot.slane %v7323, %v9305
    %v9307 = vlaneseq
    %v9308 = vshrl.u32 %v9307, 7
    %v9309 = vsub.s32 %v7433, %v9308
    %v9310 = vrot.slane %v7324, %v9309
    %v9311 = vlaneseq
    %v9312 = vshrl.u32 %v9311, 7
    %v9313 = vsub.s32 %v7433, %v9312
    %v9314 = vrot.slane %v7325, %v9313
    %v9315 = vlaneseq
    %v9316 = vshrl.u32 %v9315, 7
    %v9317 = vsub.s32 %v7433, %v9316
    %v9318 = vrot.slane %v7326, %v9317
    %v9319 = vlaneseq
    %v9320 = vshrl.u32 %v9319, 7
    %v9321 = vsub.s32 %v7433, %v9320
    %v9322 = vrot.slane %v7327, %v9321
    %v9323 = vlaneseq
    %v9324 = vshrl.u32 %v9323, 7
    %v9325 = vsub.s32 %v7433, %v9324
    %v9326 = vrot.slane %v7328, %v9325
    %v9327 = vlaneseq
    %v9328 = vshrl.u32 %v9327, 7
    %v9329 = vsub.s32 %v7433, %v9328
    %v9330 = vrot.slane %v7329, %v9329
    %v9331 = vlaneseq
    %v9332 = vshrl.u32 %v9331, 7
    %v9333 = vsub.s32 %v7433, %v9332
    %v9334 = vrot.slane %v7330, %v9333
    %v9335 = vlaneseq
    %v9336 = vshrl.u32 %v9335, 7
    %v9337 = vsub.s32 %v7433, %v9336
    %v9338 = vrot.slane %v7331, %v9337
    %v9339 = vlaneseq
    %v9340 = vshrl.u32 %v9339, 7
    %v9341 = vsub.s32 %v7433, %v9340
    %v9342 = vrot.slane %v7332, %v9341
    %v9343 = vlaneseq
    %v9344 = vshrl.u32 %v9343, 7
    %v9345 = vsub.s32 %v7433, %v9344
    %v9346 = vrot.slane %v7333, %v9345
    %v9347 = vlaneseq
    %v9348 = vshrl.u32 %v9347, 7
    %v9349 = vsub.s32 %v7433, %v9348
    %v9350 = vrot.slane %v7334, %v9349
    %v9351 = vlaneseq
    %v9352 = vshrl.u32 %v9351, 7
    %v9353 = vsub.s32 %v7433, %v9352
    %v9354 = vrot.slane %v7335, %v9353
    %v9355 = vlaneseq
    %v9356 = vshrl.u32 %v9355, 7
    %v9357 = vsub.s32 %v7433, %v9356
    %v9358 = vrot.slane %v7336, %v9357
    %v9359 = vlaneseq
    %v9360 = vshrl.u32 %v9359, 7
    %v9361 = vsub.s32 %v7433, %v9360
    %v9362 = vrot.slane %v7337, %v9361
    %v9363 = vlaneseq
    %v9364 = vshrl.u32 %v9363, 7
    %v9365 = vsub.s32 %v7433, %v9364
    %v9366 = vrot.slane %v7338, %v9365
    %v9367 = vlaneseq
    %v9368 = vshrl.u32 %v9367, 7
    %v9369 = vsub.s32 %v7433, %v9368
    %v9370 = vrot.slane %v7339, %v9369
    %v9371 = vlaneseq
    %v9372 = vshrl.u32 %v9371, 7
    %v9373 = vsub.s32 %v7433, %v9372
    %v9374 = vrot.slane %v7340, %v9373
    %v9375 = vlaneseq
    %v9376 = vshrl.u32 %v9375, 7
    %v9377 = vsub.s32 %v7433, %v9376
    %v9378 = vrot.slane %v7341, %v9377
    %v9379 = vlaneseq
    %v9380 = vshrl.u32 %v9379, 7
    %v9381 = vsub.s32 %v7433, %v9380
    %v9382 = vrot.slane %v7342, %v9381
    %v9383 = vlaneseq
    %v9384 = vshrl.u32 %v9383, 7
    %v9385 = vsub.s32 %v7433, %v9384
    %v9386 = vrot.slane %v7343, %v9385
    %v9387 = vlaneseq
    %v9388 = vshrl.u32 %v9387, 7
    %v9389 = vsub.s32 %v7433, %v9388
    %v9390 = vrot.slane %v7344, %v9389
    %v9391 = vlaneseq
    %v9392 = vshrl.u32 %v9391, 7
    %v9393 = vsub.s32 %v7433, %v9392
    %v9394 = vrot.slane %v7345, %v9393
    %v9395 = vlaneseq
    %v9396 = vshrl.u32 %v9395, 7
    %v9397 = vsub.s32 %v7433, %v9396
    %v9398 = vrot.slane %v7346, %v9397
    %v9399 = vlaneseq
    %v9400 = vshrl.u32 %v9399, 7
    %v9401 = vsub.s32 %v7433, %v9400
    %v9402 = vrot.slane %v7347, %v9401
    %v9403 = vlaneseq
    %v9404 = vshrl.u32 %v9403, 7
    %v9405 = vsub.s32 %v7433, %v9404
    %v9406 = vrot.slane %v7348, %v9405
    %v9407 = vlaneseq
    %v9408 = vshrl.u32 %v9407, 7
    %v9409 = vsub.s32 %v7433, %v9408
    %v9410 = vrot.slane %v7349, %v9409
    %v9411 = vlaneseq
    %v9412 = vshrl.u32 %v9411, 7
    %v9413 = vsub.s32 %v7433, %v9412
    %v9414 = vrot.slane %v7350, %v9413
    %v9415 = vlaneseq
    %v9416 = vshrl.u32 %v9415, 7
    %v9417 = vsub.s32 %v7433, %v9416
    %v9418 = vrot.slane %v7351, %v9417
    %v9419 = vlaneseq
    %v9420 = vshrl.u32 %v9419, 7
    %v9421 = vsub.s32 %v7433, %v9420
    %v9422 = vrot.slane %v7352, %v9421
    %v9423 = vlaneseq
    %v9424 = vshrl.u32 %v9423, 7
    %v9425 = vsub.s32 %v7433, %v9424
    %v9426 = vrot.slane %v7353, %v9425
    %v9427 = vlaneseq
    %v9428 = vshrl.u32 %v9427, 7
    %v9429 = vsub.s32 %v7433, %v9428
    %v9430 = vrot.slane %v7354, %v9429
    %v9431 = vlaneseq
    %v9432 = vshrl.u32 %v9431, 7
    %v9433 = vsub.s32 %v7433, %v9432
    %v9434 = vrot.slane %v7355, %v9433
    %v9435 = vlaneseq
    %v9436 = vshrl.u32 %v9435, 7
    %v9437 = vsub.s32 %v7433, %v9436
    %v9438 = vrot.slane %v7356, %v9437
    %v9439 = vlaneseq
    %v9440 = vshrl.u32 %v9439, 7
    %v9441 = vsub.s32 %v7433, %v9440
    %v9442 = vrot.slane %v7357, %v9441
    %v9443 = vlaneseq
    %v9444 = vshrl.u32 %v9443, 7
    %v9445 = vsub.s32 %v7433, %v9444
    %v9446 = vrot.slane %v7358, %v9445
    %v9447 = vlaneseq
    %v9448 = vshrl.u32 %v9447, 7
    %v9449 = vsub.s32 %v7433, %v9448
    %v9450 = vrot.slane %v7359, %v9449
    %v9451 = vlaneseq
    %v9452 = vshrl.u32 %v9451, 7
    %v9453 = vsub.s32 %v7433, %v9452
    %v9454 = vrot.slane %v7360, %v9453
    %v9455 = vlaneseq
    %v9456 = vshrl.u32 %v9455, 7
    %v9457 = vsub.s32 %v7433, %v9456
    %v9458 = vrot.slane %v7361, %v9457
    %v9459 = vlaneseq
    %v9460 = vshrl.u32 %v9459, 7
    %v9461 = vsub.s32 %v7433, %v9460
    %v9462 = vrot.slane %v7362, %v9461
    %v9463 = vlaneseq
    %v9464 = vshrl.u32 %v9463, 7
    %v9465 = vsub.s32 %v7433, %v9464
    %v9466 = vrot.slane %v7363, %v9465
    %v9467 = vlaneseq
    %v9468 = vshrl.u32 %v9467, 7
    %v9469 = vsub.s32 %v7433, %v9468
    %v9470 = vrot.slane %v7364, %v9469
    %v9471 = vlaneseq
    %v9472 = vshrl.u32 %v9471, 7
    %v9473 = vsub.s32 %v7433, %v9472
    %v9474 = vrot.slane %v7365, %v9473
    %v9475 = vlaneseq
    %v9476 = vshrl.u32 %v9475, 7
    %v9477 = vsub.s32 %v7433, %v9476
    %v9478 = vrot.slane %v7366, %v9477
    %v9479 = vlaneseq
    %v9480 = vshrl.u32 %v9479, 7
    %v9481 = vsub.s32 %v7433, %v9480
    %v9482 = vrot.slane %v7367, %v9481
    %v9483 = vlaneseq
    %v9484 = vshrl.u32 %v9483, 7
    %v9485 = vsub.s32 %v7433, %v9484
    %v9486 = vrot.slane %v7368, %v9485
    %v9487 = vlaneseq
    %v9488 = vshrl.u32 %v9487, 7
    %v9489 = vsub.s32 %v7433, %v9488
    %v9490 = vrot.slane %v7369, %v9489
    %v9491 = vlaneseq
    %v9492 = vshrl.u32 %v9491, 7
    %v9493 = vsub.s32 %v7433, %v9492
    %v9494 = vrot.slane %v7370, %v9493
    %v9495 = vlaneseq
    %v9496 = vshrl.u32 %v9495, 7
    %v9497 = vsub.s32 %v7433, %v9496
    %v9498 = vrot.slane %v7371, %v9497
    %v9499 = vlaneseq
    %v9500 = vshrl.u32 %v9499, 7
    %v9501 = vsub.s32 %v7433, %v9500
    %v9502 = vrot.slane %v7372, %v9501
    %v9503 = vlaneseq
    %v9504 = vshrl.u32 %v9503, 7
    %v9505 = vsub.s32 %v7433, %v9504
    %v9506 = vrot.slane %v7373, %v9505
    %v9507 = vlaneseq
    %v9508 = vshrl.u32 %v9507, 7
    %v9509 = vsub.s32 %v7433, %v9508
    %v9510 = vrot.slane %v7374, %v9509
    %v9511 = vlaneseq
    %v9512 = vshrl.u32 %v9511, 7
    %v9513 = vsub.s32 %v7433, %v9512
    %v9514 = vrot.slane %v7375, %v9513
    %v9515 = vlaneseq
    %v9516 = vshrl.u32 %v9515, 7
    %v9517 = vsub.s32 %v7433, %v9516
    %v9518 = vrot.slane %v7376, %v9517
    %v9519 = vlaneseq
    %v9520 = vshrl.u32 %v9519, 7
    %v9521 = vsub.s32 %v7433, %v9520
    %v9522 = vrot.slane %v7377, %v9521
    %v9523 = vlaneseq
    %v9524 = vshrl.u32 %v9523, 7
    %v9525 = vsub.s32 %v7433, %v9524
    %v9526 = vrot.slane %v7378, %v9525
    %v9527 = vlaneseq
    %v9528 = vshrl.u32 %v9527, 7
    %v9529 = vsub.s32 %v7433, %v9528
    %v9530 = vrot.slane %v7379, %v9529
    %v9531 = vlaneseq
    %v9532 = vshrl.u32 %v9531, 7
    %v9533 = vsub.s32 %v7433, %v9532
    %v9534 = vrot.slane %v7380, %v9533
    %v9535 = vlaneseq
    %v9536 = vshrl.u32 %v9535, 7
    %v9537 = vsub.s32 %v7433, %v9536
    %v9538 = vrot.slane %v7381, %v9537
    %v9539 = vlaneseq
    %v9540 = vshrl.u32 %v9539, 7
    %v9541 = vsub.s32 %v7433, %v9540
    %v9542 = vrot.slane %v7382, %v9541
    %v9543 = vlaneseq
    %v9544 = vshrl.u32 %v9543, 7
    %v9545 = vsub.s32 %v7433, %v9544
    %v9546 = vrot.slane %v7383, %v9545
    %v9547 = vlaneseq
    %v9548 = vshrl.u32 %v9547, 7
    %v9549 = vsub.s32 %v7433, %v9548
    %v9550 = vrot.slane %v7384, %v9549
    %v9551 = vlaneseq
    %v9552 = vshrl.u32 %v9551, 7
    %v9553 = vsub.s32 %v7433, %v9552
    %v9554 = vrot.slane %v7385, %v9553
    %v9555 = vlaneseq
    %v9556 = vshrl.u32 %v9555, 7
    %v9557 = vsub.s32 %v7433, %v9556
    %v9558 = vrot.slane %v7386, %v9557
    %v9559 = vlaneseq
    %v9560 = vshrl.u32 %v9559, 7
    %v9561 = vsub.s32 %v7433, %v9560
    %v9562 = vrot.slane %v7387, %v9561
    %v9563 = vlaneseq
    %v9564 = vshrl.u32 %v9563, 7
    %v9565 = vsub.s32 %v7433, %v9564
    %v9566 = vrot.slane %v7388, %v9565
    %v9567 = vlaneseq
    %v9568 = vshrl.u32 %v9567, 7
    %v9569 = vsub.s32 %v7433, %v9568
    %v9570 = vrot.slane %v7389, %v9569
    %v9571 = vlaneseq
    %v9572 = vshrl.u32 %v9571, 7
    %v9573 = vsub.s32 %v7433, %v9572
    %v9574 = vrot.slane %v7390, %v9573
    %v9575 = vlaneseq
    %v9576 = vshrl.u32 %v9575, 7
    %v9577 = vsub.s32 %v7433, %v9576
    %v9578 = vrot.slane %v7391, %v9577
    %v9579 = vlaneseq
    %v9580 = vshrl.u32 %v9579, 7
    %v9581 = vsub.s32 %v7433, %v9580
    %v9582 = vrot.slane %v7392, %v9581
    %v9583 = vlaneseq
    %v9584 = vshrl.u32 %v9583, 7
    %v9585 = vsub.s32 %v7433, %v9584
    %v9586 = vrot.slane %v7393, %v9585
    %v9587 = vlaneseq
    %v9588 = vshrl.u32 %v9587, 7
    %v9589 = vsub.s32 %v7433, %v9588
    %v9590 = vrot.slane %v7394, %v9589
    %v9591 = vlaneseq
    %v9592 = vshrl.u32 %v9591, 7
    %v9593 = vsub.s32 %v7433, %v9592
    %v9594 = vrot.slane %v7395, %v9593
    %v9595 = vlaneseq
    %v9596 = vshrl.u32 %v9595, 7
    %v9597 = vsub.s32 %v7433, %v9596
    %v9598 = vrot.slane %v7396, %v9597
    %v9599 = vlaneseq
    %v9600 = vshrl.u32 %v9599, 7
    %v9601 = vsub.s32 %v7433, %v9600
    %v9602 = vrot.slane %v7397, %v9601
    %v9603 = vlaneseq
    %v9604 = vshrl.u32 %v9603, 7
    %v9605 = vsub.s32 %v7433, %v9604
    %v9606 = vrot.slane %v7398, %v9605
    %v9607 = vlaneseq
    %v9608 = vshrl.u32 %v9607, 7
    %v9609 = vsub.s32 %v7433, %v9608
    %v9610 = vrot.slane %v7399, %v9609
    %v9611 = vlaneseq
    %v9612 = vshrl.u32 %v9611, 7
    %v9613 = vsub.s32 %v7433, %v9612
    %v9614 = vrot.slane %v7400, %v9613
    %v9615 = vlaneseq
    %v9616 = vshrl.u32 %v9615, 7
    %v9617 = vsub.s32 %v7433, %v9616
    %v9618 = vrot.slane %v7401, %v9617
    %v9619 = vlaneseq
    %v9620 = vshrl.u32 %v9619, 7
    %v9621 = vsub.s32 %v7433, %v9620
    %v9622 = vrot.slane %v7402, %v9621
    %v9623 = vlaneseq
    %v9624 = vshrl.u32 %v9623, 7
    %v9625 = vsub.s32 %v7433, %v9624
    %v9626 = vrot.slane %v7403, %v9625
    %v9627 = vlaneseq
    %v9628 = vshrl.u32 %v9627, 7
    %v9629 = vsub.s32 %v7433, %v9628
    %v9630 = vrot.slane %v7404, %v9629
    %v9631 = vlaneseq
    %v9632 = vshrl.u32 %v9631, 7
    %v9633 = vsub.s32 %v7433, %v9632
    %v9634 = vrot.slane %v7405, %v9633
    %v9635 = vlaneseq
    %v9636 = vshrl.u32 %v9635, 7
    %v9637 = vsub.s32 %v7433, %v9636
    %v9638 = vrot.slane %v7406, %v9637
    %v9639 = vlaneseq
    %v9640 = vshrl.u32 %v9639, 7
    %v9641 = vsub.s32 %v7433, %v9640
    %v9642 = vrot.slane %v7407, %v9641
    %v9643 = vlaneseq
    %v9644 = vshrl.u32 %v9643, 7
    %v9645 = vsub.s32 %v7433, %v9644
    %v9646 = vrot.slane %v7408, %v9645
    %v9647 = vlaneseq
    %v9648 = vshrl.u32 %v9647, 7
    %v9649 = vsub.s32 %v7433, %v9648
    %v9650 = vrot.slane %v7409, %v9649
    %v9651 = vlaneseq
    %v9652 = vshrl.u32 %v9651, 7
    %v9653 = vsub.s32 %v7433, %v9652
    %v9654 = vrot.slane %v7410, %v9653
    %v9655 = vlaneseq
    %v9656 = vshrl.u32 %v9655, 7
    %v9657 = vsub.s32 %v7433, %v9656
    %v9658 = vrot.slane %v7411, %v9657
    %v9659 = vlaneseq
    %v9660 = vshrl.u32 %v9659, 7
    %v9661 = vsub.s32 %v7433, %v9660
    %v9662 = vrot.slane %v7412, %v9661
    %v9663 = vlaneseq
    %v9664 = vshrl.u32 %v9663, 7
    %v9665 = vsub.s32 %v7433, %v9664
    %v9666 = vrot.slane %v7413, %v9665
    %v9667 = vlaneseq
    %v9668 = vshrl.u32 %v9667, 7
    %v9669 = vsub.s32 %v7433, %v9668
    %v9670 = vrot.slane %v7414, %v9669
    %v9671 = vlaneseq
    %v9672 = vshrl.u32 %v9671, 7
    %v9673 = vsub.s32 %v7433, %v9672
    %v9674 = vrot.slane %v7415, %v9673
    %v9675 = vlaneseq
    %v9676 = vshrl.u32 %v9675, 7
    %v9677 = vsub.s32 %v7433, %v9676
    %v9678 = vrot.slane %v7416, %v9677
    %v9679 = vlaneseq
    %v9680 = vshrl.u32 %v9679, 7
    %v9681 = vsub.s32 %v7433, %v9680
    %v9682 = vrot.slane %v7417, %v9681
    %v9683 = vlaneseq
    %v9684 = vshrl.u32 %v9683, 7
    %v9685 = vsub.s32 %v7433, %v9684
    %v9686 = vrot.slane %v7418, %v9685
    %v9687 = vlaneseq
    %v9688 = vshrl.u32 %v9687, 7
    %v9689 = vsub.s32 %v7433, %v9688
    %v9690 = vrot.slane %v7419, %v9689
    %v9691 = vlaneseq
    %v9692 = vshrl.u32 %v9691, 7
    %v9693 = vsub.s32 %v7433, %v9692
    %v9694 = vrot.slane %v7420, %v9693
    %v9695 = vlaneseq
    %v9696 = vshrl.u32 %v9695, 7
    %v9697 = vsub.s32 %v7433, %v9696
    %v9698 = vrot.slane %v7421, %v9697
    %v9699 = vlaneseq
    %v9700 = vshrl.u32 %v9699, 7
    %v9701 = vsub.s32 %v7433, %v9700
    %v9702 = vrot.slane %v7422, %v9701
    %v9703 = vlaneseq
    %v9704 = vshrl.u32 %v9703, 7
    %v9705 = vsub.s32 %v7433, %v9704
    %v9706 = vrot.slane %v7423, %v9705
    %v9707 = vlaneseq
    %v9708 = vshrl.u32 %v9707, 7
    %v9709 = vsub.s32 %v7433, %v9708
    %v9710 = vrot.slane %v7424, %v9709
    %v9711 = vlaneseq
    %v9712 = vshrl.u32 %v9711, 7
    %v9713 = vsub.s32 %v7433, %v9712
    %v9714 = vrot.slane %v7425, %v9713
    %v9715 = vlaneseq
    %v9716 = vshrl.u32 %v9715, 7
    %v9717 = vsub.s32 %v7433, %v9716
    %v9718 = vrot.slane %v7426, %v9717
    %v9719 = vlaneseq
    %v9720 = vshrl.u32 %v9719, 7
    %v9721 = vsub.s32 %v7433, %v9720
    %v9722 = vrot.slane %v7427, %v9721
    %v9723 = vlaneseq
    %v9724 = vshrl.u32 %v9723, 7
    %v9725 = vsub.s32 %v7433, %v9724
    %v9726 = vrot.slane %v7428, %v9725
    %v9727 = vlaneseq
    %v9728 = vshrl.u32 %v9727, 7
    %v9729 = vsub.s32 %v7433, %v9728
    %v9730 = vrot.slane %v7429, %v9729
    %v9731 = vlaneseq
    %v9732 = vshrl.u32 %v9731, 7
    %v9733 = vsub.s32 %v7433, %v9732
    %v9734 = vrot.slane %v7430, %v9733
    %v9735 = vlaneseq
    %v9736 = vshrl.u32 %v9735, 7
    %v9737 = vsub.s32 %v7433, %v9736
    %v9738 = vrot.slane %v7431, %v9737
    %vm9739 = vcmask 1041409
    %v9740 = vsel %vm9739, %v8210, %v8206
    %vm9741 = vcmask 1042434
    %v9742 = vsel %vm9741, %v8214, %v9740
    %vm9743 = vcmask 1043459
    %v9744 = vsel %vm9743, %v8218, %v9742
    %vm9745 = vcmask 1044484
    %v9746 = vsel %vm9745, %v8222, %v9744
    %vm9747 = vcmask 1045509
    %v9748 = vsel %vm9747, %v8226, %v9746
    %vm9749 = vcmask 1046534
    %v9750 = vsel %vm9749, %v8230, %v9748
    %vm9751 = vcmask 1047559
    %v9752 = vsel %vm9751, %v8234, %v9750
    %v9753 = vsel %vm9739, %v8242, %v8238
    %v9754 = vsel %vm9741, %v8246, %v9753
    %v9755 = vsel %vm9743, %v8250, %v9754
    %v9756 = vsel %vm9745, %v8254, %v9755
    %v9757 = vsel %vm9747, %v8258, %v9756
    %v9758 = vsel %vm9749, %v8262, %v9757
    %v9759 = vsel %vm9751, %v8266, %v9758
    %v9760 = vsel %vm9739, %v8274, %v8270
    %v9761 = vsel %vm9741, %v8278, %v9760
    %v9762 = vsel %vm9743, %v8282, %v9761
    %v9763 = vsel %vm9745, %v8286, %v9762
    %v9764 = vsel %vm9747, %v8290, %v9763
    %v9765 = vsel %vm9749, %v8294, %v9764
    %v9766 = vsel %vm9751, %v8298, %v9765
    %v9767 = vsel %vm9739, %v8306, %v8302
    %v9768 = vsel %vm9741, %v8310, %v9767
    %v9769 = vsel %vm9743, %v8314, %v9768
    %v9770 = vsel %vm9745, %v8318, %v9769
    %v9771 = vsel %vm9747, %v8322, %v9770
    %v9772 = vsel %vm9749, %v8326, %v9771
    %v9773 = vsel %vm9751, %v8330, %v9772
    %v9774 = vsel %vm9739, %v8338, %v8334
    %v9775 = vsel %vm9741, %v8342, %v9774
    %v9776 = vsel %vm9743, %v8346, %v9775
    %v9777 = vsel %vm9745, %v8350, %v9776
    %v9778 = vsel %vm9747, %v8354, %v9777
    %v9779 = vsel %vm9749, %v8358, %v9778
    %v9780 = vsel %vm9751, %v8362, %v9779
    %v9781 = vsel %vm9739, %v8370, %v8366
    %v9782 = vsel %vm9741, %v8374, %v9781
    %v9783 = vsel %vm9743, %v8378, %v9782
    %v9784 = vsel %vm9745, %v8382, %v9783
    %v9785 = vsel %vm9747, %v8386, %v9784
    %v9786 = vsel %vm9749, %v8390, %v9785
    %v9787 = vsel %vm9751, %v8394, %v9786
    %v9788 = vsel %vm9739, %v8402, %v8398
    %v9789 = vsel %vm9741, %v8406, %v9788
    %v9790 = vsel %vm9743, %v8410, %v9789
    %v9791 = vsel %vm9745, %v8414, %v9790
    %v9792 = vsel %vm9747, %v8418, %v9791
    %v9793 = vsel %vm9749, %v8422, %v9792
    %v9794 = vsel %vm9751, %v8426, %v9793
    %v9795 = vsel %vm9739, %v8434, %v8430
    %v9796 = vsel %vm9741, %v8438, %v9795
    %v9797 = vsel %vm9743, %v8442, %v9796
    %v9798 = vsel %vm9745, %v8446, %v9797
    %v9799 = vsel %vm9747, %v8450, %v9798
    %v9800 = vsel %vm9749, %v8454, %v9799
    %v9801 = vsel %vm9751, %v8458, %v9800
    %v9802 = vsel %vm9739, %v8466, %v8462
    %v9803 = vsel %vm9741, %v8470, %v9802
    %v9804 = vsel %vm9743, %v8474, %v9803
    %v9805 = vsel %vm9745, %v8478, %v9804
    %v9806 = vsel %vm9747, %v8482, %v9805
    %v9807 = vsel %vm9749, %v8486, %v9806
    %v9808 = vsel %vm9751, %v8490, %v9807
    %v9809 = vsel %vm9739, %v8498, %v8494
    %v9810 = vsel %vm9741, %v8502, %v9809
    %v9811 = vsel %vm9743, %v8506, %v9810
    %v9812 = vsel %vm9745, %v8510, %v9811
    %v9813 = vsel %vm9747, %v8514, %v9812
    %v9814 = vsel %vm9749, %v8518, %v9813
    %v9815 = vsel %vm9751, %v8522, %v9814
    %v9816 = vsel %vm9739, %v8530, %v8526
    %v9817 = vsel %vm9741, %v8534, %v9816
    %v9818 = vsel %vm9743, %v8538, %v9817
    %v9819 = vsel %vm9745, %v8542, %v9818
    %v9820 = vsel %vm9747, %v8546, %v9819
    %v9821 = vsel %vm9749, %v8550, %v9820
    %v9822 = vsel %vm9751, %v8554, %v9821
    %v9823 = vsel %vm9739, %v8562, %v8558
    %v9824 = vsel %vm9741, %v8566, %v9823
    %v9825 = vsel %vm9743, %v8570, %v9824
    %v9826 = vsel %vm9745, %v8574, %v9825
    %v9827 = vsel %vm9747, %v8578, %v9826
    %v9828 = vsel %vm9749, %v8582, %v9827
    %v9829 = vsel %vm9751, %v8586, %v9828
    %v9830 = vsel %vm9739, %v8594, %v8590
    %v9831 = vsel %vm9741, %v8598, %v9830
    %v9832 = vsel %vm9743, %v8602, %v9831
    %v9833 = vsel %vm9745, %v8606, %v9832
    %v9834 = vsel %vm9747, %v8610, %v9833
    %v9835 = vsel %vm9749, %v8614, %v9834
    %v9836 = vsel %vm9751, %v8618, %v9835
    %v9837 = vsel %vm9739, %v8626, %v8622
    %v9838 = vsel %vm9741, %v8630, %v9837
    %v9839 = vsel %vm9743, %v8634, %v9838
    %v9840 = vsel %vm9745, %v8638, %v9839
    %v9841 = vsel %vm9747, %v8642, %v9840
    %v9842 = vsel %vm9749, %v8646, %v9841
    %v9843 = vsel %vm9751, %v8650, %v9842
    %v9844 = vsel %vm9739, %v8658, %v8654
    %v9845 = vsel %vm9741, %v8662, %v9844
    %v9846 = vsel %vm9743, %v8666, %v9845
    %v9847 = vsel %vm9745, %v8670, %v9846
    %v9848 = vsel %vm9747, %v8674, %v9847
    %v9849 = vsel %vm9749, %v8678, %v9848
    %v9850 = vsel %vm9751, %v8682, %v9849
    %v9851 = vsel %vm9739, %v8690, %v8686
    %v9852 = vsel %vm9741, %v8694, %v9851
    %v9853 = vsel %vm9743, %v8698, %v9852
    %v9854 = vsel %vm9745, %v8702, %v9853
    %v9855 = vsel %vm9747, %v8706, %v9854
    %v9856 = vsel %vm9749, %v8710, %v9855
    %v9857 = vsel %vm9751, %v8714, %v9856
    %v9858 = vsel %vm9739, %v8722, %v8718
    %v9859 = vsel %vm9741, %v8726, %v9858
    %v9860 = vsel %vm9743, %v8730, %v9859
    %v9861 = vsel %vm9745, %v8734, %v9860
    %v9862 = vsel %vm9747, %v8738, %v9861
    %v9863 = vsel %vm9749, %v8742, %v9862
    %v9864 = vsel %vm9751, %v8746, %v9863
    %v9865 = vsel %vm9739, %v8754, %v8750
    %v9866 = vsel %vm9741, %v8758, %v9865
    %v9867 = vsel %vm9743, %v8762, %v9866
    %v9868 = vsel %vm9745, %v8766, %v9867
    %v9869 = vsel %vm9747, %v8770, %v9868
    %v9870 = vsel %vm9749, %v8774, %v9869
    %v9871 = vsel %vm9751, %v8778, %v9870
    %v9872 = vsel %vm9739, %v8786, %v8782
    %v9873 = vsel %vm9741, %v8790, %v9872
    %v9874 = vsel %vm9743, %v8794, %v9873
    %v9875 = vsel %vm9745, %v8798, %v9874
    %v9876 = vsel %vm9747, %v8802, %v9875
    %v9877 = vsel %vm9749, %v8806, %v9876
    %v9878 = vsel %vm9751, %v8810, %v9877
    %v9879 = vsel %vm9739, %v8818, %v8814
    %v9880 = vsel %vm9741, %v8822, %v9879
    %v9881 = vsel %vm9743, %v8826, %v9880
    %v9882 = vsel %vm9745, %v8830, %v9881
    %v9883 = vsel %vm9747, %v8834, %v9882
    %v9884 = vsel %vm9749, %v8838, %v9883
    %v9885 = vsel %vm9751, %v8842, %v9884
    %v9886 = vsel %vm9739, %v8850, %v8846
    %v9887 = vsel %vm9741, %v8854, %v9886
    %v9888 = vsel %vm9743, %v8858, %v9887
    %v9889 = vsel %vm9745, %v8862, %v9888
    %v9890 = vsel %vm9747, %v8866, %v9889
    %v9891 = vsel %vm9749, %v8870, %v9890
    %v9892 = vsel %vm9751, %v8874, %v9891
    %v9893 = vsel %vm9739, %v8882, %v8878
    %v9894 = vsel %vm9741, %v8886, %v9893
    %v9895 = vsel %vm9743, %v8890, %v9894
    %v9896 = vsel %vm9745, %v8894, %v9895
    %v9897 = vsel %vm9747, %v8898, %v9896
    %v9898 = vsel %vm9749, %v8902, %v9897
    %v9899 = vsel %vm9751, %v8906, %v9898
    %v9900 = vsel %vm9739, %v8914, %v8910
    %v9901 = vsel %vm9741, %v8918, %v9900
    %v9902 = vsel %vm9743, %v8922, %v9901
    %v9903 = vsel %vm9745, %v8926, %v9902
    %v9904 = vsel %vm9747, %v8930, %v9903
    %v9905 = vsel %vm9749, %v8934, %v9904
    %v9906 = vsel %vm9751, %v8938, %v9905
    %v9907 = vsel %vm9739, %v8946, %v8942
    %v9908 = vsel %vm9741, %v8950, %v9907
    %v9909 = vsel %vm9743, %v8954, %v9908
    %v9910 = vsel %vm9745, %v8958, %v9909
    %v9911 = vsel %vm9747, %v8962, %v9910
    %v9912 = vsel %vm9749, %v8966, %v9911
    %v9913 = vsel %vm9751, %v8970, %v9912
    %v9914 = vsel %vm9739, %v8978, %v8974
    %v9915 = vsel %vm9741, %v8982, %v9914
    %v9916 = vsel %vm9743, %v8986, %v9915
    %v9917 = vsel %vm9745, %v8990, %v9916
    %v9918 = vsel %vm9747, %v8994, %v9917
    %v9919 = vsel %vm9749, %v8998, %v9918
    %v9920 = vsel %vm9751, %v9002, %v9919
    %v9921 = vsel %vm9739, %v9010, %v9006
    %v9922 = vsel %vm9741, %v9014, %v9921
    %v9923 = vsel %vm9743, %v9018, %v9922
    %v9924 = vsel %vm9745, %v9022, %v9923
    %v9925 = vsel %vm9747, %v9026, %v9924
    %v9926 = vsel %vm9749, %v9030, %v9925
    %v9927 = vsel %vm9751, %v9034, %v9926
    %v9928 = vsel %vm9739, %v9042, %v9038
    %v9929 = vsel %vm9741, %v9046, %v9928
    %v9930 = vsel %vm9743, %v9050, %v9929
    %v9931 = vsel %vm9745, %v9054, %v9930
    %v9932 = vsel %vm9747, %v9058, %v9931
    %v9933 = vsel %vm9749, %v9062, %v9932
    %v9934 = vsel %vm9751, %v9066, %v9933
    %v9935 = vsel %vm9739, %v9074, %v9070
    %v9936 = vsel %vm9741, %v9078, %v9935
    %v9937 = vsel %vm9743, %v9082, %v9936
    %v9938 = vsel %vm9745, %v9086, %v9937
    %v9939 = vsel %vm9747, %v9090, %v9938
    %v9940 = vsel %vm9749, %v9094, %v9939
    %v9941 = vsel %vm9751, %v9098, %v9940
    %v9942 = vsel %vm9739, %v9106, %v9102
    %v9943 = vsel %vm9741, %v9110, %v9942
    %v9944 = vsel %vm9743, %v9114, %v9943
    %v9945 = vsel %vm9745, %v9118, %v9944
    %v9946 = vsel %vm9747, %v9122, %v9945
    %v9947 = vsel %vm9749, %v9126, %v9946
    %v9948 = vsel %vm9751, %v9130, %v9947
    %v9949 = vsel %vm9739, %v9138, %v9134
    %v9950 = vsel %vm9741, %v9142, %v9949
    %v9951 = vsel %vm9743, %v9146, %v9950
    %v9952 = vsel %vm9745, %v9150, %v9951
    %v9953 = vsel %vm9747, %v9154, %v9952
    %v9954 = vsel %vm9749, %v9158, %v9953
    %v9955 = vsel %vm9751, %v9162, %v9954
    %v9956 = vsel %vm9739, %v9170, %v9166
    %v9957 = vsel %vm9741, %v9174, %v9956
    %v9958 = vsel %vm9743, %v9178, %v9957
    %v9959 = vsel %vm9745, %v9182, %v9958
    %v9960 = vsel %vm9747, %v9186, %v9959
    %v9961 = vsel %vm9749, %v9190, %v9960
    %v9962 = vsel %vm9751, %v9194, %v9961
    %v9963 = vsel %vm9739, %v9202, %v9198
    %v9964 = vsel %vm9741, %v9206, %v9963
    %v9965 = vsel %vm9743, %v9210, %v9964
    %v9966 = vsel %vm9745, %v9214, %v9965
    %v9967 = vsel %vm9747, %v9218, %v9966
    %v9968 = vsel %vm9749, %v9222, %v9967
    %v9969 = vsel %vm9751, %v9226, %v9968
    %v9970 = vsel %vm9739, %v9234, %v9230
    %v9971 = vsel %vm9741, %v9238, %v9970
    %v9972 = vsel %vm9743, %v9242, %v9971
    %v9973 = vsel %vm9745, %v9246, %v9972
    %v9974 = vsel %vm9747, %v9250, %v9973
    %v9975 = vsel %vm9749, %v9254, %v9974
    %v9976 = vsel %vm9751, %v9258, %v9975
    %v9977 = vsel %vm9739, %v9266, %v9262
    %v9978 = vsel %vm9741, %v9270, %v9977
    %v9979 = vsel %vm9743, %v9274, %v9978
    %v9980 = vsel %vm9745, %v9278, %v9979
    %v9981 = vsel %vm9747, %v9282, %v9980
    %v9982 = vsel %vm9749, %v9286, %v9981
    %v9983 = vsel %vm9751, %v9290, %v9982
    %v9984 = vsel %vm9739, %v9298, %v9294
    %v9985 = vsel %vm9741, %v9302, %v9984
    %v9986 = vsel %vm9743, %v9306, %v9985
    %v9987 = vsel %vm9745, %v9310, %v9986
    %v9988 = vsel %vm9747, %v9314, %v9987
    %v9989 = vsel %vm9749, %v9318, %v9988
    %v9990 = vsel %vm9751, %v9322, %v9989
    %v9991 = vsel %vm9739, %v9330, %v9326
    %v9992 = vsel %vm9741, %v9334, %v9991
    %v9993 = vsel %vm9743, %v9338, %v9992
    %v9994 = vsel %vm9745, %v9342, %v9993
    %v9995 = vsel %vm9747, %v9346, %v9994
    %v9996 = vsel %vm9749, %v9350, %v9995
    %v9997 = vsel %vm9751, %v9354, %v9996
    %v9998 = vsel %vm9739, %v9362, %v9358
    %v9999 = vsel %vm9741, %v9366, %v9998
    %v10000 = vsel %vm9743, %v9370, %v9999
    %v10001 = vsel %vm9745, %v9374, %v10000
    %v10002 = vsel %vm9747, %v9378, %v10001
    %v10003 = vsel %vm9749, %v9382, %v10002
    %v10004 = vsel %vm9751, %v9386, %v10003
    %v10005 = vsel %vm9739, %v9394, %v9390
    %v10006 = vsel %vm9741, %v9398, %v10005
    %v10007 = vsel %vm9743, %v9402, %v10006
    %v10008 = vsel %vm9745, %v9406, %v10007
    %v10009 = vsel %vm9747, %v9410, %v10008
    %v10010 = vsel %vm9749, %v9414, %v10009
    %v10011 = vsel %vm9751, %v9418, %v10010
    %v10012 = vsel %vm9739, %v9426, %v9422
    %v10013 = vsel %vm9741, %v9430, %v10012
    %v10014 = vsel %vm9743, %v9434, %v10013
    %v10015 = vsel %vm9745, %v9438, %v10014
    %v10016 = vsel %vm9747, %v9442, %v10015
    %v10017 = vsel %vm9749, %v9446, %v10016
    %v10018 = vsel %vm9751, %v9450, %v10017
    %v10019 = vsel %vm9739, %v9458, %v9454
    %v10020 = vsel %vm9741, %v9462, %v10019
    %v10021 = vsel %vm9743, %v9466, %v10020
    %v10022 = vsel %vm9745, %v9470, %v10021
    %v10023 = vsel %vm9747, %v9474, %v10022
    %v10024 = vsel %vm9749, %v9478, %v10023
    %v10025 = vsel %vm9751, %v9482, %v10024
    %v10026 = vsel %vm9739, %v9490, %v9486
    %v10027 = vsel %vm9741, %v9494, %v10026
    %v10028 = vsel %vm9743, %v9498, %v10027
    %v10029 = vsel %vm9745, %v9502, %v10028
    %v10030 = vsel %vm9747, %v9506, %v10029
    %v10031 = vsel %vm9749, %v9510, %v10030
    %v10032 = vsel %vm9751, %v9514, %v10031
    %v10033 = vsel %vm9739, %v9522, %v9518
    %v10034 = vsel %vm9741, %v9526, %v10033
    %v10035 = vsel %vm9743, %v9530, %v10034
    %v10036 = vsel %vm9745, %v9534, %v10035
    %v10037 = vsel %vm9747, %v9538, %v10036
    %v10038 = vsel %vm9749, %v9542, %v10037
    %v10039 = vsel %vm9751, %v9546, %v10038
    %v10040 = vsel %vm9739, %v9554, %v9550
    %v10041 = vsel %vm9741, %v9558, %v10040
    %v10042 = vsel %vm9743, %v9562, %v10041
    %v10043 = vsel %vm9745, %v9566, %v10042
    %v10044 = vsel %vm9747, %v9570, %v10043
    %v10045 = vsel %vm9749, %v9574, %v10044
    %v10046 = vsel %vm9751, %v9578, %v10045
    %v10047 = vsel %vm9739, %v9586, %v9582
    %v10048 = vsel %vm9741, %v9590, %v10047
    %v10049 = vsel %vm9743, %v9594, %v10048
    %v10050 = vsel %vm9745, %v9598, %v10049
    %v10051 = vsel %vm9747, %v9602, %v10050
    %v10052 = vsel %vm9749, %v9606, %v10051
    %v10053 = vsel %vm9751, %v9610, %v10052
    %v10054 = vsel %vm9739, %v9618, %v9614
    %v10055 = vsel %vm9741, %v9622, %v10054
    %v10056 = vsel %vm9743, %v9626, %v10055
    %v10057 = vsel %vm9745, %v9630, %v10056
    %v10058 = vsel %vm9747, %v9634, %v10057
    %v10059 = vsel %vm9749, %v9638, %v10058
    %v10060 = vsel %vm9751, %v9642, %v10059
    %v10061 = vsel %vm9739, %v9650, %v9646
    %v10062 = vsel %vm9741, %v9654, %v10061
    %v10063 = vsel %vm9743, %v9658, %v10062
    %v10064 = vsel %vm9745, %v9662, %v10063
    %v10065 = vsel %vm9747, %v9666, %v10064
    %v10066 = vsel %vm9749, %v9670, %v10065
    %v10067 = vsel %vm9751, %v9674, %v10066
    %v10068 = vsel %vm9739, %v9682, %v9678
    %v10069 = vsel %vm9741, %v9686, %v10068
    %v10070 = vsel %vm9743, %v9690, %v10069
    %v10071 = vsel %vm9745, %v9694, %v10070
    %v10072 = vsel %vm9747, %v9698, %v10071
    %v10073 = vsel %vm9749, %v9702, %v10072
    %v10074 = vsel %vm9751, %v9706, %v10073
    %v10075 = vsel %vm9739, %v9714, %v9710
    %v10076 = vsel %vm9741, %v9718, %v10075
    %v10077 = vsel %vm9743, %v9722, %v10076
    %v10078 = vsel %vm9745, %v9726, %v10077
    %v10079 = vsel %vm9747, %v9730, %v10078
    %v10080 = vsel %vm9749, %v9734, %v10079
    %v10081 = vsel %vm9751, %v9738, %v10080
    %v10514 = vlaneseq
    %v10515 = vshrl.u32 %v10514, 7
    %v10516 = vsub.s32 %v7433, %v10515
    %v10517 = vrot.slane %v7435, %v10516
    %v10518 = vlaneseq
    %v10519 = vshrl.u32 %v10518, 7
    %v10520 = vsub.s32 %v7433, %v10519
    %v10521 = vrot.slane %v7436, %v10520
    %v10522 = vlaneseq
    %v10523 = vshrl.u32 %v10522, 7
    %v10524 = vsub.s32 %v7433, %v10523
    %v10525 = vrot.slane %v7437, %v10524
    %v10526 = vlaneseq
    %v10527 = vshrl.u32 %v10526, 7
    %v10528 = vsub.s32 %v7433, %v10527
    %v10529 = vrot.slane %v7438, %v10528
    %v10530 = vlaneseq
    %v10531 = vshrl.u32 %v10530, 7
    %v10532 = vsub.s32 %v7433, %v10531
    %v10533 = vrot.slane %v7439, %v10532
    %v10534 = vlaneseq
    %v10535 = vshrl.u32 %v10534, 7
    %v10536 = vsub.s32 %v7433, %v10535
    %v10537 = vrot.slane %v7440, %v10536
    %v10538 = vlaneseq
    %v10539 = vshrl.u32 %v10538, 7
    %v10540 = vsub.s32 %v7433, %v10539
    %v10541 = vrot.slane %v7441, %v10540
    %v10542 = vlaneseq
    %v10543 = vshrl.u32 %v10542, 7
    %v10544 = vsub.s32 %v7433, %v10543
    %v10545 = vrot.slane %v7442, %v10544
    %v10546 = vlaneseq
    %v10547 = vshrl.u32 %v10546, 7
    %v10548 = vsub.s32 %v7433, %v10547
    %v10549 = vrot.slane %v7443, %v10548
    %v10550 = vlaneseq
    %v10551 = vshrl.u32 %v10550, 7
    %v10552 = vsub.s32 %v7433, %v10551
    %v10553 = vrot.slane %v7444, %v10552
    %v10554 = vlaneseq
    %v10555 = vshrl.u32 %v10554, 7
    %v10556 = vsub.s32 %v7433, %v10555
    %v10557 = vrot.slane %v7445, %v10556
    %v10558 = vlaneseq
    %v10559 = vshrl.u32 %v10558, 7
    %v10560 = vsub.s32 %v7433, %v10559
    %v10561 = vrot.slane %v7446, %v10560
    %v10562 = vlaneseq
    %v10563 = vshrl.u32 %v10562, 7
    %v10564 = vsub.s32 %v7433, %v10563
    %v10565 = vrot.slane %v7447, %v10564
    %v10566 = vlaneseq
    %v10567 = vshrl.u32 %v10566, 7
    %v10568 = vsub.s32 %v7433, %v10567
    %v10569 = vrot.slane %v7448, %v10568
    %v10570 = vlaneseq
    %v10571 = vshrl.u32 %v10570, 7
    %v10572 = vsub.s32 %v7433, %v10571
    %v10573 = vrot.slane %v7449, %v10572
    %v10574 = vlaneseq
    %v10575 = vshrl.u32 %v10574, 7
    %v10576 = vsub.s32 %v7433, %v10575
    %v10577 = vrot.slane %v7450, %v10576
    %v10578 = vlaneseq
    %v10579 = vshrl.u32 %v10578, 7
    %v10580 = vsub.s32 %v7433, %v10579
    %v10581 = vrot.slane %v7451, %v10580
    %v10582 = vlaneseq
    %v10583 = vshrl.u32 %v10582, 7
    %v10584 = vsub.s32 %v7433, %v10583
    %v10585 = vrot.slane %v7452, %v10584
    %v10586 = vlaneseq
    %v10587 = vshrl.u32 %v10586, 7
    %v10588 = vsub.s32 %v7433, %v10587
    %v10589 = vrot.slane %v7453, %v10588
    %v10590 = vlaneseq
    %v10591 = vshrl.u32 %v10590, 7
    %v10592 = vsub.s32 %v7433, %v10591
    %v10593 = vrot.slane %v7454, %v10592
    %v10594 = vlaneseq
    %v10595 = vshrl.u32 %v10594, 7
    %v10596 = vsub.s32 %v7433, %v10595
    %v10597 = vrot.slane %v7455, %v10596
    %v10598 = vlaneseq
    %v10599 = vshrl.u32 %v10598, 7
    %v10600 = vsub.s32 %v7433, %v10599
    %v10601 = vrot.slane %v7456, %v10600
    %v10602 = vlaneseq
    %v10603 = vshrl.u32 %v10602, 7
    %v10604 = vsub.s32 %v7433, %v10603
    %v10605 = vrot.slane %v7457, %v10604
    %v10606 = vlaneseq
    %v10607 = vshrl.u32 %v10606, 7
    %v10608 = vsub.s32 %v7433, %v10607
    %v10609 = vrot.slane %v7458, %v10608
    %v10610 = vlaneseq
    %v10611 = vshrl.u32 %v10610, 7
    %v10612 = vsub.s32 %v7433, %v10611
    %v10613 = vrot.slane %v7459, %v10612
    %v10614 = vlaneseq
    %v10615 = vshrl.u32 %v10614, 7
    %v10616 = vsub.s32 %v7433, %v10615
    %v10617 = vrot.slane %v7460, %v10616
    %v10618 = vlaneseq
    %v10619 = vshrl.u32 %v10618, 7
    %v10620 = vsub.s32 %v7433, %v10619
    %v10621 = vrot.slane %v7461, %v10620
    %v10622 = vlaneseq
    %v10623 = vshrl.u32 %v10622, 7
    %v10624 = vsub.s32 %v7433, %v10623
    %v10625 = vrot.slane %v7462, %v10624
    %v10626 = vlaneseq
    %v10627 = vshrl.u32 %v10626, 7
    %v10628 = vsub.s32 %v7433, %v10627
    %v10629 = vrot.slane %v7463, %v10628
    %v10630 = vlaneseq
    %v10631 = vshrl.u32 %v10630, 7
    %v10632 = vsub.s32 %v7433, %v10631
    %v10633 = vrot.slane %v7464, %v10632
    %v10634 = vlaneseq
    %v10635 = vshrl.u32 %v10634, 7
    %v10636 = vsub.s32 %v7433, %v10635
    %v10637 = vrot.slane %v7465, %v10636
    %v10638 = vlaneseq
    %v10639 = vshrl.u32 %v10638, 7
    %v10640 = vsub.s32 %v7433, %v10639
    %v10641 = vrot.slane %v7466, %v10640
    %v10642 = vlaneseq
    %v10643 = vshrl.u32 %v10642, 7
    %v10644 = vsub.s32 %v7433, %v10643
    %v10645 = vrot.slane %v7467, %v10644
    %v10646 = vlaneseq
    %v10647 = vshrl.u32 %v10646, 7
    %v10648 = vsub.s32 %v7433, %v10647
    %v10649 = vrot.slane %v7468, %v10648
    %v10650 = vlaneseq
    %v10651 = vshrl.u32 %v10650, 7
    %v10652 = vsub.s32 %v7433, %v10651
    %v10653 = vrot.slane %v7469, %v10652
    %v10654 = vlaneseq
    %v10655 = vshrl.u32 %v10654, 7
    %v10656 = vsub.s32 %v7433, %v10655
    %v10657 = vrot.slane %v7470, %v10656
    %v10658 = vlaneseq
    %v10659 = vshrl.u32 %v10658, 7
    %v10660 = vsub.s32 %v7433, %v10659
    %v10661 = vrot.slane %v7471, %v10660
    %v10662 = vlaneseq
    %v10663 = vshrl.u32 %v10662, 7
    %v10664 = vsub.s32 %v7433, %v10663
    %v10665 = vrot.slane %v7472, %v10664
    %v10666 = vlaneseq
    %v10667 = vshrl.u32 %v10666, 7
    %v10668 = vsub.s32 %v7433, %v10667
    %v10669 = vrot.slane %v7473, %v10668
    %v10670 = vlaneseq
    %v10671 = vshrl.u32 %v10670, 7
    %v10672 = vsub.s32 %v7433, %v10671
    %v10673 = vrot.slane %v7474, %v10672
    %v10674 = vlaneseq
    %v10675 = vshrl.u32 %v10674, 7
    %v10676 = vsub.s32 %v7433, %v10675
    %v10677 = vrot.slane %v7475, %v10676
    %v10678 = vlaneseq
    %v10679 = vshrl.u32 %v10678, 7
    %v10680 = vsub.s32 %v7433, %v10679
    %v10681 = vrot.slane %v7476, %v10680
    %v10682 = vlaneseq
    %v10683 = vshrl.u32 %v10682, 7
    %v10684 = vsub.s32 %v7433, %v10683
    %v10685 = vrot.slane %v7477, %v10684
    %v10686 = vlaneseq
    %v10687 = vshrl.u32 %v10686, 7
    %v10688 = vsub.s32 %v7433, %v10687
    %v10689 = vrot.slane %v7478, %v10688
    %v10690 = vlaneseq
    %v10691 = vshrl.u32 %v10690, 7
    %v10692 = vsub.s32 %v7433, %v10691
    %v10693 = vrot.slane %v7479, %v10692
    %v10694 = vlaneseq
    %v10695 = vshrl.u32 %v10694, 7
    %v10696 = vsub.s32 %v7433, %v10695
    %v10697 = vrot.slane %v7480, %v10696
    %v10698 = vlaneseq
    %v10699 = vshrl.u32 %v10698, 7
    %v10700 = vsub.s32 %v7433, %v10699
    %v10701 = vrot.slane %v7481, %v10700
    %v10702 = vlaneseq
    %v10703 = vshrl.u32 %v10702, 7
    %v10704 = vsub.s32 %v7433, %v10703
    %v10705 = vrot.slane %v7482, %v10704
    %v10706 = vlaneseq
    %v10707 = vshrl.u32 %v10706, 7
    %v10708 = vsub.s32 %v7433, %v10707
    %v10709 = vrot.slane %v7483, %v10708
    %v10710 = vlaneseq
    %v10711 = vshrl.u32 %v10710, 7
    %v10712 = vsub.s32 %v7433, %v10711
    %v10713 = vrot.slane %v7484, %v10712
    %v10714 = vlaneseq
    %v10715 = vshrl.u32 %v10714, 7
    %v10716 = vsub.s32 %v7433, %v10715
    %v10717 = vrot.slane %v7485, %v10716
    %v10718 = vlaneseq
    %v10719 = vshrl.u32 %v10718, 7
    %v10720 = vsub.s32 %v7433, %v10719
    %v10721 = vrot.slane %v7486, %v10720
    %v10722 = vlaneseq
    %v10723 = vshrl.u32 %v10722, 7
    %v10724 = vsub.s32 %v7433, %v10723
    %v10725 = vrot.slane %v7487, %v10724
    %v10726 = vlaneseq
    %v10727 = vshrl.u32 %v10726, 7
    %v10728 = vsub.s32 %v7433, %v10727
    %v10729 = vrot.slane %v7488, %v10728
    %v10730 = vlaneseq
    %v10731 = vshrl.u32 %v10730, 7
    %v10732 = vsub.s32 %v7433, %v10731
    %v10733 = vrot.slane %v7489, %v10732
    %v10734 = vlaneseq
    %v10735 = vshrl.u32 %v10734, 7
    %v10736 = vsub.s32 %v7433, %v10735
    %v10737 = vrot.slane %v7490, %v10736
    %v10738 = vlaneseq
    %v10739 = vshrl.u32 %v10738, 7
    %v10740 = vsub.s32 %v7433, %v10739
    %v10741 = vrot.slane %v7491, %v10740
    %v10742 = vlaneseq
    %v10743 = vshrl.u32 %v10742, 7
    %v10744 = vsub.s32 %v7433, %v10743
    %v10745 = vrot.slane %v7492, %v10744
    %v10746 = vlaneseq
    %v10747 = vshrl.u32 %v10746, 7
    %v10748 = vsub.s32 %v7433, %v10747
    %v10749 = vrot.slane %v7493, %v10748
    %v10750 = vlaneseq
    %v10751 = vshrl.u32 %v10750, 7
    %v10752 = vsub.s32 %v7433, %v10751
    %v10753 = vrot.slane %v7494, %v10752
    %v10754 = vlaneseq
    %v10755 = vshrl.u32 %v10754, 7
    %v10756 = vsub.s32 %v7433, %v10755
    %v10757 = vrot.slane %v7495, %v10756
    %v10758 = vlaneseq
    %v10759 = vshrl.u32 %v10758, 7
    %v10760 = vsub.s32 %v7433, %v10759
    %v10761 = vrot.slane %v7496, %v10760
    %v10762 = vlaneseq
    %v10763 = vshrl.u32 %v10762, 7
    %v10764 = vsub.s32 %v7433, %v10763
    %v10765 = vrot.slane %v7497, %v10764
    %v10766 = vlaneseq
    %v10767 = vshrl.u32 %v10766, 7
    %v10768 = vsub.s32 %v7433, %v10767
    %v10769 = vrot.slane %v7498, %v10768
    %v10770 = vlaneseq
    %v10771 = vshrl.u32 %v10770, 7
    %v10772 = vsub.s32 %v7433, %v10771
    %v10773 = vrot.slane %v7499, %v10772
    %v10774 = vlaneseq
    %v10775 = vshrl.u32 %v10774, 7
    %v10776 = vsub.s32 %v7433, %v10775
    %v10777 = vrot.slane %v7500, %v10776
    %v10778 = vlaneseq
    %v10779 = vshrl.u32 %v10778, 7
    %v10780 = vsub.s32 %v7433, %v10779
    %v10781 = vrot.slane %v7501, %v10780
    %v10782 = vlaneseq
    %v10783 = vshrl.u32 %v10782, 7
    %v10784 = vsub.s32 %v7433, %v10783
    %v10785 = vrot.slane %v7502, %v10784
    %v10786 = vlaneseq
    %v10787 = vshrl.u32 %v10786, 7
    %v10788 = vsub.s32 %v7433, %v10787
    %v10789 = vrot.slane %v7503, %v10788
    %v10790 = vlaneseq
    %v10791 = vshrl.u32 %v10790, 7
    %v10792 = vsub.s32 %v7433, %v10791
    %v10793 = vrot.slane %v7504, %v10792
    %v10794 = vlaneseq
    %v10795 = vshrl.u32 %v10794, 7
    %v10796 = vsub.s32 %v7433, %v10795
    %v10797 = vrot.slane %v7505, %v10796
    %v10798 = vlaneseq
    %v10799 = vshrl.u32 %v10798, 7
    %v10800 = vsub.s32 %v7433, %v10799
    %v10801 = vrot.slane %v7506, %v10800
    %v10802 = vlaneseq
    %v10803 = vshrl.u32 %v10802, 7
    %v10804 = vsub.s32 %v7433, %v10803
    %v10805 = vrot.slane %v7507, %v10804
    %v10806 = vlaneseq
    %v10807 = vshrl.u32 %v10806, 7
    %v10808 = vsub.s32 %v7433, %v10807
    %v10809 = vrot.slane %v7508, %v10808
    %v10810 = vlaneseq
    %v10811 = vshrl.u32 %v10810, 7
    %v10812 = vsub.s32 %v7433, %v10811
    %v10813 = vrot.slane %v7509, %v10812
    %v10814 = vlaneseq
    %v10815 = vshrl.u32 %v10814, 7
    %v10816 = vsub.s32 %v7433, %v10815
    %v10817 = vrot.slane %v7510, %v10816
    %v10818 = vlaneseq
    %v10819 = vshrl.u32 %v10818, 7
    %v10820 = vsub.s32 %v7433, %v10819
    %v10821 = vrot.slane %v7511, %v10820
    %v10822 = vlaneseq
    %v10823 = vshrl.u32 %v10822, 7
    %v10824 = vsub.s32 %v7433, %v10823
    %v10825 = vrot.slane %v7512, %v10824
    %v10826 = vlaneseq
    %v10827 = vshrl.u32 %v10826, 7
    %v10828 = vsub.s32 %v7433, %v10827
    %v10829 = vrot.slane %v7513, %v10828
    %v10830 = vlaneseq
    %v10831 = vshrl.u32 %v10830, 7
    %v10832 = vsub.s32 %v7433, %v10831
    %v10833 = vrot.slane %v7514, %v10832
    %v10834 = vlaneseq
    %v10835 = vshrl.u32 %v10834, 7
    %v10836 = vsub.s32 %v7433, %v10835
    %v10837 = vrot.slane %v7515, %v10836
    %v10838 = vlaneseq
    %v10839 = vshrl.u32 %v10838, 7
    %v10840 = vsub.s32 %v7433, %v10839
    %v10841 = vrot.slane %v7516, %v10840
    %v10842 = vlaneseq
    %v10843 = vshrl.u32 %v10842, 7
    %v10844 = vsub.s32 %v7433, %v10843
    %v10845 = vrot.slane %v7517, %v10844
    %v10846 = vlaneseq
    %v10847 = vshrl.u32 %v10846, 7
    %v10848 = vsub.s32 %v7433, %v10847
    %v10849 = vrot.slane %v7518, %v10848
    %v10850 = vlaneseq
    %v10851 = vshrl.u32 %v10850, 7
    %v10852 = vsub.s32 %v7433, %v10851
    %v10853 = vrot.slane %v7519, %v10852
    %v10854 = vlaneseq
    %v10855 = vshrl.u32 %v10854, 7
    %v10856 = vsub.s32 %v7433, %v10855
    %v10857 = vrot.slane %v7520, %v10856
    %v10858 = vlaneseq
    %v10859 = vshrl.u32 %v10858, 7
    %v10860 = vsub.s32 %v7433, %v10859
    %v10861 = vrot.slane %v7521, %v10860
    %v10862 = vlaneseq
    %v10863 = vshrl.u32 %v10862, 7
    %v10864 = vsub.s32 %v7433, %v10863
    %v10865 = vrot.slane %v7522, %v10864
    %v10866 = vlaneseq
    %v10867 = vshrl.u32 %v10866, 7
    %v10868 = vsub.s32 %v7433, %v10867
    %v10869 = vrot.slane %v7523, %v10868
    %v10870 = vlaneseq
    %v10871 = vshrl.u32 %v10870, 7
    %v10872 = vsub.s32 %v7433, %v10871
    %v10873 = vrot.slane %v7524, %v10872
    %v10874 = vlaneseq
    %v10875 = vshrl.u32 %v10874, 7
    %v10876 = vsub.s32 %v7433, %v10875
    %v10877 = vrot.slane %v7525, %v10876
    %v10878 = vlaneseq
    %v10879 = vshrl.u32 %v10878, 7
    %v10880 = vsub.s32 %v7433, %v10879
    %v10881 = vrot.slane %v7526, %v10880
    %v10882 = vlaneseq
    %v10883 = vshrl.u32 %v10882, 7
    %v10884 = vsub.s32 %v7433, %v10883
    %v10885 = vrot.slane %v7527, %v10884
    %v10886 = vlaneseq
    %v10887 = vshrl.u32 %v10886, 7
    %v10888 = vsub.s32 %v7433, %v10887
    %v10889 = vrot.slane %v7528, %v10888
    %v10890 = vlaneseq
    %v10891 = vshrl.u32 %v10890, 7
    %v10892 = vsub.s32 %v7433, %v10891
    %v10893 = vrot.slane %v7529, %v10892
    %v10894 = vlaneseq
    %v10895 = vshrl.u32 %v10894, 7
    %v10896 = vsub.s32 %v7433, %v10895
    %v10897 = vrot.slane %v7530, %v10896
    %v10898 = vlaneseq
    %v10899 = vshrl.u32 %v10898, 7
    %v10900 = vsub.s32 %v7433, %v10899
    %v10901 = vrot.slane %v7531, %v10900
    %v10902 = vlaneseq
    %v10903 = vshrl.u32 %v10902, 7
    %v10904 = vsub.s32 %v7433, %v10903
    %v10905 = vrot.slane %v7532, %v10904
    %v10906 = vlaneseq
    %v10907 = vshrl.u32 %v10906, 7
    %v10908 = vsub.s32 %v7433, %v10907
    %v10909 = vrot.slane %v7533, %v10908
    %v10910 = vlaneseq
    %v10911 = vshrl.u32 %v10910, 7
    %v10912 = vsub.s32 %v7433, %v10911
    %v10913 = vrot.slane %v7534, %v10912
    %v10914 = vlaneseq
    %v10915 = vshrl.u32 %v10914, 7
    %v10916 = vsub.s32 %v7433, %v10915
    %v10917 = vrot.slane %v7535, %v10916
    %v10918 = vlaneseq
    %v10919 = vshrl.u32 %v10918, 7
    %v10920 = vsub.s32 %v7433, %v10919
    %v10921 = vrot.slane %v7536, %v10920
    %v10922 = vlaneseq
    %v10923 = vshrl.u32 %v10922, 7
    %v10924 = vsub.s32 %v7433, %v10923
    %v10925 = vrot.slane %v7537, %v10924
    %v10926 = vlaneseq
    %v10927 = vshrl.u32 %v10926, 7
    %v10928 = vsub.s32 %v7433, %v10927
    %v10929 = vrot.slane %v7538, %v10928
    %v10930 = vlaneseq
    %v10931 = vshrl.u32 %v10930, 7
    %v10932 = vsub.s32 %v7433, %v10931
    %v10933 = vrot.slane %v7539, %v10932
    %v10934 = vlaneseq
    %v10935 = vshrl.u32 %v10934, 7
    %v10936 = vsub.s32 %v7433, %v10935
    %v10937 = vrot.slane %v7540, %v10936
    %v10938 = vlaneseq
    %v10939 = vshrl.u32 %v10938, 7
    %v10940 = vsub.s32 %v7433, %v10939
    %v10941 = vrot.slane %v7541, %v10940
    %v10942 = vlaneseq
    %v10943 = vshrl.u32 %v10942, 7
    %v10944 = vsub.s32 %v7433, %v10943
    %v10945 = vrot.slane %v7542, %v10944
    %v10946 = vlaneseq
    %v10947 = vshrl.u32 %v10946, 7
    %v10948 = vsub.s32 %v7433, %v10947
    %v10949 = vrot.slane %v7543, %v10948
    %v10950 = vlaneseq
    %v10951 = vshrl.u32 %v10950, 7
    %v10952 = vsub.s32 %v7433, %v10951
    %v10953 = vrot.slane %v7544, %v10952
    %v10954 = vlaneseq
    %v10955 = vshrl.u32 %v10954, 7
    %v10956 = vsub.s32 %v7433, %v10955
    %v10957 = vrot.slane %v7545, %v10956
    %v10958 = vlaneseq
    %v10959 = vshrl.u32 %v10958, 7
    %v10960 = vsub.s32 %v7433, %v10959
    %v10961 = vrot.slane %v7546, %v10960
    %v10962 = vlaneseq
    %v10963 = vshrl.u32 %v10962, 7
    %v10964 = vsub.s32 %v7433, %v10963
    %v10965 = vrot.slane %v7547, %v10964
    %v10966 = vlaneseq
    %v10967 = vshrl.u32 %v10966, 7
    %v10968 = vsub.s32 %v7433, %v10967
    %v10969 = vrot.slane %v7548, %v10968
    %v10970 = vlaneseq
    %v10971 = vshrl.u32 %v10970, 7
    %v10972 = vsub.s32 %v7433, %v10971
    %v10973 = vrot.slane %v7549, %v10972
    %v10974 = vlaneseq
    %v10975 = vshrl.u32 %v10974, 7
    %v10976 = vsub.s32 %v7433, %v10975
    %v10977 = vrot.slane %v7550, %v10976
    %v10978 = vlaneseq
    %v10979 = vshrl.u32 %v10978, 7
    %v10980 = vsub.s32 %v7433, %v10979
    %v10981 = vrot.slane %v7551, %v10980
    %v10982 = vlaneseq
    %v10983 = vshrl.u32 %v10982, 7
    %v10984 = vsub.s32 %v7433, %v10983
    %v10985 = vrot.slane %v7552, %v10984
    %v10986 = vlaneseq
    %v10987 = vshrl.u32 %v10986, 7
    %v10988 = vsub.s32 %v7433, %v10987
    %v10989 = vrot.slane %v7553, %v10988
    %v10990 = vlaneseq
    %v10991 = vshrl.u32 %v10990, 7
    %v10992 = vsub.s32 %v7433, %v10991
    %v10993 = vrot.slane %v7554, %v10992
    %v10994 = vlaneseq
    %v10995 = vshrl.u32 %v10994, 7
    %v10996 = vsub.s32 %v7433, %v10995
    %v10997 = vrot.slane %v7555, %v10996
    %v10998 = vlaneseq
    %v10999 = vshrl.u32 %v10998, 7
    %v11000 = vsub.s32 %v7433, %v10999
    %v11001 = vrot.slane %v7556, %v11000
    %v11002 = vlaneseq
    %v11003 = vshrl.u32 %v11002, 7
    %v11004 = vsub.s32 %v7433, %v11003
    %v11005 = vrot.slane %v7557, %v11004
    %v11006 = vlaneseq
    %v11007 = vshrl.u32 %v11006, 7
    %v11008 = vsub.s32 %v7433, %v11007
    %v11009 = vrot.slane %v7558, %v11008
    %v11010 = vlaneseq
    %v11011 = vshrl.u32 %v11010, 7
    %v11012 = vsub.s32 %v7433, %v11011
    %v11013 = vrot.slane %v7559, %v11012
    %v11014 = vlaneseq
    %v11015 = vshrl.u32 %v11014, 7
    %v11016 = vsub.s32 %v7433, %v11015
    %v11017 = vrot.slane %v7560, %v11016
    %v11018 = vlaneseq
    %v11019 = vshrl.u32 %v11018, 7
    %v11020 = vsub.s32 %v7433, %v11019
    %v11021 = vrot.slane %v7561, %v11020
    %v11022 = vlaneseq
    %v11023 = vshrl.u32 %v11022, 7
    %v11024 = vsub.s32 %v7433, %v11023
    %v11025 = vrot.slane %v7562, %v11024
    %v11026 = vlaneseq
    %v11027 = vshrl.u32 %v11026, 7
    %v11028 = vsub.s32 %v7433, %v11027
    %v11029 = vrot.slane %v7563, %v11028
    %v11030 = vlaneseq
    %v11031 = vshrl.u32 %v11030, 7
    %v11032 = vsub.s32 %v7433, %v11031
    %v11033 = vrot.slane %v7564, %v11032
    %v11034 = vlaneseq
    %v11035 = vshrl.u32 %v11034, 7
    %v11036 = vsub.s32 %v7433, %v11035
    %v11037 = vrot.slane %v7565, %v11036
    %v11038 = vlaneseq
    %v11039 = vshrl.u32 %v11038, 7
    %v11040 = vsub.s32 %v7433, %v11039
    %v11041 = vrot.slane %v7566, %v11040
    %v11042 = vlaneseq
    %v11043 = vshrl.u32 %v11042, 7
    %v11044 = vsub.s32 %v7433, %v11043
    %v11045 = vrot.slane %v7567, %v11044
    %v11046 = vlaneseq
    %v11047 = vshrl.u32 %v11046, 7
    %v11048 = vsub.s32 %v7433, %v11047
    %v11049 = vrot.slane %v7568, %v11048
    %v11050 = vlaneseq
    %v11051 = vshrl.u32 %v11050, 7
    %v11052 = vsub.s32 %v7433, %v11051
    %v11053 = vrot.slane %v7569, %v11052
    %v11054 = vlaneseq
    %v11055 = vshrl.u32 %v11054, 7
    %v11056 = vsub.s32 %v7433, %v11055
    %v11057 = vrot.slane %v7570, %v11056
    %v11058 = vlaneseq
    %v11059 = vshrl.u32 %v11058, 7
    %v11060 = vsub.s32 %v7433, %v11059
    %v11061 = vrot.slane %v7571, %v11060
    %v11062 = vlaneseq
    %v11063 = vshrl.u32 %v11062, 7
    %v11064 = vsub.s32 %v7433, %v11063
    %v11065 = vrot.slane %v7572, %v11064
    %v11066 = vlaneseq
    %v11067 = vshrl.u32 %v11066, 7
    %v11068 = vsub.s32 %v7433, %v11067
    %v11069 = vrot.slane %v7573, %v11068
    %v11070 = vlaneseq
    %v11071 = vshrl.u32 %v11070, 7
    %v11072 = vsub.s32 %v7433, %v11071
    %v11073 = vrot.slane %v7574, %v11072
    %v11074 = vlaneseq
    %v11075 = vshrl.u32 %v11074, 7
    %v11076 = vsub.s32 %v7433, %v11075
    %v11077 = vrot.slane %v7575, %v11076
    %v11078 = vlaneseq
    %v11079 = vshrl.u32 %v11078, 7
    %v11080 = vsub.s32 %v7433, %v11079
    %v11081 = vrot.slane %v7576, %v11080
    %v11082 = vlaneseq
    %v11083 = vshrl.u32 %v11082, 7
    %v11084 = vsub.s32 %v7433, %v11083
    %v11085 = vrot.slane %v7577, %v11084
    %v11086 = vlaneseq
    %v11087 = vshrl.u32 %v11086, 7
    %v11088 = vsub.s32 %v7433, %v11087
    %v11089 = vrot.slane %v7578, %v11088
    %v11090 = vlaneseq
    %v11091 = vshrl.u32 %v11090, 7
    %v11092 = vsub.s32 %v7433, %v11091
    %v11093 = vrot.slane %v7579, %v11092
    %v11094 = vlaneseq
    %v11095 = vshrl.u32 %v11094, 7
    %v11096 = vsub.s32 %v7433, %v11095
    %v11097 = vrot.slane %v7580, %v11096
    %v11098 = vlaneseq
    %v11099 = vshrl.u32 %v11098, 7
    %v11100 = vsub.s32 %v7433, %v11099
    %v11101 = vrot.slane %v7581, %v11100
    %v11102 = vlaneseq
    %v11103 = vshrl.u32 %v11102, 7
    %v11104 = vsub.s32 %v7433, %v11103
    %v11105 = vrot.slane %v7582, %v11104
    %v11106 = vlaneseq
    %v11107 = vshrl.u32 %v11106, 7
    %v11108 = vsub.s32 %v7433, %v11107
    %v11109 = vrot.slane %v7583, %v11108
    %v11110 = vlaneseq
    %v11111 = vshrl.u32 %v11110, 7
    %v11112 = vsub.s32 %v7433, %v11111
    %v11113 = vrot.slane %v7584, %v11112
    %v11114 = vlaneseq
    %v11115 = vshrl.u32 %v11114, 7
    %v11116 = vsub.s32 %v7433, %v11115
    %v11117 = vrot.slane %v7585, %v11116
    %v11118 = vlaneseq
    %v11119 = vshrl.u32 %v11118, 7
    %v11120 = vsub.s32 %v7433, %v11119
    %v11121 = vrot.slane %v7586, %v11120
    %v11122 = vlaneseq
    %v11123 = vshrl.u32 %v11122, 7
    %v11124 = vsub.s32 %v7433, %v11123
    %v11125 = vrot.slane %v7587, %v11124
    %v11126 = vlaneseq
    %v11127 = vshrl.u32 %v11126, 7
    %v11128 = vsub.s32 %v7433, %v11127
    %v11129 = vrot.slane %v7588, %v11128
    %v11130 = vlaneseq
    %v11131 = vshrl.u32 %v11130, 7
    %v11132 = vsub.s32 %v7433, %v11131
    %v11133 = vrot.slane %v7589, %v11132
    %v11134 = vlaneseq
    %v11135 = vshrl.u32 %v11134, 7
    %v11136 = vsub.s32 %v7433, %v11135
    %v11137 = vrot.slane %v7590, %v11136
    %v11138 = vlaneseq
    %v11139 = vshrl.u32 %v11138, 7
    %v11140 = vsub.s32 %v7433, %v11139
    %v11141 = vrot.slane %v7591, %v11140
    %v11142 = vlaneseq
    %v11143 = vshrl.u32 %v11142, 7
    %v11144 = vsub.s32 %v7433, %v11143
    %v11145 = vrot.slane %v7592, %v11144
    %v11146 = vlaneseq
    %v11147 = vshrl.u32 %v11146, 7
    %v11148 = vsub.s32 %v7433, %v11147
    %v11149 = vrot.slane %v7593, %v11148
    %v11150 = vlaneseq
    %v11151 = vshrl.u32 %v11150, 7
    %v11152 = vsub.s32 %v7433, %v11151
    %v11153 = vrot.slane %v7594, %v11152
    %v11154 = vlaneseq
    %v11155 = vshrl.u32 %v11154, 7
    %v11156 = vsub.s32 %v7433, %v11155
    %v11157 = vrot.slane %v7595, %v11156
    %v11158 = vlaneseq
    %v11159 = vshrl.u32 %v11158, 7
    %v11160 = vsub.s32 %v7433, %v11159
    %v11161 = vrot.slane %v7596, %v11160
    %v11162 = vlaneseq
    %v11163 = vshrl.u32 %v11162, 7
    %v11164 = vsub.s32 %v7433, %v11163
    %v11165 = vrot.slane %v7597, %v11164
    %v11166 = vlaneseq
    %v11167 = vshrl.u32 %v11166, 7
    %v11168 = vsub.s32 %v7433, %v11167
    %v11169 = vrot.slane %v7598, %v11168
    %v11170 = vlaneseq
    %v11171 = vshrl.u32 %v11170, 7
    %v11172 = vsub.s32 %v7433, %v11171
    %v11173 = vrot.slane %v7599, %v11172
    %v11174 = vlaneseq
    %v11175 = vshrl.u32 %v11174, 7
    %v11176 = vsub.s32 %v7433, %v11175
    %v11177 = vrot.slane %v7600, %v11176
    %v11178 = vlaneseq
    %v11179 = vshrl.u32 %v11178, 7
    %v11180 = vsub.s32 %v7433, %v11179
    %v11181 = vrot.slane %v7601, %v11180
    %v11182 = vlaneseq
    %v11183 = vshrl.u32 %v11182, 7
    %v11184 = vsub.s32 %v7433, %v11183
    %v11185 = vrot.slane %v7602, %v11184
    %v11186 = vlaneseq
    %v11187 = vshrl.u32 %v11186, 7
    %v11188 = vsub.s32 %v7433, %v11187
    %v11189 = vrot.slane %v7603, %v11188
    %v11190 = vlaneseq
    %v11191 = vshrl.u32 %v11190, 7
    %v11192 = vsub.s32 %v7433, %v11191
    %v11193 = vrot.slane %v7604, %v11192
    %v11194 = vlaneseq
    %v11195 = vshrl.u32 %v11194, 7
    %v11196 = vsub.s32 %v7433, %v11195
    %v11197 = vrot.slane %v7605, %v11196
    %v11198 = vlaneseq
    %v11199 = vshrl.u32 %v11198, 7
    %v11200 = vsub.s32 %v7433, %v11199
    %v11201 = vrot.slane %v7606, %v11200
    %v11202 = vlaneseq
    %v11203 = vshrl.u32 %v11202, 7
    %v11204 = vsub.s32 %v7433, %v11203
    %v11205 = vrot.slane %v7607, %v11204
    %v11206 = vlaneseq
    %v11207 = vshrl.u32 %v11206, 7
    %v11208 = vsub.s32 %v7433, %v11207
    %v11209 = vrot.slane %v7608, %v11208
    %v11210 = vlaneseq
    %v11211 = vshrl.u32 %v11210, 7
    %v11212 = vsub.s32 %v7433, %v11211
    %v11213 = vrot.slane %v7609, %v11212
    %v11214 = vlaneseq
    %v11215 = vshrl.u32 %v11214, 7
    %v11216 = vsub.s32 %v7433, %v11215
    %v11217 = vrot.slane %v7610, %v11216
    %v11218 = vlaneseq
    %v11219 = vshrl.u32 %v11218, 7
    %v11220 = vsub.s32 %v7433, %v11219
    %v11221 = vrot.slane %v7611, %v11220
    %v11222 = vlaneseq
    %v11223 = vshrl.u32 %v11222, 7
    %v11224 = vsub.s32 %v7433, %v11223
    %v11225 = vrot.slane %v7612, %v11224
    %v11226 = vlaneseq
    %v11227 = vshrl.u32 %v11226, 7
    %v11228 = vsub.s32 %v7433, %v11227
    %v11229 = vrot.slane %v7613, %v11228
    %v11230 = vlaneseq
    %v11231 = vshrl.u32 %v11230, 7
    %v11232 = vsub.s32 %v7433, %v11231
    %v11233 = vrot.slane %v7614, %v11232
    %v11234 = vlaneseq
    %v11235 = vshrl.u32 %v11234, 7
    %v11236 = vsub.s32 %v7433, %v11235
    %v11237 = vrot.slane %v7615, %v11236
    %v11238 = vlaneseq
    %v11239 = vshrl.u32 %v11238, 7
    %v11240 = vsub.s32 %v7433, %v11239
    %v11241 = vrot.slane %v7616, %v11240
    %v11242 = vlaneseq
    %v11243 = vshrl.u32 %v11242, 7
    %v11244 = vsub.s32 %v7433, %v11243
    %v11245 = vrot.slane %v7617, %v11244
    %v11246 = vlaneseq
    %v11247 = vshrl.u32 %v11246, 7
    %v11248 = vsub.s32 %v7433, %v11247
    %v11249 = vrot.slane %v7618, %v11248
    %v11250 = vlaneseq
    %v11251 = vshrl.u32 %v11250, 7
    %v11252 = vsub.s32 %v7433, %v11251
    %v11253 = vrot.slane %v7619, %v11252
    %v11254 = vlaneseq
    %v11255 = vshrl.u32 %v11254, 7
    %v11256 = vsub.s32 %v7433, %v11255
    %v11257 = vrot.slane %v7620, %v11256
    %v11258 = vlaneseq
    %v11259 = vshrl.u32 %v11258, 7
    %v11260 = vsub.s32 %v7433, %v11259
    %v11261 = vrot.slane %v7621, %v11260
    %v11262 = vlaneseq
    %v11263 = vshrl.u32 %v11262, 7
    %v11264 = vsub.s32 %v7433, %v11263
    %v11265 = vrot.slane %v7622, %v11264
    %v11266 = vlaneseq
    %v11267 = vshrl.u32 %v11266, 7
    %v11268 = vsub.s32 %v7433, %v11267
    %v11269 = vrot.slane %v7623, %v11268
    %v11270 = vlaneseq
    %v11271 = vshrl.u32 %v11270, 7
    %v11272 = vsub.s32 %v7433, %v11271
    %v11273 = vrot.slane %v7624, %v11272
    %v11274 = vlaneseq
    %v11275 = vshrl.u32 %v11274, 7
    %v11276 = vsub.s32 %v7433, %v11275
    %v11277 = vrot.slane %v7625, %v11276
    %v11278 = vlaneseq
    %v11279 = vshrl.u32 %v11278, 7
    %v11280 = vsub.s32 %v7433, %v11279
    %v11281 = vrot.slane %v7626, %v11280
    %v11282 = vlaneseq
    %v11283 = vshrl.u32 %v11282, 7
    %v11284 = vsub.s32 %v7433, %v11283
    %v11285 = vrot.slane %v7627, %v11284
    %v11286 = vlaneseq
    %v11287 = vshrl.u32 %v11286, 7
    %v11288 = vsub.s32 %v7433, %v11287
    %v11289 = vrot.slane %v7628, %v11288
    %v11290 = vlaneseq
    %v11291 = vshrl.u32 %v11290, 7
    %v11292 = vsub.s32 %v7433, %v11291
    %v11293 = vrot.slane %v7629, %v11292
    %v11294 = vlaneseq
    %v11295 = vshrl.u32 %v11294, 7
    %v11296 = vsub.s32 %v7433, %v11295
    %v11297 = vrot.slane %v7630, %v11296
    %v11298 = vlaneseq
    %v11299 = vshrl.u32 %v11298, 7
    %v11300 = vsub.s32 %v7433, %v11299
    %v11301 = vrot.slane %v7631, %v11300
    %v11302 = vlaneseq
    %v11303 = vshrl.u32 %v11302, 7
    %v11304 = vsub.s32 %v7433, %v11303
    %v11305 = vrot.slane %v7632, %v11304
    %v11306 = vlaneseq
    %v11307 = vshrl.u32 %v11306, 7
    %v11308 = vsub.s32 %v7433, %v11307
    %v11309 = vrot.slane %v7633, %v11308
    %v11310 = vlaneseq
    %v11311 = vshrl.u32 %v11310, 7
    %v11312 = vsub.s32 %v7433, %v11311
    %v11313 = vrot.slane %v7634, %v11312
    %v11314 = vlaneseq
    %v11315 = vshrl.u32 %v11314, 7
    %v11316 = vsub.s32 %v7433, %v11315
    %v11317 = vrot.slane %v7635, %v11316
    %v11318 = vlaneseq
    %v11319 = vshrl.u32 %v11318, 7
    %v11320 = vsub.s32 %v7433, %v11319
    %v11321 = vrot.slane %v7636, %v11320
    %v11322 = vlaneseq
    %v11323 = vshrl.u32 %v11322, 7
    %v11324 = vsub.s32 %v7433, %v11323
    %v11325 = vrot.slane %v7637, %v11324
    %v11326 = vlaneseq
    %v11327 = vshrl.u32 %v11326, 7
    %v11328 = vsub.s32 %v7433, %v11327
    %v11329 = vrot.slane %v7638, %v11328
    %v11330 = vlaneseq
    %v11331 = vshrl.u32 %v11330, 7
    %v11332 = vsub.s32 %v7433, %v11331
    %v11333 = vrot.slane %v7639, %v11332
    %v11334 = vlaneseq
    %v11335 = vshrl.u32 %v11334, 7
    %v11336 = vsub.s32 %v7433, %v11335
    %v11337 = vrot.slane %v7640, %v11336
    %v11338 = vlaneseq
    %v11339 = vshrl.u32 %v11338, 7
    %v11340 = vsub.s32 %v7433, %v11339
    %v11341 = vrot.slane %v7641, %v11340
    %v11342 = vlaneseq
    %v11343 = vshrl.u32 %v11342, 7
    %v11344 = vsub.s32 %v7433, %v11343
    %v11345 = vrot.slane %v7642, %v11344
    %v11346 = vlaneseq
    %v11347 = vshrl.u32 %v11346, 7
    %v11348 = vsub.s32 %v7433, %v11347
    %v11349 = vrot.slane %v7643, %v11348
    %v11350 = vlaneseq
    %v11351 = vshrl.u32 %v11350, 7
    %v11352 = vsub.s32 %v7433, %v11351
    %v11353 = vrot.slane %v7644, %v11352
    %v11354 = vlaneseq
    %v11355 = vshrl.u32 %v11354, 7
    %v11356 = vsub.s32 %v7433, %v11355
    %v11357 = vrot.slane %v7645, %v11356
    %v11358 = vlaneseq
    %v11359 = vshrl.u32 %v11358, 7
    %v11360 = vsub.s32 %v7433, %v11359
    %v11361 = vrot.slane %v7646, %v11360
    %v11362 = vlaneseq
    %v11363 = vshrl.u32 %v11362, 7
    %v11364 = vsub.s32 %v7433, %v11363
    %v11365 = vrot.slane %v7647, %v11364
    %v11366 = vlaneseq
    %v11367 = vshrl.u32 %v11366, 7
    %v11368 = vsub.s32 %v7433, %v11367
    %v11369 = vrot.slane %v7648, %v11368
    %v11370 = vlaneseq
    %v11371 = vshrl.u32 %v11370, 7
    %v11372 = vsub.s32 %v7433, %v11371
    %v11373 = vrot.slane %v7649, %v11372
    %v11374 = vlaneseq
    %v11375 = vshrl.u32 %v11374, 7
    %v11376 = vsub.s32 %v7433, %v11375
    %v11377 = vrot.slane %v7650, %v11376
    %v11378 = vlaneseq
    %v11379 = vshrl.u32 %v11378, 7
    %v11380 = vsub.s32 %v7433, %v11379
    %v11381 = vrot.slane %v7651, %v11380
    %v11382 = vlaneseq
    %v11383 = vshrl.u32 %v11382, 7
    %v11384 = vsub.s32 %v7433, %v11383
    %v11385 = vrot.slane %v7652, %v11384
    %v11386 = vlaneseq
    %v11387 = vshrl.u32 %v11386, 7
    %v11388 = vsub.s32 %v7433, %v11387
    %v11389 = vrot.slane %v7653, %v11388
    %v11390 = vlaneseq
    %v11391 = vshrl.u32 %v11390, 7
    %v11392 = vsub.s32 %v7433, %v11391
    %v11393 = vrot.slane %v7654, %v11392
    %v11394 = vlaneseq
    %v11395 = vshrl.u32 %v11394, 7
    %v11396 = vsub.s32 %v7433, %v11395
    %v11397 = vrot.slane %v7655, %v11396
    %v11398 = vlaneseq
    %v11399 = vshrl.u32 %v11398, 7
    %v11400 = vsub.s32 %v7433, %v11399
    %v11401 = vrot.slane %v7656, %v11400
    %v11402 = vlaneseq
    %v11403 = vshrl.u32 %v11402, 7
    %v11404 = vsub.s32 %v7433, %v11403
    %v11405 = vrot.slane %v7657, %v11404
    %v11406 = vlaneseq
    %v11407 = vshrl.u32 %v11406, 7
    %v11408 = vsub.s32 %v7433, %v11407
    %v11409 = vrot.slane %v7658, %v11408
    %v11410 = vlaneseq
    %v11411 = vshrl.u32 %v11410, 7
    %v11412 = vsub.s32 %v7433, %v11411
    %v11413 = vrot.slane %v7659, %v11412
    %v11414 = vlaneseq
    %v11415 = vshrl.u32 %v11414, 7
    %v11416 = vsub.s32 %v7433, %v11415
    %v11417 = vrot.slane %v7660, %v11416
    %v11418 = vlaneseq
    %v11419 = vshrl.u32 %v11418, 7
    %v11420 = vsub.s32 %v7433, %v11419
    %v11421 = vrot.slane %v7661, %v11420
    %v11422 = vlaneseq
    %v11423 = vshrl.u32 %v11422, 7
    %v11424 = vsub.s32 %v7433, %v11423
    %v11425 = vrot.slane %v7662, %v11424
    %v11426 = vlaneseq
    %v11427 = vshrl.u32 %v11426, 7
    %v11428 = vsub.s32 %v7433, %v11427
    %v11429 = vrot.slane %v7663, %v11428
    %v11430 = vlaneseq
    %v11431 = vshrl.u32 %v11430, 7
    %v11432 = vsub.s32 %v7433, %v11431
    %v11433 = vrot.slane %v7664, %v11432
    %v11434 = vlaneseq
    %v11435 = vshrl.u32 %v11434, 7
    %v11436 = vsub.s32 %v7433, %v11435
    %v11437 = vrot.slane %v7665, %v11436
    %v11438 = vlaneseq
    %v11439 = vshrl.u32 %v11438, 7
    %v11440 = vsub.s32 %v7433, %v11439
    %v11441 = vrot.slane %v7666, %v11440
    %v11442 = vlaneseq
    %v11443 = vshrl.u32 %v11442, 7
    %v11444 = vsub.s32 %v7433, %v11443
    %v11445 = vrot.slane %v7667, %v11444
    %v11446 = vlaneseq
    %v11447 = vshrl.u32 %v11446, 7
    %v11448 = vsub.s32 %v7433, %v11447
    %v11449 = vrot.slane %v7668, %v11448
    %v11450 = vlaneseq
    %v11451 = vshrl.u32 %v11450, 7
    %v11452 = vsub.s32 %v7433, %v11451
    %v11453 = vrot.slane %v7669, %v11452
    %v11454 = vlaneseq
    %v11455 = vshrl.u32 %v11454, 7
    %v11456 = vsub.s32 %v7433, %v11455
    %v11457 = vrot.slane %v7670, %v11456
    %v11458 = vlaneseq
    %v11459 = vshrl.u32 %v11458, 7
    %v11460 = vsub.s32 %v7433, %v11459
    %v11461 = vrot.slane %v7671, %v11460
    %v11462 = vlaneseq
    %v11463 = vshrl.u32 %v11462, 7
    %v11464 = vsub.s32 %v7433, %v11463
    %v11465 = vrot.slane %v7672, %v11464
    %v11466 = vlaneseq
    %v11467 = vshrl.u32 %v11466, 7
    %v11468 = vsub.s32 %v7433, %v11467
    %v11469 = vrot.slane %v7673, %v11468
    %v11470 = vlaneseq
    %v11471 = vshrl.u32 %v11470, 7
    %v11472 = vsub.s32 %v7433, %v11471
    %v11473 = vrot.slane %v7674, %v11472
    %v11474 = vlaneseq
    %v11475 = vshrl.u32 %v11474, 7
    %v11476 = vsub.s32 %v7433, %v11475
    %v11477 = vrot.slane %v7675, %v11476
    %v11478 = vlaneseq
    %v11479 = vshrl.u32 %v11478, 7
    %v11480 = vsub.s32 %v7433, %v11479
    %v11481 = vrot.slane %v7676, %v11480
    %v11482 = vlaneseq
    %v11483 = vshrl.u32 %v11482, 7
    %v11484 = vsub.s32 %v7433, %v11483
    %v11485 = vrot.slane %v7677, %v11484
    %v11486 = vlaneseq
    %v11487 = vshrl.u32 %v11486, 7
    %v11488 = vsub.s32 %v7433, %v11487
    %v11489 = vrot.slane %v7678, %v11488
    %v11490 = vlaneseq
    %v11491 = vshrl.u32 %v11490, 7
    %v11492 = vsub.s32 %v7433, %v11491
    %v11493 = vrot.slane %v7679, %v11492
    %v11494 = vlaneseq
    %v11495 = vshrl.u32 %v11494, 7
    %v11496 = vsub.s32 %v7433, %v11495
    %v11497 = vrot.slane %v7680, %v11496
    %v11498 = vlaneseq
    %v11499 = vshrl.u32 %v11498, 7
    %v11500 = vsub.s32 %v7433, %v11499
    %v11501 = vrot.slane %v7681, %v11500
    %v11502 = vlaneseq
    %v11503 = vshrl.u32 %v11502, 7
    %v11504 = vsub.s32 %v7433, %v11503
    %v11505 = vrot.slane %v7682, %v11504
    %v11506 = vlaneseq
    %v11507 = vshrl.u32 %v11506, 7
    %v11508 = vsub.s32 %v7433, %v11507
    %v11509 = vrot.slane %v7683, %v11508
    %v11510 = vlaneseq
    %v11511 = vshrl.u32 %v11510, 7
    %v11512 = vsub.s32 %v7433, %v11511
    %v11513 = vrot.slane %v7684, %v11512
    %v11514 = vlaneseq
    %v11515 = vshrl.u32 %v11514, 7
    %v11516 = vsub.s32 %v7433, %v11515
    %v11517 = vrot.slane %v7685, %v11516
    %v11518 = vlaneseq
    %v11519 = vshrl.u32 %v11518, 7
    %v11520 = vsub.s32 %v7433, %v11519
    %v11521 = vrot.slane %v7686, %v11520
    %v11522 = vlaneseq
    %v11523 = vshrl.u32 %v11522, 7
    %v11524 = vsub.s32 %v7433, %v11523
    %v11525 = vrot.slane %v7687, %v11524
    %v11526 = vlaneseq
    %v11527 = vshrl.u32 %v11526, 7
    %v11528 = vsub.s32 %v7433, %v11527
    %v11529 = vrot.slane %v7688, %v11528
    %v11530 = vlaneseq
    %v11531 = vshrl.u32 %v11530, 7
    %v11532 = vsub.s32 %v7433, %v11531
    %v11533 = vrot.slane %v7689, %v11532
    %v11534 = vlaneseq
    %v11535 = vshrl.u32 %v11534, 7
    %v11536 = vsub.s32 %v7433, %v11535
    %v11537 = vrot.slane %v7690, %v11536
    %v11538 = vlaneseq
    %v11539 = vshrl.u32 %v11538, 7
    %v11540 = vsub.s32 %v7433, %v11539
    %v11541 = vrot.slane %v7691, %v11540
    %v11542 = vlaneseq
    %v11543 = vshrl.u32 %v11542, 7
    %v11544 = vsub.s32 %v7433, %v11543
    %v11545 = vrot.slane %v7692, %v11544
    %v11546 = vlaneseq
    %v11547 = vshrl.u32 %v11546, 7
    %v11548 = vsub.s32 %v7433, %v11547
    %v11549 = vrot.slane %v7693, %v11548
    %v11550 = vlaneseq
    %v11551 = vshrl.u32 %v11550, 7
    %v11552 = vsub.s32 %v7433, %v11551
    %v11553 = vrot.slane %v7694, %v11552
    %v11554 = vlaneseq
    %v11555 = vshrl.u32 %v11554, 7
    %v11556 = vsub.s32 %v7433, %v11555
    %v11557 = vrot.slane %v7695, %v11556
    %v11558 = vlaneseq
    %v11559 = vshrl.u32 %v11558, 7
    %v11560 = vsub.s32 %v7433, %v11559
    %v11561 = vrot.slane %v7696, %v11560
    %v11562 = vlaneseq
    %v11563 = vshrl.u32 %v11562, 7
    %v11564 = vsub.s32 %v7433, %v11563
    %v11565 = vrot.slane %v7697, %v11564
    %v11566 = vlaneseq
    %v11567 = vshrl.u32 %v11566, 7
    %v11568 = vsub.s32 %v7433, %v11567
    %v11569 = vrot.slane %v7698, %v11568
    %v11570 = vlaneseq
    %v11571 = vshrl.u32 %v11570, 7
    %v11572 = vsub.s32 %v7433, %v11571
    %v11573 = vrot.slane %v7699, %v11572
    %v11574 = vlaneseq
    %v11575 = vshrl.u32 %v11574, 7
    %v11576 = vsub.s32 %v7433, %v11575
    %v11577 = vrot.slane %v7700, %v11576
    %v11578 = vlaneseq
    %v11579 = vshrl.u32 %v11578, 7
    %v11580 = vsub.s32 %v7433, %v11579
    %v11581 = vrot.slane %v7701, %v11580
    %v11582 = vlaneseq
    %v11583 = vshrl.u32 %v11582, 7
    %v11584 = vsub.s32 %v7433, %v11583
    %v11585 = vrot.slane %v7702, %v11584
    %v11586 = vlaneseq
    %v11587 = vshrl.u32 %v11586, 7
    %v11588 = vsub.s32 %v7433, %v11587
    %v11589 = vrot.slane %v7703, %v11588
    %v11590 = vlaneseq
    %v11591 = vshrl.u32 %v11590, 7
    %v11592 = vsub.s32 %v7433, %v11591
    %v11593 = vrot.slane %v7704, %v11592
    %v11594 = vlaneseq
    %v11595 = vshrl.u32 %v11594, 7
    %v11596 = vsub.s32 %v7433, %v11595
    %v11597 = vrot.slane %v7705, %v11596
    %v11598 = vlaneseq
    %v11599 = vshrl.u32 %v11598, 7
    %v11600 = vsub.s32 %v7433, %v11599
    %v11601 = vrot.slane %v7706, %v11600
    %v11602 = vlaneseq
    %v11603 = vshrl.u32 %v11602, 7
    %v11604 = vsub.s32 %v7433, %v11603
    %v11605 = vrot.slane %v7707, %v11604
    %v11606 = vlaneseq
    %v11607 = vshrl.u32 %v11606, 7
    %v11608 = vsub.s32 %v7433, %v11607
    %v11609 = vrot.slane %v7708, %v11608
    %v11610 = vlaneseq
    %v11611 = vshrl.u32 %v11610, 7
    %v11612 = vsub.s32 %v7433, %v11611
    %v11613 = vrot.slane %v7709, %v11612
    %v11614 = vlaneseq
    %v11615 = vshrl.u32 %v11614, 7
    %v11616 = vsub.s32 %v7433, %v11615
    %v11617 = vrot.slane %v7710, %v11616
    %v11618 = vlaneseq
    %v11619 = vshrl.u32 %v11618, 7
    %v11620 = vsub.s32 %v7433, %v11619
    %v11621 = vrot.slane %v7711, %v11620
    %v11622 = vlaneseq
    %v11623 = vshrl.u32 %v11622, 7
    %v11624 = vsub.s32 %v7433, %v11623
    %v11625 = vrot.slane %v7712, %v11624
    %v11626 = vlaneseq
    %v11627 = vshrl.u32 %v11626, 7
    %v11628 = vsub.s32 %v7433, %v11627
    %v11629 = vrot.slane %v7713, %v11628
    %v11630 = vlaneseq
    %v11631 = vshrl.u32 %v11630, 7
    %v11632 = vsub.s32 %v7433, %v11631
    %v11633 = vrot.slane %v7714, %v11632
    %v11634 = vlaneseq
    %v11635 = vshrl.u32 %v11634, 7
    %v11636 = vsub.s32 %v7433, %v11635
    %v11637 = vrot.slane %v7715, %v11636
    %v11638 = vlaneseq
    %v11639 = vshrl.u32 %v11638, 7
    %v11640 = vsub.s32 %v7433, %v11639
    %v11641 = vrot.slane %v7716, %v11640
    %v11642 = vlaneseq
    %v11643 = vshrl.u32 %v11642, 7
    %v11644 = vsub.s32 %v7433, %v11643
    %v11645 = vrot.slane %v7717, %v11644
    %v11646 = vlaneseq
    %v11647 = vshrl.u32 %v11646, 7
    %v11648 = vsub.s32 %v7433, %v11647
    %v11649 = vrot.slane %v7718, %v11648
    %v11650 = vlaneseq
    %v11651 = vshrl.u32 %v11650, 7
    %v11652 = vsub.s32 %v7433, %v11651
    %v11653 = vrot.slane %v7719, %v11652
    %v11654 = vlaneseq
    %v11655 = vshrl.u32 %v11654, 7
    %v11656 = vsub.s32 %v7433, %v11655
    %v11657 = vrot.slane %v7720, %v11656
    %v11658 = vlaneseq
    %v11659 = vshrl.u32 %v11658, 7
    %v11660 = vsub.s32 %v7433, %v11659
    %v11661 = vrot.slane %v7721, %v11660
    %v11662 = vlaneseq
    %v11663 = vshrl.u32 %v11662, 7
    %v11664 = vsub.s32 %v7433, %v11663
    %v11665 = vrot.slane %v7722, %v11664
    %v11666 = vlaneseq
    %v11667 = vshrl.u32 %v11666, 7
    %v11668 = vsub.s32 %v7433, %v11667
    %v11669 = vrot.slane %v7723, %v11668
    %v11670 = vlaneseq
    %v11671 = vshrl.u32 %v11670, 7
    %v11672 = vsub.s32 %v7433, %v11671
    %v11673 = vrot.slane %v7724, %v11672
    %v11674 = vlaneseq
    %v11675 = vshrl.u32 %v11674, 7
    %v11676 = vsub.s32 %v7433, %v11675
    %v11677 = vrot.slane %v7725, %v11676
    %v11678 = vlaneseq
    %v11679 = vshrl.u32 %v11678, 7
    %v11680 = vsub.s32 %v7433, %v11679
    %v11681 = vrot.slane %v7726, %v11680
    %v11682 = vlaneseq
    %v11683 = vshrl.u32 %v11682, 7
    %v11684 = vsub.s32 %v7433, %v11683
    %v11685 = vrot.slane %v7727, %v11684
    %v11686 = vlaneseq
    %v11687 = vshrl.u32 %v11686, 7
    %v11688 = vsub.s32 %v7433, %v11687
    %v11689 = vrot.slane %v7728, %v11688
    %v11690 = vlaneseq
    %v11691 = vshrl.u32 %v11690, 7
    %v11692 = vsub.s32 %v7433, %v11691
    %v11693 = vrot.slane %v7729, %v11692
    %v11694 = vlaneseq
    %v11695 = vshrl.u32 %v11694, 7
    %v11696 = vsub.s32 %v7433, %v11695
    %v11697 = vrot.slane %v7730, %v11696
    %v11698 = vlaneseq
    %v11699 = vshrl.u32 %v11698, 7
    %v11700 = vsub.s32 %v7433, %v11699
    %v11701 = vrot.slane %v7731, %v11700
    %v11702 = vlaneseq
    %v11703 = vshrl.u32 %v11702, 7
    %v11704 = vsub.s32 %v7433, %v11703
    %v11705 = vrot.slane %v7732, %v11704
    %v11706 = vlaneseq
    %v11707 = vshrl.u32 %v11706, 7
    %v11708 = vsub.s32 %v7433, %v11707
    %v11709 = vrot.slane %v7733, %v11708
    %v11710 = vlaneseq
    %v11711 = vshrl.u32 %v11710, 7
    %v11712 = vsub.s32 %v7433, %v11711
    %v11713 = vrot.slane %v7734, %v11712
    %v11714 = vlaneseq
    %v11715 = vshrl.u32 %v11714, 7
    %v11716 = vsub.s32 %v7433, %v11715
    %v11717 = vrot.slane %v7735, %v11716
    %v11718 = vlaneseq
    %v11719 = vshrl.u32 %v11718, 7
    %v11720 = vsub.s32 %v7433, %v11719
    %v11721 = vrot.slane %v7736, %v11720
    %v11722 = vlaneseq
    %v11723 = vshrl.u32 %v11722, 7
    %v11724 = vsub.s32 %v7433, %v11723
    %v11725 = vrot.slane %v7737, %v11724
    %v11726 = vlaneseq
    %v11727 = vshrl.u32 %v11726, 7
    %v11728 = vsub.s32 %v7433, %v11727
    %v11729 = vrot.slane %v7738, %v11728
    %v11730 = vlaneseq
    %v11731 = vshrl.u32 %v11730, 7
    %v11732 = vsub.s32 %v7433, %v11731
    %v11733 = vrot.slane %v7739, %v11732
    %v11734 = vlaneseq
    %v11735 = vshrl.u32 %v11734, 7
    %v11736 = vsub.s32 %v7433, %v11735
    %v11737 = vrot.slane %v7740, %v11736
    %v11738 = vlaneseq
    %v11739 = vshrl.u32 %v11738, 7
    %v11740 = vsub.s32 %v7433, %v11739
    %v11741 = vrot.slane %v7741, %v11740
    %v11742 = vlaneseq
    %v11743 = vshrl.u32 %v11742, 7
    %v11744 = vsub.s32 %v7433, %v11743
    %v11745 = vrot.slane %v7742, %v11744
    %v11746 = vlaneseq
    %v11747 = vshrl.u32 %v11746, 7
    %v11748 = vsub.s32 %v7433, %v11747
    %v11749 = vrot.slane %v7743, %v11748
    %v11750 = vlaneseq
    %v11751 = vshrl.u32 %v11750, 7
    %v11752 = vsub.s32 %v7433, %v11751
    %v11753 = vrot.slane %v7744, %v11752
    %v11754 = vlaneseq
    %v11755 = vshrl.u32 %v11754, 7
    %v11756 = vsub.s32 %v7433, %v11755
    %v11757 = vrot.slane %v7745, %v11756
    %v11758 = vlaneseq
    %v11759 = vshrl.u32 %v11758, 7
    %v11760 = vsub.s32 %v7433, %v11759
    %v11761 = vrot.slane %v7746, %v11760
    %v11762 = vlaneseq
    %v11763 = vshrl.u32 %v11762, 7
    %v11764 = vsub.s32 %v7433, %v11763
    %v11765 = vrot.slane %v7747, %v11764
    %v11766 = vlaneseq
    %v11767 = vshrl.u32 %v11766, 7
    %v11768 = vsub.s32 %v7433, %v11767
    %v11769 = vrot.slane %v7748, %v11768
    %v11770 = vlaneseq
    %v11771 = vshrl.u32 %v11770, 7
    %v11772 = vsub.s32 %v7433, %v11771
    %v11773 = vrot.slane %v7749, %v11772
    %v11774 = vlaneseq
    %v11775 = vshrl.u32 %v11774, 7
    %v11776 = vsub.s32 %v7433, %v11775
    %v11777 = vrot.slane %v7750, %v11776
    %v11778 = vlaneseq
    %v11779 = vshrl.u32 %v11778, 7
    %v11780 = vsub.s32 %v7433, %v11779
    %v11781 = vrot.slane %v7751, %v11780
    %v11782 = vlaneseq
    %v11783 = vshrl.u32 %v11782, 7
    %v11784 = vsub.s32 %v7433, %v11783
    %v11785 = vrot.slane %v7752, %v11784
    %v11786 = vlaneseq
    %v11787 = vshrl.u32 %v11786, 7
    %v11788 = vsub.s32 %v7433, %v11787
    %v11789 = vrot.slane %v7753, %v11788
    %v11790 = vlaneseq
    %v11791 = vshrl.u32 %v11790, 7
    %v11792 = vsub.s32 %v7433, %v11791
    %v11793 = vrot.slane %v7754, %v11792
    %v11794 = vlaneseq
    %v11795 = vshrl.u32 %v11794, 7
    %v11796 = vsub.s32 %v7433, %v11795
    %v11797 = vrot.slane %v7755, %v11796
    %v11798 = vlaneseq
    %v11799 = vshrl.u32 %v11798, 7
    %v11800 = vsub.s32 %v7433, %v11799
    %v11801 = vrot.slane %v7756, %v11800
    %v11802 = vlaneseq
    %v11803 = vshrl.u32 %v11802, 7
    %v11804 = vsub.s32 %v7433, %v11803
    %v11805 = vrot.slane %v7757, %v11804
    %v11806 = vlaneseq
    %v11807 = vshrl.u32 %v11806, 7
    %v11808 = vsub.s32 %v7433, %v11807
    %v11809 = vrot.slane %v7758, %v11808
    %v11810 = vlaneseq
    %v11811 = vshrl.u32 %v11810, 7
    %v11812 = vsub.s32 %v7433, %v11811
    %v11813 = vrot.slane %v7759, %v11812
    %v11814 = vlaneseq
    %v11815 = vshrl.u32 %v11814, 7
    %v11816 = vsub.s32 %v7433, %v11815
    %v11817 = vrot.slane %v7760, %v11816
    %v11818 = vlaneseq
    %v11819 = vshrl.u32 %v11818, 7
    %v11820 = vsub.s32 %v7433, %v11819
    %v11821 = vrot.slane %v7761, %v11820
    %v11822 = vlaneseq
    %v11823 = vshrl.u32 %v11822, 7
    %v11824 = vsub.s32 %v7433, %v11823
    %v11825 = vrot.slane %v7762, %v11824
    %v11826 = vlaneseq
    %v11827 = vshrl.u32 %v11826, 7
    %v11828 = vsub.s32 %v7433, %v11827
    %v11829 = vrot.slane %v7763, %v11828
    %v11830 = vlaneseq
    %v11831 = vshrl.u32 %v11830, 7
    %v11832 = vsub.s32 %v7433, %v11831
    %v11833 = vrot.slane %v7764, %v11832
    %v11834 = vlaneseq
    %v11835 = vshrl.u32 %v11834, 7
    %v11836 = vsub.s32 %v7433, %v11835
    %v11837 = vrot.slane %v7765, %v11836
    %v11838 = vlaneseq
    %v11839 = vshrl.u32 %v11838, 7
    %v11840 = vsub.s32 %v7433, %v11839
    %v11841 = vrot.slane %v7766, %v11840
    %v11842 = vlaneseq
    %v11843 = vshrl.u32 %v11842, 7
    %v11844 = vsub.s32 %v7433, %v11843
    %v11845 = vrot.slane %v7767, %v11844
    %v11846 = vlaneseq
    %v11847 = vshrl.u32 %v11846, 7
    %v11848 = vsub.s32 %v7433, %v11847
    %v11849 = vrot.slane %v7768, %v11848
    %v11850 = vlaneseq
    %v11851 = vshrl.u32 %v11850, 7
    %v11852 = vsub.s32 %v7433, %v11851
    %v11853 = vrot.slane %v7769, %v11852
    %v11854 = vlaneseq
    %v11855 = vshrl.u32 %v11854, 7
    %v11856 = vsub.s32 %v7433, %v11855
    %v11857 = vrot.slane %v7770, %v11856
    %v11858 = vlaneseq
    %v11859 = vshrl.u32 %v11858, 7
    %v11860 = vsub.s32 %v7433, %v11859
    %v11861 = vrot.slane %v7771, %v11860
    %v11862 = vlaneseq
    %v11863 = vshrl.u32 %v11862, 7
    %v11864 = vsub.s32 %v7433, %v11863
    %v11865 = vrot.slane %v7772, %v11864
    %v11866 = vlaneseq
    %v11867 = vshrl.u32 %v11866, 7
    %v11868 = vsub.s32 %v7433, %v11867
    %v11869 = vrot.slane %v7773, %v11868
    %v11870 = vlaneseq
    %v11871 = vshrl.u32 %v11870, 7
    %v11872 = vsub.s32 %v7433, %v11871
    %v11873 = vrot.slane %v7774, %v11872
    %v11874 = vlaneseq
    %v11875 = vshrl.u32 %v11874, 7
    %v11876 = vsub.s32 %v7433, %v11875
    %v11877 = vrot.slane %v7775, %v11876
    %v11878 = vlaneseq
    %v11879 = vshrl.u32 %v11878, 7
    %v11880 = vsub.s32 %v7433, %v11879
    %v11881 = vrot.slane %v7776, %v11880
    %v11882 = vlaneseq
    %v11883 = vshrl.u32 %v11882, 7
    %v11884 = vsub.s32 %v7433, %v11883
    %v11885 = vrot.slane %v7777, %v11884
    %v11886 = vlaneseq
    %v11887 = vshrl.u32 %v11886, 7
    %v11888 = vsub.s32 %v7433, %v11887
    %v11889 = vrot.slane %v7778, %v11888
    %v11890 = vlaneseq
    %v11891 = vshrl.u32 %v11890, 7
    %v11892 = vsub.s32 %v7433, %v11891
    %v11893 = vrot.slane %v7779, %v11892
    %v11894 = vlaneseq
    %v11895 = vshrl.u32 %v11894, 7
    %v11896 = vsub.s32 %v7433, %v11895
    %v11897 = vrot.slane %v7780, %v11896
    %v11898 = vlaneseq
    %v11899 = vshrl.u32 %v11898, 7
    %v11900 = vsub.s32 %v7433, %v11899
    %v11901 = vrot.slane %v7781, %v11900
    %v11902 = vlaneseq
    %v11903 = vshrl.u32 %v11902, 7
    %v11904 = vsub.s32 %v7433, %v11903
    %v11905 = vrot.slane %v7782, %v11904
    %v11906 = vlaneseq
    %v11907 = vshrl.u32 %v11906, 7
    %v11908 = vsub.s32 %v7433, %v11907
    %v11909 = vrot.slane %v7783, %v11908
    %v11910 = vlaneseq
    %v11911 = vshrl.u32 %v11910, 7
    %v11912 = vsub.s32 %v7433, %v11911
    %v11913 = vrot.slane %v7784, %v11912
    %v11914 = vlaneseq
    %v11915 = vshrl.u32 %v11914, 7
    %v11916 = vsub.s32 %v7433, %v11915
    %v11917 = vrot.slane %v7785, %v11916
    %v11918 = vlaneseq
    %v11919 = vshrl.u32 %v11918, 7
    %v11920 = vsub.s32 %v7433, %v11919
    %v11921 = vrot.slane %v7786, %v11920
    %v11922 = vlaneseq
    %v11923 = vshrl.u32 %v11922, 7
    %v11924 = vsub.s32 %v7433, %v11923
    %v11925 = vrot.slane %v7787, %v11924
    %v11926 = vlaneseq
    %v11927 = vshrl.u32 %v11926, 7
    %v11928 = vsub.s32 %v7433, %v11927
    %v11929 = vrot.slane %v7788, %v11928
    %v11930 = vlaneseq
    %v11931 = vshrl.u32 %v11930, 7
    %v11932 = vsub.s32 %v7433, %v11931
    %v11933 = vrot.slane %v7789, %v11932
    %v11934 = vlaneseq
    %v11935 = vshrl.u32 %v11934, 7
    %v11936 = vsub.s32 %v7433, %v11935
    %v11937 = vrot.slane %v7790, %v11936
    %v11938 = vlaneseq
    %v11939 = vshrl.u32 %v11938, 7
    %v11940 = vsub.s32 %v7433, %v11939
    %v11941 = vrot.slane %v7791, %v11940
    %v11942 = vlaneseq
    %v11943 = vshrl.u32 %v11942, 7
    %v11944 = vsub.s32 %v7433, %v11943
    %v11945 = vrot.slane %v7792, %v11944
    %v11946 = vlaneseq
    %v11947 = vshrl.u32 %v11946, 7
    %v11948 = vsub.s32 %v7433, %v11947
    %v11949 = vrot.slane %v7793, %v11948
    %v11950 = vlaneseq
    %v11951 = vshrl.u32 %v11950, 7
    %v11952 = vsub.s32 %v7433, %v11951
    %v11953 = vrot.slane %v7794, %v11952
    %v11954 = vlaneseq
    %v11955 = vshrl.u32 %v11954, 7
    %v11956 = vsub.s32 %v7433, %v11955
    %v11957 = vrot.slane %v7795, %v11956
    %v11958 = vlaneseq
    %v11959 = vshrl.u32 %v11958, 7
    %v11960 = vsub.s32 %v7433, %v11959
    %v11961 = vrot.slane %v7796, %v11960
    %v11962 = vlaneseq
    %v11963 = vshrl.u32 %v11962, 7
    %v11964 = vsub.s32 %v7433, %v11963
    %v11965 = vrot.slane %v7797, %v11964
    %v11966 = vlaneseq
    %v11967 = vshrl.u32 %v11966, 7
    %v11968 = vsub.s32 %v7433, %v11967
    %v11969 = vrot.slane %v7798, %v11968
    %v11970 = vlaneseq
    %v11971 = vshrl.u32 %v11970, 7
    %v11972 = vsub.s32 %v7433, %v11971
    %v11973 = vrot.slane %v7799, %v11972
    %v11974 = vlaneseq
    %v11975 = vshrl.u32 %v11974, 7
    %v11976 = vsub.s32 %v7433, %v11975
    %v11977 = vrot.slane %v7800, %v11976
    %v11978 = vlaneseq
    %v11979 = vshrl.u32 %v11978, 7
    %v11980 = vsub.s32 %v7433, %v11979
    %v11981 = vrot.slane %v7801, %v11980
    %v11982 = vlaneseq
    %v11983 = vshrl.u32 %v11982, 7
    %v11984 = vsub.s32 %v7433, %v11983
    %v11985 = vrot.slane %v7802, %v11984
    %v11986 = vlaneseq
    %v11987 = vshrl.u32 %v11986, 7
    %v11988 = vsub.s32 %v7433, %v11987
    %v11989 = vrot.slane %v7803, %v11988
    %v11990 = vlaneseq
    %v11991 = vshrl.u32 %v11990, 7
    %v11992 = vsub.s32 %v7433, %v11991
    %v11993 = vrot.slane %v7804, %v11992
    %v11994 = vlaneseq
    %v11995 = vshrl.u32 %v11994, 7
    %v11996 = vsub.s32 %v7433, %v11995
    %v11997 = vrot.slane %v7805, %v11996
    %v11998 = vlaneseq
    %v11999 = vshrl.u32 %v11998, 7
    %v12000 = vsub.s32 %v7433, %v11999
    %v12001 = vrot.slane %v7806, %v12000
    %v12002 = vlaneseq
    %v12003 = vshrl.u32 %v12002, 7
    %v12004 = vsub.s32 %v7433, %v12003
    %v12005 = vrot.slane %v7807, %v12004
    %v12006 = vlaneseq
    %v12007 = vshrl.u32 %v12006, 7
    %v12008 = vsub.s32 %v7433, %v12007
    %v12009 = vrot.slane %v7808, %v12008
    %v12010 = vlaneseq
    %v12011 = vshrl.u32 %v12010, 7
    %v12012 = vsub.s32 %v7433, %v12011
    %v12013 = vrot.slane %v7809, %v12012
    %v12014 = vlaneseq
    %v12015 = vshrl.u32 %v12014, 7
    %v12016 = vsub.s32 %v7433, %v12015
    %v12017 = vrot.slane %v7810, %v12016
    %v12018 = vlaneseq
    %v12019 = vshrl.u32 %v12018, 7
    %v12020 = vsub.s32 %v7433, %v12019
    %v12021 = vrot.slane %v7811, %v12020
    %v12022 = vlaneseq
    %v12023 = vshrl.u32 %v12022, 7
    %v12024 = vsub.s32 %v7433, %v12023
    %v12025 = vrot.slane %v7812, %v12024
    %v12026 = vlaneseq
    %v12027 = vshrl.u32 %v12026, 7
    %v12028 = vsub.s32 %v7433, %v12027
    %v12029 = vrot.slane %v7813, %v12028
    %v12030 = vlaneseq
    %v12031 = vshrl.u32 %v12030, 7
    %v12032 = vsub.s32 %v7433, %v12031
    %v12033 = vrot.slane %v7814, %v12032
    %v12034 = vlaneseq
    %v12035 = vshrl.u32 %v12034, 7
    %v12036 = vsub.s32 %v7433, %v12035
    %v12037 = vrot.slane %v7815, %v12036
    %v12038 = vlaneseq
    %v12039 = vshrl.u32 %v12038, 7
    %v12040 = vsub.s32 %v7433, %v12039
    %v12041 = vrot.slane %v7816, %v12040
    %v12042 = vlaneseq
    %v12043 = vshrl.u32 %v12042, 7
    %v12044 = vsub.s32 %v7433, %v12043
    %v12045 = vrot.slane %v7817, %v12044
    %v12046 = vlaneseq
    %v12047 = vshrl.u32 %v12046, 7
    %v12048 = vsub.s32 %v7433, %v12047
    %v12049 = vrot.slane %v7818, %v12048
    %v12050 = vsel %vm9739, %v10521, %v10517
    %v12051 = vsel %vm9741, %v10525, %v12050
    %v12052 = vsel %vm9743, %v10529, %v12051
    %v12053 = vsel %vm9745, %v10533, %v12052
    %v12054 = vsel %vm9747, %v10537, %v12053
    %v12055 = vsel %vm9749, %v10541, %v12054
    %v12056 = vsel %vm9751, %v10545, %v12055
    %v12057 = vsel %vm9739, %v10553, %v10549
    %v12058 = vsel %vm9741, %v10557, %v12057
    %v12059 = vsel %vm9743, %v10561, %v12058
    %v12060 = vsel %vm9745, %v10565, %v12059
    %v12061 = vsel %vm9747, %v10569, %v12060
    %v12062 = vsel %vm9749, %v10573, %v12061
    %v12063 = vsel %vm9751, %v10577, %v12062
    %v12064 = vsel %vm9739, %v10585, %v10581
    %v12065 = vsel %vm9741, %v10589, %v12064
    %v12066 = vsel %vm9743, %v10593, %v12065
    %v12067 = vsel %vm9745, %v10597, %v12066
    %v12068 = vsel %vm9747, %v10601, %v12067
    %v12069 = vsel %vm9749, %v10605, %v12068
    %v12070 = vsel %vm9751, %v10609, %v12069
    %v12071 = vsel %vm9739, %v10617, %v10613
    %v12072 = vsel %vm9741, %v10621, %v12071
    %v12073 = vsel %vm9743, %v10625, %v12072
    %v12074 = vsel %vm9745, %v10629, %v12073
    %v12075 = vsel %vm9747, %v10633, %v12074
    %v12076 = vsel %vm9749, %v10637, %v12075
    %v12077 = vsel %vm9751, %v10641, %v12076
    %v12078 = vsel %vm9739, %v10649, %v10645
    %v12079 = vsel %vm9741, %v10653, %v12078
    %v12080 = vsel %vm9743, %v10657, %v12079
    %v12081 = vsel %vm9745, %v10661, %v12080
    %v12082 = vsel %vm9747, %v10665, %v12081
    %v12083 = vsel %vm9749, %v10669, %v12082
    %v12084 = vsel %vm9751, %v10673, %v12083
    %v12085 = vsel %vm9739, %v10681, %v10677
    %v12086 = vsel %vm9741, %v10685, %v12085
    %v12087 = vsel %vm9743, %v10689, %v12086
    %v12088 = vsel %vm9745, %v10693, %v12087
    %v12089 = vsel %vm9747, %v10697, %v12088
    %v12090 = vsel %vm9749, %v10701, %v12089
    %v12091 = vsel %vm9751, %v10705, %v12090
    %v12092 = vsel %vm9739, %v10713, %v10709
    %v12093 = vsel %vm9741, %v10717, %v12092
    %v12094 = vsel %vm9743, %v10721, %v12093
    %v12095 = vsel %vm9745, %v10725, %v12094
    %v12096 = vsel %vm9747, %v10729, %v12095
    %v12097 = vsel %vm9749, %v10733, %v12096
    %v12098 = vsel %vm9751, %v10737, %v12097
    %v12099 = vsel %vm9739, %v10745, %v10741
    %v12100 = vsel %vm9741, %v10749, %v12099
    %v12101 = vsel %vm9743, %v10753, %v12100
    %v12102 = vsel %vm9745, %v10757, %v12101
    %v12103 = vsel %vm9747, %v10761, %v12102
    %v12104 = vsel %vm9749, %v10765, %v12103
    %v12105 = vsel %vm9751, %v10769, %v12104
    %v12106 = vsel %vm9739, %v10777, %v10773
    %v12107 = vsel %vm9741, %v10781, %v12106
    %v12108 = vsel %vm9743, %v10785, %v12107
    %v12109 = vsel %vm9745, %v10789, %v12108
    %v12110 = vsel %vm9747, %v10793, %v12109
    %v12111 = vsel %vm9749, %v10797, %v12110
    %v12112 = vsel %vm9751, %v10801, %v12111
    %v12113 = vsel %vm9739, %v10809, %v10805
    %v12114 = vsel %vm9741, %v10813, %v12113
    %v12115 = vsel %vm9743, %v10817, %v12114
    %v12116 = vsel %vm9745, %v10821, %v12115
    %v12117 = vsel %vm9747, %v10825, %v12116
    %v12118 = vsel %vm9749, %v10829, %v12117
    %v12119 = vsel %vm9751, %v10833, %v12118
    %v12120 = vsel %vm9739, %v10841, %v10837
    %v12121 = vsel %vm9741, %v10845, %v12120
    %v12122 = vsel %vm9743, %v10849, %v12121
    %v12123 = vsel %vm9745, %v10853, %v12122
    %v12124 = vsel %vm9747, %v10857, %v12123
    %v12125 = vsel %vm9749, %v10861, %v12124
    %v12126 = vsel %vm9751, %v10865, %v12125
    %v12127 = vsel %vm9739, %v10873, %v10869
    %v12128 = vsel %vm9741, %v10877, %v12127
    %v12129 = vsel %vm9743, %v10881, %v12128
    %v12130 = vsel %vm9745, %v10885, %v12129
    %v12131 = vsel %vm9747, %v10889, %v12130
    %v12132 = vsel %vm9749, %v10893, %v12131
    %v12133 = vsel %vm9751, %v10897, %v12132
    %v12134 = vsel %vm9739, %v10905, %v10901
    %v12135 = vsel %vm9741, %v10909, %v12134
    %v12136 = vsel %vm9743, %v10913, %v12135
    %v12137 = vsel %vm9745, %v10917, %v12136
    %v12138 = vsel %vm9747, %v10921, %v12137
    %v12139 = vsel %vm9749, %v10925, %v12138
    %v12140 = vsel %vm9751, %v10929, %v12139
    %v12141 = vsel %vm9739, %v10937, %v10933
    %v12142 = vsel %vm9741, %v10941, %v12141
    %v12143 = vsel %vm9743, %v10945, %v12142
    %v12144 = vsel %vm9745, %v10949, %v12143
    %v12145 = vsel %vm9747, %v10953, %v12144
    %v12146 = vsel %vm9749, %v10957, %v12145
    %v12147 = vsel %vm9751, %v10961, %v12146
    %v12148 = vsel %vm9739, %v10969, %v10965
    %v12149 = vsel %vm9741, %v10973, %v12148
    %v12150 = vsel %vm9743, %v10977, %v12149
    %v12151 = vsel %vm9745, %v10981, %v12150
    %v12152 = vsel %vm9747, %v10985, %v12151
    %v12153 = vsel %vm9749, %v10989, %v12152
    %v12154 = vsel %vm9751, %v10993, %v12153
    %v12155 = vsel %vm9739, %v11001, %v10997
    %v12156 = vsel %vm9741, %v11005, %v12155
    %v12157 = vsel %vm9743, %v11009, %v12156
    %v12158 = vsel %vm9745, %v11013, %v12157
    %v12159 = vsel %vm9747, %v11017, %v12158
    %v12160 = vsel %vm9749, %v11021, %v12159
    %v12161 = vsel %vm9751, %v11025, %v12160
    %v12162 = vsel %vm9739, %v11033, %v11029
    %v12163 = vsel %vm9741, %v11037, %v12162
    %v12164 = vsel %vm9743, %v11041, %v12163
    %v12165 = vsel %vm9745, %v11045, %v12164
    %v12166 = vsel %vm9747, %v11049, %v12165
    %v12167 = vsel %vm9749, %v11053, %v12166
    %v12168 = vsel %vm9751, %v11057, %v12167
    %v12169 = vsel %vm9739, %v11065, %v11061
    %v12170 = vsel %vm9741, %v11069, %v12169
    %v12171 = vsel %vm9743, %v11073, %v12170
    %v12172 = vsel %vm9745, %v11077, %v12171
    %v12173 = vsel %vm9747, %v11081, %v12172
    %v12174 = vsel %vm9749, %v11085, %v12173
    %v12175 = vsel %vm9751, %v11089, %v12174
    %v12176 = vsel %vm9739, %v11097, %v11093
    %v12177 = vsel %vm9741, %v11101, %v12176
    %v12178 = vsel %vm9743, %v11105, %v12177
    %v12179 = vsel %vm9745, %v11109, %v12178
    %v12180 = vsel %vm9747, %v11113, %v12179
    %v12181 = vsel %vm9749, %v11117, %v12180
    %v12182 = vsel %vm9751, %v11121, %v12181
    %v12183 = vsel %vm9739, %v11129, %v11125
    %v12184 = vsel %vm9741, %v11133, %v12183
    %v12185 = vsel %vm9743, %v11137, %v12184
    %v12186 = vsel %vm9745, %v11141, %v12185
    %v12187 = vsel %vm9747, %v11145, %v12186
    %v12188 = vsel %vm9749, %v11149, %v12187
    %v12189 = vsel %vm9751, %v11153, %v12188
    %v12190 = vsel %vm9739, %v11161, %v11157
    %v12191 = vsel %vm9741, %v11165, %v12190
    %v12192 = vsel %vm9743, %v11169, %v12191
    %v12193 = vsel %vm9745, %v11173, %v12192
    %v12194 = vsel %vm9747, %v11177, %v12193
    %v12195 = vsel %vm9749, %v11181, %v12194
    %v12196 = vsel %vm9751, %v11185, %v12195
    %v12197 = vsel %vm9739, %v11193, %v11189
    %v12198 = vsel %vm9741, %v11197, %v12197
    %v12199 = vsel %vm9743, %v11201, %v12198
    %v12200 = vsel %vm9745, %v11205, %v12199
    %v12201 = vsel %vm9747, %v11209, %v12200
    %v12202 = vsel %vm9749, %v11213, %v12201
    %v12203 = vsel %vm9751, %v11217, %v12202
    %v12204 = vsel %vm9739, %v11225, %v11221
    %v12205 = vsel %vm9741, %v11229, %v12204
    %v12206 = vsel %vm9743, %v11233, %v12205
    %v12207 = vsel %vm9745, %v11237, %v12206
    %v12208 = vsel %vm9747, %v11241, %v12207
    %v12209 = vsel %vm9749, %v11245, %v12208
    %v12210 = vsel %vm9751, %v11249, %v12209
    %v12211 = vsel %vm9739, %v11257, %v11253
    %v12212 = vsel %vm9741, %v11261, %v12211
    %v12213 = vsel %vm9743, %v11265, %v12212
    %v12214 = vsel %vm9745, %v11269, %v12213
    %v12215 = vsel %vm9747, %v11273, %v12214
    %v12216 = vsel %vm9749, %v11277, %v12215
    %v12217 = vsel %vm9751, %v11281, %v12216
    %v12218 = vsel %vm9739, %v11289, %v11285
    %v12219 = vsel %vm9741, %v11293, %v12218
    %v12220 = vsel %vm9743, %v11297, %v12219
    %v12221 = vsel %vm9745, %v11301, %v12220
    %v12222 = vsel %vm9747, %v11305, %v12221
    %v12223 = vsel %vm9749, %v11309, %v12222
    %v12224 = vsel %vm9751, %v11313, %v12223
    %v12225 = vsel %vm9739, %v11321, %v11317
    %v12226 = vsel %vm9741, %v11325, %v12225
    %v12227 = vsel %vm9743, %v11329, %v12226
    %v12228 = vsel %vm9745, %v11333, %v12227
    %v12229 = vsel %vm9747, %v11337, %v12228
    %v12230 = vsel %vm9749, %v11341, %v12229
    %v12231 = vsel %vm9751, %v11345, %v12230
    %v12232 = vsel %vm9739, %v11353, %v11349
    %v12233 = vsel %vm9741, %v11357, %v12232
    %v12234 = vsel %vm9743, %v11361, %v12233
    %v12235 = vsel %vm9745, %v11365, %v12234
    %v12236 = vsel %vm9747, %v11369, %v12235
    %v12237 = vsel %vm9749, %v11373, %v12236
    %v12238 = vsel %vm9751, %v11377, %v12237
    %v12239 = vsel %vm9739, %v11385, %v11381
    %v12240 = vsel %vm9741, %v11389, %v12239
    %v12241 = vsel %vm9743, %v11393, %v12240
    %v12242 = vsel %vm9745, %v11397, %v12241
    %v12243 = vsel %vm9747, %v11401, %v12242
    %v12244 = vsel %vm9749, %v11405, %v12243
    %v12245 = vsel %vm9751, %v11409, %v12244
    %v12246 = vsel %vm9739, %v11417, %v11413
    %v12247 = vsel %vm9741, %v11421, %v12246
    %v12248 = vsel %vm9743, %v11425, %v12247
    %v12249 = vsel %vm9745, %v11429, %v12248
    %v12250 = vsel %vm9747, %v11433, %v12249
    %v12251 = vsel %vm9749, %v11437, %v12250
    %v12252 = vsel %vm9751, %v11441, %v12251
    %v12253 = vsel %vm9739, %v11449, %v11445
    %v12254 = vsel %vm9741, %v11453, %v12253
    %v12255 = vsel %vm9743, %v11457, %v12254
    %v12256 = vsel %vm9745, %v11461, %v12255
    %v12257 = vsel %vm9747, %v11465, %v12256
    %v12258 = vsel %vm9749, %v11469, %v12257
    %v12259 = vsel %vm9751, %v11473, %v12258
    %v12260 = vsel %vm9739, %v11481, %v11477
    %v12261 = vsel %vm9741, %v11485, %v12260
    %v12262 = vsel %vm9743, %v11489, %v12261
    %v12263 = vsel %vm9745, %v11493, %v12262
    %v12264 = vsel %vm9747, %v11497, %v12263
    %v12265 = vsel %vm9749, %v11501, %v12264
    %v12266 = vsel %vm9751, %v11505, %v12265
    %v12267 = vsel %vm9739, %v11513, %v11509
    %v12268 = vsel %vm9741, %v11517, %v12267
    %v12269 = vsel %vm9743, %v11521, %v12268
    %v12270 = vsel %vm9745, %v11525, %v12269
    %v12271 = vsel %vm9747, %v11529, %v12270
    %v12272 = vsel %vm9749, %v11533, %v12271
    %v12273 = vsel %vm9751, %v11537, %v12272
    %v12274 = vsel %vm9739, %v11545, %v11541
    %v12275 = vsel %vm9741, %v11549, %v12274
    %v12276 = vsel %vm9743, %v11553, %v12275
    %v12277 = vsel %vm9745, %v11557, %v12276
    %v12278 = vsel %vm9747, %v11561, %v12277
    %v12279 = vsel %vm9749, %v11565, %v12278
    %v12280 = vsel %vm9751, %v11569, %v12279
    %v12281 = vsel %vm9739, %v11577, %v11573
    %v12282 = vsel %vm9741, %v11581, %v12281
    %v12283 = vsel %vm9743, %v11585, %v12282
    %v12284 = vsel %vm9745, %v11589, %v12283
    %v12285 = vsel %vm9747, %v11593, %v12284
    %v12286 = vsel %vm9749, %v11597, %v12285
    %v12287 = vsel %vm9751, %v11601, %v12286
    %v12288 = vsel %vm9739, %v11609, %v11605
    %v12289 = vsel %vm9741, %v11613, %v12288
    %v12290 = vsel %vm9743, %v11617, %v12289
    %v12291 = vsel %vm9745, %v11621, %v12290
    %v12292 = vsel %vm9747, %v11625, %v12291
    %v12293 = vsel %vm9749, %v11629, %v12292
    %v12294 = vsel %vm9751, %v11633, %v12293
    %v12295 = vsel %vm9739, %v11641, %v11637
    %v12296 = vsel %vm9741, %v11645, %v12295
    %v12297 = vsel %vm9743, %v11649, %v12296
    %v12298 = vsel %vm9745, %v11653, %v12297
    %v12299 = vsel %vm9747, %v11657, %v12298
    %v12300 = vsel %vm9749, %v11661, %v12299
    %v12301 = vsel %vm9751, %v11665, %v12300
    %v12302 = vsel %vm9739, %v11673, %v11669
    %v12303 = vsel %vm9741, %v11677, %v12302
    %v12304 = vsel %vm9743, %v11681, %v12303
    %v12305 = vsel %vm9745, %v11685, %v12304
    %v12306 = vsel %vm9747, %v11689, %v12305
    %v12307 = vsel %vm9749, %v11693, %v12306
    %v12308 = vsel %vm9751, %v11697, %v12307
    %v12309 = vsel %vm9739, %v11705, %v11701
    %v12310 = vsel %vm9741, %v11709, %v12309
    %v12311 = vsel %vm9743, %v11713, %v12310
    %v12312 = vsel %vm9745, %v11717, %v12311
    %v12313 = vsel %vm9747, %v11721, %v12312
    %v12314 = vsel %vm9749, %v11725, %v12313
    %v12315 = vsel %vm9751, %v11729, %v12314
    %v12316 = vsel %vm9739, %v11737, %v11733
    %v12317 = vsel %vm9741, %v11741, %v12316
    %v12318 = vsel %vm9743, %v11745, %v12317
    %v12319 = vsel %vm9745, %v11749, %v12318
    %v12320 = vsel %vm9747, %v11753, %v12319
    %v12321 = vsel %vm9749, %v11757, %v12320
    %v12322 = vsel %vm9751, %v11761, %v12321
    %v12323 = vsel %vm9739, %v11769, %v11765
    %v12324 = vsel %vm9741, %v11773, %v12323
    %v12325 = vsel %vm9743, %v11777, %v12324
    %v12326 = vsel %vm9745, %v11781, %v12325
    %v12327 = vsel %vm9747, %v11785, %v12326
    %v12328 = vsel %vm9749, %v11789, %v12327
    %v12329 = vsel %vm9751, %v11793, %v12328
    %v12330 = vsel %vm9739, %v11801, %v11797
    %v12331 = vsel %vm9741, %v11805, %v12330
    %v12332 = vsel %vm9743, %v11809, %v12331
    %v12333 = vsel %vm9745, %v11813, %v12332
    %v12334 = vsel %vm9747, %v11817, %v12333
    %v12335 = vsel %vm9749, %v11821, %v12334
    %v12336 = vsel %vm9751, %v11825, %v12335
    %v12337 = vsel %vm9739, %v11833, %v11829
    %v12338 = vsel %vm9741, %v11837, %v12337
    %v12339 = vsel %vm9743, %v11841, %v12338
    %v12340 = vsel %vm9745, %v11845, %v12339
    %v12341 = vsel %vm9747, %v11849, %v12340
    %v12342 = vsel %vm9749, %v11853, %v12341
    %v12343 = vsel %vm9751, %v11857, %v12342
    %v12344 = vsel %vm9739, %v11865, %v11861
    %v12345 = vsel %vm9741, %v11869, %v12344
    %v12346 = vsel %vm9743, %v11873, %v12345
    %v12347 = vsel %vm9745, %v11877, %v12346
    %v12348 = vsel %vm9747, %v11881, %v12347
    %v12349 = vsel %vm9749, %v11885, %v12348
    %v12350 = vsel %vm9751, %v11889, %v12349
    %v12351 = vsel %vm9739, %v11897, %v11893
    %v12352 = vsel %vm9741, %v11901, %v12351
    %v12353 = vsel %vm9743, %v11905, %v12352
    %v12354 = vsel %vm9745, %v11909, %v12353
    %v12355 = vsel %vm9747, %v11913, %v12354
    %v12356 = vsel %vm9749, %v11917, %v12355
    %v12357 = vsel %vm9751, %v11921, %v12356
    %v12358 = vsel %vm9739, %v11929, %v11925
    %v12359 = vsel %vm9741, %v11933, %v12358
    %v12360 = vsel %vm9743, %v11937, %v12359
    %v12361 = vsel %vm9745, %v11941, %v12360
    %v12362 = vsel %vm9747, %v11945, %v12361
    %v12363 = vsel %vm9749, %v11949, %v12362
    %v12364 = vsel %vm9751, %v11953, %v12363
    %v12365 = vsel %vm9739, %v11961, %v11957
    %v12366 = vsel %vm9741, %v11965, %v12365
    %v12367 = vsel %vm9743, %v11969, %v12366
    %v12368 = vsel %vm9745, %v11973, %v12367
    %v12369 = vsel %vm9747, %v11977, %v12368
    %v12370 = vsel %vm9749, %v11981, %v12369
    %v12371 = vsel %vm9751, %v11985, %v12370
    %v12372 = vsel %vm9739, %v11993, %v11989
    %v12373 = vsel %vm9741, %v11997, %v12372
    %v12374 = vsel %vm9743, %v12001, %v12373
    %v12375 = vsel %vm9745, %v12005, %v12374
    %v12376 = vsel %vm9747, %v12009, %v12375
    %v12377 = vsel %vm9749, %v12013, %v12376
    %v12378 = vsel %vm9751, %v12017, %v12377
    %v12379 = vsel %vm9739, %v12025, %v12021
    %v12380 = vsel %vm9741, %v12029, %v12379
    %v12381 = vsel %vm9743, %v12033, %v12380
    %v12382 = vsel %vm9745, %v12037, %v12381
    %v12383 = vsel %vm9747, %v12041, %v12382
    %v12384 = vsel %vm9749, %v12045, %v12383
    %v12385 = vsel %vm9751, %v12049, %v12384
    %v12434 = vsel %vm7434, %v9752, %v12056
    %v12435 = vsel %vm7434, %v9759, %v12063
    %v12436 = vsel %vm7434, %v9766, %v12070
    %v12437 = vsel %vm7434, %v9773, %v12077
    %v12438 = vsel %vm7434, %v9780, %v12084
    %v12439 = vsel %vm7434, %v9787, %v12091
    %v12440 = vsel %vm7434, %v9794, %v12098
    %v12441 = vsel %vm7434, %v9801, %v12105
    %v12442 = vsel %vm7434, %v9808, %v12112
    %v12443 = vsel %vm7434, %v9815, %v12119
    %v12444 = vsel %vm7434, %v9822, %v12126
    %v12445 = vsel %vm7434, %v9829, %v12133
    %v12446 = vsel %vm7434, %v9836, %v12140
    %v12447 = vsel %vm7434, %v9843, %v12147
    %v12448 = vsel %vm7434, %v9850, %v12154
    %v12449 = vsel %vm7434, %v9857, %v12161
    %v12450 = vsel %vm7434, %v9864, %v12168
    %v12451 = vsel %vm7434, %v9871, %v12175
    %v12452 = vsel %vm7434, %v9878, %v12182
    %v12453 = vsel %vm7434, %v9885, %v12189
    %v12454 = vsel %vm7434, %v9892, %v12196
    %v12455 = vsel %vm7434, %v9899, %v12203
    %v12456 = vsel %vm7434, %v9906, %v12210
    %v12457 = vsel %vm7434, %v9913, %v12217
    %v12458 = vsel %vm7434, %v9920, %v12224
    %v12459 = vsel %vm7434, %v9927, %v12231
    %v12460 = vsel %vm7434, %v9934, %v12238
    %v12461 = vsel %vm7434, %v9941, %v12245
    %v12462 = vsel %vm7434, %v9948, %v12252
    %v12463 = vsel %vm7434, %v9955, %v12259
    %v12464 = vsel %vm7434, %v9962, %v12266
    %v12465 = vsel %vm7434, %v9969, %v12273
    %v12466 = vsel %vm7434, %v9976, %v12280
    %v12467 = vsel %vm7434, %v9983, %v12287
    %v12468 = vsel %vm7434, %v9990, %v12294
    %v12469 = vsel %vm7434, %v9997, %v12301
    %v12470 = vsel %vm7434, %v10004, %v12308
    %v12471 = vsel %vm7434, %v10011, %v12315
    %v12472 = vsel %vm7434, %v10018, %v12322
    %v12473 = vsel %vm7434, %v10025, %v12329
    %v12474 = vsel %vm7434, %v10032, %v12336
    %v12475 = vsel %vm7434, %v10039, %v12343
    %v12476 = vsel %vm7434, %v10046, %v12350
    %v12477 = vsel %vm7434, %v10053, %v12357
    %v12478 = vsel %vm7434, %v10060, %v12364
    %v12479 = vsel %vm7434, %v10067, %v12371
    %v12480 = vsel %vm7434, %v10074, %v12378
    %v12481 = vsel %vm7434, %v10081, %v12385
    %v12482 = vsub.f32 0.0, %v12434
    %v12483 = vsub.f32 0.0, %v12435
    %v12484 = vsub.f32 0.0, %v12436
    %v12485 = vsub.f32 0.0, %v12437
    %v12486 = vsub.f32 0.0, %v12438
    %v12487 = vsub.f32 0.0, %v12439
    %v12488 = vsub.f32 0.0, %v12440
    %v12489 = vsub.f32 0.0, %v12441
    %v12490 = vsub.f32 0.0, %v12442
    %v12491 = vsub.f32 0.0, %v12443
    %v12492 = vsub.f32 0.0, %v12444
    %v12493 = vsub.f32 0.0, %v12445
    %v12494 = vsub.f32 0.0, %v12446
    %v12495 = vsub.f32 0.0, %v12447
    %v12496 = vsub.f32 0.0, %v12448
    %v12497 = vsub.f32 0.0, %v12449
    %v12498 = vsub.f32 0.0, %v12450
    %v12499 = vsub.f32 0.0, %v12451
    %v12500 = vsub.f32 0.0, %v12452
    %v12501 = vsub.f32 0.0, %v12453
    %v12502 = vsub.f32 0.0, %v12454
    %v12503 = vsub.f32 0.0, %v12455
    %v12504 = vsub.f32 0.0, %v12456
    %v12505 = vsub.f32 0.0, %v12457
    %v12506 = vsub.f32 0.0, %v12458
    %v12507 = vsub.f32 0.0, %v12459
    %v12508 = vsub.f32 0.0, %v12460
    %v12509 = vsub.f32 0.0, %v12461
    %v12510 = vsub.f32 0.0, %v12462
    %v12511 = vsub.f32 0.0, %v12463
    %v12512 = vsub.f32 0.0, %v12464
    %v12513 = vsub.f32 0.0, %v12465
    %v12514 = vsub.f32 0.0, %v12466
    %v12515 = vsub.f32 0.0, %v12467
    %v12516 = vsub.f32 0.0, %v12468
    %v12517 = vsub.f32 0.0, %v12469
    %v12518 = vsub.f32 0.0, %v12470
    %v12519 = vsub.f32 0.0, %v12471
    %v12520 = vsub.f32 0.0, %v12472
    %v12521 = vsub.f32 0.0, %v12473
    %v12522 = vsub.f32 0.0, %v12474
    %v12523 = vsub.f32 0.0, %v12475
    %v12524 = vsub.f32 0.0, %v12476
    %v12525 = vsub.f32 0.0, %v12477
    %v12526 = vsub.f32 0.0, %v12478
    %v12527 = vsub.f32 0.0, %v12479
    %v12528 = vsub.f32 0.0, %v12480
    %v12529 = vsub.f32 0.0, %v12481
    %v12530 = vmul.f32 %v12482, 1.442695
    %v12531 = vpow.pop %v12530
    %v12532 = vmul.f32 %v12483, 1.442695
    %v12533 = vpow.pop %v12532
    %v12534 = vmul.f32 %v12484, 1.442695
    %v12535 = vpow.pop %v12534
    %v12536 = vmul.f32 %v12485, 1.442695
    %v12537 = vpow.pop %v12536
    %v12538 = vmul.f32 %v12486, 1.442695
    %v12539 = vpow.pop %v12538
    %v12540 = vmul.f32 %v12487, 1.442695
    %v12541 = vpow.pop %v12540
    %v12542 = vmul.f32 %v12488, 1.442695
    %v12543 = vpow.pop %v12542
    %v12544 = vmul.f32 %v12489, 1.442695
    %v12545 = vpow.pop %v12544
    %v12546 = vmul.f32 %v12490, 1.442695
    %v12547 = vpow.pop %v12546
    %v12548 = vmul.f32 %v12491, 1.442695
    %v12549 = vpow.pop %v12548
    %v12550 = vmul.f32 %v12492, 1.442695
    %v12551 = vpow.pop %v12550
    %v12552 = vmul.f32 %v12493, 1.442695
    %v12553 = vpow.pop %v12552
    %v12554 = vmul.f32 %v12494, 1.442695
    %v12555 = vpow.pop %v12554
    %v12556 = vmul.f32 %v12495, 1.442695
    %v12557 = vpow.pop %v12556
    %v12558 = vmul.f32 %v12496, 1.442695
    %v12559 = vpow.pop %v12558
    %v12560 = vmul.f32 %v12497, 1.442695
    %v12561 = vpow.pop %v12560
    %v12562 = vmul.f32 %v12498, 1.442695
    %v12563 = vpow.pop %v12562
    %v12564 = vmul.f32 %v12499, 1.442695
    %v12565 = vpow.pop %v12564
    %v12566 = vmul.f32 %v12500, 1.442695
    %v12567 = vpow.pop %v12566
    %v12568 = vmul.f32 %v12501, 1.442695
    %v12569 = vpow.pop %v12568
    %v12570 = vmul.f32 %v12502, 1.442695
    %v12571 = vpow.pop %v12570
    %v12572 = vmul.f32 %v12503, 1.442695
    %v12573 = vpow.pop %v12572
    %v12574 = vmul.f32 %v12504, 1.442695
    %v12575 = vpow.pop %v12574
    %v12576 = vmul.f32 %v12505, 1.442695
    %v12577 = vpow.pop %v12576
    %v12578 = vmul.f32 %v12506, 1.442695
    %v12579 = vpow.pop %v12578
    %v12580 = vmul.f32 %v12507, 1.442695
    %v12581 = vpow.pop %v12580
    %v12582 = vmul.f32 %v12508, 1.442695
    %v12583 = vpow.pop %v12582
    %v12584 = vmul.f32 %v12509, 1.442695
    %v12585 = vpow.pop %v12584
    %v12586 = vmul.f32 %v12510, 1.442695
    %v12587 = vpow.pop %v12586
    %v12588 = vmul.f32 %v12511, 1.442695
    %v12589 = vpow.pop %v12588
    %v12590 = vmul.f32 %v12512, 1.442695
    %v12591 = vpow.pop %v12590
    %v12592 = vmul.f32 %v12513, 1.442695
    %v12593 = vpow.pop %v12592
    %v12594 = vmul.f32 %v12514, 1.442695
    %v12595 = vpow.pop %v12594
    %v12596 = vmul.f32 %v12515, 1.442695
    %v12597 = vpow.pop %v12596
    %v12598 = vmul.f32 %v12516, 1.442695
    %v12599 = vpow.pop %v12598
    %v12600 = vmul.f32 %v12517, 1.442695
    %v12601 = vpow.pop %v12600
    %v12602 = vmul.f32 %v12518, 1.442695
    %v12603 = vpow.pop %v12602
    %v12604 = vmul.f32 %v12519, 1.442695
    %v12605 = vpow.pop %v12604
    %v12606 = vmul.f32 %v12520, 1.442695
    %v12607 = vpow.pop %v12606
    %v12608 = vmul.f32 %v12521, 1.442695
    %v12609 = vpow.pop %v12608
    %v12610 = vmul.f32 %v12522, 1.442695
    %v12611 = vpow.pop %v12610
    %v12612 = vmul.f32 %v12523, 1.442695
    %v12613 = vpow.pop %v12612
    %v12614 = vmul.f32 %v12524, 1.442695
    %v12615 = vpow.pop %v12614
    %v12616 = vmul.f32 %v12525, 1.442695
    %v12617 = vpow.pop %v12616
    %v12618 = vmul.f32 %v12526, 1.442695
    %v12619 = vpow.pop %v12618
    %v12620 = vmul.f32 %v12527, 1.442695
    %v12621 = vpow.pop %v12620
    %v12622 = vmul.f32 %v12528, 1.442695
    %v12623 = vpow.pop %v12622
    %v12624 = vmul.f32 %v12529, 1.442695
    %v12625 = vpow.pop %v12624
    %v12626 = vadd.f32 %v12531, 1.0
    %v12627 = vlog2.pop %v12626
    %v12628 = vmul.f32 %v12627, 0.6931472
    %v12629 = vmul.f32 -0.5, %v12531
    %v12630 = vadd.f32 %v12629, 1.0
    %v12631 = vmul.f32 %v12630, %v12531
    %v12632 = vand.u32 2147483647, %v12531
    %vm12633 = vcmp.lt.f32.partialorder %v12632, 0.0004427343
    %v12634 = vsel %vm12633, %v12631, %v12628
    %v12635 = vadd.f32 %v12533, 1.0
    %v12636 = vlog2.pop %v12635
    %v12637 = vmul.f32 %v12636, 0.6931472
    %v12638 = vmul.f32 -0.5, %v12533
    %v12639 = vadd.f32 %v12638, 1.0
    %v12640 = vmul.f32 %v12639, %v12533
    %v12641 = vand.u32 2147483647, %v12533
    %vm12642 = vcmp.lt.f32.partialorder %v12641, 0.0004427343
    %v12643 = vsel %vm12642, %v12640, %v12637
    %v12644 = vadd.f32 %v12535, 1.0
    %v12645 = vlog2.pop %v12644
    %v12646 = vmul.f32 %v12645, 0.6931472
    %v12647 = vmul.f32 -0.5, %v12535
    %v12648 = vadd.f32 %v12647, 1.0
    %v12649 = vmul.f32 %v12648, %v12535
    %v12650 = vand.u32 2147483647, %v12535
    %vm12651 = vcmp.lt.f32.partialorder %v12650, 0.0004427343
    %v12652 = vsel %vm12651, %v12649, %v12646
    %v12653 = vadd.f32 %v12537, 1.0
    %v12654 = vlog2.pop %v12653
    %v12655 = vmul.f32 %v12654, 0.6931472
    %v12656 = vmul.f32 -0.5, %v12537
    %v12657 = vadd.f32 %v12656, 1.0
    %v12658 = vmul.f32 %v12657, %v12537
    %v12659 = vand.u32 2147483647, %v12537
    %vm12660 = vcmp.lt.f32.partialorder %v12659, 0.0004427343
    %v12661 = vsel %vm12660, %v12658, %v12655
    %v12662 = vadd.f32 %v12539, 1.0
    %v12663 = vlog2.pop %v12662
    %v12664 = vmul.f32 %v12663, 0.6931472
    %v12665 = vmul.f32 -0.5, %v12539
    %v12666 = vadd.f32 %v12665, 1.0
    %v12667 = vmul.f32 %v12666, %v12539
    %v12668 = vand.u32 2147483647, %v12539
    %vm12669 = vcmp.lt.f32.partialorder %v12668, 0.0004427343
    %v12670 = vsel %vm12669, %v12667, %v12664
    %v12671 = vadd.f32 %v12541, 1.0
    %v12672 = vlog2.pop %v12671
    %v12673 = vmul.f32 %v12672, 0.6931472
    %v12674 = vmul.f32 -0.5, %v12541
    %v12675 = vadd.f32 %v12674, 1.0
    %v12676 = vmul.f32 %v12675, %v12541
    %v12677 = vand.u32 2147483647, %v12541
    %vm12678 = vcmp.lt.f32.partialorder %v12677, 0.0004427343
    %v12679 = vsel %vm12678, %v12676, %v12673
    %v12680 = vadd.f32 %v12543, 1.0
    %v12681 = vlog2.pop %v12680
    %v12682 = vmul.f32 %v12681, 0.6931472
    %v12683 = vmul.f32 -0.5, %v12543
    %v12684 = vadd.f32 %v12683, 1.0
    %v12685 = vmul.f32 %v12684, %v12543
    %v12686 = vand.u32 2147483647, %v12543
    %vm12687 = vcmp.lt.f32.partialorder %v12686, 0.0004427343
    %v12688 = vsel %vm12687, %v12685, %v12682
    %v12689 = vadd.f32 %v12545, 1.0
    %v12690 = vlog2.pop %v12689
    %v12691 = vmul.f32 %v12690, 0.6931472
    %v12692 = vmul.f32 -0.5, %v12545
    %v12693 = vadd.f32 %v12692, 1.0
    %v12694 = vmul.f32 %v12693, %v12545
    %v12695 = vand.u32 2147483647, %v12545
    %vm12696 = vcmp.lt.f32.partialorder %v12695, 0.0004427343
    %v12697 = vsel %vm12696, %v12694, %v12691
    %v12698 = vadd.f32 %v12547, 1.0
    %v12699 = vlog2.pop %v12698
    %v12700 = vmul.f32 %v12699, 0.6931472
    %v12701 = vmul.f32 -0.5, %v12547
    %v12702 = vadd.f32 %v12701, 1.0
    %v12703 = vmul.f32 %v12702, %v12547
    %v12704 = vand.u32 2147483647, %v12547
    %vm12705 = vcmp.lt.f32.partialorder %v12704, 0.0004427343
    %v12706 = vsel %vm12705, %v12703, %v12700
    %v12707 = vadd.f32 %v12549, 1.0
    %v12708 = vlog2.pop %v12707
    %v12709 = vmul.f32 %v12708, 0.6931472
    %v12710 = vmul.f32 -0.5, %v12549
    %v12711 = vadd.f32 %v12710, 1.0
    %v12712 = vmul.f32 %v12711, %v12549
    %v12713 = vand.u32 2147483647, %v12549
    %vm12714 = vcmp.lt.f32.partialorder %v12713, 0.0004427343
    %v12715 = vsel %vm12714, %v12712, %v12709
    %v12716 = vadd.f32 %v12551, 1.0
    %v12717 = vlog2.pop %v12716
    %v12718 = vmul.f32 %v12717, 0.6931472
    %v12719 = vmul.f32 -0.5, %v12551
    %v12720 = vadd.f32 %v12719, 1.0
    %v12721 = vmul.f32 %v12720, %v12551
    %v12722 = vand.u32 2147483647, %v12551
    %vm12723 = vcmp.lt.f32.partialorder %v12722, 0.0004427343
    %v12724 = vsel %vm12723, %v12721, %v12718
    %v12725 = vadd.f32 %v12553, 1.0
    %v12726 = vlog2.pop %v12725
    %v12727 = vmul.f32 %v12726, 0.6931472
    %v12728 = vmul.f32 -0.5, %v12553
    %v12729 = vadd.f32 %v12728, 1.0
    %v12730 = vmul.f32 %v12729, %v12553
    %v12731 = vand.u32 2147483647, %v12553
    %vm12732 = vcmp.lt.f32.partialorder %v12731, 0.0004427343
    %v12733 = vsel %vm12732, %v12730, %v12727
    %v12734 = vadd.f32 %v12555, 1.0
    %v12735 = vlog2.pop %v12734
    %v12736 = vmul.f32 %v12735, 0.6931472
    %v12737 = vmul.f32 -0.5, %v12555
    %v12738 = vadd.f32 %v12737, 1.0
    %v12739 = vmul.f32 %v12738, %v12555
    %v12740 = vand.u32 2147483647, %v12555
    %vm12741 = vcmp.lt.f32.partialorder %v12740, 0.0004427343
    %v12742 = vsel %vm12741, %v12739, %v12736
    %v12743 = vadd.f32 %v12557, 1.0
    %v12744 = vlog2.pop %v12743
    %v12745 = vmul.f32 %v12744, 0.6931472
    %v12746 = vmul.f32 -0.5, %v12557
    %v12747 = vadd.f32 %v12746, 1.0
    %v12748 = vmul.f32 %v12747, %v12557
    %v12749 = vand.u32 2147483647, %v12557
    %vm12750 = vcmp.lt.f32.partialorder %v12749, 0.0004427343
    %v12751 = vsel %vm12750, %v12748, %v12745
    %v12752 = vadd.f32 %v12559, 1.0
    %v12753 = vlog2.pop %v12752
    %v12754 = vmul.f32 %v12753, 0.6931472
    %v12755 = vmul.f32 -0.5, %v12559
    %v12756 = vadd.f32 %v12755, 1.0
    %v12757 = vmul.f32 %v12756, %v12559
    %v12758 = vand.u32 2147483647, %v12559
    %vm12759 = vcmp.lt.f32.partialorder %v12758, 0.0004427343
    %v12760 = vsel %vm12759, %v12757, %v12754
    %v12761 = vadd.f32 %v12561, 1.0
    %v12762 = vlog2.pop %v12761
    %v12763 = vmul.f32 %v12762, 0.6931472
    %v12764 = vmul.f32 -0.5, %v12561
    %v12765 = vadd.f32 %v12764, 1.0
    %v12766 = vmul.f32 %v12765, %v12561
    %v12767 = vand.u32 2147483647, %v12561
    %vm12768 = vcmp.lt.f32.partialorder %v12767, 0.0004427343
    %v12769 = vsel %vm12768, %v12766, %v12763
    %v12770 = vadd.f32 %v12563, 1.0
    %v12771 = vlog2.pop %v12770
    %v12772 = vmul.f32 %v12771, 0.6931472
    %v12773 = vmul.f32 -0.5, %v12563
    %v12774 = vadd.f32 %v12773, 1.0
    %v12775 = vmul.f32 %v12774, %v12563
    %v12776 = vand.u32 2147483647, %v12563
    %vm12777 = vcmp.lt.f32.partialorder %v12776, 0.0004427343
    %v12778 = vsel %vm12777, %v12775, %v12772
    %v12779 = vadd.f32 %v12565, 1.0
    %v12780 = vlog2.pop %v12779
    %v12781 = vmul.f32 %v12780, 0.6931472
    %v12782 = vmul.f32 -0.5, %v12565
    %v12783 = vadd.f32 %v12782, 1.0
    %v12784 = vmul.f32 %v12783, %v12565
    %v12785 = vand.u32 2147483647, %v12565
    %vm12786 = vcmp.lt.f32.partialorder %v12785, 0.0004427343
    %v12787 = vsel %vm12786, %v12784, %v12781
    %v12788 = vadd.f32 %v12567, 1.0
    %v12789 = vlog2.pop %v12788
    %v12790 = vmul.f32 %v12789, 0.6931472
    %v12791 = vmul.f32 -0.5, %v12567
    %v12792 = vadd.f32 %v12791, 1.0
    %v12793 = vmul.f32 %v12792, %v12567
    %v12794 = vand.u32 2147483647, %v12567
    %vm12795 = vcmp.lt.f32.partialorder %v12794, 0.0004427343
    %v12796 = vsel %vm12795, %v12793, %v12790
    %v12797 = vadd.f32 %v12569, 1.0
    %v12798 = vlog2.pop %v12797
    %v12799 = vmul.f32 %v12798, 0.6931472
    %v12800 = vmul.f32 -0.5, %v12569
    %v12801 = vadd.f32 %v12800, 1.0
    %v12802 = vmul.f32 %v12801, %v12569
    %v12803 = vand.u32 2147483647, %v12569
    %vm12804 = vcmp.lt.f32.partialorder %v12803, 0.0004427343
    %v12805 = vsel %vm12804, %v12802, %v12799
    %v12806 = vadd.f32 %v12571, 1.0
    %v12807 = vlog2.pop %v12806
    %v12808 = vmul.f32 %v12807, 0.6931472
    %v12809 = vmul.f32 -0.5, %v12571
    %v12810 = vadd.f32 %v12809, 1.0
    %v12811 = vmul.f32 %v12810, %v12571
    %v12812 = vand.u32 2147483647, %v12571
    %vm12813 = vcmp.lt.f32.partialorder %v12812, 0.0004427343
    %v12814 = vsel %vm12813, %v12811, %v12808
    %v12815 = vadd.f32 %v12573, 1.0
    %v12816 = vlog2.pop %v12815
    %v12817 = vmul.f32 %v12816, 0.6931472
    %v12818 = vmul.f32 -0.5, %v12573
    %v12819 = vadd.f32 %v12818, 1.0
    %v12820 = vmul.f32 %v12819, %v12573
    %v12821 = vand.u32 2147483647, %v12573
    %vm12822 = vcmp.lt.f32.partialorder %v12821, 0.0004427343
    %v12823 = vsel %vm12822, %v12820, %v12817
    %v12824 = vadd.f32 %v12575, 1.0
    %v12825 = vlog2.pop %v12824
    %v12826 = vmul.f32 %v12825, 0.6931472
    %v12827 = vmul.f32 -0.5, %v12575
    %v12828 = vadd.f32 %v12827, 1.0
    %v12829 = vmul.f32 %v12828, %v12575
    %v12830 = vand.u32 2147483647, %v12575
    %vm12831 = vcmp.lt.f32.partialorder %v12830, 0.0004427343
    %v12832 = vsel %vm12831, %v12829, %v12826
    %v12833 = vadd.f32 %v12577, 1.0
    %v12834 = vlog2.pop %v12833
    %v12835 = vmul.f32 %v12834, 0.6931472
    %v12836 = vmul.f32 -0.5, %v12577
    %v12837 = vadd.f32 %v12836, 1.0
    %v12838 = vmul.f32 %v12837, %v12577
    %v12839 = vand.u32 2147483647, %v12577
    %vm12840 = vcmp.lt.f32.partialorder %v12839, 0.0004427343
    %v12841 = vsel %vm12840, %v12838, %v12835
    %v12842 = vadd.f32 %v12579, 1.0
    %v12843 = vlog2.pop %v12842
    %v12844 = vmul.f32 %v12843, 0.6931472
    %v12845 = vmul.f32 -0.5, %v12579
    %v12846 = vadd.f32 %v12845, 1.0
    %v12847 = vmul.f32 %v12846, %v12579
    %v12848 = vand.u32 2147483647, %v12579
    %vm12849 = vcmp.lt.f32.partialorder %v12848, 0.0004427343
    %v12850 = vsel %vm12849, %v12847, %v12844
    %v12851 = vadd.f32 %v12581, 1.0
    %v12852 = vlog2.pop %v12851
    %v12853 = vmul.f32 %v12852, 0.6931472
    %v12854 = vmul.f32 -0.5, %v12581
    %v12855 = vadd.f32 %v12854, 1.0
    %v12856 = vmul.f32 %v12855, %v12581
    %v12857 = vand.u32 2147483647, %v12581
    %vm12858 = vcmp.lt.f32.partialorder %v12857, 0.0004427343
    %v12859 = vsel %vm12858, %v12856, %v12853
    %v12860 = vadd.f32 %v12583, 1.0
    %v12861 = vlog2.pop %v12860
    %v12862 = vmul.f32 %v12861, 0.6931472
    %v12863 = vmul.f32 -0.5, %v12583
    %v12864 = vadd.f32 %v12863, 1.0
    %v12865 = vmul.f32 %v12864, %v12583
    %v12866 = vand.u32 2147483647, %v12583
    %vm12867 = vcmp.lt.f32.partialorder %v12866, 0.0004427343
    %v12868 = vsel %vm12867, %v12865, %v12862
    %v12869 = vadd.f32 %v12585, 1.0
    %v12870 = vlog2.pop %v12869
    %v12871 = vmul.f32 %v12870, 0.6931472
    %v12872 = vmul.f32 -0.5, %v12585
    %v12873 = vadd.f32 %v12872, 1.0
    %v12874 = vmul.f32 %v12873, %v12585
    %v12875 = vand.u32 2147483647, %v12585
    %vm12876 = vcmp.lt.f32.partialorder %v12875, 0.0004427343
    %v12877 = vsel %vm12876, %v12874, %v12871
    %v12878 = vadd.f32 %v12587, 1.0
    %v12879 = vlog2.pop %v12878
    %v12880 = vmul.f32 %v12879, 0.6931472
    %v12881 = vmul.f32 -0.5, %v12587
    %v12882 = vadd.f32 %v12881, 1.0
    %v12883 = vmul.f32 %v12882, %v12587
    %v12884 = vand.u32 2147483647, %v12587
    %vm12885 = vcmp.lt.f32.partialorder %v12884, 0.0004427343
    %v12886 = vsel %vm12885, %v12883, %v12880
    %v12887 = vadd.f32 %v12589, 1.0
    %v12888 = vlog2.pop %v12887
    %v12889 = vmul.f32 %v12888, 0.6931472
    %v12890 = vmul.f32 -0.5, %v12589
    %v12891 = vadd.f32 %v12890, 1.0
    %v12892 = vmul.f32 %v12891, %v12589
    %v12893 = vand.u32 2147483647, %v12589
    %vm12894 = vcmp.lt.f32.partialorder %v12893, 0.0004427343
    %v12895 = vsel %vm12894, %v12892, %v12889
    %v12896 = vadd.f32 %v12591, 1.0
    %v12897 = vlog2.pop %v12896
    %v12898 = vmul.f32 %v12897, 0.6931472
    %v12899 = vmul.f32 -0.5, %v12591
    %v12900 = vadd.f32 %v12899, 1.0
    %v12901 = vmul.f32 %v12900, %v12591
    %v12902 = vand.u32 2147483647, %v12591
    %vm12903 = vcmp.lt.f32.partialorder %v12902, 0.0004427343
    %v12904 = vsel %vm12903, %v12901, %v12898
    %v12905 = vadd.f32 %v12593, 1.0
    %v12906 = vlog2.pop %v12905
    %v12907 = vmul.f32 %v12906, 0.6931472
    %v12908 = vmul.f32 -0.5, %v12593
    %v12909 = vadd.f32 %v12908, 1.0
    %v12910 = vmul.f32 %v12909, %v12593
    %v12911 = vand.u32 2147483647, %v12593
    %vm12912 = vcmp.lt.f32.partialorder %v12911, 0.0004427343
    %v12913 = vsel %vm12912, %v12910, %v12907
    %v12914 = vadd.f32 %v12595, 1.0
    %v12915 = vlog2.pop %v12914
    %v12916 = vmul.f32 %v12915, 0.6931472
    %v12917 = vmul.f32 -0.5, %v12595
    %v12918 = vadd.f32 %v12917, 1.0
    %v12919 = vmul.f32 %v12918, %v12595
    %v12920 = vand.u32 2147483647, %v12595
    %vm12921 = vcmp.lt.f32.partialorder %v12920, 0.0004427343
    %v12922 = vsel %vm12921, %v12919, %v12916
    %v12923 = vadd.f32 %v12597, 1.0
    %v12924 = vlog2.pop %v12923
    %v12925 = vmul.f32 %v12924, 0.6931472
    %v12926 = vmul.f32 -0.5, %v12597
    %v12927 = vadd.f32 %v12926, 1.0
    %v12928 = vmul.f32 %v12927, %v12597
    %v12929 = vand.u32 2147483647, %v12597
    %vm12930 = vcmp.lt.f32.partialorder %v12929, 0.0004427343
    %v12931 = vsel %vm12930, %v12928, %v12925
    %v12932 = vadd.f32 %v12599, 1.0
    %v12933 = vlog2.pop %v12932
    %v12934 = vmul.f32 %v12933, 0.6931472
    %v12935 = vmul.f32 -0.5, %v12599
    %v12936 = vadd.f32 %v12935, 1.0
    %v12937 = vmul.f32 %v12936, %v12599
    %v12938 = vand.u32 2147483647, %v12599
    %vm12939 = vcmp.lt.f32.partialorder %v12938, 0.0004427343
    %v12940 = vsel %vm12939, %v12937, %v12934
    %v12941 = vadd.f32 %v12601, 1.0
    %v12942 = vlog2.pop %v12941
    %v12943 = vmul.f32 %v12942, 0.6931472
    %v12944 = vmul.f32 -0.5, %v12601
    %v12945 = vadd.f32 %v12944, 1.0
    %v12946 = vmul.f32 %v12945, %v12601
    %v12947 = vand.u32 2147483647, %v12601
    %vm12948 = vcmp.lt.f32.partialorder %v12947, 0.0004427343
    %v12949 = vsel %vm12948, %v12946, %v12943
    %v12950 = vadd.f32 %v12603, 1.0
    %v12951 = vlog2.pop %v12950
    %v12952 = vmul.f32 %v12951, 0.6931472
    %v12953 = vmul.f32 -0.5, %v12603
    %v12954 = vadd.f32 %v12953, 1.0
    %v12955 = vmul.f32 %v12954, %v12603
    %v12956 = vand.u32 2147483647, %v12603
    %vm12957 = vcmp.lt.f32.partialorder %v12956, 0.0004427343
    %v12958 = vsel %vm12957, %v12955, %v12952
    %v12959 = vadd.f32 %v12605, 1.0
    %v12960 = vlog2.pop %v12959
    %v12961 = vmul.f32 %v12960, 0.6931472
    %v12962 = vmul.f32 -0.5, %v12605
    %v12963 = vadd.f32 %v12962, 1.0
    %v12964 = vmul.f32 %v12963, %v12605
    %v12965 = vand.u32 2147483647, %v12605
    %vm12966 = vcmp.lt.f32.partialorder %v12965, 0.0004427343
    %v12967 = vsel %vm12966, %v12964, %v12961
    %v12968 = vadd.f32 %v12607, 1.0
    %v12969 = vlog2.pop %v12968
    %v12970 = vmul.f32 %v12969, 0.6931472
    %v12971 = vmul.f32 -0.5, %v12607
    %v12972 = vadd.f32 %v12971, 1.0
    %v12973 = vmul.f32 %v12972, %v12607
    %v12974 = vand.u32 2147483647, %v12607
    %vm12975 = vcmp.lt.f32.partialorder %v12974, 0.0004427343
    %v12976 = vsel %vm12975, %v12973, %v12970
    %v12977 = vadd.f32 %v12609, 1.0
    %v12978 = vlog2.pop %v12977
    %v12979 = vmul.f32 %v12978, 0.6931472
    %v12980 = vmul.f32 -0.5, %v12609
    %v12981 = vadd.f32 %v12980, 1.0
    %v12982 = vmul.f32 %v12981, %v12609
    %v12983 = vand.u32 2147483647, %v12609
    %vm12984 = vcmp.lt.f32.partialorder %v12983, 0.0004427343
    %v12985 = vsel %vm12984, %v12982, %v12979
    %v12986 = vadd.f32 %v12611, 1.0
    %v12987 = vlog2.pop %v12986
    %v12988 = vmul.f32 %v12987, 0.6931472
    %v12989 = vmul.f32 -0.5, %v12611
    %v12990 = vadd.f32 %v12989, 1.0
    %v12991 = vmul.f32 %v12990, %v12611
    %v12992 = vand.u32 2147483647, %v12611
    %vm12993 = vcmp.lt.f32.partialorder %v12992, 0.0004427343
    %v12994 = vsel %vm12993, %v12991, %v12988
    %v12995 = vadd.f32 %v12613, 1.0
    %v12996 = vlog2.pop %v12995
    %v12997 = vmul.f32 %v12996, 0.6931472
    %v12998 = vmul.f32 -0.5, %v12613
    %v12999 = vadd.f32 %v12998, 1.0
    %v13000 = vmul.f32 %v12999, %v12613
    %v13001 = vand.u32 2147483647, %v12613
    %vm13002 = vcmp.lt.f32.partialorder %v13001, 0.0004427343
    %v13003 = vsel %vm13002, %v13000, %v12997
    %v13004 = vadd.f32 %v12615, 1.0
    %v13005 = vlog2.pop %v13004
    %v13006 = vmul.f32 %v13005, 0.6931472
    %v13007 = vmul.f32 -0.5, %v12615
    %v13008 = vadd.f32 %v13007, 1.0
    %v13009 = vmul.f32 %v13008, %v12615
    %v13010 = vand.u32 2147483647, %v12615
    %vm13011 = vcmp.lt.f32.partialorder %v13010, 0.0004427343
    %v13012 = vsel %vm13011, %v13009, %v13006
    %v13013 = vadd.f32 %v12617, 1.0
    %v13014 = vlog2.pop %v13013
    %v13015 = vmul.f32 %v13014, 0.6931472
    %v13016 = vmul.f32 -0.5, %v12617
    %v13017 = vadd.f32 %v13016, 1.0
    %v13018 = vmul.f32 %v13017, %v12617
    %v13019 = vand.u32 2147483647, %v12617
    %vm13020 = vcmp.lt.f32.partialorder %v13019, 0.0004427343
    %v13021 = vsel %vm13020, %v13018, %v13015
    %v13022 = vadd.f32 %v12619, 1.0
    %v13023 = vlog2.pop %v13022
    %v13024 = vmul.f32 %v13023, 0.6931472
    %v13025 = vmul.f32 -0.5, %v12619
    %v13026 = vadd.f32 %v13025, 1.0
    %v13027 = vmul.f32 %v13026, %v12619
    %v13028 = vand.u32 2147483647, %v12619
    %vm13029 = vcmp.lt.f32.partialorder %v13028, 0.0004427343
    %v13030 = vsel %vm13029, %v13027, %v13024
    %v13031 = vadd.f32 %v12621, 1.0
    %v13032 = vlog2.pop %v13031
    %v13033 = vmul.f32 %v13032, 0.6931472
    %v13034 = vmul.f32 -0.5, %v12621
    %v13035 = vadd.f32 %v13034, 1.0
    %v13036 = vmul.f32 %v13035, %v12621
    %v13037 = vand.u32 2147483647, %v12621
    %vm13038 = vcmp.lt.f32.partialorder %v13037, 0.0004427343
    %v13039 = vsel %vm13038, %v13036, %v13033
    %v13040 = vadd.f32 %v12623, 1.0
    %v13041 = vlog2.pop %v13040
    %v13042 = vmul.f32 %v13041, 0.6931472
    %v13043 = vmul.f32 -0.5, %v12623
    %v13044 = vadd.f32 %v13043, 1.0
    %v13045 = vmul.f32 %v13044, %v12623
    %v13046 = vand.u32 2147483647, %v12623
    %vm13047 = vcmp.lt.f32.partialorder %v13046, 0.0004427343
    %v13048 = vsel %vm13047, %v13045, %v13042
    %v13049 = vadd.f32 %v12625, 1.0
    %v13050 = vlog2.pop %v13049
    %v13051 = vmul.f32 %v13050, 0.6931472
    %v13052 = vmul.f32 -0.5, %v12625
    %v13053 = vadd.f32 %v13052, 1.0
    %v13054 = vmul.f32 %v13053, %v12625
    %v13055 = vand.u32 2147483647, %v12625
    %vm13056 = vcmp.lt.f32.partialorder %v13055, 0.0004427343
    %v13057 = vsel %vm13056, %v13054, %v13051
    %v13058 = vsub.f32 0.0, %v12634
    %v13059 = vsub.f32 0.0, %v12643
    %v13060 = vsub.f32 0.0, %v12652
    %v13061 = vsub.f32 0.0, %v12661
    %v13062 = vsub.f32 0.0, %v12670
    %v13063 = vsub.f32 0.0, %v12679
    %v13064 = vsub.f32 0.0, %v12688
    %v13065 = vsub.f32 0.0, %v12697
    %v13066 = vsub.f32 0.0, %v12706
    %v13067 = vsub.f32 0.0, %v12715
    %v13068 = vsub.f32 0.0, %v12724
    %v13069 = vsub.f32 0.0, %v12733
    %v13070 = vsub.f32 0.0, %v12742
    %v13071 = vsub.f32 0.0, %v12751
    %v13072 = vsub.f32 0.0, %v12760
    %v13073 = vsub.f32 0.0, %v12769
    %v13074 = vsub.f32 0.0, %v12778
    %v13075 = vsub.f32 0.0, %v12787
    %v13076 = vsub.f32 0.0, %v12796
    %v13077 = vsub.f32 0.0, %v12805
    %v13078 = vsub.f32 0.0, %v12814
    %v13079 = vsub.f32 0.0, %v12823
    %v13080 = vsub.f32 0.0, %v12832
    %v13081 = vsub.f32 0.0, %v12841
    %v13082 = vsub.f32 0.0, %v12850
    %v13083 = vsub.f32 0.0, %v12859
    %v13084 = vsub.f32 0.0, %v12868
    %v13085 = vsub.f32 0.0, %v12877
    %v13086 = vsub.f32 0.0, %v12886
    %v13087 = vsub.f32 0.0, %v12895
    %v13088 = vsub.f32 0.0, %v12904
    %v13089 = vsub.f32 0.0, %v12913
    %v13090 = vsub.f32 0.0, %v12922
    %v13091 = vsub.f32 0.0, %v12931
    %v13092 = vsub.f32 0.0, %v12940
    %v13093 = vsub.f32 0.0, %v12949
    %v13094 = vsub.f32 0.0, %v12958
    %v13095 = vsub.f32 0.0, %v12967
    %v13096 = vsub.f32 0.0, %v12976
    %v13097 = vsub.f32 0.0, %v12985
    %v13098 = vsub.f32 0.0, %v12994
    %v13099 = vsub.f32 0.0, %v13003
    %v13100 = vsub.f32 0.0, %v13012
    %v13101 = vsub.f32 0.0, %v13021
    %v13102 = vsub.f32 0.0, %v13030
    %v13103 = vsub.f32 0.0, %v13039
    %v13104 = vsub.f32 0.0, %v13048
    %v13105 = vsub.f32 0.0, %v13057
    %v13106 = vsub.f32 0.0, %v13058
    %v13107 = vsub.f32 0.0, %v13059
    %v13108 = vsub.f32 0.0, %v13060
    %v13109 = vsub.f32 0.0, %v13061
    %v13110 = vsub.f32 0.0, %v13062
    %v13111 = vsub.f32 0.0, %v13063
    %v13112 = vsub.f32 0.0, %v13064
    %v13113 = vsub.f32 0.0, %v13065
    %v13114 = vsub.f32 0.0, %v13066
    %v13115 = vsub.f32 0.0, %v13067
    %v13116 = vsub.f32 0.0, %v13068
    %v13117 = vsub.f32 0.0, %v13069
    %v13118 = vsub.f32 0.0, %v13070
    %v13119 = vsub.f32 0.0, %v13071
    %v13120 = vsub.f32 0.0, %v13072
    %v13121 = vsub.f32 0.0, %v13073
    %v13122 = vsub.f32 0.0, %v13074
    %v13123 = vsub.f32 0.0, %v13075
    %v13124 = vsub.f32 0.0, %v13076
    %v13125 = vsub.f32 0.0, %v13077
    %v13126 = vsub.f32 0.0, %v13078
    %v13127 = vsub.f32 0.0, %v13079
    %v13128 = vsub.f32 0.0, %v13080
    %v13129 = vsub.f32 0.0, %v13081
    %v13130 = vsub.f32 0.0, %v13082
    %v13131 = vsub.f32 0.0, %v13083
    %v13132 = vsub.f32 0.0, %v13084
    %v13133 = vsub.f32 0.0, %v13085
    %v13134 = vsub.f32 0.0, %v13086
    %v13135 = vsub.f32 0.0, %v13087
    %v13136 = vsub.f32 0.0, %v13088
    %v13137 = vsub.f32 0.0, %v13089
    %v13138 = vsub.f32 0.0, %v13090
    %v13139 = vsub.f32 0.0, %v13091
    %v13140 = vsub.f32 0.0, %v13092
    %v13141 = vsub.f32 0.0, %v13093
    %v13142 = vsub.f32 0.0, %v13094
    %v13143 = vsub.f32 0.0, %v13095
    %v13144 = vsub.f32 0.0, %v13096
    %v13145 = vsub.f32 0.0, %v13097
    %v13146 = vsub.f32 0.0, %v13098
    %v13147 = vsub.f32 0.0, %v13099
    %v13148 = vsub.f32 0.0, %v13100
    %v13149 = vsub.f32 0.0, %v13101
    %v13150 = vsub.f32 0.0, %v13102
    %v13151 = vsub.f32 0.0, %v13103
    %v13152 = vsub.f32 0.0, %v13104
    %v13153 = vsub.f32 0.0, %v13105
    %vm13154 = vcmask 56320
    %v13155 = vsel %vm13154, %v13106, 0.0
    %13156 = vadd.xlane.f32.xlu0 %v13155
    %v13157 = vpop.xlane.xlu0 %13156
    %v13158 = vsel %vm13154, %v13107, 0.0
    %13159 = vadd.xlane.f32.xlu0 %v13158
    %v13160 = vpop.xlane.xlu0 %13159
    %v13161 = vsel %vm13154, %v13108, 0.0
    %13162 = vadd.xlane.f32.xlu0 %v13161
    %v13163 = vpop.xlane.xlu0 %13162
    %v13164 = vsel %vm13154, %v13109, 0.0
    %13165 = vadd.xlane.f32.xlu0 %v13164
    %v13166 = vpop.xlane.xlu0 %13165
    %v13167 = vsel %vm13154, %v13110, 0.0
    %13168 = vadd.xlane.f32.xlu0 %v13167
    %v13169 = vpop.xlane.xlu0 %13168
    %v13170 = vsel %vm13154, %v13111, 0.0
    %13171 = vadd.xlane.f32.xlu0 %v13170
    %v13172 = vpop.xlane.xlu0 %13171
    %v13173 = vsel %vm13154, %v13112, 0.0
    %13174 = vadd.xlane.f32.xlu0 %v13173
    %v13175 = vpop.xlane.xlu0 %13174
    %v13176 = vsel %vm13154, %v13113, 0.0
    %13177 = vadd.xlane.f32.xlu0 %v13176
    %v13178 = vpop.xlane.xlu0 %13177
    %v13179 = vsel %vm13154, %v13114, 0.0
    %13180 = vadd.xlane.f32.xlu0 %v13179
    %v13181 = vpop.xlane.xlu0 %13180
    %v13182 = vsel %vm13154, %v13115, 0.0
    %13183 = vadd.xlane.f32.xlu0 %v13182
    %v13184 = vpop.xlane.xlu0 %13183
    %v13185 = vsel %vm13154, %v13116, 0.0
    %13186 = vadd.xlane.f32.xlu0 %v13185
    %v13187 = vpop.xlane.xlu0 %13186
    %v13188 = vsel %vm13154, %v13117, 0.0
    %13189 = vadd.xlane.f32.xlu0 %v13188
    %v13190 = vpop.xlane.xlu0 %13189
    %v13191 = vsel %vm13154, %v13118, 0.0
    %13192 = vadd.xlane.f32.xlu0 %v13191
    %v13193 = vpop.xlane.xlu0 %13192
    %v13194 = vsel %vm13154, %v13119, 0.0
    %13195 = vadd.xlane.f32.xlu0 %v13194
    %v13196 = vpop.xlane.xlu0 %13195
    %v13197 = vsel %vm13154, %v13120, 0.0
    %13198 = vadd.xlane.f32.xlu0 %v13197
    %v13199 = vpop.xlane.xlu0 %13198
    %v13200 = vsel %vm13154, %v13121, 0.0
    %13201 = vadd.xlane.f32.xlu0 %v13200
    %v13202 = vpop.xlane.xlu0 %13201
    %v13203 = vsel %vm13154, %v13122, 0.0
    %13204 = vadd.xlane.f32.xlu0 %v13203
    %v13205 = vpop.xlane.xlu0 %13204
    %v13206 = vsel %vm13154, %v13123, 0.0
    %13207 = vadd.xlane.f32.xlu0 %v13206
    %v13208 = vpop.xlane.xlu0 %13207
    %v13209 = vsel %vm13154, %v13124, 0.0
    %13210 = vadd.xlane.f32.xlu0 %v13209
    %v13211 = vpop.xlane.xlu0 %13210
    %v13212 = vsel %vm13154, %v13125, 0.0
    %13213 = vadd.xlane.f32.xlu0 %v13212
    %v13214 = vpop.xlane.xlu0 %13213
    %v13215 = vsel %vm13154, %v13126, 0.0
    %13216 = vadd.xlane.f32.xlu0 %v13215
    %v13217 = vpop.xlane.xlu0 %13216
    %v13218 = vsel %vm13154, %v13127, 0.0
    %13219 = vadd.xlane.f32.xlu0 %v13218
    %v13220 = vpop.xlane.xlu0 %13219
    %v13221 = vsel %vm13154, %v13128, 0.0
    %13222 = vadd.xlane.f32.xlu0 %v13221
    %v13223 = vpop.xlane.xlu0 %13222
    %v13224 = vsel %vm13154, %v13129, 0.0
    %13225 = vadd.xlane.f32.xlu0 %v13224
    %v13226 = vpop.xlane.xlu0 %13225
    %v13227 = vsel %vm13154, %v13130, 0.0
    %13228 = vadd.xlane.f32.xlu0 %v13227
    %v13229 = vpop.xlane.xlu0 %13228
    %v13230 = vsel %vm13154, %v13131, 0.0
    %13231 = vadd.xlane.f32.xlu0 %v13230
    %v13232 = vpop.xlane.xlu0 %13231
    %v13233 = vsel %vm13154, %v13132, 0.0
    %13234 = vadd.xlane.f32.xlu0 %v13233
    %v13235 = vpop.xlane.xlu0 %13234
    %v13236 = vsel %vm13154, %v13133, 0.0
    %13237 = vadd.xlane.f32.xlu0 %v13236
    %v13238 = vpop.xlane.xlu0 %13237
    %v13239 = vsel %vm13154, %v13134, 0.0
    %13240 = vadd.xlane.f32.xlu0 %v13239
    %v13241 = vpop.xlane.xlu0 %13240
    %v13242 = vsel %vm13154, %v13135, 0.0
    %13243 = vadd.xlane.f32.xlu0 %v13242
    %v13244 = vpop.xlane.xlu0 %13243
    %v13245 = vsel %vm13154, %v13136, 0.0
    %13246 = vadd.xlane.f32.xlu0 %v13245
    %v13247 = vpop.xlane.xlu0 %13246
    %v13248 = vsel %vm13154, %v13137, 0.0
    %13249 = vadd.xlane.f32.xlu0 %v13248
    %v13250 = vpop.xlane.xlu0 %13249
    %v13251 = vsel %vm13154, %v13138, 0.0
    %13252 = vadd.xlane.f32.xlu0 %v13251
    %v13253 = vpop.xlane.xlu0 %13252
    %v13254 = vsel %vm13154, %v13139, 0.0
    %13255 = vadd.xlane.f32.xlu0 %v13254
    %v13256 = vpop.xlane.xlu0 %13255
    %v13257 = vsel %vm13154, %v13140, 0.0
    %13258 = vadd.xlane.f32.xlu0 %v13257
    %v13259 = vpop.xlane.xlu0 %13258
    %v13260 = vsel %vm13154, %v13141, 0.0
    %13261 = vadd.xlane.f32.xlu0 %v13260
    %v13262 = vpop.xlane.xlu0 %13261
    %v13263 = vsel %vm13154, %v13142, 0.0
    %13264 = vadd.xlane.f32.xlu0 %v13263
    %v13265 = vpop.xlane.xlu0 %13264
    %v13266 = vsel %vm13154, %v13143, 0.0
    %13267 = vadd.xlane.f32.xlu0 %v13266
    %v13268 = vpop.xlane.xlu0 %13267
    %v13269 = vsel %vm13154, %v13144, 0.0
    %13270 = vadd.xlane.f32.xlu0 %v13269
    %v13271 = vpop.xlane.xlu0 %13270
    %v13272 = vsel %vm13154, %v13145, 0.0
    %13273 = vadd.xlane.f32.xlu0 %v13272
    %v13274 = vpop.xlane.xlu0 %13273
    %v13275 = vsel %vm13154, %v13146, 0.0
    %13276 = vadd.xlane.f32.xlu0 %v13275
    %v13277 = vpop.xlane.xlu0 %13276
    %v13278 = vsel %vm13154, %v13147, 0.0
    %13279 = vadd.xlane.f32.xlu0 %v13278
    %v13280 = vpop.xlane.xlu0 %13279
    %v13281 = vsel %vm13154, %v13148, 0.0
    %13282 = vadd.xlane.f32.xlu0 %v13281
    %v13283 = vpop.xlane.xlu0 %13282
    %v13284 = vsel %vm13154, %v13149, 0.0
    %13285 = vadd.xlane.f32.xlu0 %v13284
    %v13286 = vpop.xlane.xlu0 %13285
    %v13287 = vsel %vm13154, %v13150, 0.0
    %13288 = vadd.xlane.f32.xlu0 %v13287
    %v13289 = vpop.xlane.xlu0 %13288
    %v13290 = vsel %vm13154, %v13151, 0.0
    %13291 = vadd.xlane.f32.xlu0 %v13290
    %v13292 = vpop.xlane.xlu0 %13291
    %v13293 = vsel %vm13154, %v13152, 0.0
    %13294 = vadd.xlane.f32.xlu0 %v13293
    %v13295 = vpop.xlane.xlu0 %13294
    %v13296 = vsel %vm13154, %v13153, 0.0
    %13297 = vadd.xlane.f32.xlu0 %v13296
    %v13298 = vpop.xlane.xlu0 %13297
    %v13299 = vsel %vm759, %v13157, 0.0
    %v13300 = vsel %vm760, %v13160, 0.0
    %v13301 = vsel %vm761, %v13163, 0.0
    %v13302 = vsel %vm762, %v13166, 0.0
    %v13303 = vsel %vm763, %v13169, 0.0
    %v13304 = vsel %vm764, %v13172, 0.0
    %v13305 = vsel %vm765, %v13175, 0.0
    %v13306 = vsel %vm766, %v13178, 0.0
    %v13307 = vsel %vm767, %v13181, 0.0
    %v13308 = vsel %vm768, %v13184, 0.0
    %v13309 = vsel %vm769, %v13187, 0.0
    %v13310 = vsel %vm770, %v13190, 0.0
    %v13311 = vsel %vm771, %v13193, 0.0
    %v13312 = vsel %vm772, %v13196, 0.0
    %v13313 = vsel %vm773, %v13199, 0.0
    %v13314 = vsel %vm774, %v13202, 0.0
    %v13315 = vsel %vm775, %v13205, 0.0
    %v13316 = vsel %vm776, %v13208, 0.0
    %v13317 = vsel %vm777, %v13211, 0.0
    %v13318 = vsel %vm778, %v13214, 0.0
    %v13319 = vsel %vm779, %v13217, 0.0
    %v13320 = vsel %vm780, %v13220, 0.0
    %v13321 = vsel %vm781, %v13223, 0.0
    %v13322 = vsel %vm782, %v13226, 0.0
    %v13323 = vsel %vm783, %v13229, 0.0
    %v13324 = vsel %vm784, %v13232, 0.0
    %v13325 = vsel %vm785, %v13235, 0.0
    %v13326 = vsel %vm786, %v13238, 0.0
    %v13327 = vsel %vm787, %v13241, 0.0
    %v13328 = vsel %vm788, %v13244, 0.0
    %v13329 = vsel %vm789, %v13247, 0.0
    %v13330 = vsel %vm790, %v13250, 0.0
    %v13331 = vsel %vm791, %v13253, 0.0
    %v13332 = vsel %vm792, %v13256, 0.0
    %v13333 = vsel %vm793, %v13259, 0.0
    %v13334 = vsel %vm794, %v13262, 0.0
    %v13335 = vsel %vm795, %v13265, 0.0
    %v13336 = vsel %vm796, %v13268, 0.0
    %v13337 = vsel %vm797, %v13271, 0.0
    %v13338 = vsel %vm798, %v13274, 0.0
    %v13339 = vsel %vm799, %v13277, 0.0
    %v13340 = vsel %vm800, %v13280, 0.0
    %v13341 = vsel %vm801, %v13283, 0.0
    %v13342 = vsel %vm802, %v13286, 0.0
    %v13343 = vsel %vm803, %v13289, 0.0
    %v13344 = vsel %vm804, %v13292, 0.0
    %v13345 = vsel %vm805, %v13295, 0.0
    %v13346 = vsel %vm806, %v13298, 0.0
    %v13347 = vsel %vm654, %v13299, 0.0
    %v13348 = vsel %vm654, %v13300, 0.0
    %v13349 = vadd.f32 %v13347, %v13348
    %v13350 = vsel %vm654, %v13301, 0.0
    %v13351 = vadd.f32 %v13349, %v13350
    %v13352 = vsel %vm654, %v13302, 0.0
    %v13353 = vadd.f32 %v13351, %v13352
    %v13354 = vsel %vm654, %v13303, 0.0
    %v13355 = vadd.f32 %v13353, %v13354
    %v13356 = vsel %vm654, %v13304, 0.0
    %v13357 = vadd.f32 %v13355, %v13356
    %v13358 = vsel %vm654, %v13305, 0.0
    %v13359 = vadd.f32 %v13357, %v13358
    %v13360 = vsel %vm654, %v13306, 0.0
    %v13361 = vadd.f32 %v13359, %v13360
    %v13362 = vsel %vm654, %v13307, 0.0
    %v13363 = vadd.f32 %v13361, %v13362
    %v13364 = vsel %vm654, %v13308, 0.0
    %v13365 = vadd.f32 %v13363, %v13364
    %v13366 = vsel %vm654, %v13309, 0.0
    %v13367 = vadd.f32 %v13365, %v13366
    %v13368 = vsel %vm654, %v13310, 0.0
    %v13369 = vadd.f32 %v13367, %v13368
    %v13370 = vsel %vm654, %v13311, 0.0
    %v13371 = vadd.f32 %v13369, %v13370
    %v13372 = vsel %vm654, %v13312, 0.0
    %v13373 = vadd.f32 %v13371, %v13372
    %v13374 = vsel %vm654, %v13313, 0.0
    %v13375 = vadd.f32 %v13373, %v13374
    %v13376 = vsel %vm654, %v13314, 0.0
    %v13377 = vadd.f32 %v13375, %v13376
    %v13378 = vsel %vm654, %v13315, 0.0
    %v13379 = vadd.f32 %v13377, %v13378
    %v13380 = vsel %vm654, %v13316, 0.0
    %v13381 = vadd.f32 %v13379, %v13380
    %v13382 = vsel %vm654, %v13317, 0.0
    %v13383 = vadd.f32 %v13381, %v13382
    %v13384 = vsel %vm654, %v13318, 0.0
    %v13385 = vadd.f32 %v13383, %v13384
    %v13386 = vsel %vm654, %v13319, 0.0
    %v13387 = vadd.f32 %v13385, %v13386
    %v13388 = vsel %vm654, %v13320, 0.0
    %v13389 = vadd.f32 %v13387, %v13388
    %v13390 = vsel %vm654, %v13321, 0.0
    %v13391 = vadd.f32 %v13389, %v13390
    %v13392 = vsel %vm654, %v13322, 0.0
    %v13393 = vadd.f32 %v13391, %v13392
    %v13394 = vsel %vm654, %v13323, 0.0
    %v13395 = vadd.f32 %v13393, %v13394
    %v13396 = vsel %vm654, %v13324, 0.0
    %v13397 = vadd.f32 %v13395, %v13396
    %v13398 = vsel %vm654, %v13325, 0.0
    %v13399 = vadd.f32 %v13397, %v13398
    %v13400 = vsel %vm654, %v13326, 0.0
    %v13401 = vadd.f32 %v13399, %v13400
    %v13402 = vsel %vm654, %v13327, 0.0
    %v13403 = vadd.f32 %v13401, %v13402
    %v13404 = vsel %vm654, %v13328, 0.0
    %v13405 = vadd.f32 %v13403, %v13404
    %v13406 = vsel %vm654, %v13329, 0.0
    %v13407 = vadd.f32 %v13405, %v13406
    %v13408 = vsel %vm654, %v13330, 0.0
    %v13409 = vadd.f32 %v13407, %v13408
    %v13410 = vsel %vm654, %v13331, 0.0
    %v13411 = vadd.f32 %v13409, %v13410
    %v13412 = vsel %vm654, %v13332, 0.0
    %v13413 = vadd.f32 %v13411, %v13412
    %v13414 = vsel %vm654, %v13333, 0.0
    %v13415 = vadd.f32 %v13413, %v13414
    %v13416 = vsel %vm654, %v13334, 0.0
    %v13417 = vadd.f32 %v13415, %v13416
    %v13418 = vsel %vm654, %v13335, 0.0
    %v13419 = vadd.f32 %v13417, %v13418
    %v13420 = vsel %vm654, %v13336, 0.0
    %v13421 = vadd.f32 %v13419, %v13420
    %v13422 = vsel %vm654, %v13337, 0.0
    %v13423 = vadd.f32 %v13421, %v13422
    %v13424 = vsel %vm654, %v13338, 0.0
    %v13425 = vadd.f32 %v13423, %v13424
    %v13426 = vsel %vm654, %v13339, 0.0
    %v13427 = vadd.f32 %v13425, %v13426
    %v13428 = vsel %vm654, %v13340, 0.0
    %v13429 = vadd.f32 %v13427, %v13428
    %v13430 = vsel %vm654, %v13341, 0.0
    %v13431 = vadd.f32 %v13429, %v13430
    %v13432 = vsel %vm654, %v13342, 0.0
    %v13433 = vadd.f32 %v13431, %v13432
    %v13434 = vsel %vm654, %v13343, 0.0
    %v13435 = vadd.f32 %v13433, %v13434
    %v13436 = vsel %vm654, %v13344, 0.0
    %v13437 = vadd.f32 %v13435, %v13436
    %v13438 = vsel %vm654, %v13345, 0.0
    %v13439 = vadd.f32 %v13437, %v13438
    %v13440 = vsel %vm654, %v13346, 0.0
    %v13441 = vadd.f32 %v13439, %v13440
    %13442 = vadd.xlane.f32.xlu0 %v13441
    %v13443 = vpop.xlane.xlu0 %13442
    %v13444 = vrot.slane %v13443, 4
    %v13445 = vadd.f32 %v13443, %v13444
    %v13446 = vrot.slane %v13445, 2
    %v13447 = vadd.f32 %v13445, %v13446
    %v13448 = vrot.slane %v13447, 1
    %v13449 = vadd.f32 %v13447, %v13448
    %s13450 = vtos %v13449
    %v13451 = vstv %s13450
    %13452 = vst [vmem:[#allocation3] sm:$0x1] %v13451
    // Predicated region
    $region18: #{tpu_custom_call.1} parent=1 // pred_check
      _
    $region19: #{tpu_custom_call.1} parent=1 // pred_check_branch
      %13454 = sbr.rel (0) target = $region21
    $region20: #{tpu_custom_call.1} parent=1 // pred_region
      %s13456 = ssub.s32 16, 16
      %13457 = vsyncadd [#allocation4], %s13456
      %s13459 = sshll.u32 [#allocation3], 4
      %s13460 = int_to_ptr.vmem [resolvable:$true] %s13459
      %13462 = dma.vmem_to_hbm [thread:$0]  %s13460, 16, %s4, [#allocation4]
    $region21: #{tpu_custom_call.1} parent=1 // pred_fallthru
      _
    // Predicated region
    $region22: #{tpu_custom_call.1} parent=1 // pred_check
      _
    $region23: #{tpu_custom_call.1} parent=1 // pred_check_branch
      %13464 = sbr.rel (0) target = $region25
    $region24: #{tpu_custom_call.1} parent=1 // pred_region
      _
    $region25: #{tpu_custom_call.1} parent=1 // pred_fallthru
      _
    // Predicated region
    $region26: #{tpu_custom_call.1} parent=1 // pred_check
      _
    $region27: #{tpu_custom_call.1} parent=1 // pred_check_branch
      %13466 = sbr.rel (0) target = $region29
    $region28: #{tpu_custom_call.1} parent=1 // pred_region
      %13467 = dma.done [#allocation4], 16
    $region29: #{tpu_custom_call.1} parent=1 // pred_fallthru
      _
    // Predicated region
    $region30: #{tpu_custom_call.1} parent=1 // pred_check
      _
    $region31: #{tpu_custom_call.1} parent=1 // pred_check_branch
      %13469 = sbr.rel (0) target = $region33
    $region32: #{tpu_custom_call.1} parent=1 // pred_region
      _
    $region33: #{tpu_custom_call.1} parent=1 // pred_fallthru
      _
    %13470 = vsyncpa [#allocation4], 1

</llo_original>
